<compile_context>
chip_gen: v7x
topology: tpu7x:2x2x1
jax: 0.10.0
libtpu: 0.0.40
codegen_flags: <defaults>
</compile_context>

<pallas_src>
import numpy as np

import jax
import jax.numpy as jnp
from jax.experimental import pallas as pl
from jax.experimental.pallas import tpu as pltpu


# ---------------------------------------------------------------------------
# Wrapper-side parameter preprocessing (weight-only, fused by XLA under jit).
# ---------------------------------------------------------------------------
def _std_weight(w):
    """StdConv2d weight standardization.  w: (3, 3, Cin, Cout), biased var, eps=1e-10."""
    m = jnp.mean(w, axis=(0, 1, 2), keepdims=True)
    v = jnp.mean((w - m) ** 2, axis=(0, 1, 2), keepdims=True)
    return (w - m) / jnp.sqrt(v + 1e-10)


def _toeplitz_weight(wstd, W):
    """Fold the kw(=3) taps and the width zero-padding into ONE block-Toeplitz matrix.

    Returns (3*W*Cin, W*Cout): row block dy, row (w_in*Cin + ci), col (w_out*Cout + co)
    = wstd[dy, w_in - w_out + 1, ci, co] (zero outside the 3-tap band).  The 'same'
    conv is then a single GEMM of the K-concatenated row-shifted input
    [pad[r] | pad[r+1] | pad[r+2]] against this matrix.
    """
    kh, kw, Cin, Cout = wstd.shape
    w_out = np.arange(W)
    w_in = np.arange(W)
    dx = np.arange(kw)
    # P[dx, w_out, w_in] = 1 iff w_in == w_out + dx - 1 (in-range => width padding implicit)
    P = (w_in[None, None, :] == (w_out[None, :, None] + dx[:, None, None] - 1)).astype(np.float32)
    T = jnp.einsum('xwu,yxio->yuiwo', jnp.asarray(P), wstd)        # (3, W, Cin, W, Cout)
    return T.reshape(kh * W * Cin, W * Cout)


# ---------------------------------------------------------------------------
# Fused kernel
# ---------------------------------------------------------------------------
def _make_kernel(N, cfgs, H3):
    def _iota(shape, dim):
        return jax.lax.broadcasted_iota(jnp.int32, shape, dim)

    def _conv_block(cur, pad_ref, tw_ref, aff_ref, cfg):
        Hc, Wc, Cin, Cout, G = cfg
        Hp = Hc + 2                    # per-image row stride in the height-padded buffer
        R = N * Hp
        Rm = R - 2                     # conv-GEMM rows; valid output rows are n*Hp + h
        WCin = Wc * Cin
        WC = Wc * Cout
        H2 = Hc // 2
        NH2 = N * H2
        W2C = (Wc // 2) * Cout
        cg = Cout // G

        bias_l = aff_ref[0:1, :]       # (1, WC) lane layout (w, c)
        gamma_l = aff_ref[1:2, :]
        beta_l = aff_ref[2:3, :]

        # ---- height padding into scratch: zero ONLY the 2 border rows per image ----
        zrow = jnp.zeros((1, WCin), jnp.float32)
        for n in range(N):
            pad_ref[n * Hp:n * Hp + 1, :] = zrow
            pad_ref[n * Hp + Hc + 1:n * Hp + Hc + 2, :] = zrow
            pad_ref[n * Hp + 1:n * Hp + 1 + Hc, :] = cur[n * Hc:(n + 1) * Hc, :]
        padv = pad_ref[...]

        # ---- StdConv2d (+bias): ONE fused GEMM, dy taps concatenated along K --------
        tap = jnp.concatenate([padv[0:Rm], padv[1:Rm + 1], padv[2:Rm + 2]], axis=1)
        acc = jnp.dot(tap.astype(jnp.bfloat16), tw_ref[...],
                      preferred_element_type=jnp.float32) + bias_l              # (Rm, WC)

        # ---- GroupNorm: one-pass stats + fused (scale, shift) broadcasts ------------
        # valid-row selectors for the strided padded layout (garbage rows ignored)
        off = _iota((N, Rm), 1) - _iota((N, Rm), 0) * Hp
        sel = ((off >= 0) & (off < Hc)).astype(jnp.float32)                      # (N, Rm)
        offT = _iota((Rm, N), 0) - _iota((Rm, N), 1) * Hp
        selT = ((offT >= 0) & (offT < Hc)).astype(jnp.float32)                   # (Rm, N)
        # lane (w*Cout + c) -> group (c // cg) membership, built in-kernel (zero DMA)
        c_of = jnp.bitwise_and(_iota((WC, G), 0), Cout - 1)
        g_of = _iota((WC, G), 1)
        mem = ((c_of >= g_of * cg) & (c_of < (g_of + 1) * cg)).astype(jnp.float32)     # (WC, G)
        c_ofT = jnp.bitwise_and(_iota((G, WC), 1), Cout - 1)
        g_ofT = _iota((G, WC), 0)
        memT = ((c_ofT >= g_ofT * cg) & (c_ofT < (g_ofT + 1) * cg)).astype(jnp.float32)  # (G, WC)

        cnt = float(Hc * Wc * cg)
        st = jnp.dot(sel, jnp.concatenate([acc, acc * acc], axis=1),
                     preferred_element_type=jnp.float32)                         # (N, 2*WC)
        gstat = jnp.dot(jnp.concatenate([st[:, :WC], st[:, WC:]], axis=0), mem,
                        preferred_element_type=jnp.float32) * (1.0 / cnt)        # (2N, G)
        gmean = gstat[0:N]
        gvar = jnp.maximum(gstat[N:2 * N] - gmean * gmean, 0.0)
        grstd = jax.lax.rsqrt(gvar + 1e-5)
        lanes = jnp.dot(jnp.concatenate([grstd, gmean], axis=0), memT,
                        preferred_element_type=jnp.float32)                      # (2N, WC)
        scale = lanes[0:N] * gamma_l                                             # (N, WC)
        shift = beta_l - lanes[N:2 * N] * scale                                  # (N, WC)
        rb = jnp.dot(selT, jnp.concatenate([scale, shift], axis=1),
                     preferred_element_type=jnp.float32)                         # (Rm, 2*WC)
        xn = acc * rb[:, :WC] + rb[:, WC:]                                       # (Rm, WC)

        # ---- 2x2 max-pool (stride 2) + ReLU ------------------------------------------
        # height half: pick strided rows n*Hp + 2k (+parity) -> compact row n*H2 + k
        def _rowsel_stacked():
            rows = 2 * NH2
            m_ids = _iota((rows, Rm), 0)
            r_ids = _iota((rows, Rm), 1)
            p = (m_ids >= NH2).astype(jnp.int32)
            m = m_ids - p * NH2
            out = None
            for n in range(N):
                term = ((m >= n * H2) & (m < (n + 1) * H2)
                        & (r_ids == n * Hp + 2 * (m - n * H2) + p)).astype(jnp.float32)
                out = term if out is None else out + term
            return out

        def _rowsel(parity):
            m_ids = _iota((NH2, Rm), 0)
            r_ids = _iota((NH2, Rm), 1)
            out = None
            for n in range(N):
                term = ((m_ids >= n * H2) & (m_ids < (n + 1) * H2)
                        & (r_ids == n * Hp + 2 * (m_ids - n * H2) + parity)).astype(jnp.float32)
                out = term if out is None else out + term
            return out

        if NH2 % 8 == 0:
            d = jnp.dot(_rowsel_stacked(), xn, preferred_element_type=jnp.float32)   # (2*NH2, WC)
            hm = jnp.maximum(d[0:NH2], d[NH2:2 * NH2])
        else:
            hm = jnp.maximum(
                jnp.dot(_rowsel(0), xn, preferred_element_type=jnp.float32),
                jnp.dot(_rowsel(1), xn, preferred_element_type=jnp.float32))          # (NH2, WC)

        # width half: even|odd lane selectors stacked along the output dim (in-kernel)
        l_ids = _iota((WC, 2 * W2C), 0)
        j_ids = _iota((WC, 2 * W2C), 1)
        pj = (j_ids >= W2C).astype(jnp.int32)
        mj = j_ids - pj * W2C
        cm = jnp.bitwise_and(mj, Cout - 1)
        fwm = (l_ids == 2 * mj - cm + pj * Cout).astype(jnp.float32)             # (WC, 2*W2C)
        pw = jnp.dot(hm, fwm, preferred_element_type=jnp.float32)                # (NH2, 2*W2C)
        pooled = jnp.maximum(pw[:, :W2C], pw[:, W2C:])
        return jnp.maximum(pooled, 0.0)                                          # (NH2, W2C)

    def kernel(x_ref, tw1, aff1, tw2, aff2, tw3_hbm, aff3,
               w1p_hbm, b1_ref, w2_hbm, b2_ref, w3_ref, b3_ref,
               out_ref,
               pad1, pad2, pad3, tw3_buf, w1p_buf, w2_buf, dma_sem):
        # Prefetch late-layer weights (HBM -> VMEM) so their DMA hides behind layer 1/2.
        cp_tw3 = pltpu.make_async_copy(tw3_hbm, tw3_buf, dma_sem.at[0])
        cp_w1p = pltpu.make_async_copy(w1p_hbm, w1p_buf, dma_sem.at[1])
        cp_w2 = pltpu.make_async_copy(w2_hbm, w2_buf, dma_sem.at[2])
        cp_tw3.start()
        cp_w1p.start()
        cp_w2.start()

        cur = x_ref[...]                         # (N*H, W*Cin); rows=(n,h), lanes=(w,c)
        cur = _conv_block(cur, pad1, tw1, aff1, cfgs[0])
        cur = _conv_block(cur, pad2, tw2, aff2, cfgs[1])
        cp_tw3.wait()
        cur = _conv_block(cur, pad3, tw3_buf, aff3, cfgs[2])      # (N*H3, W3*C3)

        # ---- MLP (torch.flatten(NCHW) folded into the permuted fc1 weight) ----------
        cp_w1p.wait()
        cp_w2.wait()
        NH3 = N * H3
        n_i = _iota((N, NH3), 0)
        j_i = _iota((N, NH3), 1)
        parts = [jnp.dot((j_i == n_i * H3 + h).astype(jnp.float32), cur,
                         preferred_element_type=jnp.float32) for h in range(H3)]
        x_flat = parts[0] if H3 == 1 else jnp.concatenate(parts, axis=1)         # (N, H3*W3*C3)
        h1 = jnp.maximum(
            jnp.dot(x_flat.astype(jnp.bfloat16), w1p_buf[...],
                    preferred_element_type=jnp.float32) + b1_ref[...], 0.0)
        h2 = jnp.maximum(
            jnp.dot(h1.astype(jnp.bfloat16), w2_buf[...],
                    preferred_element_type=jnp.float32) + b2_ref[...], 0.0)
        out_ref[...] = jnp.dot(h2, w3_ref[...],
                               preferred_element_type=jnp.float32) + b3_ref[...]

    return kernel


# ---------------------------------------------------------------------------
# Full forward
# ---------------------------------------------------------------------------
def group_cnn_forward(x_nchw, params):
    N, C, H, W = x_nchw.shape
    output_size = params["fc3"][0].shape[-1]
    cfgs = [(H, W, C, 16, 8),
            (H // 2, W // 2, 16, 32, 16),
            (H // 4, W // 4, 32, 64, 32)]
    H3, W3 = H // 8, W // 8
    C3 = cfgs[-1][3]

    # NCHW -> NHWC -> (N*H, W*C): rows = (n, h), lanes = (w, c).
    x2d = jnp.transpose(x_nchw, (0, 2, 3, 1)).reshape(N * H, W * C).astype(jnp.float32)

    tws, affs = [], []
    for (Hc, Wc, Cin, Cout, G), name in zip(cfgs, ("conv1", "conv2", "conv3")):
        w, b, gamma, beta = params[name]                 # w: (3,3,Cin,Cout); others (1,Cout)
        wstd = _std_weight(w.astype(jnp.float32))
        tws.append(_toeplitz_weight(wstd, Wc).astype(jnp.bfloat16))   # (3*Wc*Cin, Wc*Cout)
        affs.append(jnp.concatenate([jnp.tile(b, (1, Wc)),
                                     jnp.tile(gamma, (1, Wc)),
                                     jnp.tile(beta, (1, Wc))], axis=0).astype(jnp.float32))

    w1, b1 = params["fc1"]
    w2, b2 = params["fc2"]
    w3, b3 = params["fc3"]
    # fc1 rows come in torch.flatten(NCHW) order (c, h, w); permute once to (h, w, c) so
    # the kernel's (h-row, (w,c)-lane) resident activation feeds a single K=256 GEMM.
    w1p = jnp.transpose(w1.reshape(C3, H3, W3, w1.shape[-1]), (1, 2, 0, 3))
    w1p = w1p.reshape(H3 * W3 * C3, w1.shape[-1]).astype(jnp.bfloat16)
    w2b = w2.astype(jnp.bfloat16)

    kernel = _make_kernel(N, cfgs, H3)
    vmem = pl.BlockSpec(memory_space=pltpu.MemorySpace.VMEM)
    hbm = pl.BlockSpec(memory_space=pl.ANY)          # manually prefetched inside the kernel
    in_specs = [vmem,            # x
                vmem, vmem,      # tw1, aff1
                vmem, vmem,      # tw2, aff2
                hbm, vmem,       # tw3 (prefetched), aff3
                hbm, vmem,       # fc1 weight (prefetched), b1
                hbm, vmem,       # fc2 weight (prefetched), b2
                vmem, vmem]      # w3, b3
    scratch = [pltpu.VMEM((N * (Hc + 2), Wc * Cin), jnp.float32)
               for (Hc, Wc, Cin, _, _) in cfgs]
    scratch += [pltpu.VMEM(tws[2].shape, jnp.bfloat16),
                pltpu.VMEM(w1p.shape, jnp.bfloat16),
                pltpu.VMEM(w2b.shape, jnp.bfloat16),
                pltpu.SemaphoreType.DMA((3,))]
    return pl.pallas_call(
        kernel,
        out_shape=jax.ShapeDtypeStruct((N, output_size), jnp.float32),
        in_specs=in_specs,
        out_specs=vmem,
        scratch_shapes=scratch,
    )(x2d, tws[0], affs[0], tws[1], affs[1], tws[2], affs[2],
      w1p, b1, w2b, b2, w3, b3)


if __name__ == "__main__":
    N, C, H, W = 2, 4, 16, 16
    output_size = 10

    key = jax.random.PRNGKey(0)
    keys = jax.random.split(key, 8)
    x_nchw = jax.random.normal(keys[0], (N, C, H, W), jnp.float32)

    def conv_params(k, cin, cout):
        k1, k2, k3, k4 = jax.random.split(k, 4)
        w = 0.1 * jax.random.normal(k1, (3, 3, cin, cout), jnp.float32)   # (kh, kw, Cin, Cout)
        b = 0.1 * jax.random.normal(k2, (1, cout), jnp.float32)
        gamma = 1.0 + 0.1 * jax.random.normal(k3, (1, cout), jnp.float32)
        beta = 0.1 * jax.random.normal(k4, (1, cout), jnp.float32)
        return (w, b, gamma, beta)

    def lin_params(k, din, dout):
        k1, k2 = jax.random.split(k)
        return (0.05 * jax.random.normal(k1, (din, dout), jnp.float32),
                0.05 * jax.random.normal(k2, (1, dout), jnp.float32))

    fdim = (H // 8) * (W // 8) * 64   # = 256, rows ordered (c, h, w) as in torch.flatten(NCHW)
    params = {
        "conv1": conv_params(keys[1], C, 16),
        "conv2": conv_params(keys[2], 16, 32),
        "conv3": conv_params(keys[3], 32, 64),
        "fc1": lin_params(keys[4], fdim, 256),
        "fc2": lin_params(keys[5], 256, 256),
        "fc3": lin_params(keys[6], 256, output_size),
    }

    fwd = jax.jit(group_cnn_forward)
    out = fwd(x_nchw, params)
    jax.block_until_ready(out)
    assert out.shape == (N, output_size)
    print("KERNEL_OK")
</pallas_src>

<mosaic_0001>
module attributes {stable_mosaic.version = 11 : i64} {
  func.func @kernel(%arg0: memref<32x64xf32, #tpu.memory_space<vmem>>, %arg1: memref<192x256xbf16, #tpu.memory_space<vmem>>, %arg2: memref<3x256xf32, #tpu.memory_space<vmem>>, %arg3: memref<384x256xbf16, #tpu.memory_space<vmem>>, %arg4: memref<3x256xf32, #tpu.memory_space<vmem>>, %arg5: memref<384x256xbf16, #tpu.memory_space<any>>, %arg6: memref<3x256xf32, #tpu.memory_space<vmem>>, %arg7: memref<256x256xbf16, #tpu.memory_space<any>>, %arg8: memref<1x256xf32, #tpu.memory_space<vmem>>, %arg9: memref<256x256xbf16, #tpu.memory_space<any>>, %arg10: memref<1x256xf32, #tpu.memory_space<vmem>>, %arg11: memref<256x10xf32, #tpu.memory_space<vmem>>, %arg12: memref<1x10xf32, #tpu.memory_space<vmem>>, %arg13: memref<2x10xf32, #tpu.memory_space<vmem>>, %arg14: memref<36x64xf32, #tpu.memory_space<vmem>>, %arg15: memref<20x128xf32, #tpu.memory_space<vmem>>, %arg16: memref<12x128xf32, #tpu.memory_space<vmem>>, %arg17: memref<384x256xbf16, #tpu.memory_space<vmem>>, %arg18: memref<256x256xbf16, #tpu.memory_space<vmem>>, %arg19: memref<256x256xbf16, #tpu.memory_space<vmem>>, %arg20: memref<3x!tpu.dma_semaphore, #tpu.memory_space<semaphore_mem>>) attributes {dimension_semantics = [], scalar_prefetch = 0 : i64, scratch_operands = 7 : i64, tpu.core_type = #tpu.core_type<tc>} {
    %c0_i32 = arith.constant 0 : i32
    %0 = tpu.memref_slice %arg20[%c0_i32] : memref<3x!tpu.dma_semaphore, #tpu.memory_space<semaphore_mem>> -> memref<1x!tpu.dma_semaphore, #tpu.memory_space<semaphore_mem>>
    %1 = tpu.memref_squeeze %0 : memref<1x!tpu.dma_semaphore, #tpu.memory_space<semaphore_mem>> -> memref<!tpu.dma_semaphore, #tpu.memory_space<semaphore_mem>>
    tpu.enqueue_dma source(%arg5 : memref<384x256xbf16, #tpu.memory_space<any>>) target(%arg17 : memref<384x256xbf16, #tpu.memory_space<vmem>>) target_semaphore(%1 : memref<!tpu.dma_semaphore, #tpu.memory_space<semaphore_mem>>)
    %c1_i32 = arith.constant 1 : i32
    %2 = tpu.memref_slice %arg20[%c1_i32] : memref<3x!tpu.dma_semaphore, #tpu.memory_space<semaphore_mem>> -> memref<1x!tpu.dma_semaphore, #tpu.memory_space<semaphore_mem>>
    %3 = tpu.memref_squeeze %2 : memref<1x!tpu.dma_semaphore, #tpu.memory_space<semaphore_mem>> -> memref<!tpu.dma_semaphore, #tpu.memory_space<semaphore_mem>>
    tpu.enqueue_dma source(%arg7 : memref<256x256xbf16, #tpu.memory_space<any>>) target(%arg18 : memref<256x256xbf16, #tpu.memory_space<vmem>>) target_semaphore(%3 : memref<!tpu.dma_semaphore, #tpu.memory_space<semaphore_mem>>)
    %c2_i32 = arith.constant 2 : i32
    %4 = tpu.memref_slice %arg20[%c2_i32] : memref<3x!tpu.dma_semaphore, #tpu.memory_space<semaphore_mem>> -> memref<1x!tpu.dma_semaphore, #tpu.memory_space<semaphore_mem>>
    %5 = tpu.memref_squeeze %4 : memref<1x!tpu.dma_semaphore, #tpu.memory_space<semaphore_mem>> -> memref<!tpu.dma_semaphore, #tpu.memory_space<semaphore_mem>>
    tpu.enqueue_dma source(%arg9 : memref<256x256xbf16, #tpu.memory_space<any>>) target(%arg19 : memref<256x256xbf16, #tpu.memory_space<vmem>>) target_semaphore(%5 : memref<!tpu.dma_semaphore, #tpu.memory_space<semaphore_mem>>)
    %c0 = arith.constant 0 : index
    %c0_0 = arith.constant 0 : index
    %6 = vector.load %arg0[%c0, %c0_0] : memref<32x64xf32, #tpu.memory_space<vmem>>, vector<32x64xf32>
    %c0_1 = arith.constant 0 : index
    %c0_2 = arith.constant 0 : index
    %7 = vector.load %arg2[%c0_1, %c0_2] : memref<3x256xf32, #tpu.memory_space<vmem>>, vector<1x256xf32>
    %c1 = arith.constant 1 : index
    %c0_3 = arith.constant 0 : index
    %8 = vector.load %arg2[%c1, %c0_3] : memref<3x256xf32, #tpu.memory_space<vmem>>, vector<1x256xf32>
    %c2 = arith.constant 2 : index
    %c0_4 = arith.constant 0 : index
    %9 = vector.load %arg2[%c2, %c0_4] : memref<3x256xf32, #tpu.memory_space<vmem>>, vector<1x256xf32>
    %cst = arith.constant 0.000000e+00 : f32
    %10 = vector.broadcast %cst : f32 to vector<1x64xf32>
    %c0_5 = arith.constant 0 : index
    %c0_6 = arith.constant 0 : index
    %11 = vector.load %arg14[%c0_5, %c0_6] : memref<36x64xf32, #tpu.memory_space<vmem>>, vector<1x64xf32>
    tpu.vector_store %arg14[%c0_5, %c0_6], %10 {strides = array<i32>} : memref<36x64xf32, #tpu.memory_space<vmem>>, vector<1x64xf32>,
    %c17 = arith.constant 17 : index
    %c0_7 = arith.constant 0 : index
    %12 = vector.load %arg14[%c17, %c0_7] : memref<36x64xf32, #tpu.memory_space<vmem>>, vector<1x64xf32>
    tpu.vector_store %arg14[%c17, %c0_7], %10 {strides = array<i32>} : memref<36x64xf32, #tpu.memory_space<vmem>>, vector<1x64xf32>,
    %13 = vector.extract_strided_slice %6 {offsets = [0, 0], sizes = [16, 64], strides = [1, 1]} : vector<32x64xf32> to vector<16x64xf32>
    %c1_8 = arith.constant 1 : index
    %c0_9 = arith.constant 0 : index
    %14 = vector.load %arg14[%c1_8, %c0_9] : memref<36x64xf32, #tpu.memory_space<vmem>>, vector<16x64xf32>
    tpu.vector_store %arg14[%c1_8, %c0_9], %13 {strides = array<i32>} : memref<36x64xf32, #tpu.memory_space<vmem>>, vector<16x64xf32>,
    %c18 = arith.constant 18 : index
    %c0_10 = arith.constant 0 : index
    %15 = vector.load %arg14[%c18, %c0_10] : memref<36x64xf32, #tpu.memory_space<vmem>>, vector<1x64xf32>
    tpu.vector_store %arg14[%c18, %c0_10], %10 {strides = array<i32>} : memref<36x64xf32, #tpu.memory_space<vmem>>, vector<1x64xf32>,
    %c35 = arith.constant 35 : index
    %c0_11 = arith.constant 0 : index
    %16 = vector.load %arg14[%c35, %c0_11] : memref<36x64xf32, #tpu.memory_space<vmem>>, vector<1x64xf32>
    tpu.vector_store %arg14[%c35, %c0_11], %10 {strides = array<i32>} : memref<36x64xf32, #tpu.memory_space<vmem>>, vector<1x64xf32>,
    %17 = vector.extract_strided_slice %6 {offsets = [16, 0], sizes = [16, 64], strides = [1, 1]} : vector<32x64xf32> to vector<16x64xf32>
    %c19 = arith.constant 19 : index
    %c0_12 = arith.constant 0 : index
    %18 = vector.load %arg14[%c19, %c0_12] : memref<36x64xf32, #tpu.memory_space<vmem>>, vector<16x64xf32>
    tpu.vector_store %arg14[%c19, %c0_12], %17 {strides = array<i32>} : memref<36x64xf32, #tpu.memory_space<vmem>>, vector<16x64xf32>,
    %c0_13 = arith.constant 0 : index
    %c0_14 = arith.constant 0 : index
    %19 = vector.load %arg14[%c0_13, %c0_14] : memref<36x64xf32, #tpu.memory_space<vmem>>, vector<36x64xf32>
    %20 = vector.extract_strided_slice %19 {offsets = [0, 0], sizes = [34, 64], strides = [1, 1]} : vector<36x64xf32> to vector<34x64xf32>
    %21 = vector.extract_strided_slice %19 {offsets = [1, 0], sizes = [34, 64], strides = [1, 1]} : vector<36x64xf32> to vector<34x64xf32>
    %22 = vector.extract_strided_slice %19 {offsets = [2, 0], sizes = [34, 64], strides = [1, 1]} : vector<36x64xf32> to vector<34x64xf32>
    %23 = tpu.concatenate %20, %21, %22 in 1 : vector<34x64xf32>, vector<34x64xf32>, vector<34x64xf32> -> vector<34x192xf32>
    %24 = arith.truncf %23 : vector<34x192xf32> to vector<34x192xbf16>
    %c0_15 = arith.constant 0 : index
    %c0_16 = arith.constant 0 : index
    %25 = vector.load %arg1[%c0_15, %c0_16] : memref<192x256xbf16, #tpu.memory_space<vmem>>, vector<192x256xbf16>
    %cst_17 = arith.constant dense<0.000000e+00> : vector<34x256xf32>
    %26 = tpu.matmul %24, %25, %cst_17 {dimension_numbers = #tpu.dot_dimension_numbers<[1], [0], [0], [1], [0, 0, 1, 1], [], []>} : vector<34x192xbf16>, vector<192x256xbf16>, vector<34x256xf32> -> vector<34x256xf32>
    %27 = vector.broadcast %7 : vector<1x256xf32> to vector<34x256xf32>
    %28 = arith.addf %26, %27 : vector<34x256xf32>
    %29 = tpu.iota {dimensions = array<i32: 1>} : vector<2x34xi32>
    %30 = tpu.iota {dimensions = array<i32: 0>} : vector<2x34xi32>
    %c18_i32 = arith.constant 18 : i32
    %31 = vector.broadcast %c18_i32 : i32 to vector<2x34xi32>
    %32 = arith.muli %30, %31 : vector<2x34xi32>
    %33 = arith.subi %29, %32 : vector<2x34xi32>
    %c0_i32_18 = arith.constant 0 : i32
    %34 = vector.broadcast %c0_i32_18 : i32 to vector<2x34xi32>
    %35 = arith.cmpi sge, %33, %34 : vector<2x34xi32>
    %c16_i32 = arith.constant 16 : i32
    %36 = vector.broadcast %c16_i32 : i32 to vector<2x34xi32>
    %37 = arith.cmpi slt, %33, %36 : vector<2x34xi32>
    %38 = arith.andi %35, %37 : vector<2x34xi1>
    %39 = arith.extui %38 : vector<2x34xi1> to vector<2x34xi32>
    %40 = arith.sitofp %39 : vector<2x34xi32> to vector<2x34xf32>
    %41 = tpu.iota {dimensions = array<i32: 0>} : vector<34x2xi32>
    %42 = tpu.iota {dimensions = array<i32: 1>} : vector<34x2xi32>
    %c18_i32_19 = arith.constant 18 : i32
    %43 = vector.broadcast %c18_i32_19 : i32 to vector<34x2xi32>
    %44 = arith.muli %42, %43 : vector<34x2xi32>
    %45 = arith.subi %41, %44 : vector<34x2xi32>
    %c0_i32_20 = arith.constant 0 : i32
    %46 = vector.broadcast %c0_i32_20 : i32 to vector<34x2xi32>
    %47 = arith.cmpi sge, %45, %46 : vector<34x2xi32>
    %c16_i32_21 = arith.constant 16 : i32
    %48 = vector.broadcast %c16_i32_21 : i32 to vector<34x2xi32>
    %49 = arith.cmpi slt, %45, %48 : vector<34x2xi32>
    %50 = arith.andi %47, %49 : vector<34x2xi1>
    %51 = arith.extui %50 : vector<34x2xi1> to vector<34x2xi32>
    %52 = arith.sitofp %51 : vector<34x2xi32> to vector<34x2xf32>
    %53 = tpu.iota {dimensions = array<i32: 0>} : vector<256x8xi32>
    %c15_i32 = arith.constant 15 : i32
    %54 = vector.broadcast %c15_i32 : i32 to vector<256x8xi32>
    %55 = arith.andi %53, %54 : vector<256x8xi32>
    %56 = tpu.iota {dimensions = array<i32: 1>} : vector<256x8xi32>
    %c2_i32_22 = arith.constant 2 : i32
    %57 = vector.broadcast %c2_i32_22 : i32 to vector<256x8xi32>
    %58 = arith.muli %56, %57 : vector<256x8xi32>
    %59 = arith.cmpi sge, %55, %58 : vector<256x8xi32>
    %c1_i32_23 = arith.constant 1 : i32
    %60 = vector.broadcast %c1_i32_23 : i32 to vector<256x8xi32>
    %61 = arith.addi %56, %60 : vector<256x8xi32>
    %c2_i32_24 = arith.constant 2 : i32
    %62 = vector.broadcast %c2_i32_24 : i32 to vector<256x8xi32>
    %63 = arith.muli %61, %62 : vector<256x8xi32>
    %64 = arith.cmpi slt, %55, %63 : vector<256x8xi32>
    %65 = arith.andi %59, %64 : vector<256x8xi1>
    %66 = arith.extui %65 : vector<256x8xi1> to vector<256x8xi32>
    %67 = arith.sitofp %66 : vector<256x8xi32> to vector<256x8xf32>
    %68 = tpu.iota {dimensions = array<i32: 1>} : vector<8x256xi32>
    %c15_i32_25 = arith.constant 15 : i32
    %69 = vector.broadcast %c15_i32_25 : i32 to vector<8x256xi32>
    %70 = arith.andi %68, %69 : vector<8x256xi32>
    %71 = tpu.iota {dimensions = array<i32: 0>} : vector<8x256xi32>
    %c2_i32_26 = arith.constant 2 : i32
    %72 = vector.broadcast %c2_i32_26 : i32 to vector<8x256xi32>
    %73 = arith.muli %71, %72 : vector<8x256xi32>
    %74 = arith.cmpi sge, %70, %73 : vector<8x256xi32>
    %c1_i32_27 = arith.constant 1 : i32
    %75 = vector.broadcast %c1_i32_27 : i32 to vector<8x256xi32>
    %76 = arith.addi %71, %75 : vector<8x256xi32>
    %c2_i32_28 = arith.constant 2 : i32
    %77 = vector.broadcast %c2_i32_28 : i32 to vector<8x256xi32>
    %78 = arith.muli %76, %77 : vector<8x256xi32>
    %79 = arith.cmpi slt, %70, %78 : vector<8x256xi32>
    %80 = arith.andi %74, %79 : vector<8x256xi1>
    %81 = arith.extui %80 : vector<8x256xi1> to vector<8x256xi32>
    %82 = arith.sitofp %81 : vector<8x256xi32> to vector<8x256xf32>
    %83 = arith.mulf %28, %28 : vector<34x256xf32>
    %84 = tpu.concatenate %28, %83 in 1 : vector<34x256xf32>, vector<34x256xf32> -> vector<34x512xf32>
    %cst_29 = arith.constant dense<0.000000e+00> : vector<2x512xf32>
    %85 = tpu.matmul %40, %84, %cst_29 {dimension_numbers = #tpu.dot_dimension_numbers<[1], [0], [0], [1], [0, 0, 1, 1], [], []>} : vector<2x34xf32>, vector<34x512xf32>, vector<2x512xf32> -> vector<2x512xf32>
    %86 = vector.extract_strided_slice %85 {offsets = [0, 0], sizes = [2, 256], strides = [1, 1]} : vector<2x512xf32> to vector<2x256xf32>
    %87 = vector.extract_strided_slice %85 {offsets = [0, 256], sizes = [2, 256], strides = [1, 1]} : vector<2x512xf32> to vector<2x256xf32>
    %88 = tpu.concatenate %86, %87 in 0 : vector<2x256xf32>, vector<2x256xf32> -> vector<4x256xf32>
    %cst_30 = arith.constant dense<0.000000e+00> : vector<4x8xf32>
    %89 = tpu.matmul %88, %67, %cst_30 {dimension_numbers = #tpu.dot_dimension_numbers<[1], [0], [0], [1], [0, 0, 1, 1], [], []>} : vector<4x256xf32>, vector<256x8xf32>, vector<4x8xf32> -> vector<4x8xf32>
    %cst_31 = arith.constant 0.001953125 : f32
    %90 = vector.broadcast %cst_31 : f32 to vector<4x8xf32>
    %91 = arith.mulf %89, %90 : vector<4x8xf32>
    %92 = vector.extract_strided_slice %91 {offsets = [0, 0], sizes = [2, 8], strides = [1, 1]} : vector<4x8xf32> to vector<2x8xf32>
    %93 = vector.extract_strided_slice %91 {offsets = [2, 0], sizes = [2, 8], strides = [1, 1]} : vector<4x8xf32> to vector<2x8xf32>
    %94 = arith.mulf %92, %92 : vector<2x8xf32>
    %95 = arith.subf %93, %94 : vector<2x8xf32>
    %cst_32 = arith.constant 0.000000e+00 : f32
    %96 = vector.broadcast %cst_32 : f32 to vector<2x8xf32>
    %97 = arith.maximumf %95, %96 : vector<2x8xf32>
    %cst_33 = arith.constant 9.99999974E-6 : f32
    %98 = vector.broadcast %cst_33 : f32 to vector<2x8xf32>
    %99 = arith.addf %97, %98 : vector<2x8xf32>
    %100 = math.rsqrt %99 : vector<2x8xf32>
    %101 = tpu.concatenate %100, %92 in 0 : vector<2x8xf32>, vector<2x8xf32> -> vector<4x8xf32>
    %cst_34 = arith.constant dense<0.000000e+00> : vector<4x256xf32>
    %102 = tpu.matmul %101, %82, %cst_34 {dimension_numbers = #tpu.dot_dimension_numbers<[1], [0], [0], [1], [0, 0, 1, 1], [], []>} : vector<4x8xf32>, vector<8x256xf32>, vector<4x256xf32> -> vector<4x256xf32>
    %103 = vector.extract_strided_slice %102 {offsets = [0, 0], sizes = [2, 256], strides = [1, 1]} : vector<4x256xf32> to vector<2x256xf32>
    %104 = vector.broadcast %8 : vector<1x256xf32> to vector<2x256xf32>
    %105 = arith.mulf %103, %104 : vector<2x256xf32>
    %106 = vector.extract_strided_slice %102 {offsets = [2, 0], sizes = [2, 256], strides = [1, 1]} : vector<4x256xf32> to vector<2x256xf32>
    %107 = arith.mulf %106, %105 : vector<2x256xf32>
    %108 = vector.broadcast %9 : vector<1x256xf32> to vector<2x256xf32>
    %109 = arith.subf %108, %107 : vector<2x256xf32>
    %110 = tpu.concatenate %105, %109 in 1 : vector<2x256xf32>, vector<2x256xf32> -> vector<2x512xf32>
    %cst_35 = arith.constant dense<0.000000e+00> : vector<34x512xf32>
    %111 = tpu.matmul %52, %110, %cst_35 {dimension_numbers = #tpu.dot_dimension_numbers<[1], [0], [0], [1], [0, 0, 1, 1], [], []>} : vector<34x2xf32>, vector<2x512xf32>, vector<34x512xf32> -> vector<34x512xf32>
    %112 = vector.extract_strided_slice %111 {offsets = [0, 0], sizes = [34, 256], strides = [1, 1]} : vector<34x512xf32> to vector<34x256xf32>
    %113 = arith.mulf %28, %112 : vector<34x256xf32>
    %114 = vector.extract_strided_slice %111 {offsets = [0, 256], sizes = [34, 256], strides = [1, 1]} : vector<34x512xf32> to vector<34x256xf32>
    %115 = arith.addf %113, %114 : vector<34x256xf32>
    %116 = tpu.iota {dimensions = array<i32: 0>} : vector<32x34xi32>
    %117 = tpu.iota {dimensions = array<i32: 1>} : vector<32x34xi32>
    %c16_i32_36 = arith.constant 16 : i32
    %118 = vector.broadcast %c16_i32_36 : i32 to vector<32x34xi32>
    %119 = arith.cmpi sge, %116, %118 : vector<32x34xi32>
    %120 = arith.extui %119 : vector<32x34xi1> to vector<32x34xi32>
    %c16_i32_37 = arith.constant 16 : i32
    %121 = vector.broadcast %c16_i32_37 : i32 to vector<32x34xi32>
    %122 = arith.muli %120, %121 : vector<32x34xi32>
    %123 = arith.subi %116, %122 : vector<32x34xi32>
    %c0_i32_38 = arith.constant 0 : i32
    %124 = vector.broadcast %c0_i32_38 : i32 to vector<32x34xi32>
    %125 = arith.cmpi sge, %123, %124 : vector<32x34xi32>
    %c8_i32 = arith.constant 8 : i32
    %126 = vector.broadcast %c8_i32 : i32 to vector<32x34xi32>
    %127 = arith.cmpi slt, %123, %126 : vector<32x34xi32>
    %128 = arith.andi %125, %127 : vector<32x34xi1>
    %c0_i32_39 = arith.constant 0 : i32
    %129 = vector.broadcast %c0_i32_39 : i32 to vector<32x34xi32>
    %130 = arith.subi %123, %129 : vector<32x34xi32>
    %c2_i32_40 = arith.constant 2 : i32
    %131 = vector.broadcast %c2_i32_40 : i32 to vector<32x34xi32>
    %132 = arith.muli %131, %130 : vector<32x34xi32>
    %c0_i32_41 = arith.constant 0 : i32
    %133 = vector.broadcast %c0_i32_41 : i32 to vector<32x34xi32>
    %134 = arith.addi %133, %132 : vector<32x34xi32>
    %135 = arith.addi %134, %120 : vector<32x34xi32>
    %136 = arith.cmpi eq, %117, %135 : vector<32x34xi32>
    %137 = arith.andi %128, %136 : vector<32x34xi1>
    %138 = arith.extui %137 : vector<32x34xi1> to vector<32x34xi32>
    %139 = arith.sitofp %138 : vector<32x34xi32> to vector<32x34xf32>
    %c8_i32_42 = arith.constant 8 : i32
    %140 = vector.broadcast %c8_i32_42 : i32 to vector<32x34xi32>
    %141 = arith.cmpi sge, %123, %140 : vector<32x34xi32>
    %c16_i32_43 = arith.constant 16 : i32
    %142 = vector.broadcast %c16_i32_43 : i32 to vector<32x34xi32>
    %143 = arith.cmpi slt, %123, %142 : vector<32x34xi32>
    %144 = arith.andi %141, %143 : vector<32x34xi1>
    %c8_i32_44 = arith.constant 8 : i32
    %145 = vector.broadcast %c8_i32_44 : i32 to vector<32x34xi32>
    %146 = arith.subi %123, %145 : vector<32x34xi32>
    %c2_i32_45 = arith.constant 2 : i32
    %147 = vector.broadcast %c2_i32_45 : i32 to vector<32x34xi32>
    %148 = arith.muli %147, %146 : vector<32x34xi32>
    %c18_i32_46 = arith.constant 18 : i32
    %149 = vector.broadcast %c18_i32_46 : i32 to vector<32x34xi32>
    %150 = arith.addi %149, %148 : vector<32x34xi32>
    %151 = arith.addi %150, %120 : vector<32x34xi32>
    %152 = arith.cmpi eq, %117, %151 : vector<32x34xi32>
    %153 = arith.andi %144, %152 : vector<32x34xi1>
    %154 = arith.extui %153 : vector<32x34xi1> to vector<32x34xi32>
    %155 = arith.sitofp %154 : vector<32x34xi32> to vector<32x34xf32>
    %156 = arith.addf %139, %155 : vector<32x34xf32>
    %cst_47 = arith.constant dense<0.000000e+00> : vector<32x256xf32>
    %157 = tpu.matmul %156, %115, %cst_47 {dimension_numbers = #tpu.dot_dimension_numbers<[1], [0], [0], [1], [0, 0, 1, 1], [], []>} : vector<32x34xf32>, vector<34x256xf32>, vector<32x256xf32> -> vector<32x256xf32>
    %158 = vector.extract_strided_slice %157 {offsets = [0, 0], sizes = [16, 256], strides = [1, 1]} : vector<32x256xf32> to vector<16x256xf32>
    %159 = vector.extract_strided_slice %157 {offsets = [16, 0], sizes = [16, 256], strides = [1, 1]} : vector<32x256xf32> to vector<16x256xf32>
    %160 = arith.maximumf %158, %159 : vector<16x256xf32>
    %161 = tpu.iota {dimensions = array<i32: 0>} : vector<256x256xi32>
    %162 = tpu.iota {dimensions = array<i32: 1>} : vector<256x256xi32>
    %c128_i32 = arith.constant 128 : i32
    %163 = vector.broadcast %c128_i32 : i32 to vector<256x256xi32>
    %164 = arith.cmpi sge, %162, %163 : vector<256x256xi32>
    %165 = arith.extui %164 : vector<256x256xi1> to vector<256x256xi32>
    %c128_i32_48 = arith.constant 128 : i32
    %166 = vector.broadcast %c128_i32_48 : i32 to vector<256x256xi32>
    %167 = arith.muli %165, %166 : vector<256x256xi32>
    %168 = arith.subi %162, %167 : vector<256x256xi32>
    %c15_i32_49 = arith.constant 15 : i32
    %169 = vector.broadcast %c15_i32_49 : i32 to vector<256x256xi32>
    %170 = arith.andi %168, %169 : vector<256x256xi32>
    %c2_i32_50 = arith.constant 2 : i32
    %171 = vector.broadcast %c2_i32_50 : i32 to vector<256x256xi32>
    %172 = arith.muli %171, %168 : vector<256x256xi32>
    %173 = arith.subi %172, %170 : vector<256x256xi32>
    %c16_i32_51 = arith.constant 16 : i32
    %174 = vector.broadcast %c16_i32_51 : i32 to vector<256x256xi32>
    %175 = arith.muli %165, %174 : vector<256x256xi32>
    %176 = arith.addi %173, %175 : vector<256x256xi32>
    %177 = arith.cmpi eq, %161, %176 : vector<256x256xi32>
    %178 = arith.extui %177 : vector<256x256xi1> to vector<256x256xi32>
    %179 = arith.sitofp %178 : vector<256x256xi32> to vector<256x256xf32>
    %cst_52 = arith.constant dense<0.000000e+00> : vector<16x256xf32>
    %180 = tpu.matmul %160, %179, %cst_52 {dimension_numbers = #tpu.dot_dimension_numbers<[1], [0], [0], [1], [0, 0, 1, 1], [], []>} : vector<16x256xf32>, vector<256x256xf32>, vector<16x256xf32> -> vector<16x256xf32>
    %181 = vector.extract_strided_slice %180 {offsets = [0, 0], sizes = [16, 128], strides = [1, 1]} : vector<16x256xf32> to vector<16x128xf32>
    %182 = vector.extract_strided_slice %180 {offsets = [0, 128], sizes = [16, 128], strides = [1, 1]} : vector<16x256xf32> to vector<16x128xf32>
    %183 = arith.maximumf %181, %182 : vector<16x128xf32>
    %cst_53 = arith.constant 0.000000e+00 : f32
    %184 = vector.broadcast %cst_53 : f32 to vector<16x128xf32>
    %185 = arith.maximumf %183, %184 : vector<16x128xf32>
    %c0_54 = arith.constant 0 : index
    %c0_55 = arith.constant 0 : index
    %186 = vector.load %arg4[%c0_54, %c0_55] : memref<3x256xf32, #tpu.memory_space<vmem>>, vector<1x256xf32>
    %c1_56 = arith.constant 1 : index
    %c0_57 = arith.constant 0 : index
    %187 = vector.load %arg4[%c1_56, %c0_57] : memref<3x256xf32, #tpu.memory_space<vmem>>, vector<1x256xf32>
    %c2_58 = arith.constant 2 : index
    %c0_59 = arith.constant 0 : index
    %188 = vector.load %arg4[%c2_58, %c0_59] : memref<3x256xf32, #tpu.memory_space<vmem>>, vector<1x256xf32>
    %cst_60 = arith.constant 0.000000e+00 : f32
    %189 = vector.broadcast %cst_60 : f32 to vector<1x128xf32>
    %c0_61 = arith.constant 0 : index
    %c0_62 = arith.constant 0 : index
    %190 = vector.load %arg15[%c0_61, %c0_62] : memref<20x128xf32, #tpu.memory_space<vmem>>, vector<1x128xf32>
    tpu.vector_store %arg15[%c0_61, %c0_62], %189 {strides = array<i32>} : memref<20x128xf32, #tpu.memory_space<vmem>>, vector<1x128xf32>,
    %c9 = arith.constant 9 : index
    %c0_63 = arith.constant 0 : index
    %191 = vector.load %arg15[%c9, %c0_63] : memref<20x128xf32, #tpu.memory_space<vmem>>, vector<1x128xf32>
    tpu.vector_store %arg15[%c9, %c0_63], %189 {strides = array<i32>} : memref<20x128xf32, #tpu.memory_space<vmem>>, vector<1x128xf32>,
    %192 = vector.extract_strided_slice %185 {offsets = [0, 0], sizes = [8, 128], strides = [1, 1]} : vector<16x128xf32> to vector<8x128xf32>
    %c1_64 = arith.constant 1 : index
    %c0_65 = arith.constant 0 : index
    %193 = vector.load %arg15[%c1_64, %c0_65] : memref<20x128xf32, #tpu.memory_space<vmem>>, vector<8x128xf32>
    tpu.vector_store %arg15[%c1_64, %c0_65], %192 {strides = array<i32>} : memref<20x128xf32, #tpu.memory_space<vmem>>, vector<8x128xf32>,
    %c10 = arith.constant 10 : index
    %c0_66 = arith.constant 0 : index
    %194 = vector.load %arg15[%c10, %c0_66] : memref<20x128xf32, #tpu.memory_space<vmem>>, vector<1x128xf32>
    tpu.vector_store %arg15[%c10, %c0_66], %189 {strides = array<i32>} : memref<20x128xf32, #tpu.memory_space<vmem>>, vector<1x128xf32>,
    %c19_67 = arith.constant 19 : index
    %c0_68 = arith.constant 0 : index
    %195 = vector.load %arg15[%c19_67, %c0_68] : memref<20x128xf32, #tpu.memory_space<vmem>>, vector<1x128xf32>
    tpu.vector_store %arg15[%c19_67, %c0_68], %189 {strides = array<i32>} : memref<20x128xf32, #tpu.memory_space<vmem>>, vector<1x128xf32>,
    %196 = vector.extract_strided_slice %185 {offsets = [8, 0], sizes = [8, 128], strides = [1, 1]} : vector<16x128xf32> to vector<8x128xf32>
    %c11 = arith.constant 11 : index
    %c0_69 = arith.constant 0 : index
    %197 = vector.load %arg15[%c11, %c0_69] : memref<20x128xf32, #tpu.memory_space<vmem>>, vector<8x128xf32>
    tpu.vector_store %arg15[%c11, %c0_69], %196 {strides = array<i32>} : memref<20x128xf32, #tpu.memory_space<vmem>>, vector<8x128xf32>,
    %c0_70 = arith.constant 0 : index
    %c0_71 = arith.constant 0 : index
    %198 = vector.load %arg15[%c0_70, %c0_71] : memref<20x128xf32, #tpu.memory_space<vmem>>, vector<20x128xf32>
    %199 = vector.extract_strided_slice %198 {offsets = [0, 0], sizes = [18, 128], strides = [1, 1]} : vector<20x128xf32> to vector<18x128xf32>
    %200 = vector.extract_strided_slice %198 {offsets = [1, 0], sizes = [18, 128], strides = [1, 1]} : vector<20x128xf32> to vector<18x128xf32>
    %201 = vector.extract_strided_slice %198 {offsets = [2, 0], sizes = [18, 128], strides = [1, 1]} : vector<20x128xf32> to vector<18x128xf32>
    %202 = tpu.concatenate %199, %200, %201 in 1 : vector<18x128xf32>, vector<18x128xf32>, vector<18x128xf32> -> vector<18x384xf32>
    %203 = arith.truncf %202 : vector<18x384xf32> to vector<18x384xbf16>
    %c0_72 = arith.constant 0 : index
    %c0_73 = arith.constant 0 : index
    %204 = vector.load %arg3[%c0_72, %c0_73] : memref<384x256xbf16, #tpu.memory_space<vmem>>, vector<384x256xbf16>
    %cst_74 = arith.constant dense<0.000000e+00> : vector<18x256xf32>
    %205 = tpu.matmul %203, %204, %cst_74 {dimension_numbers = #tpu.dot_dimension_numbers<[1], [0], [0], [1], [0, 0, 1, 1], [], []>} : vector<18x384xbf16>, vector<384x256xbf16>, vector<18x256xf32> -> vector<18x256xf32>
    %206 = vector.broadcast %186 : vector<1x256xf32> to vector<18x256xf32>
    %207 = arith.addf %205, %206 : vector<18x256xf32>
    %208 = tpu.iota {dimensions = array<i32: 1>} : vector<2x18xi32>
    %209 = tpu.iota {dimensions = array<i32: 0>} : vector<2x18xi32>
    %c10_i32 = arith.constant 10 : i32
    %210 = vector.broadcast %c10_i32 : i32 to vector<2x18xi32>
    %211 = arith.muli %209, %210 : vector<2x18xi32>
    %212 = arith.subi %208, %211 : vector<2x18xi32>
    %c0_i32_75 = arith.constant 0 : i32
    %213 = vector.broadcast %c0_i32_75 : i32 to vector<2x18xi32>
    %214 = arith.cmpi sge, %212, %213 : vector<2x18xi32>
    %c8_i32_76 = arith.constant 8 : i32
    %215 = vector.broadcast %c8_i32_76 : i32 to vector<2x18xi32>
    %216 = arith.cmpi slt, %212, %215 : vector<2x18xi32>
    %217 = arith.andi %214, %216 : vector<2x18xi1>
    %218 = arith.extui %217 : vector<2x18xi1> to vector<2x18xi32>
    %219 = arith.sitofp %218 : vector<2x18xi32> to vector<2x18xf32>
    %220 = tpu.iota {dimensions = array<i32: 0>} : vector<18x2xi32>
    %221 = tpu.iota {dimensions = array<i32: 1>} : vector<18x2xi32>
    %c10_i32_77 = arith.constant 10 : i32
    %222 = vector.broadcast %c10_i32_77 : i32 to vector<18x2xi32>
    %223 = arith.muli %221, %222 : vector<18x2xi32>
    %224 = arith.subi %220, %223 : vector<18x2xi32>
    %c0_i32_78 = arith.constant 0 : i32
    %225 = vector.broadcast %c0_i32_78 : i32 to vector<18x2xi32>
    %226 = arith.cmpi sge, %224, %225 : vector<18x2xi32>
    %c8_i32_79 = arith.constant 8 : i32
    %227 = vector.broadcast %c8_i32_79 : i32 to vector<18x2xi32>
    %228 = arith.cmpi slt, %224, %227 : vector<18x2xi32>
    %229 = arith.andi %226, %228 : vector<18x2xi1>
    %230 = arith.extui %229 : vector<18x2xi1> to vector<18x2xi32>
    %231 = arith.sitofp %230 : vector<18x2xi32> to vector<18x2xf32>
    %232 = tpu.iota {dimensions = array<i32: 0>} : vector<256x16xi32>
    %c31_i32 = arith.constant 31 : i32
    %233 = vector.broadcast %c31_i32 : i32 to vector<256x16xi32>
    %234 = arith.andi %232, %233 : vector<256x16xi32>
    %235 = tpu.iota {dimensions = array<i32: 1>} : vector<256x16xi32>
    %c2_i32_80 = arith.constant 2 : i32
    %236 = vector.broadcast %c2_i32_80 : i32 to vector<256x16xi32>
    %237 = arith.muli %235, %236 : vector<256x16xi32>
    %238 = arith.cmpi sge, %234, %237 : vector<256x16xi32>
    %c1_i32_81 = arith.constant 1 : i32
    %239 = vector.broadcast %c1_i32_81 : i32 to vector<256x16xi32>
    %240 = arith.addi %235, %239 : vector<256x16xi32>
    %c2_i32_82 = arith.constant 2 : i32
    %241 = vector.broadcast %c2_i32_82 : i32 to vector<256x16xi32>
    %242 = arith.muli %240, %241 : vector<256x16xi32>
    %243 = arith.cmpi slt, %234, %242 : vector<256x16xi32>
    %244 = arith.andi %238, %243 : vector<256x16xi1>
    %245 = arith.extui %244 : vector<256x16xi1> to vector<256x16xi32>
    %246 = arith.sitofp %245 : vector<256x16xi32> to vector<256x16xf32>
    %247 = tpu.iota {dimensions = array<i32: 1>} : vector<16x256xi32>
    %c31_i32_83 = arith.constant 31 : i32
    %248 = vector.broadcast %c31_i32_83 : i32 to vector<16x256xi32>
    %249 = arith.andi %247, %248 : vector<16x256xi32>
    %250 = tpu.iota {dimensions = array<i32: 0>} : vector<16x256xi32>
    %c2_i32_84 = arith.constant 2 : i32
    %251 = vector.broadcast %c2_i32_84 : i32 to vector<16x256xi32>
    %252 = arith.muli %250, %251 : vector<16x256xi32>
    %253 = arith.cmpi sge, %249, %252 : vector<16x256xi32>
    %c1_i32_85 = arith.constant 1 : i32
    %254 = vector.broadcast %c1_i32_85 : i32 to vector<16x256xi32>
    %255 = arith.addi %250, %254 : vector<16x256xi32>
    %c2_i32_86 = arith.constant 2 : i32
    %256 = vector.broadcast %c2_i32_86 : i32 to vector<16x256xi32>
    %257 = arith.muli %255, %256 : vector<16x256xi32>
    %258 = arith.cmpi slt, %249, %257 : vector<16x256xi32>
    %259 = arith.andi %253, %258 : vector<16x256xi1>
    %260 = arith.extui %259 : vector<16x256xi1> to vector<16x256xi32>
    %261 = arith.sitofp %260 : vector<16x256xi32> to vector<16x256xf32>
    %262 = arith.mulf %207, %207 : vector<18x256xf32>
    %263 = tpu.concatenate %207, %262 in 1 : vector<18x256xf32>, vector<18x256xf32> -> vector<18x512xf32>
    %cst_87 = arith.constant dense<0.000000e+00> : vector<2x512xf32>
    %264 = tpu.matmul %219, %263, %cst_87 {dimension_numbers = #tpu.dot_dimension_numbers<[1], [0], [0], [1], [0, 0, 1, 1], [], []>} : vector<2x18xf32>, vector<18x512xf32>, vector<2x512xf32> -> vector<2x512xf32>
    %265 = vector.extract_strided_slice %264 {offsets = [0, 0], sizes = [2, 256], strides = [1, 1]} : vector<2x512xf32> to vector<2x256xf32>
    %266 = vector.extract_strided_slice %264 {offsets = [0, 256], sizes = [2, 256], strides = [1, 1]} : vector<2x512xf32> to vector<2x256xf32>
    %267 = tpu.concatenate %265, %266 in 0 : vector<2x256xf32>, vector<2x256xf32> -> vector<4x256xf32>
    %cst_88 = arith.constant dense<0.000000e+00> : vector<4x16xf32>
    %268 = tpu.matmul %267, %246, %cst_88 {dimension_numbers = #tpu.dot_dimension_numbers<[1], [0], [0], [1], [0, 0, 1, 1], [], []>} : vector<4x256xf32>, vector<256x16xf32>, vector<4x16xf32> -> vector<4x16xf32>
    %cst_89 = arith.constant 7.812500e-03 : f32
    %269 = vector.broadcast %cst_89 : f32 to vector<4x16xf32>
    %270 = arith.mulf %268, %269 : vector<4x16xf32>
    %271 = vector.extract_strided_slice %270 {offsets = [0, 0], sizes = [2, 16], strides = [1, 1]} : vector<4x16xf32> to vector<2x16xf32>
    %272 = vector.extract_strided_slice %270 {offsets = [2, 0], sizes = [2, 16], strides = [1, 1]} : vector<4x16xf32> to vector<2x16xf32>
    %273 = arith.mulf %271, %271 : vector<2x16xf32>
    %274 = arith.subf %272, %273 : vector<2x16xf32>
    %cst_90 = arith.constant 0.000000e+00 : f32
    %275 = vector.broadcast %cst_90 : f32 to vector<2x16xf32>
    %276 = arith.maximumf %274, %275 : vector<2x16xf32>
    %cst_91 = arith.constant 9.99999974E-6 : f32
    %277 = vector.broadcast %cst_91 : f32 to vector<2x16xf32>
    %278 = arith.addf %276, %277 : vector<2x16xf32>
    %279 = math.rsqrt %278 : vector<2x16xf32>
    %280 = tpu.concatenate %279, %271 in 0 : vector<2x16xf32>, vector<2x16xf32> -> vector<4x16xf32>
    %cst_92 = arith.constant dense<0.000000e+00> : vector<4x256xf32>
    %281 = tpu.matmul %280, %261, %cst_92 {dimension_numbers = #tpu.dot_dimension_numbers<[1], [0], [0], [1], [0, 0, 1, 1], [], []>} : vector<4x16xf32>, vector<16x256xf32>, vector<4x256xf32> -> vector<4x256xf32>
    %282 = vector.extract_strided_slice %281 {offsets = [0, 0], sizes = [2, 256], strides = [1, 1]} : vector<4x256xf32> to vector<2x256xf32>
    %283 = vector.broadcast %187 : vector<1x256xf32> to vector<2x256xf32>
    %284 = arith.mulf %282, %283 : vector<2x256xf32>
    %285 = vector.extract_strided_slice %281 {offsets = [2, 0], sizes = [2, 256], strides = [1, 1]} : vector<4x256xf32> to vector<2x256xf32>
    %286 = arith.mulf %285, %284 : vector<2x256xf32>
    %287 = vector.broadcast %188 : vector<1x256xf32> to vector<2x256xf32>
    %288 = arith.subf %287, %286 : vector<2x256xf32>
    %289 = tpu.concatenate %284, %288 in 1 : vector<2x256xf32>, vector<2x256xf32> -> vector<2x512xf32>
    %cst_93 = arith.constant dense<0.000000e+00> : vector<18x512xf32>
    %290 = tpu.matmul %231, %289, %cst_93 {dimension_numbers = #tpu.dot_dimension_numbers<[1], [0], [0], [1], [0, 0, 1, 1], [], []>} : vector<18x2xf32>, vector<2x512xf32>, vector<18x512xf32> -> vector<18x512xf32>
    %291 = vector.extract_strided_slice %290 {offsets = [0, 0], sizes = [18, 256], strides = [1, 1]} : vector<18x512xf32> to vector<18x256xf32>
    %292 = arith.mulf %207, %291 : vector<18x256xf32>
    %293 = vector.extract_strided_slice %290 {offsets = [0, 256], sizes = [18, 256], strides = [1, 1]} : vector<18x512xf32> to vector<18x256xf32>
    %294 = arith.addf %292, %293 : vector<18x256xf32>
    %295 = tpu.iota {dimensions = array<i32: 0>} : vector<16x18xi32>
    %296 = tpu.iota {dimensions = array<i32: 1>} : vector<16x18xi32>
    %c8_i32_94 = arith.constant 8 : i32
    %297 = vector.broadcast %c8_i32_94 : i32 to vector<16x18xi32>
    %298 = arith.cmpi sge, %295, %297 : vector<16x18xi32>
    %299 = arith.extui %298 : vector<16x18xi1> to vector<16x18xi32>
    %c8_i32_95 = arith.constant 8 : i32
    %300 = vector.broadcast %c8_i32_95 : i32 to vector<16x18xi32>
    %301 = arith.muli %299, %300 : vector<16x18xi32>
    %302 = arith.subi %295, %301 : vector<16x18xi32>
    %c0_i32_96 = arith.constant 0 : i32
    %303 = vector.broadcast %c0_i32_96 : i32 to vector<16x18xi32>
    %304 = arith.cmpi sge, %302, %303 : vector<16x18xi32>
    %c4_i32 = arith.constant 4 : i32
    %305 = vector.broadcast %c4_i32 : i32 to vector<16x18xi32>
    %306 = arith.cmpi slt, %302, %305 : vector<16x18xi32>
    %307 = arith.andi %304, %306 : vector<16x18xi1>
    %c0_i32_97 = arith.constant 0 : i32
    %308 = vector.broadcast %c0_i32_97 : i32 to vector<16x18xi32>
    %309 = arith.subi %302, %308 : vector<16x18xi32>
    %c2_i32_98 = arith.constant 2 : i32
    %310 = vector.broadcast %c2_i32_98 : i32 to vector<16x18xi32>
    %311 = arith.muli %310, %309 : vector<16x18xi32>
    %c0_i32_99 = arith.constant 0 : i32
    %312 = vector.broadcast %c0_i32_99 : i32 to vector<16x18xi32>
    %313 = arith.addi %312, %311 : vector<16x18xi32>
    %314 = arith.addi %313, %299 : vector<16x18xi32>
    %315 = arith.cmpi eq, %296, %314 : vector<16x18xi32>
    %316 = arith.andi %307, %315 : vector<16x18xi1>
    %317 = arith.extui %316 : vector<16x18xi1> to vector<16x18xi32>
    %318 = arith.sitofp %317 : vector<16x18xi32> to vector<16x18xf32>
    %c4_i32_100 = arith.constant 4 : i32
    %319 = vector.broadcast %c4_i32_100 : i32 to vector<16x18xi32>
    %320 = arith.cmpi sge, %302, %319 : vector<16x18xi32>
    %c8_i32_101 = arith.constant 8 : i32
    %321 = vector.broadcast %c8_i32_101 : i32 to vector<16x18xi32>
    %322 = arith.cmpi slt, %302, %321 : vector<16x18xi32>
    %323 = arith.andi %320, %322 : vector<16x18xi1>
    %c4_i32_102 = arith.constant 4 : i32
    %324 = vector.broadcast %c4_i32_102 : i32 to vector<16x18xi32>
    %325 = arith.subi %302, %324 : vector<16x18xi32>
    %c2_i32_103 = arith.constant 2 : i32
    %326 = vector.broadcast %c2_i32_103 : i32 to vector<16x18xi32>
    %327 = arith.muli %326, %325 : vector<16x18xi32>
    %c10_i32_104 = arith.constant 10 : i32
    %328 = vector.broadcast %c10_i32_104 : i32 to vector<16x18xi32>
    %329 = arith.addi %328, %327 : vector<16x18xi32>
    %330 = arith.addi %329, %299 : vector<16x18xi32>
    %331 = arith.cmpi eq, %296, %330 : vector<16x18xi32>
    %332 = arith.andi %323, %331 : vector<16x18xi1>
    %333 = arith.extui %332 : vector<16x18xi1> to vector<16x18xi32>
    %334 = arith.sitofp %333 : vector<16x18xi32> to vector<16x18xf32>
    %335 = arith.addf %318, %334 : vector<16x18xf32>
    %cst_105 = arith.constant dense<0.000000e+00> : vector<16x256xf32>
    %336 = tpu.matmul %335, %294, %cst_105 {dimension_numbers = #tpu.dot_dimension_numbers<[1], [0], [0], [1], [0, 0, 1, 1], [], []>} : vector<16x18xf32>, vector<18x256xf32>, vector<16x256xf32> -> vector<16x256xf32>
    %337 = vector.extract_strided_slice %336 {offsets = [0, 0], sizes = [8, 256], strides = [1, 1]} : vector<16x256xf32> to vector<8x256xf32>
    %338 = vector.extract_strided_slice %336 {offsets = [8, 0], sizes = [8, 256], strides = [1, 1]} : vector<16x256xf32> to vector<8x256xf32>
    %339 = arith.maximumf %337, %338 : vector<8x256xf32>
    %340 = tpu.iota {dimensions = array<i32: 0>} : vector<256x256xi32>
    %341 = tpu.iota {dimensions = array<i32: 1>} : vector<256x256xi32>
    %c128_i32_106 = arith.constant 128 : i32
    %342 = vector.broadcast %c128_i32_106 : i32 to vector<256x256xi32>
    %343 = arith.cmpi sge, %341, %342 : vector<256x256xi32>
    %344 = arith.extui %343 : vector<256x256xi1> to vector<256x256xi32>
    %c128_i32_107 = arith.constant 128 : i32
    %345 = vector.broadcast %c128_i32_107 : i32 to vector<256x256xi32>
    %346 = arith.muli %344, %345 : vector<256x256xi32>
    %347 = arith.subi %341, %346 : vector<256x256xi32>
    %c31_i32_108 = arith.constant 31 : i32
    %348 = vector.broadcast %c31_i32_108 : i32 to vector<256x256xi32>
    %349 = arith.andi %347, %348 : vector<256x256xi32>
    %c2_i32_109 = arith.constant 2 : i32
    %350 = vector.broadcast %c2_i32_109 : i32 to vector<256x256xi32>
    %351 = arith.muli %350, %347 : vector<256x256xi32>
    %352 = arith.subi %351, %349 : vector<256x256xi32>
    %c32_i32 = arith.constant 32 : i32
    %353 = vector.broadcast %c32_i32 : i32 to vector<256x256xi32>
    %354 = arith.muli %344, %353 : vector<256x256xi32>
    %355 = arith.addi %352, %354 : vector<256x256xi32>
    %356 = arith.cmpi eq, %340, %355 : vector<256x256xi32>
    %357 = arith.extui %356 : vector<256x256xi1> to vector<256x256xi32>
    %358 = arith.sitofp %357 : vector<256x256xi32> to vector<256x256xf32>
    %cst_110 = arith.constant dense<0.000000e+00> : vector<8x256xf32>
    %359 = tpu.matmul %339, %358, %cst_110 {dimension_numbers = #tpu.dot_dimension_numbers<[1], [0], [0], [1], [0, 0, 1, 1], [], []>} : vector<8x256xf32>, vector<256x256xf32>, vector<8x256xf32> -> vector<8x256xf32>
    %360 = vector.extract_strided_slice %359 {offsets = [0, 0], sizes = [8, 128], strides = [1, 1]} : vector<8x256xf32> to vector<8x128xf32>
    %361 = vector.extract_strided_slice %359 {offsets = [0, 128], sizes = [8, 128], strides = [1, 1]} : vector<8x256xf32> to vector<8x128xf32>
    %362 = arith.maximumf %360, %361 : vector<8x128xf32>
    %cst_111 = arith.constant 0.000000e+00 : f32
    %363 = vector.broadcast %cst_111 : f32 to vector<8x128xf32>
    %364 = arith.maximumf %362, %363 : vector<8x128xf32>
    %c0_i32_112 = arith.constant 0 : i32
    %365 = tpu.memref_slice %arg20[%c0_i32_112] : memref<3x!tpu.dma_semaphore, #tpu.memory_space<semaphore_mem>> -> memref<1x!tpu.dma_semaphore, #tpu.memory_space<semaphore_mem>>
    %366 = tpu.memref_squeeze %365 : memref<1x!tpu.dma_semaphore, #tpu.memory_space<semaphore_mem>> -> memref<!tpu.dma_semaphore, #tpu.memory_space<semaphore_mem>>
    tpu.wait_dma2 semaphore(%366 : memref<!tpu.dma_semaphore, #tpu.memory_space<semaphore_mem>>) src(%arg5 : memref<384x256xbf16, #tpu.memory_space<any>>) dst(%arg17 : memref<384x256xbf16, #tpu.memory_space<vmem>>)
    %c0_113 = arith.constant 0 : index
    %c0_114 = arith.constant 0 : index
    %367 = vector.load %arg6[%c0_113, %c0_114] : memref<3x256xf32, #tpu.memory_space<vmem>>, vector<1x256xf32>
    %c1_115 = arith.constant 1 : index
    %c0_116 = arith.constant 0 : index
    %368 = vector.load %arg6[%c1_115, %c0_116] : memref<3x256xf32, #tpu.memory_space<vmem>>, vector<1x256xf32>
    %c2_117 = arith.constant 2 : index
    %c0_118 = arith.constant 0 : index
    %369 = vector.load %arg6[%c2_117, %c0_118] : memref<3x256xf32, #tpu.memory_space<vmem>>, vector<1x256xf32>
    %cst_119 = arith.constant 0.000000e+00 : f32
    %370 = vector.broadcast %cst_119 : f32 to vector<1x128xf32>
    %c0_120 = arith.constant 0 : index
    %c0_121 = arith.constant 0 : index
    %371 = vector.load %arg16[%c0_120, %c0_121] : memref<12x128xf32, #tpu.memory_space<vmem>>, vector<1x128xf32>
    tpu.vector_store %arg16[%c0_120, %c0_121], %370 {strides = array<i32>} : memref<12x128xf32, #tpu.memory_space<vmem>>, vector<1x128xf32>,
    %c5 = arith.constant 5 : index
    %c0_122 = arith.constant 0 : index
    %372 = vector.load %arg16[%c5, %c0_122] : memref<12x128xf32, #tpu.memory_space<vmem>>, vector<1x128xf32>
    tpu.vector_store %arg16[%c5, %c0_122], %370 {strides = array<i32>} : memref<12x128xf32, #tpu.memory_space<vmem>>, vector<1x128xf32>,
    %373 = vector.extract_strided_slice %364 {offsets = [0, 0], sizes = [4, 128], strides = [1, 1]} : vector<8x128xf32> to vector<4x128xf32>
    %c1_123 = arith.constant 1 : index
    %c0_124 = arith.constant 0 : index
    %374 = vector.load %arg16[%c1_123, %c0_124] : memref<12x128xf32, #tpu.memory_space<vmem>>, vector<4x128xf32>
    tpu.vector_store %arg16[%c1_123, %c0_124], %373 {strides = array<i32>} : memref<12x128xf32, #tpu.memory_space<vmem>>, vector<4x128xf32>,
    %c6 = arith.constant 6 : index
    %c0_125 = arith.constant 0 : index
    %375 = vector.load %arg16[%c6, %c0_125] : memref<12x128xf32, #tpu.memory_space<vmem>>, vector<1x128xf32>
    tpu.vector_store %arg16[%c6, %c0_125], %370 {strides = array<i32>} : memref<12x128xf32, #tpu.memory_space<vmem>>, vector<1x128xf32>,
    %c11_126 = arith.constant 11 : index
    %c0_127 = arith.constant 0 : index
    %376 = vector.load %arg16[%c11_126, %c0_127] : memref<12x128xf32, #tpu.memory_space<vmem>>, vector<1x128xf32>
    tpu.vector_store %arg16[%c11_126, %c0_127], %370 {strides = array<i32>} : memref<12x128xf32, #tpu.memory_space<vmem>>, vector<1x128xf32>,
    %377 = vector.extract_strided_slice %364 {offsets = [4, 0], sizes = [4, 128], strides = [1, 1]} : vector<8x128xf32> to vector<4x128xf32>
    %c7 = arith.constant 7 : index
    %c0_128 = arith.constant 0 : index
    %378 = vector.load %arg16[%c7, %c0_128] : memref<12x128xf32, #tpu.memory_space<vmem>>, vector<4x128xf32>
    tpu.vector_store %arg16[%c7, %c0_128], %377 {strides = array<i32>} : memref<12x128xf32, #tpu.memory_space<vmem>>, vector<4x128xf32>,
    %c0_129 = arith.constant 0 : index
    %c0_130 = arith.constant 0 : index
    %379 = vector.load %arg16[%c0_129, %c0_130] : memref<12x128xf32, #tpu.memory_space<vmem>>, vector<12x128xf32>
    %380 = vector.extract_strided_slice %379 {offsets = [0, 0], sizes = [10, 128], strides = [1, 1]} : vector<12x128xf32> to vector<10x128xf32>
    %381 = vector.extract_strided_slice %379 {offsets = [1, 0], sizes = [10, 128], strides = [1, 1]} : vector<12x128xf32> to vector<10x128xf32>
    %382 = vector.extract_strided_slice %379 {offsets = [2, 0], sizes = [10, 128], strides = [1, 1]} : vector<12x128xf32> to vector<10x128xf32>
    %383 = tpu.concatenate %380, %381, %382 in 1 : vector<10x128xf32>, vector<10x128xf32>, vector<10x128xf32> -> vector<10x384xf32>
    %384 = arith.truncf %383 : vector<10x384xf32> to vector<10x384xbf16>
    %c0_131 = arith.constant 0 : index
    %c0_132 = arith.constant 0 : index
    %385 = vector.load %arg17[%c0_131, %c0_132] : memref<384x256xbf16, #tpu.memory_space<vmem>>, vector<384x256xbf16>
    %cst_133 = arith.constant dense<0.000000e+00> : vector<10x256xf32>
    %386 = tpu.matmul %384, %385, %cst_133 {dimension_numbers = #tpu.dot_dimension_numbers<[1], [0], [0], [1], [0, 0, 1, 1], [], []>} : vector<10x384xbf16>, vector<384x256xbf16>, vector<10x256xf32> -> vector<10x256xf32>
    %387 = vector.broadcast %367 : vector<1x256xf32> to vector<10x256xf32>
    %388 = arith.addf %386, %387 : vector<10x256xf32>
    %389 = tpu.iota {dimensions = array<i32: 1>} : vector<2x10xi32>
    %390 = tpu.iota {dimensions = array<i32: 0>} : vector<2x10xi32>
    %c6_i32 = arith.constant 6 : i32
    %391 = vector.broadcast %c6_i32 : i32 to vector<2x10xi32>
    %392 = arith.muli %390, %391 : vector<2x10xi32>
    %393 = arith.subi %389, %392 : vector<2x10xi32>
    %c0_i32_134 = arith.constant 0 : i32
    %394 = vector.broadcast %c0_i32_134 : i32 to vector<2x10xi32>
    %395 = arith.cmpi sge, %393, %394 : vector<2x10xi32>
    %c4_i32_135 = arith.constant 4 : i32
    %396 = vector.broadcast %c4_i32_135 : i32 to vector<2x10xi32>
    %397 = arith.cmpi slt, %393, %396 : vector<2x10xi32>
    %398 = arith.andi %395, %397 : vector<2x10xi1>
    %399 = arith.extui %398 : vector<2x10xi1> to vector<2x10xi32>
    %400 = arith.sitofp %399 : vector<2x10xi32> to vector<2x10xf32>
    %401 = tpu.iota {dimensions = array<i32: 0>} : vector<10x2xi32>
    %402 = tpu.iota {dimensions = array<i32: 1>} : vector<10x2xi32>
    %c6_i32_136 = arith.constant 6 : i32
    %403 = vector.broadcast %c6_i32_136 : i32 to vector<10x2xi32>
    %404 = arith.muli %402, %403 : vector<10x2xi32>
    %405 = arith.subi %401, %404 : vector<10x2xi32>
    %c0_i32_137 = arith.constant 0 : i32
    %406 = vector.broadcast %c0_i32_137 : i32 to vector<10x2xi32>
    %407 = arith.cmpi sge, %405, %406 : vector<10x2xi32>
    %c4_i32_138 = arith.constant 4 : i32
    %408 = vector.broadcast %c4_i32_138 : i32 to vector<10x2xi32>
    %409 = arith.cmpi slt, %405, %408 : vector<10x2xi32>
    %410 = arith.andi %407, %409 : vector<10x2xi1>
    %411 = arith.extui %410 : vector<10x2xi1> to vector<10x2xi32>
    %412 = arith.sitofp %411 : vector<10x2xi32> to vector<10x2xf32>
    %413 = tpu.iota {dimensions = array<i32: 0>} : vector<256x32xi32>
    %c63_i32 = arith.constant 63 : i32
    %414 = vector.broadcast %c63_i32 : i32 to vector<256x32xi32>
    %415 = arith.andi %413, %414 : vector<256x32xi32>
    %416 = tpu.iota {dimensions = array<i32: 1>} : vector<256x32xi32>
    %c2_i32_139 = arith.constant 2 : i32
    %417 = vector.broadcast %c2_i32_139 : i32 to vector<256x32xi32>
    %418 = arith.muli %416, %417 : vector<256x32xi32>
    %419 = arith.cmpi sge, %415, %418 : vector<256x32xi32>
    %c1_i32_140 = arith.constant 1 : i32
    %420 = vector.broadcast %c1_i32_140 : i32 to vector<256x32xi32>
    %421 = arith.addi %416, %420 : vector<256x32xi32>
    %c2_i32_141 = arith.constant 2 : i32
    %422 = vector.broadcast %c2_i32_141 : i32 to vector<256x32xi32>
    %423 = arith.muli %421, %422 : vector<256x32xi32>
    %424 = arith.cmpi slt, %415, %423 : vector<256x32xi32>
    %425 = arith.andi %419, %424 : vector<256x32xi1>
    %426 = arith.extui %425 : vector<256x32xi1> to vector<256x32xi32>
    %427 = arith.sitofp %426 : vector<256x32xi32> to vector<256x32xf32>
    %428 = tpu.iota {dimensions = array<i32: 1>} : vector<32x256xi32>
    %c63_i32_142 = arith.constant 63 : i32
    %429 = vector.broadcast %c63_i32_142 : i32 to vector<32x256xi32>
    %430 = arith.andi %428, %429 : vector<32x256xi32>
    %431 = tpu.iota {dimensions = array<i32: 0>} : vector<32x256xi32>
    %c2_i32_143 = arith.constant 2 : i32
    %432 = vector.broadcast %c2_i32_143 : i32 to vector<32x256xi32>
    %433 = arith.muli %431, %432 : vector<32x256xi32>
    %434 = arith.cmpi sge, %430, %433 : vector<32x256xi32>
    %c1_i32_144 = arith.constant 1 : i32
    %435 = vector.broadcast %c1_i32_144 : i32 to vector<32x256xi32>
    %436 = arith.addi %431, %435 : vector<32x256xi32>
    %c2_i32_145 = arith.constant 2 : i32
    %437 = vector.broadcast %c2_i32_145 : i32 to vector<32x256xi32>
    %438 = arith.muli %436, %437 : vector<32x256xi32>
    %439 = arith.cmpi slt, %430, %438 : vector<32x256xi32>
    %440 = arith.andi %434, %439 : vector<32x256xi1>
    %441 = arith.extui %440 : vector<32x256xi1> to vector<32x256xi32>
    %442 = arith.sitofp %441 : vector<32x256xi32> to vector<32x256xf32>
    %443 = arith.mulf %388, %388 : vector<10x256xf32>
    %444 = tpu.concatenate %388, %443 in 1 : vector<10x256xf32>, vector<10x256xf32> -> vector<10x512xf32>
    %cst_146 = arith.constant dense<0.000000e+00> : vector<2x512xf32>
    %445 = tpu.matmul %400, %444, %cst_146 {dimension_numbers = #tpu.dot_dimension_numbers<[1], [0], [0], [1], [0, 0, 1, 1], [], []>} : vector<2x10xf32>, vector<10x512xf32>, vector<2x512xf32> -> vector<2x512xf32>
    %446 = vector.extract_strided_slice %445 {offsets = [0, 0], sizes = [2, 256], strides = [1, 1]} : vector<2x512xf32> to vector<2x256xf32>
    %447 = vector.extract_strided_slice %445 {offsets = [0, 256], sizes = [2, 256], strides = [1, 1]} : vector<2x512xf32> to vector<2x256xf32>
    %448 = tpu.concatenate %446, %447 in 0 : vector<2x256xf32>, vector<2x256xf32> -> vector<4x256xf32>
    %cst_147 = arith.constant dense<0.000000e+00> : vector<4x32xf32>
    %449 = tpu.matmul %448, %427, %cst_147 {dimension_numbers = #tpu.dot_dimension_numbers<[1], [0], [0], [1], [0, 0, 1, 1], [], []>} : vector<4x256xf32>, vector<256x32xf32>, vector<4x32xf32> -> vector<4x32xf32>
    %cst_148 = arith.constant 3.125000e-02 : f32
    %450 = vector.broadcast %cst_148 : f32 to vector<4x32xf32>
    %451 = arith.mulf %449, %450 : vector<4x32xf32>
    %452 = vector.extract_strided_slice %451 {offsets = [0, 0], sizes = [2, 32], strides = [1, 1]} : vector<4x32xf32> to vector<2x32xf32>
    %453 = vector.extract_strided_slice %451 {offsets = [2, 0], sizes = [2, 32], strides = [1, 1]} : vector<4x32xf32> to vector<2x32xf32>
    %454 = arith.mulf %452, %452 : vector<2x32xf32>
    %455 = arith.subf %453, %454 : vector<2x32xf32>
    %cst_149 = arith.constant 0.000000e+00 : f32
    %456 = vector.broadcast %cst_149 : f32 to vector<2x32xf32>
    %457 = arith.maximumf %455, %456 : vector<2x32xf32>
    %cst_150 = arith.constant 9.99999974E-6 : f32
    %458 = vector.broadcast %cst_150 : f32 to vector<2x32xf32>
    %459 = arith.addf %457, %458 : vector<2x32xf32>
    %460 = math.rsqrt %459 : vector<2x32xf32>
    %461 = tpu.concatenate %460, %452 in 0 : vector<2x32xf32>, vector<2x32xf32> -> vector<4x32xf32>
    %cst_151 = arith.constant dense<0.000000e+00> : vector<4x256xf32>
    %462 = tpu.matmul %461, %442, %cst_151 {dimension_numbers = #tpu.dot_dimension_numbers<[1], [0], [0], [1], [0, 0, 1, 1], [], []>} : vector<4x32xf32>, vector<32x256xf32>, vector<4x256xf32> -> vector<4x256xf32>
    %463 = vector.extract_strided_slice %462 {offsets = [0, 0], sizes = [2, 256], strides = [1, 1]} : vector<4x256xf32> to vector<2x256xf32>
    %464 = vector.broadcast %368 : vector<1x256xf32> to vector<2x256xf32>
    %465 = arith.mulf %463, %464 : vector<2x256xf32>
    %466 = vector.extract_strided_slice %462 {offsets = [2, 0], sizes = [2, 256], strides = [1, 1]} : vector<4x256xf32> to vector<2x256xf32>
    %467 = arith.mulf %466, %465 : vector<2x256xf32>
    %468 = vector.broadcast %369 : vector<1x256xf32> to vector<2x256xf32>
    %469 = arith.subf %468, %467 : vector<2x256xf32>
    %470 = tpu.concatenate %465, %469 in 1 : vector<2x256xf32>, vector<2x256xf32> -> vector<2x512xf32>
    %cst_152 = arith.constant dense<0.000000e+00> : vector<10x512xf32>
    %471 = tpu.matmul %412, %470, %cst_152 {dimension_numbers = #tpu.dot_dimension_numbers<[1], [0], [0], [1], [0, 0, 1, 1], [], []>} : vector<10x2xf32>, vector<2x512xf32>, vector<10x512xf32> -> vector<10x512xf32>
    %472 = vector.extract_strided_slice %471 {offsets = [0, 0], sizes = [10, 256], strides = [1, 1]} : vector<10x512xf32> to vector<10x256xf32>
    %473 = arith.mulf %388, %472 : vector<10x256xf32>
    %474 = vector.extract_strided_slice %471 {offsets = [0, 256], sizes = [10, 256], strides = [1, 1]} : vector<10x512xf32> to vector<10x256xf32>
    %475 = arith.addf %473, %474 : vector<10x256xf32>
    %476 = tpu.iota {dimensions = array<i32: 0>} : vector<4x10xi32>
    %477 = tpu.iota {dimensions = array<i32: 1>} : vector<4x10xi32>
    %c0_i32_153 = arith.constant 0 : i32
    %478 = vector.broadcast %c0_i32_153 : i32 to vector<4x10xi32>
    %479 = arith.cmpi sge, %476, %478 : vector<4x10xi32>
    %c2_i32_154 = arith.constant 2 : i32
    %480 = vector.broadcast %c2_i32_154 : i32 to vector<4x10xi32>
    %481 = arith.cmpi slt, %476, %480 : vector<4x10xi32>
    %482 = arith.andi %479, %481 : vector<4x10xi1>
    %c0_i32_155 = arith.constant 0 : i32
    %483 = vector.broadcast %c0_i32_155 : i32 to vector<4x10xi32>
    %484 = arith.subi %476, %483 : vector<4x10xi32>
    %c2_i32_156 = arith.constant 2 : i32
    %485 = vector.broadcast %c2_i32_156 : i32 to vector<4x10xi32>
    %486 = arith.muli %485, %484 : vector<4x10xi32>
    %c0_i32_157 = arith.constant 0 : i32
    %487 = vector.broadcast %c0_i32_157 : i32 to vector<4x10xi32>
    %488 = arith.addi %487, %486 : vector<4x10xi32>
    %c0_i32_158 = arith.constant 0 : i32
    %489 = vector.broadcast %c0_i32_158 : i32 to vector<4x10xi32>
    %490 = arith.addi %488, %489 : vector<4x10xi32>
    %491 = arith.cmpi eq, %477, %490 : vector<4x10xi32>
    %492 = arith.andi %482, %491 : vector<4x10xi1>
    %493 = arith.extui %492 : vector<4x10xi1> to vector<4x10xi32>
    %494 = arith.sitofp %493 : vector<4x10xi32> to vector<4x10xf32>
    %c2_i32_159 = arith.constant 2 : i32
    %495 = vector.broadcast %c2_i32_159 : i32 to vector<4x10xi32>
    %496 = arith.cmpi sge, %476, %495 : vector<4x10xi32>
    %c4_i32_160 = arith.constant 4 : i32
    %497 = vector.broadcast %c4_i32_160 : i32 to vector<4x10xi32>
    %498 = arith.cmpi slt, %476, %497 : vector<4x10xi32>
    %499 = arith.andi %496, %498 : vector<4x10xi1>
    %c2_i32_161 = arith.constant 2 : i32
    %500 = vector.broadcast %c2_i32_161 : i32 to vector<4x10xi32>
    %501 = arith.subi %476, %500 : vector<4x10xi32>
    %c2_i32_162 = arith.constant 2 : i32
    %502 = vector.broadcast %c2_i32_162 : i32 to vector<4x10xi32>
    %503 = arith.muli %502, %501 : vector<4x10xi32>
    %c6_i32_163 = arith.constant 6 : i32
    %504 = vector.broadcast %c6_i32_163 : i32 to vector<4x10xi32>
    %505 = arith.addi %504, %503 : vector<4x10xi32>
    %c0_i32_164 = arith.constant 0 : i32
    %506 = vector.broadcast %c0_i32_164 : i32 to vector<4x10xi32>
    %507 = arith.addi %505, %506 : vector<4x10xi32>
    %508 = arith.cmpi eq, %477, %507 : vector<4x10xi32>
    %509 = arith.andi %499, %508 : vector<4x10xi1>
    %510 = arith.extui %509 : vector<4x10xi1> to vector<4x10xi32>
    %511 = arith.sitofp %510 : vector<4x10xi32> to vector<4x10xf32>
    %512 = arith.addf %494, %511 : vector<4x10xf32>
    %cst_165 = arith.constant dense<0.000000e+00> : vector<4x256xf32>
    %513 = tpu.matmul %512, %475, %cst_165 {dimension_numbers = #tpu.dot_dimension_numbers<[1], [0], [0], [1], [0, 0, 1, 1], [], []>} : vector<4x10xf32>, vector<10x256xf32>, vector<4x256xf32> -> vector<4x256xf32>
    %514 = tpu.iota {dimensions = array<i32: 0>} : vector<4x10xi32>
    %515 = tpu.iota {dimensions = array<i32: 1>} : vector<4x10xi32>
    %c0_i32_166 = arith.constant 0 : i32
    %516 = vector.broadcast %c0_i32_166 : i32 to vector<4x10xi32>
    %517 = arith.cmpi sge, %514, %516 : vector<4x10xi32>
    %c2_i32_167 = arith.constant 2 : i32
    %518 = vector.broadcast %c2_i32_167 : i32 to vector<4x10xi32>
    %519 = arith.cmpi slt, %514, %518 : vector<4x10xi32>
    %520 = arith.andi %517, %519 : vector<4x10xi1>
    %c0_i32_168 = arith.constant 0 : i32
    %521 = vector.broadcast %c0_i32_168 : i32 to vector<4x10xi32>
    %522 = arith.subi %514, %521 : vector<4x10xi32>
    %c2_i32_169 = arith.constant 2 : i32
    %523 = vector.broadcast %c2_i32_169 : i32 to vector<4x10xi32>
    %524 = arith.muli %523, %522 : vector<4x10xi32>
    %c0_i32_170 = arith.constant 0 : i32
    %525 = vector.broadcast %c0_i32_170 : i32 to vector<4x10xi32>
    %526 = arith.addi %525, %524 : vector<4x10xi32>
    %c1_i32_171 = arith.constant 1 : i32
    %527 = vector.broadcast %c1_i32_171 : i32 to vector<4x10xi32>
    %528 = arith.addi %526, %527 : vector<4x10xi32>
    %529 = arith.cmpi eq, %515, %528 : vector<4x10xi32>
    %530 = arith.andi %520, %529 : vector<4x10xi1>
    %531 = arith.extui %530 : vector<4x10xi1> to vector<4x10xi32>
    %532 = arith.sitofp %531 : vector<4x10xi32> to vector<4x10xf32>
    %c2_i32_172 = arith.constant 2 : i32
    %533 = vector.broadcast %c2_i32_172 : i32 to vector<4x10xi32>
    %534 = arith.cmpi sge, %514, %533 : vector<4x10xi32>
    %c4_i32_173 = arith.constant 4 : i32
    %535 = vector.broadcast %c4_i32_173 : i32 to vector<4x10xi32>
    %536 = arith.cmpi slt, %514, %535 : vector<4x10xi32>
    %537 = arith.andi %534, %536 : vector<4x10xi1>
    %c2_i32_174 = arith.constant 2 : i32
    %538 = vector.broadcast %c2_i32_174 : i32 to vector<4x10xi32>
    %539 = arith.subi %514, %538 : vector<4x10xi32>
    %c2_i32_175 = arith.constant 2 : i32
    %540 = vector.broadcast %c2_i32_175 : i32 to vector<4x10xi32>
    %541 = arith.muli %540, %539 : vector<4x10xi32>
    %c6_i32_176 = arith.constant 6 : i32
    %542 = vector.broadcast %c6_i32_176 : i32 to vector<4x10xi32>
    %543 = arith.addi %542, %541 : vector<4x10xi32>
    %c1_i32_177 = arith.constant 1 : i32
    %544 = vector.broadcast %c1_i32_177 : i32 to vector<4x10xi32>
    %545 = arith.addi %543, %544 : vector<4x10xi32>
    %546 = arith.cmpi eq, %515, %545 : vector<4x10xi32>
    %547 = arith.andi %537, %546 : vector<4x10xi1>
    %548 = arith.extui %547 : vector<4x10xi1> to vector<4x10xi32>
    %549 = arith.sitofp %548 : vector<4x10xi32> to vector<4x10xf32>
    %550 = arith.addf %532, %549 : vector<4x10xf32>
    %cst_178 = arith.constant dense<0.000000e+00> : vector<4x256xf32>
    %551 = tpu.matmul %550, %475, %cst_178 {dimension_numbers = #tpu.dot_dimension_numbers<[1], [0], [0], [1], [0, 0, 1, 1], [], []>} : vector<4x10xf32>, vector<10x256xf32>, vector<4x256xf32> -> vector<4x256xf32>
    %552 = arith.maximumf %513, %551 : vector<4x256xf32>
    %553 = tpu.iota {dimensions = array<i32: 0>} : vector<256x256xi32>
    %554 = tpu.iota {dimensions = array<i32: 1>} : vector<256x256xi32>
    %c128_i32_179 = arith.constant 128 : i32
    %555 = vector.broadcast %c128_i32_179 : i32 to vector<256x256xi32>
    %556 = arith.cmpi sge, %554, %555 : vector<256x256xi32>
    %557 = arith.extui %556 : vector<256x256xi1> to vector<256x256xi32>
    %c128_i32_180 = arith.constant 128 : i32
    %558 = vector.broadcast %c128_i32_180 : i32 to vector<256x256xi32>
    %559 = arith.muli %557, %558 : vector<256x256xi32>
    %560 = arith.subi %554, %559 : vector<256x256xi32>
    %c63_i32_181 = arith.constant 63 : i32
    %561 = vector.broadcast %c63_i32_181 : i32 to vector<256x256xi32>
    %562 = arith.andi %560, %561 : vector<256x256xi32>
    %c2_i32_182 = arith.constant 2 : i32
    %563 = vector.broadcast %c2_i32_182 : i32 to vector<256x256xi32>
    %564 = arith.muli %563, %560 : vector<256x256xi32>
    %565 = arith.subi %564, %562 : vector<256x256xi32>
    %c64_i32 = arith.constant 64 : i32
    %566 = vector.broadcast %c64_i32 : i32 to vector<256x256xi32>
    %567 = arith.muli %557, %566 : vector<256x256xi32>
    %568 = arith.addi %565, %567 : vector<256x256xi32>
    %569 = arith.cmpi eq, %553, %568 : vector<256x256xi32>
    %570 = arith.extui %569 : vector<256x256xi1> to vector<256x256xi32>
    %571 = arith.sitofp %570 : vector<256x256xi32> to vector<256x256xf32>
    %cst_183 = arith.constant dense<0.000000e+00> : vector<4x256xf32>
    %572 = tpu.matmul %552, %571, %cst_183 {dimension_numbers = #tpu.dot_dimension_numbers<[1], [0], [0], [1], [0, 0, 1, 1], [], []>} : vector<4x256xf32>, vector<256x256xf32>, vector<4x256xf32> -> vector<4x256xf32>
    %573 = vector.extract_strided_slice %572 {offsets = [0, 0], sizes = [4, 128], strides = [1, 1]} : vector<4x256xf32> to vector<4x128xf32>
    %574 = vector.extract_strided_slice %572 {offsets = [0, 128], sizes = [4, 128], strides = [1, 1]} : vector<4x256xf32> to vector<4x128xf32>
    %575 = arith.maximumf %573, %574 : vector<4x128xf32>
    %cst_184 = arith.constant 0.000000e+00 : f32
    %576 = vector.broadcast %cst_184 : f32 to vector<4x128xf32>
    %577 = arith.maximumf %575, %576 : vector<4x128xf32>
    %c1_i32_185 = arith.constant 1 : i32
    %578 = tpu.memref_slice %arg20[%c1_i32_185] : memref<3x!tpu.dma_semaphore, #tpu.memory_space<semaphore_mem>> -> memref<1x!tpu.dma_semaphore, #tpu.memory_space<semaphore_mem>>
    %579 = tpu.memref_squeeze %578 : memref<1x!tpu.dma_semaphore, #tpu.memory_space<semaphore_mem>> -> memref<!tpu.dma_semaphore, #tpu.memory_space<semaphore_mem>>
    tpu.wait_dma2 semaphore(%579 : memref<!tpu.dma_semaphore, #tpu.memory_space<semaphore_mem>>) src(%arg7 : memref<256x256xbf16, #tpu.memory_space<any>>) dst(%arg18 : memref<256x256xbf16, #tpu.memory_space<vmem>>)
    %c2_i32_186 = arith.constant 2 : i32
    %580 = tpu.memref_slice %arg20[%c2_i32_186] : memref<3x!tpu.dma_semaphore, #tpu.memory_space<semaphore_mem>> -> memref<1x!tpu.dma_semaphore, #tpu.memory_space<semaphore_mem>>
    %581 = tpu.memref_squeeze %580 : memref<1x!tpu.dma_semaphore, #tpu.memory_space<semaphore_mem>> -> memref<!tpu.dma_semaphore, #tpu.memory_space<semaphore_mem>>
    tpu.wait_dma2 semaphore(%581 : memref<!tpu.dma_semaphore, #tpu.memory_space<semaphore_mem>>) src(%arg9 : memref<256x256xbf16, #tpu.memory_space<any>>) dst(%arg19 : memref<256x256xbf16, #tpu.memory_space<vmem>>)
    %582 = tpu.iota {dimensions = array<i32: 0>} : vector<2x4xi32>
    %583 = tpu.iota {dimensions = array<i32: 1>} : vector<2x4xi32>
    %c2_i32_187 = arith.constant 2 : i32
    %584 = vector.broadcast %c2_i32_187 : i32 to vector<2x4xi32>
    %585 = arith.muli %582, %584 : vector<2x4xi32>
    %c0_i32_188 = arith.constant 0 : i32
    %586 = vector.broadcast %c0_i32_188 : i32 to vector<2x4xi32>
    %587 = arith.addi %585, %586 : vector<2x4xi32>
    %588 = arith.cmpi eq, %583, %587 : vector<2x4xi32>
    %589 = arith.extui %588 : vector<2x4xi1> to vector<2x4xi32>
    %590 = arith.sitofp %589 : vector<2x4xi32> to vector<2x4xf32>
    %cst_189 = arith.constant dense<0.000000e+00> : vector<2x128xf32>
    %591 = tpu.matmul %590, %577, %cst_189 {dimension_numbers = #tpu.dot_dimension_numbers<[1], [0], [0], [1], [0, 0, 1, 1], [], []>} : vector<2x4xf32>, vector<4x128xf32>, vector<2x128xf32> -> vector<2x128xf32>
    %c2_i32_190 = arith.constant 2 : i32
    %592 = vector.broadcast %c2_i32_190 : i32 to vector<2x4xi32>
    %593 = arith.muli %582, %592 : vector<2x4xi32>
    %c1_i32_191 = arith.constant 1 : i32
    %594 = vector.broadcast %c1_i32_191 : i32 to vector<2x4xi32>
    %595 = arith.addi %593, %594 : vector<2x4xi32>
    %596 = arith.cmpi eq, %583, %595 : vector<2x4xi32>
    %597 = arith.extui %596 : vector<2x4xi1> to vector<2x4xi32>
    %598 = arith.sitofp %597 : vector<2x4xi32> to vector<2x4xf32>
    %cst_192 = arith.constant dense<0.000000e+00> : vector<2x128xf32>
    %599 = tpu.matmul %598, %577, %cst_192 {dimension_numbers = #tpu.dot_dimension_numbers<[1], [0], [0], [1], [0, 0, 1, 1], [], []>} : vector<2x4xf32>, vector<4x128xf32>, vector<2x128xf32> -> vector<2x128xf32>
    %600 = tpu.concatenate %591, %599 in 1 : vector<2x128xf32>, vector<2x128xf32> -> vector<2x256xf32>
    %601 = arith.truncf %600 : vector<2x256xf32> to vector<2x256xbf16>
    %c0_193 = arith.constant 0 : index
    %c0_194 = arith.constant 0 : index
    %602 = vector.load %arg18[%c0_193, %c0_194] : memref<256x256xbf16, #tpu.memory_space<vmem>>, vector<256x256xbf16>
    %cst_195 = arith.constant dense<0.000000e+00> : vector<2x256xf32>
    %603 = tpu.matmul %601, %602, %cst_195 {dimension_numbers = #tpu.dot_dimension_numbers<[1], [0], [0], [1], [0, 0, 1, 1], [], []>} : vector<2x256xbf16>, vector<256x256xbf16>, vector<2x256xf32> -> vector<2x256xf32>
    %c0_196 = arith.constant 0 : index
    %c0_197 = arith.constant 0 : index
    %604 = vector.load %arg8[%c0_196, %c0_197] : memref<1x256xf32, #tpu.memory_space<vmem>>, vector<1x256xf32>
    %605 = vector.broadcast %604 : vector<1x256xf32> to vector<2x256xf32>
    %606 = arith.addf %603, %605 : vector<2x256xf32>
    %cst_198 = arith.constant 0.000000e+00 : f32
    %607 = vector.broadcast %cst_198 : f32 to vector<2x256xf32>
    %608 = arith.maximumf %606, %607 : vector<2x256xf32>
    %609 = arith.truncf %608 : vector<2x256xf32> to vector<2x256xbf16>
    %c0_199 = arith.constant 0 : index
    %c0_200 = arith.constant 0 : index
    %610 = vector.load %arg19[%c0_199, %c0_200] : memref<256x256xbf16, #tpu.memory_space<vmem>>, vector<256x256xbf16>
    %cst_201 = arith.constant dense<0.000000e+00> : vector<2x256xf32>
    %611 = tpu.matmul %609, %610, %cst_201 {dimension_numbers = #tpu.dot_dimension_numbers<[1], [0], [0], [1], [0, 0, 1, 1], [], []>} : vector<2x256xbf16>, vector<256x256xbf16>, vector<2x256xf32> -> vector<2x256xf32>
    %c0_202 = arith.constant 0 : index
    %c0_203 = arith.constant 0 : index
    %612 = vector.load %arg10[%c0_202, %c0_203] : memref<1x256xf32, #tpu.memory_space<vmem>>, vector<1x256xf32>
    %613 = vector.broadcast %612 : vector<1x256xf32> to vector<2x256xf32>
    %614 = arith.addf %611, %613 : vector<2x256xf32>
    %cst_204 = arith.constant 0.000000e+00 : f32
    %615 = vector.broadcast %cst_204 : f32 to vector<2x256xf32>
    %616 = arith.maximumf %614, %615 : vector<2x256xf32>
    %c0_205 = arith.constant 0 : index
    %c0_206 = arith.constant 0 : index
    %617 = vector.load %arg11[%c0_205, %c0_206] : memref<256x10xf32, #tpu.memory_space<vmem>>, vector<256x10xf32>
    %cst_207 = arith.constant dense<0.000000e+00> : vector<2x10xf32>
    %618 = tpu.matmul %616, %617, %cst_207 {dimension_numbers = #tpu.dot_dimension_numbers<[1], [0], [0], [1], [0, 0, 1, 1], [], []>} : vector<2x256xf32>, vector<256x10xf32>, vector<2x10xf32> -> vector<2x10xf32>
    %c0_208 = arith.constant 0 : index
    %c0_209 = arith.constant 0 : index
    %619 = vector.load %arg12[%c0_208, %c0_209] : memref<1x10xf32, #tpu.memory_space<vmem>>, vector<1x10xf32>
    %620 = vector.broadcast %619 : vector<1x10xf32> to vector<2x10xf32>
    %621 = arith.addf %618, %620 : vector<2x10xf32>
    %c0_210 = arith.constant 0 : index
    %c0_211 = arith.constant 0 : index
    %622 = vector.load %arg13[%c0_210, %c0_211] : memref<2x10xf32, #tpu.memory_space<vmem>>, vector<2x10xf32>
    tpu.vector_store %arg13[%c0_210, %c0_211], %621 {strides = array<i32>} : memref<2x10xf32, #tpu.memory_space<vmem>>, vector<2x10xf32>,
    return
  }
}

</mosaic_0001>

<llo_original>
// kernel: group_cnn_forward.1
$region0: #{group_cnn_forward.1}
  #allocation0 [shape = 'u32[]', space=smem, size = 0x4, offset = 0x4, fixed_abs, tag = 'smem constant byte address 0x4 - core index']
  #allocation1 [shape = 'u32[144,128]{1,0:T(1,128)}', space=vmem, size = 0x12000, scoped, tag = 'internal scratch']
  #allocation2 [shape = 'f32[36,64]{1,0:T(8,128)}', space=vmem, size = 0x5000, scoped, tag = 'scratch operand']
  #allocation3 [shape = 'f32[20,128]{1,0:T(8,128)}', space=vmem, size = 0x3000, scoped, tag = 'scratch operand']
  #allocation4 [shape = 'f32[12,128]{1,0:T(8,128)}', space=vmem, size = 0x2000, scoped, tag = 'scratch operand']
  #allocation5 [shape = 'bf16[384,256]{1,0:T(16,128)(2,1)}', space=vmem, size = 0x30000, scoped, tag = 'scratch operand']
  #allocation6 [shape = 'bf16[256,256]{1,0:T(16,128)(2,1)}', space=vmem, size = 0x20000, scoped, tag = 'scratch operand']
  #allocation7 [shape = 'bf16[256,256]{1,0:T(16,128)(2,1)}', space=vmem, size = 0x20000, scoped, tag = 'scratch operand']
  #allocation8 [shape = 's32[3]{0}', space=sflag, size = 0xc, scoped, tag = 'scratch operand']
  #allocation11 [shape = 's32[]', space=sflag, size = 0x4, offset = 0, fixed_abs, tag = 'sflag constant byte address 0x0 - dummy sync flag']
  #allocation12 [shape = 's32[]', space=sflag, size = 0x4, offset = 0, fixed_abs, tag = 'sflag constant byte address 0x0 - dummy sync flag']
  #allocation13 [shape = 's32[]', space=sflag, size = 0x4, offset = 0, fixed_abs, tag = 'sflag constant byte address 0x0 - dummy sync flag']
  %s0 = inlined_call_operand.vmem [shape: f32[32,64], index: 0, kind: input, shape index: {}]
  %s1 = inlined_call_operand.vmem [shape: bf16[192,256], index: 1, kind: input, shape index: {}]
  %s2 = inlined_call_operand.vmem [shape: f32[3,256], index: 2, kind: input, shape index: {}]
  %s3 = inlined_call_operand.vmem [shape: bf16[384,256], index: 3, kind: input, shape index: {}]
  %s4 = inlined_call_operand.vmem [shape: f32[3,256], index: 4, kind: input, shape index: {}]
  %s5 = inlined_call_operand.vmem [shape: bf16[384,256], index: 5, kind: input, shape index: {}]
  %s6 = inlined_call_operand.vmem [shape: f32[3,256], index: 6, kind: input, shape index: {}]
  %s7 = inlined_call_operand.vmem [shape: bf16[256,256], index: 7, kind: input, shape index: {}]
  %s8 = inlined_call_operand.vmem [shape: f32[1,256], index: 8, kind: input, shape index: {}]
  %s9 = inlined_call_operand.vmem [shape: bf16[256,256], index: 9, kind: input, shape index: {}]
  %s10 = inlined_call_operand.vmem [shape: f32[1,256], index: 10, kind: input, shape index: {}]
  %s11 = inlined_call_operand.vmem [shape: f32[256,10], index: 11, kind: input, shape index: {}]
  %s12 = inlined_call_operand.vmem [shape: f32[1,10], index: 12, kind: input, shape index: {}]
  %s13 = inlined_call_operand.hbm [shape: f32[2,10], index: 13, kind: output, shape index: {}]
  %s14 = sld [smem:[#allocation0]]
  $region161: #{group_cnn_forward.1} parent=0
    _
  %s16 = ssub.s32 1, %s14
  %s17 = scalar_select 0, %s16, %s14
  $region1: #{group_cnn_forward.1} parent=0
    #allocation9 [shape = 'u8[1024]{0}', space=vmem, size = 0x400, scoped, tag = 'output window, operand 0, single buffered']
    #allocation10 [shape = 's32[1]{0}', space=sflag, size = 0x4, scoped, tag = 'scoped memory for group_cnn_forward.1']
    %18 = vsyncpa [#allocation10], 0
    // Predicated region
    $region2: #{group_cnn_forward.1} parent=1 // pred_check
      _
    $region3: #{group_cnn_forward.1} parent=1 // pred_check_branch
      %20 = sbr.rel (0) target = $region5
    $region4: #{group_cnn_forward.1} parent=1 // pred_region
      _
    $region5: #{group_cnn_forward.1} parent=1 // pred_fallthru
      _
    // Predicated region
    $region6: #{group_cnn_forward.1} parent=1 // pred_check
      _
    $region7: #{group_cnn_forward.1} parent=1 // pred_check_branch
      %22 = sbr.rel (0) target = $region9
    $region8: #{group_cnn_forward.1} parent=1 // pred_region
      _
    $region9: #{group_cnn_forward.1} parent=1 // pred_fallthru
      _
    // Predicated region
    $region10: #{group_cnn_forward.1} parent=1 // pred_check
      _
    $region11: #{group_cnn_forward.1} parent=1 // pred_check_branch
      %24 = sbr.rel (0) target = $region13
    $region12: #{group_cnn_forward.1} parent=1 // pred_region
      _
    $region13: #{group_cnn_forward.1} parent=1 // pred_fallthru
      _
    // Predicated region
    $region14: #{group_cnn_forward.1} parent=1 // pred_check
      _
    $region15: #{group_cnn_forward.1} parent=1 // pred_check_branch
      %26 = sbr.rel (0) target = $region17
    $region16: #{group_cnn_forward.1} parent=1 // pred_region
      _
    $region17: #{group_cnn_forward.1} parent=1 // pred_fallthru
      _
    // Predicated region
    $region18: #{group_cnn_forward.1} parent=1 // pred_check
      _
    $region19: #{group_cnn_forward.1} parent=1 // pred_check_branch
      %28 = sbr.rel (0) target = $region21
    $region20: #{group_cnn_forward.1} parent=1 // pred_region
      _
    $region21: #{group_cnn_forward.1} parent=1 // pred_fallthru
      _
    // Predicated region
    $region22: #{group_cnn_forward.1} parent=1 // pred_check
      _
    $region23: #{group_cnn_forward.1} parent=1 // pred_check_branch
      %30 = sbr.rel (0) target = $region25
    $region24: #{group_cnn_forward.1} parent=1 // pred_region
      _
    $region25: #{group_cnn_forward.1} parent=1 // pred_fallthru
      _
    // Predicated region
    $region26: #{group_cnn_forward.1} parent=1 // pred_check
      _
    $region27: #{group_cnn_forward.1} parent=1 // pred_check_branch
      %32 = sbr.rel (0) target = $region29
    $region28: #{group_cnn_forward.1} parent=1 // pred_region
      _
    $region29: #{group_cnn_forward.1} parent=1 // pred_fallthru
      _
    // Predicated region
    $region30: #{group_cnn_forward.1} parent=1 // pred_check
      _
    $region31: #{group_cnn_forward.1} parent=1 // pred_check_branch
      %34 = sbr.rel (0) target = $region33
    $region32: #{group_cnn_forward.1} parent=1 // pred_region
      _
    $region33: #{group_cnn_forward.1} parent=1 // pred_fallthru
      _
    // Predicated region
    $region34: #{group_cnn_forward.1} parent=1 // pred_check
      _
    $region35: #{group_cnn_forward.1} parent=1 // pred_check_branch
      %36 = sbr.rel (0) target = $region37
    $region36: #{group_cnn_forward.1} parent=1 // pred_region
      _
    $region37: #{group_cnn_forward.1} parent=1 // pred_fallthru
      _
    // Predicated region
    $region38: #{group_cnn_forward.1} parent=1 // pred_check
      _
    $region39: #{group_cnn_forward.1} parent=1 // pred_check_branch
      %38 = sbr.rel (0) target = $region41
    $region40: #{group_cnn_forward.1} parent=1 // pred_region
      _
    $region41: #{group_cnn_forward.1} parent=1 // pred_fallthru
      _
    %p41 = scmp.lt.u32.totalorder 4, 8
    %p42 = pneg %p41
    // Predicated region
    $region42: #{group_cnn_forward.1} parent=1 // pred_check
      _
    $region43: #{group_cnn_forward.1} parent=1 // pred_check_branch
      %44 = sbr.rel (%p41) target = $region45
    $region44: #{group_cnn_forward.1} parent=1 // pred_region
      %s249 = sand.u32 4, 7
      %p250 = scmp.eq.s32.totalorder %s249, 0
      %p251 = pneg %p250
      // Predicated region
      $region57: #{group_cnn_forward.1} parent=44 // pred_check
        _
      $region58: #{group_cnn_forward.1} parent=44 // pred_check_branch
        %253 = sbr.rel (%p250) target = $region60
      $region59: #{group_cnn_forward.1} parent=44 // pred_region
        %s254 = sand.u32 4, 7
        %s255 = ssub.s32 4, %s254
        %s256 = scalar_lea.vmem %s5, %s255
        %s257 = ssub.s32 4, %s254
        %s258 = scalar_lea.vmem [#allocation5], %s257
        loop: start=0, step=1, limit=1
        $region61: #{group_cnn_forward.1} parent=59 // loop_pre_header
          _
        $region62: #{group_cnn_forward.1} parent=59 // loop_header
          %s260 = sphi 0, %s264
          %p261 = scmp.ge.s32.totalorder %s260, 1
          %s265 = sphi %s5, %s5
          %s266 = sphi [#allocation5], [#allocation5]
        $region63: #{group_cnn_forward.1} parent=59 // loop_header_branch
          %263 = sbr.rel (%p261) target = $region67
        $region64: #{group_cnn_forward.1} parent=59 // loop_body
          _
        $region65: #{group_cnn_forward.1} parent=59 // loop_footer
          %s264 = sadd.s32 1, %s260
        $region66: #{group_cnn_forward.1} parent=59 // loop_footer_branch
          %259 = sbr.rel target = $region62
        $region67: #{group_cnn_forward.1} parent=59 // loop_exit
          _
        %s267 = sshllo.u32 0, %s254
        loop: start=0, step=1, limit=1
        $region68: #{group_cnn_forward.1} parent=59 // loop_pre_header
          _
        $region69: #{group_cnn_forward.1} parent=59 // loop_header
          %s269 = sphi 0, %s273
          %p270 = scmp.ge.s32.totalorder %s269, 1
          %s274 = sphi %s256, %s256
          %s275 = sphi %s258, %s258
        $region70: #{group_cnn_forward.1} parent=59 // loop_header_branch
          %272 = sbr.rel (%p270) target = $region74
        $region71: #{group_cnn_forward.1} parent=59 // loop_body
          %v276 = vld [vmem:[%s274] sm:%s267]
          %277 = vst [vmem:[%s275] sm:%s267] %v276
          %v278 = vld [vmem:[%s274 + $0x8] sm:%s267]
          %279 = vst [vmem:[%s275 + $0x4] sm:%s267] %v278
          %v280 = vld [vmem:[%s274 + $0x4] sm:%s267]
          %281 = vst [vmem:[%s275 + $0x8] sm:%s267] %v280
          %v282 = vld [vmem:[%s274 + $0xc] sm:%s267]
          %283 = vst [vmem:[%s275 + $0xc] sm:%s267] %v282
          %v284 = vld [vmem:[%s274 + $0x10] sm:%s267]
          %285 = vst [vmem:[%s275 + $0x10] sm:%s267] %v284
          %v286 = vld [vmem:[%s274 + $0x18] sm:%s267]
          %287 = vst [vmem:[%s275 + $0x14] sm:%s267] %v286
          %v288 = vld [vmem:[%s274 + $0x14] sm:%s267]
          %289 = vst [vmem:[%s275 + $0x18] sm:%s267] %v288
          %v290 = vld [vmem:[%s274 + $0x1c] sm:%s267]
          %291 = vst [vmem:[%s275 + $0x1c] sm:%s267] %v290
          %v292 = vld [vmem:[%s274 + $0x20] sm:%s267]
          %293 = vst [vmem:[%s275 + $0x20] sm:%s267] %v292
          %v294 = vld [vmem:[%s274 + $0x28] sm:%s267]
          %295 = vst [vmem:[%s275 + $0x24] sm:%s267] %v294
          %v296 = vld [vmem:[%s274 + $0x24] sm:%s267]
          %297 = vst [vmem:[%s275 + $0x28] sm:%s267] %v296
          %v298 = vld [vmem:[%s274 + $0x2c] sm:%s267]
          %299 = vst [vmem:[%s275 + $0x2c] sm:%s267] %v298
          %v300 = vld [vmem:[%s274 + $0x30] sm:%s267]
          %301 = vst [vmem:[%s275 + $0x30] sm:%s267] %v300
          %v302 = vld [vmem:[%s274 + $0x38] sm:%s267]
          %303 = vst [vmem:[%s275 + $0x34] sm:%s267] %v302
          %v304 = vld [vmem:[%s274 + $0x34] sm:%s267]
          %305 = vst [vmem:[%s275 + $0x38] sm:%s267] %v304
          %v306 = vld [vmem:[%s274 + $0x3c] sm:%s267]
          %307 = vst [vmem:[%s275 + $0x3c] sm:%s267] %v306
          %v308 = vld [vmem:[%s274 + $0x40] sm:%s267]
          %309 = vst [vmem:[%s275 + $0x40] sm:%s267] %v308
          %v310 = vld [vmem:[%s274 + $0x48] sm:%s267]
          %311 = vst [vmem:[%s275 + $0x44] sm:%s267] %v310
          %v312 = vld [vmem:[%s274 + $0x44] sm:%s267]
          %313 = vst [vmem:[%s275 + $0x48] sm:%s267] %v312
          %v314 = vld [vmem:[%s274 + $0x4c] sm:%s267]
          %315 = vst [vmem:[%s275 + $0x4c] sm:%s267] %v314
          %v316 = vld [vmem:[%s274 + $0x50] sm:%s267]
          %317 = vst [vmem:[%s275 + $0x50] sm:%s267] %v316
          %v318 = vld [vmem:[%s274 + $0x58] sm:%s267]
          %319 = vst [vmem:[%s275 + $0x54] sm:%s267] %v318
          %v320 = vld [vmem:[%s274 + $0x54] sm:%s267]
          %321 = vst [vmem:[%s275 + $0x58] sm:%s267] %v320
          %v322 = vld [vmem:[%s274 + $0x5c] sm:%s267]
          %323 = vst [vmem:[%s275 + $0x5c] sm:%s267] %v322
          %v324 = vld [vmem:[%s274 + $0x60] sm:%s267]
          %325 = vst [vmem:[%s275 + $0x60] sm:%s267] %v324
          %v326 = vld [vmem:[%s274 + $0x68] sm:%s267]
          %327 = vst [vmem:[%s275 + $0x64] sm:%s267] %v326
          %v328 = vld [vmem:[%s274 + $0x64] sm:%s267]
          %329 = vst [vmem:[%s275 + $0x68] sm:%s267] %v328
          %v330 = vld [vmem:[%s274 + $0x6c] sm:%s267]
          %331 = vst [vmem:[%s275 + $0x6c] sm:%s267] %v330
          %v332 = vld [vmem:[%s274 + $0x70] sm:%s267]
          %333 = vst [vmem:[%s275 + $0x70] sm:%s267] %v332
          %v334 = vld [vmem:[%s274 + $0x78] sm:%s267]
          %335 = vst [vmem:[%s275 + $0x74] sm:%s267] %v334
          %v336 = vld [vmem:[%s274 + $0x74] sm:%s267]
          %337 = vst [vmem:[%s275 + $0x78] sm:%s267] %v336
          %v338 = vld [vmem:[%s274 + $0x7c] sm:%s267]
          %339 = vst [vmem:[%s275 + $0x7c] sm:%s267] %v338
          %v340 = vld [vmem:[%s274 + $0x80] sm:%s267]
          %341 = vst [vmem:[%s275 + $0x80] sm:%s267] %v340
          %v342 = vld [vmem:[%s274 + $0x88] sm:%s267]
          %343 = vst [vmem:[%s275 + $0x84] sm:%s267] %v342
          %v344 = vld [vmem:[%s274 + $0x84] sm:%s267]
          %345 = vst [vmem:[%s275 + $0x88] sm:%s267] %v344
          %v346 = vld [vmem:[%s274 + $0x8c] sm:%s267]
          %347 = vst [vmem:[%s275 + $0x8c] sm:%s267] %v346
          %v348 = vld [vmem:[%s274 + $0x90] sm:%s267]
          %349 = vst [vmem:[%s275 + $0x90] sm:%s267] %v348
          %v350 = vld [vmem:[%s274 + $0x98] sm:%s267]
          %351 = vst [vmem:[%s275 + $0x94] sm:%s267] %v350
          %v352 = vld [vmem:[%s274 + $0x94] sm:%s267]
          %353 = vst [vmem:[%s275 + $0x98] sm:%s267] %v352
          %v354 = vld [vmem:[%s274 + $0x9c] sm:%s267]
          %355 = vst [vmem:[%s275 + $0x9c] sm:%s267] %v354
          %v356 = vld [vmem:[%s274 + $0xa0] sm:%s267]
          %357 = vst [vmem:[%s275 + $0xa0] sm:%s267] %v356
          %v358 = vld [vmem:[%s274 + $0xa8] sm:%s267]
          %359 = vst [vmem:[%s275 + $0xa4] sm:%s267] %v358
          %v360 = vld [vmem:[%s274 + $0xa4] sm:%s267]
          %361 = vst [vmem:[%s275 + $0xa8] sm:%s267] %v360
          %v362 = vld [vmem:[%s274 + $0xac] sm:%s267]
          %363 = vst [vmem:[%s275 + $0xac] sm:%s267] %v362
          %v364 = vld [vmem:[%s274 + $0xb0] sm:%s267]
          %365 = vst [vmem:[%s275 + $0xb0] sm:%s267] %v364
          %v366 = vld [vmem:[%s274 + $0xb8] sm:%s267]
          %367 = vst [vmem:[%s275 + $0xb4] sm:%s267] %v366
          %v368 = vld [vmem:[%s274 + $0xb4] sm:%s267]
          %369 = vst [vmem:[%s275 + $0xb8] sm:%s267] %v368
          %v370 = vld [vmem:[%s274 + $0xbc] sm:%s267]
          %371 = vst [vmem:[%s275 + $0xbc] sm:%s267] %v370
          %v372 = vld [vmem:[%s274 + $0xc0] sm:%s267]
          %373 = vst [vmem:[%s275 + $0xc0] sm:%s267] %v372
          %v374 = vld [vmem:[%s274 + $0xc8] sm:%s267]
          %375 = vst [vmem:[%s275 + $0xc4] sm:%s267] %v374
          %v376 = vld [vmem:[%s274 + $0xc4] sm:%s267]
          %377 = vst [vmem:[%s275 + $0xc8] sm:%s267] %v376
          %v378 = vld [vmem:[%s274 + $0xcc] sm:%s267]
          %379 = vst [vmem:[%s275 + $0xcc] sm:%s267] %v378
          %v380 = vld [vmem:[%s274 + $0xd0] sm:%s267]
          %381 = vst [vmem:[%s275 + $0xd0] sm:%s267] %v380
          %v382 = vld [vmem:[%s274 + $0xd8] sm:%s267]
          %383 = vst [vmem:[%s275 + $0xd4] sm:%s267] %v382
          %v384 = vld [vmem:[%s274 + $0xd4] sm:%s267]
          %385 = vst [vmem:[%s275 + $0xd8] sm:%s267] %v384
          %v386 = vld [vmem:[%s274 + $0xdc] sm:%s267]
          %387 = vst [vmem:[%s275 + $0xdc] sm:%s267] %v386
          %v388 = vld [vmem:[%s274 + $0xe0] sm:%s267]
          %389 = vst [vmem:[%s275 + $0xe0] sm:%s267] %v388
          %v390 = vld [vmem:[%s274 + $0xe8] sm:%s267]
          %391 = vst [vmem:[%s275 + $0xe4] sm:%s267] %v390
          %v392 = vld [vmem:[%s274 + $0xe4] sm:%s267]
          %393 = vst [vmem:[%s275 + $0xe8] sm:%s267] %v392
          %v394 = vld [vmem:[%s274 + $0xec] sm:%s267]
          %395 = vst [vmem:[%s275 + $0xec] sm:%s267] %v394
          %v396 = vld [vmem:[%s274 + $0xf0] sm:%s267]
          %397 = vst [vmem:[%s275 + $0xf0] sm:%s267] %v396
          %v398 = vld [vmem:[%s274 + $0xf8] sm:%s267]
          %399 = vst [vmem:[%s275 + $0xf4] sm:%s267] %v398
          %v400 = vld [vmem:[%s274 + $0xf4] sm:%s267]
          %401 = vst [vmem:[%s275 + $0xf8] sm:%s267] %v400
          %v402 = vld [vmem:[%s274 + $0xfc] sm:%s267]
          %403 = vst [vmem:[%s275 + $0xfc] sm:%s267] %v402
          %v404 = vld [vmem:[%s274 + $0x100] sm:%s267]
          %405 = vst [vmem:[%s275 + $0x100] sm:%s267] %v404
          %v406 = vld [vmem:[%s274 + $0x108] sm:%s267]
          %407 = vst [vmem:[%s275 + $0x104] sm:%s267] %v406
          %v408 = vld [vmem:[%s274 + $0x104] sm:%s267]
          %409 = vst [vmem:[%s275 + $0x108] sm:%s267] %v408
          %v410 = vld [vmem:[%s274 + $0x10c] sm:%s267]
          %411 = vst [vmem:[%s275 + $0x10c] sm:%s267] %v410
          %v412 = vld [vmem:[%s274 + $0x110] sm:%s267]
          %413 = vst [vmem:[%s275 + $0x110] sm:%s267] %v412
          %v414 = vld [vmem:[%s274 + $0x118] sm:%s267]
          %415 = vst [vmem:[%s275 + $0x114] sm:%s267] %v414
          %v416 = vld [vmem:[%s274 + $0x114] sm:%s267]
          %417 = vst [vmem:[%s275 + $0x118] sm:%s267] %v416
          %v418 = vld [vmem:[%s274 + $0x11c] sm:%s267]
          %419 = vst [vmem:[%s275 + $0x11c] sm:%s267] %v418
          %v420 = vld [vmem:[%s274 + $0x120] sm:%s267]
          %421 = vst [vmem:[%s275 + $0x120] sm:%s267] %v420
          %v422 = vld [vmem:[%s274 + $0x128] sm:%s267]
          %423 = vst [vmem:[%s275 + $0x124] sm:%s267] %v422
          %v424 = vld [vmem:[%s274 + $0x124] sm:%s267]
          %425 = vst [vmem:[%s275 + $0x128] sm:%s267] %v424
          %v426 = vld [vmem:[%s274 + $0x12c] sm:%s267]
          %427 = vst [vmem:[%s275 + $0x12c] sm:%s267] %v426
          %v428 = vld [vmem:[%s274 + $0x130] sm:%s267]
          %429 = vst [vmem:[%s275 + $0x130] sm:%s267] %v428
          %v430 = vld [vmem:[%s274 + $0x138] sm:%s267]
          %431 = vst [vmem:[%s275 + $0x134] sm:%s267] %v430
          %v432 = vld [vmem:[%s274 + $0x134] sm:%s267]
          %433 = vst [vmem:[%s275 + $0x138] sm:%s267] %v432
          %v434 = vld [vmem:[%s274 + $0x13c] sm:%s267]
          %435 = vst [vmem:[%s275 + $0x13c] sm:%s267] %v434
          %v436 = vld [vmem:[%s274 + $0x140] sm:%s267]
          %437 = vst [vmem:[%s275 + $0x140] sm:%s267] %v436
          %v438 = vld [vmem:[%s274 + $0x148] sm:%s267]
          %439 = vst [vmem:[%s275 + $0x144] sm:%s267] %v438
          %v440 = vld [vmem:[%s274 + $0x144] sm:%s267]
          %441 = vst [vmem:[%s275 + $0x148] sm:%s267] %v440
          %v442 = vld [vmem:[%s274 + $0x14c] sm:%s267]
          %443 = vst [vmem:[%s275 + $0x14c] sm:%s267] %v442
          %v444 = vld [vmem:[%s274 + $0x150] sm:%s267]
          %445 = vst [vmem:[%s275 + $0x150] sm:%s267] %v444
          %v446 = vld [vmem:[%s274 + $0x158] sm:%s267]
          %447 = vst [vmem:[%s275 + $0x154] sm:%s267] %v446
          %v448 = vld [vmem:[%s274 + $0x154] sm:%s267]
          %449 = vst [vmem:[%s275 + $0x158] sm:%s267] %v448
          %v450 = vld [vmem:[%s274 + $0x15c] sm:%s267]
          %451 = vst [vmem:[%s275 + $0x15c] sm:%s267] %v450
          %v452 = vld [vmem:[%s274 + $0x160] sm:%s267]
          %453 = vst [vmem:[%s275 + $0x160] sm:%s267] %v452
          %v454 = vld [vmem:[%s274 + $0x168] sm:%s267]
          %455 = vst [vmem:[%s275 + $0x164] sm:%s267] %v454
          %v456 = vld [vmem:[%s274 + $0x164] sm:%s267]
          %457 = vst [vmem:[%s275 + $0x168] sm:%s267] %v456
          %v458 = vld [vmem:[%s274 + $0x16c] sm:%s267]
          %459 = vst [vmem:[%s275 + $0x16c] sm:%s267] %v458
          %v460 = vld [vmem:[%s274 + $0x170] sm:%s267]
          %461 = vst [vmem:[%s275 + $0x170] sm:%s267] %v460
          %v462 = vld [vmem:[%s274 + $0x178] sm:%s267]
          %463 = vst [vmem:[%s275 + $0x174] sm:%s267] %v462
          %v464 = vld [vmem:[%s274 + $0x174] sm:%s267]
          %465 = vst [vmem:[%s275 + $0x178] sm:%s267] %v464
          %v466 = vld [vmem:[%s274 + $0x17c] sm:%s267]
          %467 = vst [vmem:[%s275 + $0x17c] sm:%s267] %v466
        $region72: #{group_cnn_forward.1} parent=59 // loop_footer
          %s273 = sadd.s32 1, %s269
        $region73: #{group_cnn_forward.1} parent=59 // loop_footer_branch
          %268 = sbr.rel target = $region69
        $region74: #{group_cnn_forward.1} parent=59 // loop_exit
          _
      $region60: #{group_cnn_forward.1} parent=44 // pred_fallthru
        _
    $region45: #{group_cnn_forward.1} parent=1 // pred_fallthru
      _
    // Predicated region
    $region46: #{group_cnn_forward.1} parent=1 // pred_check
      %p45 = pneg %p41
    $region47: #{group_cnn_forward.1} parent=1 // pred_check_branch
      %47 = sbr.rel (%p45) target = $region49
    $region48: #{group_cnn_forward.1} parent=1 // pred_region
      %s48 = sshllo.u32 0, 4
      loop: start=0, step=1, limit=1
      $region50: #{group_cnn_forward.1} parent=48 // loop_pre_header
        _
      $region51: #{group_cnn_forward.1} parent=48 // loop_header
        %s50 = sphi 0, %s54
        %p51 = scmp.ge.s32.totalorder %s50, 1
        %s55 = sphi %s5, %s5
        %s56 = sphi [#allocation5], [#allocation5]
      $region52: #{group_cnn_forward.1} parent=48 // loop_header_branch
        %53 = sbr.rel (%p51) target = $region56
      $region53: #{group_cnn_forward.1} parent=48 // loop_body
        %v57 = vld [vmem:[%s55] sm:%s48]
        %58 = vst [vmem:[%s56] sm:%s48] %v57
        %v59 = vld [vmem:[%s55 + $0x8] sm:%s48]
        %60 = vst [vmem:[%s56 + $0x4] sm:%s48] %v59
        %v61 = vld [vmem:[%s55 + $0x4] sm:%s48]
        %62 = vst [vmem:[%s56 + $0x8] sm:%s48] %v61
        %v63 = vld [vmem:[%s55 + $0xc] sm:%s48]
        %64 = vst [vmem:[%s56 + $0xc] sm:%s48] %v63
        %v65 = vld [vmem:[%s55 + $0x10] sm:%s48]
        %66 = vst [vmem:[%s56 + $0x10] sm:%s48] %v65
        %v67 = vld [vmem:[%s55 + $0x18] sm:%s48]
        %68 = vst [vmem:[%s56 + $0x14] sm:%s48] %v67
        %v69 = vld [vmem:[%s55 + $0x14] sm:%s48]
        %70 = vst [vmem:[%s56 + $0x18] sm:%s48] %v69
        %v71 = vld [vmem:[%s55 + $0x1c] sm:%s48]
        %72 = vst [vmem:[%s56 + $0x1c] sm:%s48] %v71
        %v73 = vld [vmem:[%s55 + $0x20] sm:%s48]
        %74 = vst [vmem:[%s56 + $0x20] sm:%s48] %v73
        %v75 = vld [vmem:[%s55 + $0x28] sm:%s48]
        %76 = vst [vmem:[%s56 + $0x24] sm:%s48] %v75
        %v77 = vld [vmem:[%s55 + $0x24] sm:%s48]
        %78 = vst [vmem:[%s56 + $0x28] sm:%s48] %v77
        %v79 = vld [vmem:[%s55 + $0x2c] sm:%s48]
        %80 = vst [vmem:[%s56 + $0x2c] sm:%s48] %v79
        %v81 = vld [vmem:[%s55 + $0x30] sm:%s48]
        %82 = vst [vmem:[%s56 + $0x30] sm:%s48] %v81
        %v83 = vld [vmem:[%s55 + $0x38] sm:%s48]
        %84 = vst [vmem:[%s56 + $0x34] sm:%s48] %v83
        %v85 = vld [vmem:[%s55 + $0x34] sm:%s48]
        %86 = vst [vmem:[%s56 + $0x38] sm:%s48] %v85
        %v87 = vld [vmem:[%s55 + $0x3c] sm:%s48]
        %88 = vst [vmem:[%s56 + $0x3c] sm:%s48] %v87
        %v89 = vld [vmem:[%s55 + $0x40] sm:%s48]
        %90 = vst [vmem:[%s56 + $0x40] sm:%s48] %v89
        %v91 = vld [vmem:[%s55 + $0x48] sm:%s48]
        %92 = vst [vmem:[%s56 + $0x44] sm:%s48] %v91
        %v93 = vld [vmem:[%s55 + $0x44] sm:%s48]
        %94 = vst [vmem:[%s56 + $0x48] sm:%s48] %v93
        %v95 = vld [vmem:[%s55 + $0x4c] sm:%s48]
        %96 = vst [vmem:[%s56 + $0x4c] sm:%s48] %v95
        %v97 = vld [vmem:[%s55 + $0x50] sm:%s48]
        %98 = vst [vmem:[%s56 + $0x50] sm:%s48] %v97
        %v99 = vld [vmem:[%s55 + $0x58] sm:%s48]
        %100 = vst [vmem:[%s56 + $0x54] sm:%s48] %v99
        %v101 = vld [vmem:[%s55 + $0x54] sm:%s48]
        %102 = vst [vmem:[%s56 + $0x58] sm:%s48] %v101
        %v103 = vld [vmem:[%s55 + $0x5c] sm:%s48]
        %104 = vst [vmem:[%s56 + $0x5c] sm:%s48] %v103
        %v105 = vld [vmem:[%s55 + $0x60] sm:%s48]
        %106 = vst [vmem:[%s56 + $0x60] sm:%s48] %v105
        %v107 = vld [vmem:[%s55 + $0x68] sm:%s48]
        %108 = vst [vmem:[%s56 + $0x64] sm:%s48] %v107
        %v109 = vld [vmem:[%s55 + $0x64] sm:%s48]
        %110 = vst [vmem:[%s56 + $0x68] sm:%s48] %v109
        %v111 = vld [vmem:[%s55 + $0x6c] sm:%s48]
        %112 = vst [vmem:[%s56 + $0x6c] sm:%s48] %v111
        %v113 = vld [vmem:[%s55 + $0x70] sm:%s48]
        %114 = vst [vmem:[%s56 + $0x70] sm:%s48] %v113
        %v115 = vld [vmem:[%s55 + $0x78] sm:%s48]
        %116 = vst [vmem:[%s56 + $0x74] sm:%s48] %v115
        %v117 = vld [vmem:[%s55 + $0x74] sm:%s48]
        %118 = vst [vmem:[%s56 + $0x78] sm:%s48] %v117
        %v119 = vld [vmem:[%s55 + $0x7c] sm:%s48]
        %120 = vst [vmem:[%s56 + $0x7c] sm:%s48] %v119
        %v121 = vld [vmem:[%s55 + $0x80] sm:%s48]
        %122 = vst [vmem:[%s56 + $0x80] sm:%s48] %v121
        %v123 = vld [vmem:[%s55 + $0x88] sm:%s48]
        %124 = vst [vmem:[%s56 + $0x84] sm:%s48] %v123
        %v125 = vld [vmem:[%s55 + $0x84] sm:%s48]
        %126 = vst [vmem:[%s56 + $0x88] sm:%s48] %v125
        %v127 = vld [vmem:[%s55 + $0x8c] sm:%s48]
        %128 = vst [vmem:[%s56 + $0x8c] sm:%s48] %v127
        %v129 = vld [vmem:[%s55 + $0x90] sm:%s48]
        %130 = vst [vmem:[%s56 + $0x90] sm:%s48] %v129
        %v131 = vld [vmem:[%s55 + $0x98] sm:%s48]
        %132 = vst [vmem:[%s56 + $0x94] sm:%s48] %v131
        %v133 = vld [vmem:[%s55 + $0x94] sm:%s48]
        %134 = vst [vmem:[%s56 + $0x98] sm:%s48] %v133
        %v135 = vld [vmem:[%s55 + $0x9c] sm:%s48]
        %136 = vst [vmem:[%s56 + $0x9c] sm:%s48] %v135
        %v137 = vld [vmem:[%s55 + $0xa0] sm:%s48]
        %138 = vst [vmem:[%s56 + $0xa0] sm:%s48] %v137
        %v139 = vld [vmem:[%s55 + $0xa8] sm:%s48]
        %140 = vst [vmem:[%s56 + $0xa4] sm:%s48] %v139
        %v141 = vld [vmem:[%s55 + $0xa4] sm:%s48]
        %142 = vst [vmem:[%s56 + $0xa8] sm:%s48] %v141
        %v143 = vld [vmem:[%s55 + $0xac] sm:%s48]
        %144 = vst [vmem:[%s56 + $0xac] sm:%s48] %v143
        %v145 = vld [vmem:[%s55 + $0xb0] sm:%s48]
        %146 = vst [vmem:[%s56 + $0xb0] sm:%s48] %v145
        %v147 = vld [vmem:[%s55 + $0xb8] sm:%s48]
        %148 = vst [vmem:[%s56 + $0xb4] sm:%s48] %v147
        %v149 = vld [vmem:[%s55 + $0xb4] sm:%s48]
        %150 = vst [vmem:[%s56 + $0xb8] sm:%s48] %v149
        %v151 = vld [vmem:[%s55 + $0xbc] sm:%s48]
        %152 = vst [vmem:[%s56 + $0xbc] sm:%s48] %v151
        %v153 = vld [vmem:[%s55 + $0xc0] sm:%s48]
        %154 = vst [vmem:[%s56 + $0xc0] sm:%s48] %v153
        %v155 = vld [vmem:[%s55 + $0xc8] sm:%s48]
        %156 = vst [vmem:[%s56 + $0xc4] sm:%s48] %v155
        %v157 = vld [vmem:[%s55 + $0xc4] sm:%s48]
        %158 = vst [vmem:[%s56 + $0xc8] sm:%s48] %v157
        %v159 = vld [vmem:[%s55 + $0xcc] sm:%s48]
        %160 = vst [vmem:[%s56 + $0xcc] sm:%s48] %v159
        %v161 = vld [vmem:[%s55 + $0xd0] sm:%s48]
        %162 = vst [vmem:[%s56 + $0xd0] sm:%s48] %v161
        %v163 = vld [vmem:[%s55 + $0xd8] sm:%s48]
        %164 = vst [vmem:[%s56 + $0xd4] sm:%s48] %v163
        %v165 = vld [vmem:[%s55 + $0xd4] sm:%s48]
        %166 = vst [vmem:[%s56 + $0xd8] sm:%s48] %v165
        %v167 = vld [vmem:[%s55 + $0xdc] sm:%s48]
        %168 = vst [vmem:[%s56 + $0xdc] sm:%s48] %v167
        %v169 = vld [vmem:[%s55 + $0xe0] sm:%s48]
        %170 = vst [vmem:[%s56 + $0xe0] sm:%s48] %v169
        %v171 = vld [vmem:[%s55 + $0xe8] sm:%s48]
        %172 = vst [vmem:[%s56 + $0xe4] sm:%s48] %v171
        %v173 = vld [vmem:[%s55 + $0xe4] sm:%s48]
        %174 = vst [vmem:[%s56 + $0xe8] sm:%s48] %v173
        %v175 = vld [vmem:[%s55 + $0xec] sm:%s48]
        %176 = vst [vmem:[%s56 + $0xec] sm:%s48] %v175
        %v177 = vld [vmem:[%s55 + $0xf0] sm:%s48]
        %178 = vst [vmem:[%s56 + $0xf0] sm:%s48] %v177
        %v179 = vld [vmem:[%s55 + $0xf8] sm:%s48]
        %180 = vst [vmem:[%s56 + $0xf4] sm:%s48] %v179
        %v181 = vld [vmem:[%s55 + $0xf4] sm:%s48]
        %182 = vst [vmem:[%s56 + $0xf8] sm:%s48] %v181
        %v183 = vld [vmem:[%s55 + $0xfc] sm:%s48]
        %184 = vst [vmem:[%s56 + $0xfc] sm:%s48] %v183
        %v185 = vld [vmem:[%s55 + $0x100] sm:%s48]
        %186 = vst [vmem:[%s56 + $0x100] sm:%s48] %v185
        %v187 = vld [vmem:[%s55 + $0x108] sm:%s48]
        %188 = vst [vmem:[%s56 + $0x104] sm:%s48] %v187
        %v189 = vld [vmem:[%s55 + $0x104] sm:%s48]
        %190 = vst [vmem:[%s56 + $0x108] sm:%s48] %v189
        %v191 = vld [vmem:[%s55 + $0x10c] sm:%s48]
        %192 = vst [vmem:[%s56 + $0x10c] sm:%s48] %v191
        %v193 = vld [vmem:[%s55 + $0x110] sm:%s48]
        %194 = vst [vmem:[%s56 + $0x110] sm:%s48] %v193
        %v195 = vld [vmem:[%s55 + $0x118] sm:%s48]
        %196 = vst [vmem:[%s56 + $0x114] sm:%s48] %v195
        %v197 = vld [vmem:[%s55 + $0x114] sm:%s48]
        %198 = vst [vmem:[%s56 + $0x118] sm:%s48] %v197
        %v199 = vld [vmem:[%s55 + $0x11c] sm:%s48]
        %200 = vst [vmem:[%s56 + $0x11c] sm:%s48] %v199
        %v201 = vld [vmem:[%s55 + $0x120] sm:%s48]
        %202 = vst [vmem:[%s56 + $0x120] sm:%s48] %v201
        %v203 = vld [vmem:[%s55 + $0x128] sm:%s48]
        %204 = vst [vmem:[%s56 + $0x124] sm:%s48] %v203
        %v205 = vld [vmem:[%s55 + $0x124] sm:%s48]
        %206 = vst [vmem:[%s56 + $0x128] sm:%s48] %v205
        %v207 = vld [vmem:[%s55 + $0x12c] sm:%s48]
        %208 = vst [vmem:[%s56 + $0x12c] sm:%s48] %v207
        %v209 = vld [vmem:[%s55 + $0x130] sm:%s48]
        %210 = vst [vmem:[%s56 + $0x130] sm:%s48] %v209
        %v211 = vld [vmem:[%s55 + $0x138] sm:%s48]
        %212 = vst [vmem:[%s56 + $0x134] sm:%s48] %v211
        %v213 = vld [vmem:[%s55 + $0x134] sm:%s48]
        %214 = vst [vmem:[%s56 + $0x138] sm:%s48] %v213
        %v215 = vld [vmem:[%s55 + $0x13c] sm:%s48]
        %216 = vst [vmem:[%s56 + $0x13c] sm:%s48] %v215
        %v217 = vld [vmem:[%s55 + $0x140] sm:%s48]
        %218 = vst [vmem:[%s56 + $0x140] sm:%s48] %v217
        %v219 = vld [vmem:[%s55 + $0x148] sm:%s48]
        %220 = vst [vmem:[%s56 + $0x144] sm:%s48] %v219
        %v221 = vld [vmem:[%s55 + $0x144] sm:%s48]
        %222 = vst [vmem:[%s56 + $0x148] sm:%s48] %v221
        %v223 = vld [vmem:[%s55 + $0x14c] sm:%s48]
        %224 = vst [vmem:[%s56 + $0x14c] sm:%s48] %v223
        %v225 = vld [vmem:[%s55 + $0x150] sm:%s48]
        %226 = vst [vmem:[%s56 + $0x150] sm:%s48] %v225
        %v227 = vld [vmem:[%s55 + $0x158] sm:%s48]
        %228 = vst [vmem:[%s56 + $0x154] sm:%s48] %v227
        %v229 = vld [vmem:[%s55 + $0x154] sm:%s48]
        %230 = vst [vmem:[%s56 + $0x158] sm:%s48] %v229
        %v231 = vld [vmem:[%s55 + $0x15c] sm:%s48]
        %232 = vst [vmem:[%s56 + $0x15c] sm:%s48] %v231
        %v233 = vld [vmem:[%s55 + $0x160] sm:%s48]
        %234 = vst [vmem:[%s56 + $0x160] sm:%s48] %v233
        %v235 = vld [vmem:[%s55 + $0x168] sm:%s48]
        %236 = vst [vmem:[%s56 + $0x164] sm:%s48] %v235
        %v237 = vld [vmem:[%s55 + $0x164] sm:%s48]
        %238 = vst [vmem:[%s56 + $0x168] sm:%s48] %v237
        %v239 = vld [vmem:[%s55 + $0x16c] sm:%s48]
        %240 = vst [vmem:[%s56 + $0x16c] sm:%s48] %v239
        %v241 = vld [vmem:[%s55 + $0x170] sm:%s48]
        %242 = vst [vmem:[%s56 + $0x170] sm:%s48] %v241
        %v243 = vld [vmem:[%s55 + $0x178] sm:%s48]
        %244 = vst [vmem:[%s56 + $0x174] sm:%s48] %v243
        %v245 = vld [vmem:[%s55 + $0x174] sm:%s48]
        %246 = vst [vmem:[%s56 + $0x178] sm:%s48] %v245
        %v247 = vld [vmem:[%s55 + $0x17c] sm:%s48]
        %248 = vst [vmem:[%s56 + $0x17c] sm:%s48] %v247
      $region54: #{group_cnn_forward.1} parent=48 // loop_footer
        %s54 = sadd.s32 1, %s50
      $region55: #{group_cnn_forward.1} parent=48 // loop_footer_branch
        %49 = sbr.rel target = $region51
      $region56: #{group_cnn_forward.1} parent=48 // loop_exit
        _
    $region49: #{group_cnn_forward.1} parent=1 // pred_fallthru
      _
    // Predicated region
    $region75: #{group_cnn_forward.1} parent=1 // pred_check
      _
    $region76: #{group_cnn_forward.1} parent=1 // pred_check_branch
      %470 = sbr.rel (0) target = $region78
    $region77: #{group_cnn_forward.1} parent=1 // pred_region
      %471 = vsyncadd [#allocation8], 6144
    $region78: #{group_cnn_forward.1} parent=1 // pred_fallthru
      _
    %s472 = scalar_lea.sflag [#allocation8], 1
    %p474 = scmp.lt.u32.totalorder 4, 8
    %p475 = pneg %p474
    // Predicated region
    $region79: #{group_cnn_forward.1} parent=1 // pred_check
      _
    $region80: #{group_cnn_forward.1} parent=1 // pred_check_branch
      %477 = sbr.rel (%p474) target = $region82
    $region81: #{group_cnn_forward.1} parent=1 // pred_region
      %s618 = sand.u32 4, 7
      %p619 = scmp.eq.s32.totalorder %s618, 0
      %p620 = pneg %p619
      // Predicated region
      $region94: #{group_cnn_forward.1} parent=81 // pred_check
        _
      $region95: #{group_cnn_forward.1} parent=81 // pred_check_branch
        %622 = sbr.rel (%p619) target = $region97
      $region96: #{group_cnn_forward.1} parent=81 // pred_region
        %s623 = sand.u32 4, 7
        %s624 = ssub.s32 4, %s623
        %s625 = scalar_lea.vmem %s7, %s624
        %s626 = ssub.s32 4, %s623
        %s627 = scalar_lea.vmem [#allocation6], %s626
        loop: start=0, step=1, limit=1
        $region98: #{group_cnn_forward.1} parent=96 // loop_pre_header
          _
        $region99: #{group_cnn_forward.1} parent=96 // loop_header
          %s629 = sphi 0, %s633
          %p630 = scmp.ge.s32.totalorder %s629, 1
          %s634 = sphi %s7, %s7
          %s635 = sphi [#allocation6], [#allocation6]
        $region100: #{group_cnn_forward.1} parent=96 // loop_header_branch
          %632 = sbr.rel (%p630) target = $region104
        $region101: #{group_cnn_forward.1} parent=96 // loop_body
          _
        $region102: #{group_cnn_forward.1} parent=96 // loop_footer
          %s633 = sadd.s32 1, %s629
        $region103: #{group_cnn_forward.1} parent=96 // loop_footer_branch
          %628 = sbr.rel target = $region99
        $region104: #{group_cnn_forward.1} parent=96 // loop_exit
          _
        %s636 = sshllo.u32 0, %s623
        loop: start=0, step=1, limit=1
        $region105: #{group_cnn_forward.1} parent=96 // loop_pre_header
          _
        $region106: #{group_cnn_forward.1} parent=96 // loop_header
          %s638 = sphi 0, %s642
          %p639 = scmp.ge.s32.totalorder %s638, 1
          %s643 = sphi %s625, %s625
          %s644 = sphi %s627, %s627
        $region107: #{group_cnn_forward.1} parent=96 // loop_header_branch
          %641 = sbr.rel (%p639) target = $region111
        $region108: #{group_cnn_forward.1} parent=96 // loop_body
          %v645 = vld [vmem:[%s643] sm:%s636]
          %646 = vst [vmem:[%s644] sm:%s636] %v645
          %v647 = vld [vmem:[%s643 + $0x8] sm:%s636]
          %648 = vst [vmem:[%s644 + $0x4] sm:%s636] %v647
          %v649 = vld [vmem:[%s643 + $0x4] sm:%s636]
          %650 = vst [vmem:[%s644 + $0x8] sm:%s636] %v649
          %v651 = vld [vmem:[%s643 + $0xc] sm:%s636]
          %652 = vst [vmem:[%s644 + $0xc] sm:%s636] %v651
          %v653 = vld [vmem:[%s643 + $0x10] sm:%s636]
          %654 = vst [vmem:[%s644 + $0x10] sm:%s636] %v653
          %v655 = vld [vmem:[%s643 + $0x18] sm:%s636]
          %656 = vst [vmem:[%s644 + $0x14] sm:%s636] %v655
          %v657 = vld [vmem:[%s643 + $0x14] sm:%s636]
          %658 = vst [vmem:[%s644 + $0x18] sm:%s636] %v657
          %v659 = vld [vmem:[%s643 + $0x1c] sm:%s636]
          %660 = vst [vmem:[%s644 + $0x1c] sm:%s636] %v659
          %v661 = vld [vmem:[%s643 + $0x20] sm:%s636]
          %662 = vst [vmem:[%s644 + $0x20] sm:%s636] %v661
          %v663 = vld [vmem:[%s643 + $0x28] sm:%s636]
          %664 = vst [vmem:[%s644 + $0x24] sm:%s636] %v663
          %v665 = vld [vmem:[%s643 + $0x24] sm:%s636]
          %666 = vst [vmem:[%s644 + $0x28] sm:%s636] %v665
          %v667 = vld [vmem:[%s643 + $0x2c] sm:%s636]
          %668 = vst [vmem:[%s644 + $0x2c] sm:%s636] %v667
          %v669 = vld [vmem:[%s643 + $0x30] sm:%s636]
          %670 = vst [vmem:[%s644 + $0x30] sm:%s636] %v669
          %v671 = vld [vmem:[%s643 + $0x38] sm:%s636]
          %672 = vst [vmem:[%s644 + $0x34] sm:%s636] %v671
          %v673 = vld [vmem:[%s643 + $0x34] sm:%s636]
          %674 = vst [vmem:[%s644 + $0x38] sm:%s636] %v673
          %v675 = vld [vmem:[%s643 + $0x3c] sm:%s636]
          %676 = vst [vmem:[%s644 + $0x3c] sm:%s636] %v675
          %v677 = vld [vmem:[%s643 + $0x40] sm:%s636]
          %678 = vst [vmem:[%s644 + $0x40] sm:%s636] %v677
          %v679 = vld [vmem:[%s643 + $0x48] sm:%s636]
          %680 = vst [vmem:[%s644 + $0x44] sm:%s636] %v679
          %v681 = vld [vmem:[%s643 + $0x44] sm:%s636]
          %682 = vst [vmem:[%s644 + $0x48] sm:%s636] %v681
          %v683 = vld [vmem:[%s643 + $0x4c] sm:%s636]
          %684 = vst [vmem:[%s644 + $0x4c] sm:%s636] %v683
          %v685 = vld [vmem:[%s643 + $0x50] sm:%s636]
          %686 = vst [vmem:[%s644 + $0x50] sm:%s636] %v685
          %v687 = vld [vmem:[%s643 + $0x58] sm:%s636]
          %688 = vst [vmem:[%s644 + $0x54] sm:%s636] %v687
          %v689 = vld [vmem:[%s643 + $0x54] sm:%s636]
          %690 = vst [vmem:[%s644 + $0x58] sm:%s636] %v689
          %v691 = vld [vmem:[%s643 + $0x5c] sm:%s636]
          %692 = vst [vmem:[%s644 + $0x5c] sm:%s636] %v691
          %v693 = vld [vmem:[%s643 + $0x60] sm:%s636]
          %694 = vst [vmem:[%s644 + $0x60] sm:%s636] %v693
          %v695 = vld [vmem:[%s643 + $0x68] sm:%s636]
          %696 = vst [vmem:[%s644 + $0x64] sm:%s636] %v695
          %v697 = vld [vmem:[%s643 + $0x64] sm:%s636]
          %698 = vst [vmem:[%s644 + $0x68] sm:%s636] %v697
          %v699 = vld [vmem:[%s643 + $0x6c] sm:%s636]
          %700 = vst [vmem:[%s644 + $0x6c] sm:%s636] %v699
          %v701 = vld [vmem:[%s643 + $0x70] sm:%s636]
          %702 = vst [vmem:[%s644 + $0x70] sm:%s636] %v701
          %v703 = vld [vmem:[%s643 + $0x78] sm:%s636]
          %704 = vst [vmem:[%s644 + $0x74] sm:%s636] %v703
          %v705 = vld [vmem:[%s643 + $0x74] sm:%s636]
          %706 = vst [vmem:[%s644 + $0x78] sm:%s636] %v705
          %v707 = vld [vmem:[%s643 + $0x7c] sm:%s636]
          %708 = vst [vmem:[%s644 + $0x7c] sm:%s636] %v707
          %v709 = vld [vmem:[%s643 + $0x80] sm:%s636]
          %710 = vst [vmem:[%s644 + $0x80] sm:%s636] %v709
          %v711 = vld [vmem:[%s643 + $0x88] sm:%s636]
          %712 = vst [vmem:[%s644 + $0x84] sm:%s636] %v711
          %v713 = vld [vmem:[%s643 + $0x84] sm:%s636]
          %714 = vst [vmem:[%s644 + $0x88] sm:%s636] %v713
          %v715 = vld [vmem:[%s643 + $0x8c] sm:%s636]
          %716 = vst [vmem:[%s644 + $0x8c] sm:%s636] %v715
          %v717 = vld [vmem:[%s643 + $0x90] sm:%s636]
          %718 = vst [vmem:[%s644 + $0x90] sm:%s636] %v717
          %v719 = vld [vmem:[%s643 + $0x98] sm:%s636]
          %720 = vst [vmem:[%s644 + $0x94] sm:%s636] %v719
          %v721 = vld [vmem:[%s643 + $0x94] sm:%s636]
          %722 = vst [vmem:[%s644 + $0x98] sm:%s636] %v721
          %v723 = vld [vmem:[%s643 + $0x9c] sm:%s636]
          %724 = vst [vmem:[%s644 + $0x9c] sm:%s636] %v723
          %v725 = vld [vmem:[%s643 + $0xa0] sm:%s636]
          %726 = vst [vmem:[%s644 + $0xa0] sm:%s636] %v725
          %v727 = vld [vmem:[%s643 + $0xa8] sm:%s636]
          %728 = vst [vmem:[%s644 + $0xa4] sm:%s636] %v727
          %v729 = vld [vmem:[%s643 + $0xa4] sm:%s636]
          %730 = vst [vmem:[%s644 + $0xa8] sm:%s636] %v729
          %v731 = vld [vmem:[%s643 + $0xac] sm:%s636]
          %732 = vst [vmem:[%s644 + $0xac] sm:%s636] %v731
          %v733 = vld [vmem:[%s643 + $0xb0] sm:%s636]
          %734 = vst [vmem:[%s644 + $0xb0] sm:%s636] %v733
          %v735 = vld [vmem:[%s643 + $0xb8] sm:%s636]
          %736 = vst [vmem:[%s644 + $0xb4] sm:%s636] %v735
          %v737 = vld [vmem:[%s643 + $0xb4] sm:%s636]
          %738 = vst [vmem:[%s644 + $0xb8] sm:%s636] %v737
          %v739 = vld [vmem:[%s643 + $0xbc] sm:%s636]
          %740 = vst [vmem:[%s644 + $0xbc] sm:%s636] %v739
          %v741 = vld [vmem:[%s643 + $0xc0] sm:%s636]
          %742 = vst [vmem:[%s644 + $0xc0] sm:%s636] %v741
          %v743 = vld [vmem:[%s643 + $0xc8] sm:%s636]
          %744 = vst [vmem:[%s644 + $0xc4] sm:%s636] %v743
          %v745 = vld [vmem:[%s643 + $0xc4] sm:%s636]
          %746 = vst [vmem:[%s644 + $0xc8] sm:%s636] %v745
          %v747 = vld [vmem:[%s643 + $0xcc] sm:%s636]
          %748 = vst [vmem:[%s644 + $0xcc] sm:%s636] %v747
          %v749 = vld [vmem:[%s643 + $0xd0] sm:%s636]
          %750 = vst [vmem:[%s644 + $0xd0] sm:%s636] %v749
          %v751 = vld [vmem:[%s643 + $0xd8] sm:%s636]
          %752 = vst [vmem:[%s644 + $0xd4] sm:%s636] %v751
          %v753 = vld [vmem:[%s643 + $0xd4] sm:%s636]
          %754 = vst [vmem:[%s644 + $0xd8] sm:%s636] %v753
          %v755 = vld [vmem:[%s643 + $0xdc] sm:%s636]
          %756 = vst [vmem:[%s644 + $0xdc] sm:%s636] %v755
          %v757 = vld [vmem:[%s643 + $0xe0] sm:%s636]
          %758 = vst [vmem:[%s644 + $0xe0] sm:%s636] %v757
          %v759 = vld [vmem:[%s643 + $0xe8] sm:%s636]
          %760 = vst [vmem:[%s644 + $0xe4] sm:%s636] %v759
          %v761 = vld [vmem:[%s643 + $0xe4] sm:%s636]
          %762 = vst [vmem:[%s644 + $0xe8] sm:%s636] %v761
          %v763 = vld [vmem:[%s643 + $0xec] sm:%s636]
          %764 = vst [vmem:[%s644 + $0xec] sm:%s636] %v763
          %v765 = vld [vmem:[%s643 + $0xf0] sm:%s636]
          %766 = vst [vmem:[%s644 + $0xf0] sm:%s636] %v765
          %v767 = vld [vmem:[%s643 + $0xf8] sm:%s636]
          %768 = vst [vmem:[%s644 + $0xf4] sm:%s636] %v767
          %v769 = vld [vmem:[%s643 + $0xf4] sm:%s636]
          %770 = vst [vmem:[%s644 + $0xf8] sm:%s636] %v769
          %v771 = vld [vmem:[%s643 + $0xfc] sm:%s636]
          %772 = vst [vmem:[%s644 + $0xfc] sm:%s636] %v771
        $region109: #{group_cnn_forward.1} parent=96 // loop_footer
          %s642 = sadd.s32 1, %s638
        $region110: #{group_cnn_forward.1} parent=96 // loop_footer_branch
          %637 = sbr.rel target = $region106
        $region111: #{group_cnn_forward.1} parent=96 // loop_exit
          _
      $region97: #{group_cnn_forward.1} parent=81 // pred_fallthru
        _
    $region82: #{group_cnn_forward.1} parent=1 // pred_fallthru
      _
    // Predicated region
    $region83: #{group_cnn_forward.1} parent=1 // pred_check
      %p478 = pneg %p474
    $region84: #{group_cnn_forward.1} parent=1 // pred_check_branch
      %480 = sbr.rel (%p478) target = $region86
    $region85: #{group_cnn_forward.1} parent=1 // pred_region
      %s481 = sshllo.u32 0, 4
      loop: start=0, step=1, limit=1
      $region87: #{group_cnn_forward.1} parent=85 // loop_pre_header
        _
      $region88: #{group_cnn_forward.1} parent=85 // loop_header
        %s483 = sphi 0, %s487
        %p484 = scmp.ge.s32.totalorder %s483, 1
        %s488 = sphi %s7, %s7
        %s489 = sphi [#allocation6], [#allocation6]
      $region89: #{group_cnn_forward.1} parent=85 // loop_header_branch
        %486 = sbr.rel (%p484) target = $region93
      $region90: #{group_cnn_forward.1} parent=85 // loop_body
        %v490 = vld [vmem:[%s488] sm:%s481]
        %491 = vst [vmem:[%s489] sm:%s481] %v490
        %v492 = vld [vmem:[%s488 + $0x8] sm:%s481]
        %493 = vst [vmem:[%s489 + $0x4] sm:%s481] %v492
        %v494 = vld [vmem:[%s488 + $0x4] sm:%s481]
        %495 = vst [vmem:[%s489 + $0x8] sm:%s481] %v494
        %v496 = vld [vmem:[%s488 + $0xc] sm:%s481]
        %497 = vst [vmem:[%s489 + $0xc] sm:%s481] %v496
        %v498 = vld [vmem:[%s488 + $0x10] sm:%s481]
        %499 = vst [vmem:[%s489 + $0x10] sm:%s481] %v498
        %v500 = vld [vmem:[%s488 + $0x18] sm:%s481]
        %501 = vst [vmem:[%s489 + $0x14] sm:%s481] %v500
        %v502 = vld [vmem:[%s488 + $0x14] sm:%s481]
        %503 = vst [vmem:[%s489 + $0x18] sm:%s481] %v502
        %v504 = vld [vmem:[%s488 + $0x1c] sm:%s481]
        %505 = vst [vmem:[%s489 + $0x1c] sm:%s481] %v504
        %v506 = vld [vmem:[%s488 + $0x20] sm:%s481]
        %507 = vst [vmem:[%s489 + $0x20] sm:%s481] %v506
        %v508 = vld [vmem:[%s488 + $0x28] sm:%s481]
        %509 = vst [vmem:[%s489 + $0x24] sm:%s481] %v508
        %v510 = vld [vmem:[%s488 + $0x24] sm:%s481]
        %511 = vst [vmem:[%s489 + $0x28] sm:%s481] %v510
        %v512 = vld [vmem:[%s488 + $0x2c] sm:%s481]
        %513 = vst [vmem:[%s489 + $0x2c] sm:%s481] %v512
        %v514 = vld [vmem:[%s488 + $0x30] sm:%s481]
        %515 = vst [vmem:[%s489 + $0x30] sm:%s481] %v514
        %v516 = vld [vmem:[%s488 + $0x38] sm:%s481]
        %517 = vst [vmem:[%s489 + $0x34] sm:%s481] %v516
        %v518 = vld [vmem:[%s488 + $0x34] sm:%s481]
        %519 = vst [vmem:[%s489 + $0x38] sm:%s481] %v518
        %v520 = vld [vmem:[%s488 + $0x3c] sm:%s481]
        %521 = vst [vmem:[%s489 + $0x3c] sm:%s481] %v520
        %v522 = vld [vmem:[%s488 + $0x40] sm:%s481]
        %523 = vst [vmem:[%s489 + $0x40] sm:%s481] %v522
        %v524 = vld [vmem:[%s488 + $0x48] sm:%s481]
        %525 = vst [vmem:[%s489 + $0x44] sm:%s481] %v524
        %v526 = vld [vmem:[%s488 + $0x44] sm:%s481]
        %527 = vst [vmem:[%s489 + $0x48] sm:%s481] %v526
        %v528 = vld [vmem:[%s488 + $0x4c] sm:%s481]
        %529 = vst [vmem:[%s489 + $0x4c] sm:%s481] %v528
        %v530 = vld [vmem:[%s488 + $0x50] sm:%s481]
        %531 = vst [vmem:[%s489 + $0x50] sm:%s481] %v530
        %v532 = vld [vmem:[%s488 + $0x58] sm:%s481]
        %533 = vst [vmem:[%s489 + $0x54] sm:%s481] %v532
        %v534 = vld [vmem:[%s488 + $0x54] sm:%s481]
        %535 = vst [vmem:[%s489 + $0x58] sm:%s481] %v534
        %v536 = vld [vmem:[%s488 + $0x5c] sm:%s481]
        %537 = vst [vmem:[%s489 + $0x5c] sm:%s481] %v536
        %v538 = vld [vmem:[%s488 + $0x60] sm:%s481]
        %539 = vst [vmem:[%s489 + $0x60] sm:%s481] %v538
        %v540 = vld [vmem:[%s488 + $0x68] sm:%s481]
        %541 = vst [vmem:[%s489 + $0x64] sm:%s481] %v540
        %v542 = vld [vmem:[%s488 + $0x64] sm:%s481]
        %543 = vst [vmem:[%s489 + $0x68] sm:%s481] %v542
        %v544 = vld [vmem:[%s488 + $0x6c] sm:%s481]
        %545 = vst [vmem:[%s489 + $0x6c] sm:%s481] %v544
        %v546 = vld [vmem:[%s488 + $0x70] sm:%s481]
        %547 = vst [vmem:[%s489 + $0x70] sm:%s481] %v546
        %v548 = vld [vmem:[%s488 + $0x78] sm:%s481]
        %549 = vst [vmem:[%s489 + $0x74] sm:%s481] %v548
        %v550 = vld [vmem:[%s488 + $0x74] sm:%s481]
        %551 = vst [vmem:[%s489 + $0x78] sm:%s481] %v550
        %v552 = vld [vmem:[%s488 + $0x7c] sm:%s481]
        %553 = vst [vmem:[%s489 + $0x7c] sm:%s481] %v552
        %v554 = vld [vmem:[%s488 + $0x80] sm:%s481]
        %555 = vst [vmem:[%s489 + $0x80] sm:%s481] %v554
        %v556 = vld [vmem:[%s488 + $0x88] sm:%s481]
        %557 = vst [vmem:[%s489 + $0x84] sm:%s481] %v556
        %v558 = vld [vmem:[%s488 + $0x84] sm:%s481]
        %559 = vst [vmem:[%s489 + $0x88] sm:%s481] %v558
        %v560 = vld [vmem:[%s488 + $0x8c] sm:%s481]
        %561 = vst [vmem:[%s489 + $0x8c] sm:%s481] %v560
        %v562 = vld [vmem:[%s488 + $0x90] sm:%s481]
        %563 = vst [vmem:[%s489 + $0x90] sm:%s481] %v562
        %v564 = vld [vmem:[%s488 + $0x98] sm:%s481]
        %565 = vst [vmem:[%s489 + $0x94] sm:%s481] %v564
        %v566 = vld [vmem:[%s488 + $0x94] sm:%s481]
        %567 = vst [vmem:[%s489 + $0x98] sm:%s481] %v566
        %v568 = vld [vmem:[%s488 + $0x9c] sm:%s481]
        %569 = vst [vmem:[%s489 + $0x9c] sm:%s481] %v568
        %v570 = vld [vmem:[%s488 + $0xa0] sm:%s481]
        %571 = vst [vmem:[%s489 + $0xa0] sm:%s481] %v570
        %v572 = vld [vmem:[%s488 + $0xa8] sm:%s481]
        %573 = vst [vmem:[%s489 + $0xa4] sm:%s481] %v572
        %v574 = vld [vmem:[%s488 + $0xa4] sm:%s481]
        %575 = vst [vmem:[%s489 + $0xa8] sm:%s481] %v574
        %v576 = vld [vmem:[%s488 + $0xac] sm:%s481]
        %577 = vst [vmem:[%s489 + $0xac] sm:%s481] %v576
        %v578 = vld [vmem:[%s488 + $0xb0] sm:%s481]
        %579 = vst [vmem:[%s489 + $0xb0] sm:%s481] %v578
        %v580 = vld [vmem:[%s488 + $0xb8] sm:%s481]
        %581 = vst [vmem:[%s489 + $0xb4] sm:%s481] %v580
        %v582 = vld [vmem:[%s488 + $0xb4] sm:%s481]
        %583 = vst [vmem:[%s489 + $0xb8] sm:%s481] %v582
        %v584 = vld [vmem:[%s488 + $0xbc] sm:%s481]
        %585 = vst [vmem:[%s489 + $0xbc] sm:%s481] %v584
        %v586 = vld [vmem:[%s488 + $0xc0] sm:%s481]
        %587 = vst [vmem:[%s489 + $0xc0] sm:%s481] %v586
        %v588 = vld [vmem:[%s488 + $0xc8] sm:%s481]
        %589 = vst [vmem:[%s489 + $0xc4] sm:%s481] %v588
        %v590 = vld [vmem:[%s488 + $0xc4] sm:%s481]
        %591 = vst [vmem:[%s489 + $0xc8] sm:%s481] %v590
        %v592 = vld [vmem:[%s488 + $0xcc] sm:%s481]
        %593 = vst [vmem:[%s489 + $0xcc] sm:%s481] %v592
        %v594 = vld [vmem:[%s488 + $0xd0] sm:%s481]
        %595 = vst [vmem:[%s489 + $0xd0] sm:%s481] %v594
        %v596 = vld [vmem:[%s488 + $0xd8] sm:%s481]
        %597 = vst [vmem:[%s489 + $0xd4] sm:%s481] %v596
        %v598 = vld [vmem:[%s488 + $0xd4] sm:%s481]
        %599 = vst [vmem:[%s489 + $0xd8] sm:%s481] %v598
        %v600 = vld [vmem:[%s488 + $0xdc] sm:%s481]
        %601 = vst [vmem:[%s489 + $0xdc] sm:%s481] %v600
        %v602 = vld [vmem:[%s488 + $0xe0] sm:%s481]
        %603 = vst [vmem:[%s489 + $0xe0] sm:%s481] %v602
        %v604 = vld [vmem:[%s488 + $0xe8] sm:%s481]
        %605 = vst [vmem:[%s489 + $0xe4] sm:%s481] %v604
        %v606 = vld [vmem:[%s488 + $0xe4] sm:%s481]
        %607 = vst [vmem:[%s489 + $0xe8] sm:%s481] %v606
        %v608 = vld [vmem:[%s488 + $0xec] sm:%s481]
        %609 = vst [vmem:[%s489 + $0xec] sm:%s481] %v608
        %v610 = vld [vmem:[%s488 + $0xf0] sm:%s481]
        %611 = vst [vmem:[%s489 + $0xf0] sm:%s481] %v610
        %v612 = vld [vmem:[%s488 + $0xf8] sm:%s481]
        %613 = vst [vmem:[%s489 + $0xf4] sm:%s481] %v612
        %v614 = vld [vmem:[%s488 + $0xf4] sm:%s481]
        %615 = vst [vmem:[%s489 + $0xf8] sm:%s481] %v614
        %v616 = vld [vmem:[%s488 + $0xfc] sm:%s481]
        %617 = vst [vmem:[%s489 + $0xfc] sm:%s481] %v616
      $region91: #{group_cnn_forward.1} parent=85 // loop_footer
        %s487 = sadd.s32 1, %s483
      $region92: #{group_cnn_forward.1} parent=85 // loop_footer_branch
        %482 = sbr.rel target = $region88
      $region93: #{group_cnn_forward.1} parent=85 // loop_exit
        _
    $region86: #{group_cnn_forward.1} parent=1 // pred_fallthru
      _
    // Predicated region
    $region112: #{group_cnn_forward.1} parent=1 // pred_check
      _
    $region113: #{group_cnn_forward.1} parent=1 // pred_check_branch
      %775 = sbr.rel (0) target = $region115
    $region114: #{group_cnn_forward.1} parent=1 // pred_region
      %776 = vsyncadd %s472, 4096
    $region115: #{group_cnn_forward.1} parent=1 // pred_fallthru
      _
    %s777 = scalar_lea.sflag [#allocation8], 2
    %p779 = scmp.lt.u32.totalorder 4, 8
    %p780 = pneg %p779
    // Predicated region
    $region116: #{group_cnn_forward.1} parent=1 // pred_check
      _
    $region117: #{group_cnn_forward.1} parent=1 // pred_check_branch
      %782 = sbr.rel (%p779) target = $region119
    $region118: #{group_cnn_forward.1} parent=1 // pred_region
      %s923 = sand.u32 4, 7
      %p924 = scmp.eq.s32.totalorder %s923, 0
      %p925 = pneg %p924
      // Predicated region
      $region131: #{group_cnn_forward.1} parent=118 // pred_check
        _
      $region132: #{group_cnn_forward.1} parent=118 // pred_check_branch
        %927 = sbr.rel (%p924) target = $region134
      $region133: #{group_cnn_forward.1} parent=118 // pred_region
        %s928 = sand.u32 4, 7
        %s929 = ssub.s32 4, %s928
        %s930 = scalar_lea.vmem %s9, %s929
        %s931 = ssub.s32 4, %s928
        %s932 = scalar_lea.vmem [#allocation7], %s931
        loop: start=0, step=1, limit=1
        $region135: #{group_cnn_forward.1} parent=133 // loop_pre_header
          _
        $region136: #{group_cnn_forward.1} parent=133 // loop_header
          %s934 = sphi 0, %s938
          %p935 = scmp.ge.s32.totalorder %s934, 1
          %s939 = sphi %s9, %s9
          %s940 = sphi [#allocation7], [#allocation7]
        $region137: #{group_cnn_forward.1} parent=133 // loop_header_branch
          %937 = sbr.rel (%p935) target = $region141
        $region138: #{group_cnn_forward.1} parent=133 // loop_body
          _
        $region139: #{group_cnn_forward.1} parent=133 // loop_footer
          %s938 = sadd.s32 1, %s934
        $region140: #{group_cnn_forward.1} parent=133 // loop_footer_branch
          %933 = sbr.rel target = $region136
        $region141: #{group_cnn_forward.1} parent=133 // loop_exit
          _
        %s941 = sshllo.u32 0, %s928
        loop: start=0, step=1, limit=1
        $region142: #{group_cnn_forward.1} parent=133 // loop_pre_header
          _
        $region143: #{group_cnn_forward.1} parent=133 // loop_header
          %s943 = sphi 0, %s947
          %p944 = scmp.ge.s32.totalorder %s943, 1
          %s948 = sphi %s930, %s930
          %s949 = sphi %s932, %s932
        $region144: #{group_cnn_forward.1} parent=133 // loop_header_branch
          %946 = sbr.rel (%p944) target = $region148
        $region145: #{group_cnn_forward.1} parent=133 // loop_body
          %v950 = vld [vmem:[%s948] sm:%s941]
          %951 = vst [vmem:[%s949] sm:%s941] %v950
          %v952 = vld [vmem:[%s948 + $0x8] sm:%s941]
          %953 = vst [vmem:[%s949 + $0x4] sm:%s941] %v952
          %v954 = vld [vmem:[%s948 + $0x4] sm:%s941]
          %955 = vst [vmem:[%s949 + $0x8] sm:%s941] %v954
          %v956 = vld [vmem:[%s948 + $0xc] sm:%s941]
          %957 = vst [vmem:[%s949 + $0xc] sm:%s941] %v956
          %v958 = vld [vmem:[%s948 + $0x10] sm:%s941]
          %959 = vst [vmem:[%s949 + $0x10] sm:%s941] %v958
          %v960 = vld [vmem:[%s948 + $0x18] sm:%s941]
          %961 = vst [vmem:[%s949 + $0x14] sm:%s941] %v960
          %v962 = vld [vmem:[%s948 + $0x14] sm:%s941]
          %963 = vst [vmem:[%s949 + $0x18] sm:%s941] %v962
          %v964 = vld [vmem:[%s948 + $0x1c] sm:%s941]
          %965 = vst [vmem:[%s949 + $0x1c] sm:%s941] %v964
          %v966 = vld [vmem:[%s948 + $0x20] sm:%s941]
          %967 = vst [vmem:[%s949 + $0x20] sm:%s941] %v966
          %v968 = vld [vmem:[%s948 + $0x28] sm:%s941]
          %969 = vst [vmem:[%s949 + $0x24] sm:%s941] %v968
          %v970 = vld [vmem:[%s948 + $0x24] sm:%s941]
          %971 = vst [vmem:[%s949 + $0x28] sm:%s941] %v970
          %v972 = vld [vmem:[%s948 + $0x2c] sm:%s941]
          %973 = vst [vmem:[%s949 + $0x2c] sm:%s941] %v972
          %v974 = vld [vmem:[%s948 + $0x30] sm:%s941]
          %975 = vst [vmem:[%s949 + $0x30] sm:%s941] %v974
          %v976 = vld [vmem:[%s948 + $0x38] sm:%s941]
          %977 = vst [vmem:[%s949 + $0x34] sm:%s941] %v976
          %v978 = vld [vmem:[%s948 + $0x34] sm:%s941]
          %979 = vst [vmem:[%s949 + $0x38] sm:%s941] %v978
          %v980 = vld [vmem:[%s948 + $0x3c] sm:%s941]
          %981 = vst [vmem:[%s949 + $0x3c] sm:%s941] %v980
          %v982 = vld [vmem:[%s948 + $0x40] sm:%s941]
          %983 = vst [vmem:[%s949 + $0x40] sm:%s941] %v982
          %v984 = vld [vmem:[%s948 + $0x48] sm:%s941]
          %985 = vst [vmem:[%s949 + $0x44] sm:%s941] %v984
          %v986 = vld [vmem:[%s948 + $0x44] sm:%s941]
          %987 = vst [vmem:[%s949 + $0x48] sm:%s941] %v986
          %v988 = vld [vmem:[%s948 + $0x4c] sm:%s941]
          %989 = vst [vmem:[%s949 + $0x4c] sm:%s941] %v988
          %v990 = vld [vmem:[%s948 + $0x50] sm:%s941]
          %991 = vst [vmem:[%s949 + $0x50] sm:%s941] %v990
          %v992 = vld [vmem:[%s948 + $0x58] sm:%s941]
          %993 = vst [vmem:[%s949 + $0x54] sm:%s941] %v992
          %v994 = vld [vmem:[%s948 + $0x54] sm:%s941]
          %995 = vst [vmem:[%s949 + $0x58] sm:%s941] %v994
          %v996 = vld [vmem:[%s948 + $0x5c] sm:%s941]
          %997 = vst [vmem:[%s949 + $0x5c] sm:%s941] %v996
          %v998 = vld [vmem:[%s948 + $0x60] sm:%s941]
          %999 = vst [vmem:[%s949 + $0x60] sm:%s941] %v998
          %v1000 = vld [vmem:[%s948 + $0x68] sm:%s941]
          %1001 = vst [vmem:[%s949 + $0x64] sm:%s941] %v1000
          %v1002 = vld [vmem:[%s948 + $0x64] sm:%s941]
          %1003 = vst [vmem:[%s949 + $0x68] sm:%s941] %v1002
          %v1004 = vld [vmem:[%s948 + $0x6c] sm:%s941]
          %1005 = vst [vmem:[%s949 + $0x6c] sm:%s941] %v1004
          %v1006 = vld [vmem:[%s948 + $0x70] sm:%s941]
          %1007 = vst [vmem:[%s949 + $0x70] sm:%s941] %v1006
          %v1008 = vld [vmem:[%s948 + $0x78] sm:%s941]
          %1009 = vst [vmem:[%s949 + $0x74] sm:%s941] %v1008
          %v1010 = vld [vmem:[%s948 + $0x74] sm:%s941]
          %1011 = vst [vmem:[%s949 + $0x78] sm:%s941] %v1010
          %v1012 = vld [vmem:[%s948 + $0x7c] sm:%s941]
          %1013 = vst [vmem:[%s949 + $0x7c] sm:%s941] %v1012
          %v1014 = vld [vmem:[%s948 + $0x80] sm:%s941]
          %1015 = vst [vmem:[%s949 + $0x80] sm:%s941] %v1014
          %v1016 = vld [vmem:[%s948 + $0x88] sm:%s941]
          %1017 = vst [vmem:[%s949 + $0x84] sm:%s941] %v1016
          %v1018 = vld [vmem:[%s948 + $0x84] sm:%s941]
          %1019 = vst [vmem:[%s949 + $0x88] sm:%s941] %v1018
          %v1020 = vld [vmem:[%s948 + $0x8c] sm:%s941]
          %1021 = vst [vmem:[%s949 + $0x8c] sm:%s941] %v1020
          %v1022 = vld [vmem:[%s948 + $0x90] sm:%s941]
          %1023 = vst [vmem:[%s949 + $0x90] sm:%s941] %v1022
          %v1024 = vld [vmem:[%s948 + $0x98] sm:%s941]
          %1025 = vst [vmem:[%s949 + $0x94] sm:%s941] %v1024
          %v1026 = vld [vmem:[%s948 + $0x94] sm:%s941]
          %1027 = vst [vmem:[%s949 + $0x98] sm:%s941] %v1026
          %v1028 = vld [vmem:[%s948 + $0x9c] sm:%s941]
          %1029 = vst [vmem:[%s949 + $0x9c] sm:%s941] %v1028
          %v1030 = vld [vmem:[%s948 + $0xa0] sm:%s941]
          %1031 = vst [vmem:[%s949 + $0xa0] sm:%s941] %v1030
          %v1032 = vld [vmem:[%s948 + $0xa8] sm:%s941]
          %1033 = vst [vmem:[%s949 + $0xa4] sm:%s941] %v1032
          %v1034 = vld [vmem:[%s948 + $0xa4] sm:%s941]
          %1035 = vst [vmem:[%s949 + $0xa8] sm:%s941] %v1034
          %v1036 = vld [vmem:[%s948 + $0xac] sm:%s941]
          %1037 = vst [vmem:[%s949 + $0xac] sm:%s941] %v1036
          %v1038 = vld [vmem:[%s948 + $0xb0] sm:%s941]
          %1039 = vst [vmem:[%s949 + $0xb0] sm:%s941] %v1038
          %v1040 = vld [vmem:[%s948 + $0xb8] sm:%s941]
          %1041 = vst [vmem:[%s949 + $0xb4] sm:%s941] %v1040
          %v1042 = vld [vmem:[%s948 + $0xb4] sm:%s941]
          %1043 = vst [vmem:[%s949 + $0xb8] sm:%s941] %v1042
          %v1044 = vld [vmem:[%s948 + $0xbc] sm:%s941]
          %1045 = vst [vmem:[%s949 + $0xbc] sm:%s941] %v1044
          %v1046 = vld [vmem:[%s948 + $0xc0] sm:%s941]
          %1047 = vst [vmem:[%s949 + $0xc0] sm:%s941] %v1046
          %v1048 = vld [vmem:[%s948 + $0xc8] sm:%s941]
          %1049 = vst [vmem:[%s949 + $0xc4] sm:%s941] %v1048
          %v1050 = vld [vmem:[%s948 + $0xc4] sm:%s941]
          %1051 = vst [vmem:[%s949 + $0xc8] sm:%s941] %v1050
          %v1052 = vld [vmem:[%s948 + $0xcc] sm:%s941]
          %1053 = vst [vmem:[%s949 + $0xcc] sm:%s941] %v1052
          %v1054 = vld [vmem:[%s948 + $0xd0] sm:%s941]
          %1055 = vst [vmem:[%s949 + $0xd0] sm:%s941] %v1054
          %v1056 = vld [vmem:[%s948 + $0xd8] sm:%s941]
          %1057 = vst [vmem:[%s949 + $0xd4] sm:%s941] %v1056
          %v1058 = vld [vmem:[%s948 + $0xd4] sm:%s941]
          %1059 = vst [vmem:[%s949 + $0xd8] sm:%s941] %v1058
          %v1060 = vld [vmem:[%s948 + $0xdc] sm:%s941]
          %1061 = vst [vmem:[%s949 + $0xdc] sm:%s941] %v1060
          %v1062 = vld [vmem:[%s948 + $0xe0] sm:%s941]
          %1063 = vst [vmem:[%s949 + $0xe0] sm:%s941] %v1062
          %v1064 = vld [vmem:[%s948 + $0xe8] sm:%s941]
          %1065 = vst [vmem:[%s949 + $0xe4] sm:%s941] %v1064
          %v1066 = vld [vmem:[%s948 + $0xe4] sm:%s941]
          %1067 = vst [vmem:[%s949 + $0xe8] sm:%s941] %v1066
          %v1068 = vld [vmem:[%s948 + $0xec] sm:%s941]
          %1069 = vst [vmem:[%s949 + $0xec] sm:%s941] %v1068
          %v1070 = vld [vmem:[%s948 + $0xf0] sm:%s941]
          %1071 = vst [vmem:[%s949 + $0xf0] sm:%s941] %v1070
          %v1072 = vld [vmem:[%s948 + $0xf8] sm:%s941]
          %1073 = vst [vmem:[%s949 + $0xf4] sm:%s941] %v1072
          %v1074 = vld [vmem:[%s948 + $0xf4] sm:%s941]
          %1075 = vst [vmem:[%s949 + $0xf8] sm:%s941] %v1074
          %v1076 = vld [vmem:[%s948 + $0xfc] sm:%s941]
          %1077 = vst [vmem:[%s949 + $0xfc] sm:%s941] %v1076
        $region146: #{group_cnn_forward.1} parent=133 // loop_footer
          %s947 = sadd.s32 1, %s943
        $region147: #{group_cnn_forward.1} parent=133 // loop_footer_branch
          %942 = sbr.rel target = $region143
        $region148: #{group_cnn_forward.1} parent=133 // loop_exit
          _
      $region134: #{group_cnn_forward.1} parent=118 // pred_fallthru
        _
    $region119: #{group_cnn_forward.1} parent=1 // pred_fallthru
      _
    // Predicated region
    $region120: #{group_cnn_forward.1} parent=1 // pred_check
      %p783 = pneg %p779
    $region121: #{group_cnn_forward.1} parent=1 // pred_check_branch
      %785 = sbr.rel (%p783) target = $region123
    $region122: #{group_cnn_forward.1} parent=1 // pred_region
      %s786 = sshllo.u32 0, 4
      loop: start=0, step=1, limit=1
      $region124: #{group_cnn_forward.1} parent=122 // loop_pre_header
        _
      $region125: #{group_cnn_forward.1} parent=122 // loop_header
        %s788 = sphi 0, %s792
        %p789 = scmp.ge.s32.totalorder %s788, 1
        %s793 = sphi %s9, %s9
        %s794 = sphi [#allocation7], [#allocation7]
      $region126: #{group_cnn_forward.1} parent=122 // loop_header_branch
        %791 = sbr.rel (%p789) target = $region130
      $region127: #{group_cnn_forward.1} parent=122 // loop_body
        %v795 = vld [vmem:[%s793] sm:%s786]
        %796 = vst [vmem:[%s794] sm:%s786] %v795
        %v797 = vld [vmem:[%s793 + $0x8] sm:%s786]
        %798 = vst [vmem:[%s794 + $0x4] sm:%s786] %v797
        %v799 = vld [vmem:[%s793 + $0x4] sm:%s786]
        %800 = vst [vmem:[%s794 + $0x8] sm:%s786] %v799
        %v801 = vld [vmem:[%s793 + $0xc] sm:%s786]
        %802 = vst [vmem:[%s794 + $0xc] sm:%s786] %v801
        %v803 = vld [vmem:[%s793 + $0x10] sm:%s786]
        %804 = vst [vmem:[%s794 + $0x10] sm:%s786] %v803
        %v805 = vld [vmem:[%s793 + $0x18] sm:%s786]
        %806 = vst [vmem:[%s794 + $0x14] sm:%s786] %v805
        %v807 = vld [vmem:[%s793 + $0x14] sm:%s786]
        %808 = vst [vmem:[%s794 + $0x18] sm:%s786] %v807
        %v809 = vld [vmem:[%s793 + $0x1c] sm:%s786]
        %810 = vst [vmem:[%s794 + $0x1c] sm:%s786] %v809
        %v811 = vld [vmem:[%s793 + $0x20] sm:%s786]
        %812 = vst [vmem:[%s794 + $0x20] sm:%s786] %v811
        %v813 = vld [vmem:[%s793 + $0x28] sm:%s786]
        %814 = vst [vmem:[%s794 + $0x24] sm:%s786] %v813
        %v815 = vld [vmem:[%s793 + $0x24] sm:%s786]
        %816 = vst [vmem:[%s794 + $0x28] sm:%s786] %v815
        %v817 = vld [vmem:[%s793 + $0x2c] sm:%s786]
        %818 = vst [vmem:[%s794 + $0x2c] sm:%s786] %v817
        %v819 = vld [vmem:[%s793 + $0x30] sm:%s786]
        %820 = vst [vmem:[%s794 + $0x30] sm:%s786] %v819
        %v821 = vld [vmem:[%s793 + $0x38] sm:%s786]
        %822 = vst [vmem:[%s794 + $0x34] sm:%s786] %v821
        %v823 = vld [vmem:[%s793 + $0x34] sm:%s786]
        %824 = vst [vmem:[%s794 + $0x38] sm:%s786] %v823
        %v825 = vld [vmem:[%s793 + $0x3c] sm:%s786]
        %826 = vst [vmem:[%s794 + $0x3c] sm:%s786] %v825
        %v827 = vld [vmem:[%s793 + $0x40] sm:%s786]
        %828 = vst [vmem:[%s794 + $0x40] sm:%s786] %v827
        %v829 = vld [vmem:[%s793 + $0x48] sm:%s786]
        %830 = vst [vmem:[%s794 + $0x44] sm:%s786] %v829
        %v831 = vld [vmem:[%s793 + $0x44] sm:%s786]
        %832 = vst [vmem:[%s794 + $0x48] sm:%s786] %v831
        %v833 = vld [vmem:[%s793 + $0x4c] sm:%s786]
        %834 = vst [vmem:[%s794 + $0x4c] sm:%s786] %v833
        %v835 = vld [vmem:[%s793 + $0x50] sm:%s786]
        %836 = vst [vmem:[%s794 + $0x50] sm:%s786] %v835
        %v837 = vld [vmem:[%s793 + $0x58] sm:%s786]
        %838 = vst [vmem:[%s794 + $0x54] sm:%s786] %v837
        %v839 = vld [vmem:[%s793 + $0x54] sm:%s786]
        %840 = vst [vmem:[%s794 + $0x58] sm:%s786] %v839
        %v841 = vld [vmem:[%s793 + $0x5c] sm:%s786]
        %842 = vst [vmem:[%s794 + $0x5c] sm:%s786] %v841
        %v843 = vld [vmem:[%s793 + $0x60] sm:%s786]
        %844 = vst [vmem:[%s794 + $0x60] sm:%s786] %v843
        %v845 = vld [vmem:[%s793 + $0x68] sm:%s786]
        %846 = vst [vmem:[%s794 + $0x64] sm:%s786] %v845
        %v847 = vld [vmem:[%s793 + $0x64] sm:%s786]
        %848 = vst [vmem:[%s794 + $0x68] sm:%s786] %v847
        %v849 = vld [vmem:[%s793 + $0x6c] sm:%s786]
        %850 = vst [vmem:[%s794 + $0x6c] sm:%s786] %v849
        %v851 = vld [vmem:[%s793 + $0x70] sm:%s786]
        %852 = vst [vmem:[%s794 + $0x70] sm:%s786] %v851
        %v853 = vld [vmem:[%s793 + $0x78] sm:%s786]
        %854 = vst [vmem:[%s794 + $0x74] sm:%s786] %v853
        %v855 = vld [vmem:[%s793 + $0x74] sm:%s786]
        %856 = vst [vmem:[%s794 + $0x78] sm:%s786] %v855
        %v857 = vld [vmem:[%s793 + $0x7c] sm:%s786]
        %858 = vst [vmem:[%s794 + $0x7c] sm:%s786] %v857
        %v859 = vld [vmem:[%s793 + $0x80] sm:%s786]
        %860 = vst [vmem:[%s794 + $0x80] sm:%s786] %v859
        %v861 = vld [vmem:[%s793 + $0x88] sm:%s786]
        %862 = vst [vmem:[%s794 + $0x84] sm:%s786] %v861
        %v863 = vld [vmem:[%s793 + $0x84] sm:%s786]
        %864 = vst [vmem:[%s794 + $0x88] sm:%s786] %v863
        %v865 = vld [vmem:[%s793 + $0x8c] sm:%s786]
        %866 = vst [vmem:[%s794 + $0x8c] sm:%s786] %v865
        %v867 = vld [vmem:[%s793 + $0x90] sm:%s786]
        %868 = vst [vmem:[%s794 + $0x90] sm:%s786] %v867
        %v869 = vld [vmem:[%s793 + $0x98] sm:%s786]
        %870 = vst [vmem:[%s794 + $0x94] sm:%s786] %v869
        %v871 = vld [vmem:[%s793 + $0x94] sm:%s786]
        %872 = vst [vmem:[%s794 + $0x98] sm:%s786] %v871
        %v873 = vld [vmem:[%s793 + $0x9c] sm:%s786]
        %874 = vst [vmem:[%s794 + $0x9c] sm:%s786] %v873
        %v875 = vld [vmem:[%s793 + $0xa0] sm:%s786]
        %876 = vst [vmem:[%s794 + $0xa0] sm:%s786] %v875
        %v877 = vld [vmem:[%s793 + $0xa8] sm:%s786]
        %878 = vst [vmem:[%s794 + $0xa4] sm:%s786] %v877
        %v879 = vld [vmem:[%s793 + $0xa4] sm:%s786]
        %880 = vst [vmem:[%s794 + $0xa8] sm:%s786] %v879
        %v881 = vld [vmem:[%s793 + $0xac] sm:%s786]
        %882 = vst [vmem:[%s794 + $0xac] sm:%s786] %v881
        %v883 = vld [vmem:[%s793 + $0xb0] sm:%s786]
        %884 = vst [vmem:[%s794 + $0xb0] sm:%s786] %v883
        %v885 = vld [vmem:[%s793 + $0xb8] sm:%s786]
        %886 = vst [vmem:[%s794 + $0xb4] sm:%s786] %v885
        %v887 = vld [vmem:[%s793 + $0xb4] sm:%s786]
        %888 = vst [vmem:[%s794 + $0xb8] sm:%s786] %v887
        %v889 = vld [vmem:[%s793 + $0xbc] sm:%s786]
        %890 = vst [vmem:[%s794 + $0xbc] sm:%s786] %v889
        %v891 = vld [vmem:[%s793 + $0xc0] sm:%s786]
        %892 = vst [vmem:[%s794 + $0xc0] sm:%s786] %v891
        %v893 = vld [vmem:[%s793 + $0xc8] sm:%s786]
        %894 = vst [vmem:[%s794 + $0xc4] sm:%s786] %v893
        %v895 = vld [vmem:[%s793 + $0xc4] sm:%s786]
        %896 = vst [vmem:[%s794 + $0xc8] sm:%s786] %v895
        %v897 = vld [vmem:[%s793 + $0xcc] sm:%s786]
        %898 = vst [vmem:[%s794 + $0xcc] sm:%s786] %v897
        %v899 = vld [vmem:[%s793 + $0xd0] sm:%s786]
        %900 = vst [vmem:[%s794 + $0xd0] sm:%s786] %v899
        %v901 = vld [vmem:[%s793 + $0xd8] sm:%s786]
        %902 = vst [vmem:[%s794 + $0xd4] sm:%s786] %v901
        %v903 = vld [vmem:[%s793 + $0xd4] sm:%s786]
        %904 = vst [vmem:[%s794 + $0xd8] sm:%s786] %v903
        %v905 = vld [vmem:[%s793 + $0xdc] sm:%s786]
        %906 = vst [vmem:[%s794 + $0xdc] sm:%s786] %v905
        %v907 = vld [vmem:[%s793 + $0xe0] sm:%s786]
        %908 = vst [vmem:[%s794 + $0xe0] sm:%s786] %v907
        %v909 = vld [vmem:[%s793 + $0xe8] sm:%s786]
        %910 = vst [vmem:[%s794 + $0xe4] sm:%s786] %v909
        %v911 = vld [vmem:[%s793 + $0xe4] sm:%s786]
        %912 = vst [vmem:[%s794 + $0xe8] sm:%s786] %v911
        %v913 = vld [vmem:[%s793 + $0xec] sm:%s786]
        %914 = vst [vmem:[%s794 + $0xec] sm:%s786] %v913
        %v915 = vld [vmem:[%s793 + $0xf0] sm:%s786]
        %916 = vst [vmem:[%s794 + $0xf0] sm:%s786] %v915
        %v917 = vld [vmem:[%s793 + $0xf8] sm:%s786]
        %918 = vst [vmem:[%s794 + $0xf4] sm:%s786] %v917
        %v919 = vld [vmem:[%s793 + $0xf4] sm:%s786]
        %920 = vst [vmem:[%s794 + $0xf8] sm:%s786] %v919
        %v921 = vld [vmem:[%s793 + $0xfc] sm:%s786]
        %922 = vst [vmem:[%s794 + $0xfc] sm:%s786] %v921
      $region128: #{group_cnn_forward.1} parent=122 // loop_footer
        %s792 = sadd.s32 1, %s788
      $region129: #{group_cnn_forward.1} parent=122 // loop_footer_branch
        %787 = sbr.rel target = $region125
      $region130: #{group_cnn_forward.1} parent=122 // loop_exit
        _
    $region123: #{group_cnn_forward.1} parent=1 // pred_fallthru
      _
    // Predicated region
    $region149: #{group_cnn_forward.1} parent=1 // pred_check
      _
    $region150: #{group_cnn_forward.1} parent=1 // pred_check_branch
      %1080 = sbr.rel (0) target = $region152
    $region151: #{group_cnn_forward.1} parent=1 // pred_region
      %1081 = vsyncadd %s777, 4096
    $region152: #{group_cnn_forward.1} parent=1 // pred_fallthru
      _
    %v1082 = vld [vmem:[%s0] sm:$0xff]
    %v1083 = vld [vmem:[%s0 + $0x8] sm:$0xff]
    %v1084 = vld [vmem:[%s0 + $0x10] sm:$0xff]
    %v1085 = vld [vmem:[%s0 + $0x18] sm:$0xff]
    %v1086 = vld [vmem:[%s2] ss:$4 sm:$0x3]
    %s1087 = scalar_lea.vmem %s2, 1
    %v1088 = vld [vmem:[%s1087] ss:$4 sm:$0x3]
    %s1089 = scalar_lea.vmem %s2, 2
    %v1090 = vld [vmem:[%s1089] ss:$4 sm:$0x3]
    %vm1091 = vcmask 516096
    %1092 = vst.msk [vmem:[#allocation2] sm:$0x1] %vm1091, 0.0
    %1093 = vst.msk [vmem:[#allocation2 + $0x11] sm:$0x1] %vm1091, 0.0
    %vm1094 = vcmask 523264
    %1095 = vst.msk [vmem:[#allocation2 + $0x1] sm:$0xff] %vm1094, %v1082
    %1096 = vst.msk [vmem:[#allocation2 + $0x9] sm:$0xff] %vm1094, %v1083
    %1097 = vst.msk [vmem:[#allocation2 + $0x12] sm:$0x1] %vm1091, 0.0
    %1098 = vst.msk [vmem:[#allocation2 + $0x23] sm:$0x1] %vm1091, 0.0
    %1099 = vst.msk [vmem:[#allocation2 + $0x13] sm:$0xff] %vm1094, %v1084
    %1100 = vst.msk [vmem:[#allocation2 + $0x1b] sm:$0xff] %vm1094, %v1085
    %v1101 = vld [vmem:[#allocation2] sm:$0xff]
    %v1102 = vld [vmem:[#allocation2 + $0x8] sm:$0xff]
    %v1103 = vld [vmem:[#allocation2 + $0x10] sm:$0xff]
    %v1104 = vld [vmem:[#allocation2 + $0x18] sm:$0xff]
    %v1105 = vld [vmem:[#allocation2 + $0x20] sm:$0xf]
    %vm1111 = vcmask 1046528
    %v1112 = vrot.slane %v1101, 1
    %v1113 = vrot.slane %v1102, 1
    %v1114 = vsel %vm1111, %v1112, %v1113
    %v1115 = vrot.slane %v1103, 1
    %v1116 = vsel %vm1111, %v1113, %v1115
    %v1117 = vrot.slane %v1104, 1
    %v1118 = vsel %vm1111, %v1115, %v1117
    %v1119 = vrot.slane %v1105, 1
    %v1120 = vsel %vm1111, %v1117, %v1119
    %1121 = vrot.lane.b32.xlu0 %v1114, 64
    %v1122 = vpop.permute.xlu0 %1121
    %1123 = vrot.lane.b32.xlu0 %v1116, 64
    %v1124 = vpop.permute.xlu0 %1123
    %1125 = vrot.lane.b32.xlu0 %v1118, 64
    %v1126 = vpop.permute.xlu0 %1125
    %1127 = vrot.lane.b32.xlu0 %v1120, 64
    %v1128 = vpop.permute.xlu0 %1127
    %1129 = vrot.lane.b32.xlu0 %v1119, 64
    %v1130 = vpop.permute.xlu0 %1129
    %vm1136 = vcmask 1045504
    %v1137 = vrot.slane %v1101, 2
    %v1138 = vrot.slane %v1102, 2
    %v1139 = vsel %vm1136, %v1137, %v1138
    %v1140 = vrot.slane %v1103, 2
    %v1141 = vsel %vm1136, %v1138, %v1140
    %v1142 = vrot.slane %v1104, 2
    %v1143 = vsel %vm1136, %v1140, %v1142
    %v1144 = vrot.slane %v1105, 2
    %v1145 = vsel %vm1136, %v1142, %v1144
    %v1151 = vsel %vm1094, %v1101, %v1122
    %v1152 = vsel %vm1094, %v1102, %v1124
    %v1153 = vsel %vm1094, %v1103, %v1126
    %v1154 = vsel %vm1094, %v1104, %v1128
    %v1155 = vsel %vm1094, %v1105, %v1130
    %v1156 = vpack.c.bf16 %v1152, %v1151
    %v1157 = vpack.c.bf16 %v1141, %v1139
    %v1158 = vpack.c.bf16 %v1154, %v1153
    %v1159 = vpack.c.bf16 %v1145, %v1143
    %v1160 = vpack.c.bf16 %v1155, %v1155
    %v1161 = vpack.c.bf16 %v1144, %v1144
    %v1162 = vld [vmem:[%s1] sm:$0xff]
    %v1163 = vld [vmem:[%s1 + $0x8] sm:$0xff]
    %v1164 = vld [vmem:[%s1 + $0x10] sm:$0xff]
    %v1165 = vld [vmem:[%s1 + $0x18] sm:$0xff]
    %v1166 = vld [vmem:[%s1 + $0x20] sm:$0xff]
    %v1167 = vld [vmem:[%s1 + $0x28] sm:$0xff]
    %v1168 = vld [vmem:[%s1 + $0x30] sm:$0xff]
    %v1169 = vld [vmem:[%s1 + $0x38] sm:$0xff]
    %v1170 = vld [vmem:[%s1 + $0x40] sm:$0xff]
    %v1171 = vld [vmem:[%s1 + $0x48] sm:$0xff]
    %v1172 = vld [vmem:[%s1 + $0x50] sm:$0xff]
    %v1173 = vld [vmem:[%s1 + $0x58] sm:$0xff]
    %v1174 = vld [vmem:[%s1 + $0x60] sm:$0xff]
    %v1175 = vld [vmem:[%s1 + $0x68] sm:$0xff]
    %v1176 = vld [vmem:[%s1 + $0x70] sm:$0xff]
    %v1177 = vld [vmem:[%s1 + $0x78] sm:$0xff]
    %v1178 = vld [vmem:[%s1 + $0x80] sm:$0xff]
    %v1179 = vld [vmem:[%s1 + $0x88] sm:$0xff]
    %v1180 = vld [vmem:[%s1 + $0x90] sm:$0xff]
    %v1181 = vld [vmem:[%s1 + $0x98] sm:$0xff]
    %v1182 = vld [vmem:[%s1 + $0xa0] sm:$0xff]
    %v1183 = vld [vmem:[%s1 + $0xa8] sm:$0xff]
    %v1184 = vld [vmem:[%s1 + $0xb0] sm:$0xff]
    %v1185 = vld [vmem:[%s1 + $0xb8] sm:$0xff]
    %v1187 = vlaneseq
    %v1188 = vshrl.u32 %v1187, 7
    %v1189 = vsub.s32 0, %v1188
    %v1190 = vrot.slane %v1086, %v1189
    %v1191 = vlaneseq
    %v1192 = vshrl.u32 %v1191, 7
    %v1193 = vsub.s32 1, %v1192
    %v1194 = vrot.slane %v1086, %v1193
    %v1221 = vunpack.c.l.b16 %v1162
    %v1222 = vunpack.c.h.b16 %v1162
    %v1223 = vunpack.c.l.b16 %v1163
    %v1224 = vunpack.c.h.b16 %v1163
    %v1225 = vunpack.c.l.b16 %v1164
    %v1226 = vunpack.c.h.b16 %v1164
    %v1227 = vunpack.c.l.b16 %v1165
    %v1228 = vunpack.c.h.b16 %v1165
    %v1229 = vunpack.c.l.b16 %v1166
    %v1230 = vunpack.c.h.b16 %v1166
    %v1231 = vunpack.c.l.b16 %v1167
    %v1232 = vunpack.c.h.b16 %v1167
    %v1233 = vunpack.c.l.b16 %v1168
    %v1234 = vunpack.c.h.b16 %v1168
    %v1235 = vunpack.c.l.b16 %v1169
    %v1236 = vunpack.c.h.b16 %v1169
    %v1237 = vunpack.c.l.b16 %v1170
    %v1238 = vunpack.c.h.b16 %v1170
    %v1239 = vunpack.c.l.b16 %v1171
    %v1240 = vunpack.c.h.b16 %v1171
    %v1241 = vunpack.c.l.b16 %v1172
    %v1242 = vunpack.c.h.b16 %v1172
    %v1243 = vunpack.c.l.b16 %v1173
    %v1244 = vunpack.c.h.b16 %v1173
    %v1245 = vunpack.c.l.b16 %v1174
    %v1246 = vunpack.c.h.b16 %v1174
    %v1247 = vunpack.c.l.b16 %v1175
    %v1248 = vunpack.c.h.b16 %v1175
    %v1249 = vunpack.c.l.b16 %v1176
    %v1250 = vunpack.c.h.b16 %v1176
    %v1251 = vunpack.c.l.b16 %v1177
    %v1252 = vunpack.c.h.b16 %v1177
    %v1253 = vunpack.c.l.b16 %v1178
    %v1254 = vunpack.c.h.b16 %v1178
    %v1255 = vunpack.c.l.b16 %v1179
    %v1256 = vunpack.c.h.b16 %v1179
    %v1257 = vunpack.c.l.b16 %v1180
    %v1258 = vunpack.c.h.b16 %v1180
    %v1259 = vunpack.c.l.b16 %v1181
    %v1260 = vunpack.c.h.b16 %v1181
    %v1261 = vunpack.c.l.b16 %v1182
    %v1262 = vunpack.c.h.b16 %v1182
    %v1263 = vunpack.c.l.b16 %v1183
    %v1264 = vunpack.c.h.b16 %v1183
    %v1265 = vunpack.c.l.b16 %v1184
    %v1266 = vunpack.c.h.b16 %v1184
    %v1267 = vunpack.c.l.b16 %v1185
    %v1268 = vunpack.c.h.b16 %v1185
    %v1269 = vpack.c.b16 %v1223, %v1221
    %v1270 = vpack.c.b16 %v1224, %v1222
    %v1271 = vpack.c.b16 %v1227, %v1225
    %v1272 = vpack.c.b16 %v1228, %v1226
    %v1273 = vpack.c.b16 %v1231, %v1229
    %v1274 = vpack.c.b16 %v1232, %v1230
    %v1275 = vpack.c.b16 %v1235, %v1233
    %v1276 = vpack.c.b16 %v1236, %v1234
    %v1277 = vpack.c.b16 %v1239, %v1237
    %v1278 = vpack.c.b16 %v1240, %v1238
    %v1279 = vpack.c.b16 %v1243, %v1241
    %v1280 = vpack.c.b16 %v1244, %v1242
    %v1281 = vpack.c.b16 %v1247, %v1245
    %v1282 = vpack.c.b16 %v1248, %v1246
    %v1283 = vpack.c.b16 %v1251, %v1249
    %v1284 = vpack.c.b16 %v1252, %v1250
    %v1285 = vpack.c.b16 %v1255, %v1253
    %v1286 = vpack.c.b16 %v1256, %v1254
    %v1287 = vpack.c.b16 %v1259, %v1257
    %v1288 = vpack.c.b16 %v1260, %v1258
    %v1289 = vpack.c.b16 %v1263, %v1261
    %v1290 = vpack.c.b16 %v1264, %v1262
    %v1291 = vpack.c.b16 %v1267, %v1265
    %v1292 = vpack.c.b16 %v1268, %v1266
    %v1318 = vsel %vm1094, %v1157, 0
    %v1321 = vsel %vm1094, %v1159, 0
    %v1324 = vsel %vm1094, %v1161, 0
    %1326 = vmatprep.subr.bf16.mxu0 %v1270
    %1327 = vmatpush1.bf16.msra.mxu0 %v1269
    %1328 = vmatprep.subr.bf16.mxu0 %v1272
    %1329 = vmatpush1.bf16.msra.mxu0 %v1271
    %1330 = vmatprep.subr.bf16.mxu0 %v1274
    %1331 = vmatpush1.bf16.msra.mxu0 %v1273
    %1332 = vmatprep.subr.bf16.mxu0 %v1276
    %1333 = vmatpush1.bf16.msra.mxu0 %v1275
    %1334 = vmatprep.subr.bf16.mxu0 %v1278
    %1335 = vmatpush1.bf16.msra.mxu0 %v1277
    %1336 = vmatprep.subr.bf16.mxu0 %v1280
    %1337 = vmatpush1.bf16.msra.mxu0 %v1279
    %1338 = vmatprep.subr.bf16.mxu0 %v1282
    %1339 = vmatpush1.bf16.msra.mxu0 %v1281
    %1340 = vmatprep.subr.bf16.mxu0 %v1284
    %1341 = vmatpush1.bf16.msra.mxu0 %v1283
    %1342 = vmatprep.subr.bf16.mxu0 %v1286
    %1343 = vmatpush1.bf16.msra.mxu0 %v1285
    %1344 = vmatprep.subr.bf16.mxu0 %v1288
    %1345 = vmatpush1.bf16.msra.mxu0 %v1287
    %1346 = vmatprep.subr.bf16.mxu0 %v1290
    %1347 = vmatpush1.bf16.msra.mxu0 %v1289
    %1348 = vmatprep.subr.bf16.mxu0 %v1292
    %1349 = vmatpush1.bf16.msra.mxu0 %v1291
    %1350 = vmatprep.subr.bf16.mxu0 0
    %1351 = vmatpush1.bf16.msra.mxu0 0
    %1352 = vmatprep.subr.bf16.mxu0 0
    %1353 = vmatpush1.bf16.msra.mxu0 0
    %1354 = vmatprep.subr.bf16.mxu0 0
    %1355 = vmatpush1.bf16.msra.mxu0 0
    %1356 = vmatprep.subr.bf16.mxu0 0
    %1357 = vmatpush1.bf16.msra.mxu0 0
    %1358 = vmatprep.mubr.bf16.mxu0 %v1318
    %1359 = vmatmul.mubr.bf16.gmra.mrb[0].mxu0 %v1156
    %v1360 = vpop.f32.mrb[0].mxu0
    %v1361 = vadd.f32 %v1190, %v1360
    %v1362 = vpop.f32.mrb[0].mxu0
    %v1363 = vadd.f32 %v1194, %v1362
    %v1364 = vpop.f32.mrb[0].mxu0
    %v1365 = vadd.f32 %v1190, %v1364
    %v1366 = vpop.f32.mrb[0].mxu0
    %v1367 = vadd.f32 %v1194, %v1366
    %1368 = vmatprep.mubr.bf16.mxu0 %v1321
    %1369 = vmatmul.mubr.bf16.gmra.mrb[0].mxu0 %v1158
    %v1370 = vpop.f32.mrb[0].mxu0
    %v1371 = vadd.f32 %v1190, %v1370
    %v1372 = vpop.f32.mrb[0].mxu0
    %v1373 = vadd.f32 %v1194, %v1372
    %v1374 = vpop.f32.mrb[0].mxu0
    %v1375 = vadd.f32 %v1190, %v1374
    %v1376 = vpop.f32.mrb[0].mxu0
    %v1377 = vadd.f32 %v1194, %v1376
    %1378 = vmatprep.mubr.bf16.mxu0 %v1324
    %1379 = vmatmul.mubr.bf16.gmra.mrb[0].mxu0 %v1160
    %v1380 = vpop.f32.mrb[0].mxu0
    %v1381 = vadd.f32 %v1190, %v1380
    %v1382 = vpop.f32.mrb[0].mxu0
    %v1383 = vadd.f32 %v1194, %v1382
    %v1384 = vpop.f32.mrb[0].mxu0
    %v1385 = vpop.f32.mrb[0].mxu0
    %1386 = vdwg.mxu0
    %v1387 = vlaneseq
    %v1388 = vand.u32 %v1387, 127
    %v1389 = vlaneseq
    %v1390 = vshrl.u32 %v1389, 7
    %v1391 = vmul.u32 %v1390, 18
    %v1392 = vsub.s32 %v1388, %v1391
    %vm1393 = vcmp.ge.s32.totalorder %v1392, 0
    %vm1394 = vcmp.lt.s32.totalorder %v1392, 16
    %vm1395 = vmand %vm1393, %vm1394
    %v1396 = vsel %vm1395, 1, 0
    %v1397 = vcvt.s32.f32 %v1396
    %v1398 = vadd.s32 %v1390, 8
    %v1399 = vadd.s32 %v1390, 16
    %v1400 = vadd.s32 %v1390, 24
    %v1401 = vadd.s32 %v1390, 32
    %v1402 = vmul.u32 %v1388, 18
    %v1403 = vsub.s32 %v1390, %v1402
    %v1404 = vsub.s32 %v1398, %v1402
    %v1405 = vsub.s32 %v1399, %v1402
    %v1406 = vsub.s32 %v1400, %v1402
    %v1407 = vsub.s32 %v1401, %v1402
    %vm1408 = vcmp.ge.s32.totalorder %v1403, 0
    %vm1409 = vcmp.ge.s32.totalorder %v1404, 0
    %vm1410 = vcmp.ge.s32.totalorder %v1405, 0
    %vm1411 = vcmp.ge.s32.totalorder %v1406, 0
    %vm1412 = vcmp.ge.s32.totalorder %v1407, 0
    %vm1413 = vcmp.lt.s32.totalorder %v1403, 16
    %vm1414 = vcmp.lt.s32.totalorder %v1404, 16
    %vm1415 = vcmp.lt.s32.totalorder %v1405, 16
    %vm1416 = vcmp.lt.s32.totalorder %v1406, 16
    %vm1417 = vcmp.lt.s32.totalorder %v1407, 16
    %vm1418 = vmand %vm1408, %vm1413
    %vm1419 = vmand %vm1409, %vm1414
    %vm1420 = vmand %vm1410, %vm1415
    %vm1421 = vmand %vm1411, %vm1416
    %vm1422 = vmand %vm1412, %vm1417
    %v1423 = vsel %vm1418, 1, 0
    %v1424 = vsel %vm1419, 1, 0
    %v1425 = vsel %vm1420, 1, 0
    %v1426 = vsel %vm1421, 1, 0
    %v1427 = vsel %vm1422, 1, 0
    %v1428 = vcvt.s32.f32 %v1423
    %v1429 = vcvt.s32.f32 %v1424
    %v1430 = vcvt.s32.f32 %v1425
    %v1431 = vcvt.s32.f32 %v1426
    %v1432 = vcvt.s32.f32 %v1427
    %v1433 = vadd.s32 %v1390, 40
    %v1434 = vadd.s32 %v1390, 48
    %v1435 = vadd.s32 %v1390, 56
    %v1436 = vadd.s32 %v1390, 64
    %v1437 = vadd.s32 %v1390, 72
    %v1438 = vadd.s32 %v1390, 80
    %v1439 = vadd.s32 %v1390, 88
    %v1440 = vadd.s32 %v1390, 96
    %v1441 = vadd.s32 %v1390, 104
    %v1442 = vadd.s32 %v1390, 112
    %v1443 = vadd.s32 %v1390, 120
    %v1444 = vadd.s32 %v1390, 128
    %v1445 = vadd.s32 %v1390, 136
    %v1446 = vadd.s32 %v1390, 144
    %v1447 = vadd.s32 %v1390, 152
    %v1448 = vadd.s32 %v1390, 160
    %v1449 = vadd.s32 %v1390, 168
    %v1450 = vadd.s32 %v1390, 176
    %v1451 = vadd.s32 %v1390, 184
    %v1452 = vadd.s32 %v1390, 192
    %v1453 = vadd.s32 %v1390, 200
    %v1454 = vadd.s32 %v1390, 208
    %v1455 = vadd.s32 %v1390, 216
    %v1456 = vadd.s32 %v1390, 224
    %v1457 = vadd.s32 %v1390, 232
    %v1458 = vadd.s32 %v1390, 240
    %v1459 = vadd.s32 %v1390, 248
    %v1460 = vand.u32 %v1390, 15
    %v1461 = vand.u32 %v1398, 15
    %v1462 = vand.u32 %v1399, 15
    %v1463 = vand.u32 %v1400, 15
    %v1464 = vand.u32 %v1401, 15
    %v1465 = vand.u32 %v1433, 15
    %v1466 = vand.u32 %v1434, 15
    %v1467 = vand.u32 %v1435, 15
    %v1468 = vand.u32 %v1436, 15
    %v1469 = vand.u32 %v1437, 15
    %v1470 = vand.u32 %v1438, 15
    %v1471 = vand.u32 %v1439, 15
    %v1472 = vand.u32 %v1440, 15
    %v1473 = vand.u32 %v1441, 15
    %v1474 = vand.u32 %v1442, 15
    %v1475 = vand.u32 %v1443, 15
    %v1476 = vand.u32 %v1444, 15
    %v1477 = vand.u32 %v1445, 15
    %v1478 = vand.u32 %v1446, 15
    %v1479 = vand.u32 %v1447, 15
    %v1480 = vand.u32 %v1448, 15
    %v1481 = vand.u32 %v1449, 15
    %v1482 = vand.u32 %v1450, 15
    %v1483 = vand.u32 %v1451, 15
    %v1484 = vand.u32 %v1452, 15
    %v1485 = vand.u32 %v1453, 15
    %v1486 = vand.u32 %v1454, 15
    %v1487 = vand.u32 %v1455, 15
    %v1488 = vand.u32 %v1456, 15
    %v1489 = vand.u32 %v1457, 15
    %v1490 = vand.u32 %v1458, 15
    %v1491 = vand.u32 %v1459, 15
    %v1492 = vmul.u32 %v1388, 2
    %vm1493 = vcmp.ge.s32.totalorder %v1460, %v1492
    %vm1494 = vcmp.ge.s32.totalorder %v1461, %v1492
    %vm1495 = vcmp.ge.s32.totalorder %v1462, %v1492
    %vm1496 = vcmp.ge.s32.totalorder %v1463, %v1492
    %vm1497 = vcmp.ge.s32.totalorder %v1464, %v1492
    %vm1498 = vcmp.ge.s32.totalorder %v1465, %v1492
    %vm1499 = vcmp.ge.s32.totalorder %v1466, %v1492
    %vm1500 = vcmp.ge.s32.totalorder %v1467, %v1492
    %vm1501 = vcmp.ge.s32.totalorder %v1468, %v1492
    %vm1502 = vcmp.ge.s32.totalorder %v1469, %v1492
    %vm1503 = vcmp.ge.s32.totalorder %v1470, %v1492
    %vm1504 = vcmp.ge.s32.totalorder %v1471, %v1492
    %vm1505 = vcmp.ge.s32.totalorder %v1472, %v1492
    %vm1506 = vcmp.ge.s32.totalorder %v1473, %v1492
    %vm1507 = vcmp.ge.s32.totalorder %v1474, %v1492
    %vm1508 = vcmp.ge.s32.totalorder %v1475, %v1492
    %vm1509 = vcmp.ge.s32.totalorder %v1476, %v1492
    %vm1510 = vcmp.ge.s32.totalorder %v1477, %v1492
    %vm1511 = vcmp.ge.s32.totalorder %v1478, %v1492
    %vm1512 = vcmp.ge.s32.totalorder %v1479, %v1492
    %vm1513 = vcmp.ge.s32.totalorder %v1480, %v1492
    %vm1514 = vcmp.ge.s32.totalorder %v1481, %v1492
    %vm1515 = vcmp.ge.s32.totalorder %v1482, %v1492
    %vm1516 = vcmp.ge.s32.totalorder %v1483, %v1492
    %vm1517 = vcmp.ge.s32.totalorder %v1484, %v1492
    %vm1518 = vcmp.ge.s32.totalorder %v1485, %v1492
    %vm1519 = vcmp.ge.s32.totalorder %v1486, %v1492
    %vm1520 = vcmp.ge.s32.totalorder %v1487, %v1492
    %vm1521 = vcmp.ge.s32.totalorder %v1488, %v1492
    %vm1522 = vcmp.ge.s32.totalorder %v1489, %v1492
    %vm1523 = vcmp.ge.s32.totalorder %v1490, %v1492
    %vm1524 = vcmp.ge.s32.totalorder %v1491, %v1492
    %v1525 = vadd.s32 %v1388, 1
    %v1526 = vmul.u32 %v1525, 2
    %vm1527 = vcmp.lt.s32.totalorder %v1460, %v1526
    %vm1528 = vcmp.lt.s32.totalorder %v1461, %v1526
    %vm1529 = vcmp.lt.s32.totalorder %v1462, %v1526
    %vm1530 = vcmp.lt.s32.totalorder %v1463, %v1526
    %vm1531 = vcmp.lt.s32.totalorder %v1464, %v1526
    %vm1532 = vcmp.lt.s32.totalorder %v1465, %v1526
    %vm1533 = vcmp.lt.s32.totalorder %v1466, %v1526
    %vm1534 = vcmp.lt.s32.totalorder %v1467, %v1526
    %vm1535 = vcmp.lt.s32.totalorder %v1468, %v1526
    %vm1536 = vcmp.lt.s32.totalorder %v1469, %v1526
    %vm1537 = vcmp.lt.s32.totalorder %v1470, %v1526
    %vm1538 = vcmp.lt.s32.totalorder %v1471, %v1526
    %vm1539 = vcmp.lt.s32.totalorder %v1472, %v1526
    %vm1540 = vcmp.lt.s32.totalorder %v1473, %v1526
    %vm1541 = vcmp.lt.s32.totalorder %v1474, %v1526
    %vm1542 = vcmp.lt.s32.totalorder %v1475, %v1526
    %vm1543 = vcmp.lt.s32.totalorder %v1476, %v1526
    %vm1544 = vcmp.lt.s32.totalorder %v1477, %v1526
    %vm1545 = vcmp.lt.s32.totalorder %v1478, %v1526
    %vm1546 = vcmp.lt.s32.totalorder %v1479, %v1526
    %vm1547 = vcmp.lt.s32.totalorder %v1480, %v1526
    %vm1548 = vcmp.lt.s32.totalorder %v1481, %v1526
    %vm1549 = vcmp.lt.s32.totalorder %v1482, %v1526
    %vm1550 = vcmp.lt.s32.totalorder %v1483, %v1526
    %vm1551 = vcmp.lt.s32.totalorder %v1484, %v1526
    %vm1552 = vcmp.lt.s32.totalorder %v1485, %v1526
    %vm1553 = vcmp.lt.s32.totalorder %v1486, %v1526
    %vm1554 = vcmp.lt.s32.totalorder %v1487, %v1526
    %vm1555 = vcmp.lt.s32.totalorder %v1488, %v1526
    %vm1556 = vcmp.lt.s32.totalorder %v1489, %v1526
    %vm1557 = vcmp.lt.s32.totalorder %v1490, %v1526
    %vm1558 = vcmp.lt.s32.totalorder %v1491, %v1526
    %vm1559 = vmand %vm1493, %vm1527
    %vm1560 = vmand %vm1494, %vm1528
    %vm1561 = vmand %vm1495, %vm1529
    %vm1562 = vmand %vm1496, %vm1530
    %vm1563 = vmand %vm1497, %vm1531
    %vm1564 = vmand %vm1498, %vm1532
    %vm1565 = vmand %vm1499, %vm1533
    %vm1566 = vmand %vm1500, %vm1534
    %vm1567 = vmand %vm1501, %vm1535
    %vm1568 = vmand %vm1502, %vm1536
    %vm1569 = vmand %vm1503, %vm1537
    %vm1570 = vmand %vm1504, %vm1538
    %vm1571 = vmand %vm1505, %vm1539
    %vm1572 = vmand %vm1506, %vm1540
    %vm1573 = vmand %vm1507, %vm1541
    %vm1574 = vmand %vm1508, %vm1542
    %vm1575 = vmand %vm1509, %vm1543
    %vm1576 = vmand %vm1510, %vm1544
    %vm1577 = vmand %vm1511, %vm1545
    %vm1578 = vmand %vm1512, %vm1546
    %vm1579 = vmand %vm1513, %vm1547
    %vm1580 = vmand %vm1514, %vm1548
    %vm1581 = vmand %vm1515, %vm1549
    %vm1582 = vmand %vm1516, %vm1550
    %vm1583 = vmand %vm1517, %vm1551
    %vm1584 = vmand %vm1518, %vm1552
    %vm1585 = vmand %vm1519, %vm1553
    %vm1586 = vmand %vm1520, %vm1554
    %vm1587 = vmand %vm1521, %vm1555
    %vm1588 = vmand %vm1522, %vm1556
    %vm1589 = vmand %vm1523, %vm1557
    %vm1590 = vmand %vm1524, %vm1558
    %v1591 = vsel %vm1559, 1, 0
    %v1592 = vsel %vm1560, 1, 0
    %v1593 = vsel %vm1561, 1, 0
    %v1594 = vsel %vm1562, 1, 0
    %v1595 = vsel %vm1563, 1, 0
    %v1596 = vsel %vm1564, 1, 0
    %v1597 = vsel %vm1565, 1, 0
    %v1598 = vsel %vm1566, 1, 0
    %v1599 = vsel %vm1567, 1, 0
    %v1600 = vsel %vm1568, 1, 0
    %v1601 = vsel %vm1569, 1, 0
    %v1602 = vsel %vm1570, 1, 0
    %v1603 = vsel %vm1571, 1, 0
    %v1604 = vsel %vm1572, 1, 0
    %v1605 = vsel %vm1573, 1, 0
    %v1606 = vsel %vm1574, 1, 0
    %v1607 = vsel %vm1575, 1, 0
    %v1608 = vsel %vm1576, 1, 0
    %v1609 = vsel %vm1577, 1, 0
    %v1610 = vsel %vm1578, 1, 0
    %v1611 = vsel %vm1579, 1, 0
    %v1612 = vsel %vm1580, 1, 0
    %v1613 = vsel %vm1581, 1, 0
    %v1614 = vsel %vm1582, 1, 0
    %v1615 = vsel %vm1583, 1, 0
    %v1616 = vsel %vm1584, 1, 0
    %v1617 = vsel %vm1585, 1, 0
    %v1618 = vsel %vm1586, 1, 0
    %v1619 = vsel %vm1587, 1, 0
    %v1620 = vsel %vm1588, 1, 0
    %v1621 = vsel %vm1589, 1, 0
    %v1622 = vsel %vm1590, 1, 0
    %v1623 = vcvt.s32.f32 %v1591
    %v1624 = vcvt.s32.f32 %v1592
    %v1625 = vcvt.s32.f32 %v1593
    %v1626 = vcvt.s32.f32 %v1594
    %v1627 = vcvt.s32.f32 %v1595
    %v1628 = vcvt.s32.f32 %v1596
    %v1629 = vcvt.s32.f32 %v1597
    %v1630 = vcvt.s32.f32 %v1598
    %v1631 = vcvt.s32.f32 %v1599
    %v1632 = vcvt.s32.f32 %v1600
    %v1633 = vcvt.s32.f32 %v1601
    %v1634 = vcvt.s32.f32 %v1602
    %v1635 = vcvt.s32.f32 %v1603
    %v1636 = vcvt.s32.f32 %v1604
    %v1637 = vcvt.s32.f32 %v1605
    %v1638 = vcvt.s32.f32 %v1606
    %v1639 = vcvt.s32.f32 %v1607
    %v1640 = vcvt.s32.f32 %v1608
    %v1641 = vcvt.s32.f32 %v1609
    %v1642 = vcvt.s32.f32 %v1610
    %v1643 = vcvt.s32.f32 %v1611
    %v1644 = vcvt.s32.f32 %v1612
    %v1645 = vcvt.s32.f32 %v1613
    %v1646 = vcvt.s32.f32 %v1614
    %v1647 = vcvt.s32.f32 %v1615
    %v1648 = vcvt.s32.f32 %v1616
    %v1649 = vcvt.s32.f32 %v1617
    %v1650 = vcvt.s32.f32 %v1618
    %v1651 = vcvt.s32.f32 %v1619
    %v1652 = vcvt.s32.f32 %v1620
    %v1653 = vcvt.s32.f32 %v1621
    %v1654 = vcvt.s32.f32 %v1622
    %v1655 = vadd.s32 %v1388, 128
    %v1656 = vand.u32 %v1388, 15
    %v1657 = vand.u32 %v1655, 15
    %v1658 = vmul.u32 %v1390, 2
    %vm1659 = vcmp.ge.s32.totalorder %v1656, %v1658
    %vm1660 = vcmp.ge.s32.totalorder %v1657, %v1658
    %v1661 = vadd.s32 %v1390, 1
    %v1662 = vmul.u32 %v1661, 2
    %vm1663 = vcmp.lt.s32.totalorder %v1656, %v1662
    %vm1664 = vcmp.lt.s32.totalorder %v1657, %v1662
    %vm1665 = vmand %vm1659, %vm1663
    %vm1666 = vmand %vm1660, %vm1664
    %v1667 = vsel %vm1665, 1, 0
    %v1668 = vsel %vm1666, 1, 0
    %v1669 = vcvt.s32.f32 %v1667
    %v1670 = vcvt.s32.f32 %v1668
    %v1671 = vmul.f32 %v1361, %v1361
    %v1672 = vmul.f32 %v1363, %v1363
    %v1673 = vmul.f32 %v1365, %v1365
    %v1674 = vmul.f32 %v1367, %v1367
    %v1675 = vmul.f32 %v1371, %v1371
    %v1676 = vmul.f32 %v1373, %v1373
    %v1677 = vmul.f32 %v1375, %v1375
    %v1678 = vmul.f32 %v1377, %v1377
    %v1679 = vmul.f32 %v1381, %v1381
    %v1680 = vmul.f32 %v1383, %v1383
    %vm1681 = vcmask 277504
    %v1683 = vsel %vm1681, %v1397, 0
    %vm1685 = vcmask 1041408
    %v1687 = vsel %vm1685, %v1381, 0
    %v1690 = vsel %vm1685, %v1383, 0
    %v1693 = vsel %vm1685, %v1679, 0
    %v1696 = vsel %vm1685, %v1680, 0
    %1698 = vmatprep.subr.mxu0 %v1363
    %1699 = vmatpush1.msra.mxu0 %v1361
    %1700 = vmatprep.subr.mxu0 %v1367
    %1701 = vmatpush1.msra.mxu0 %v1365
    %1702 = vmatprep.subr.mxu0 %v1373
    %1703 = vmatpush1.msra.mxu0 %v1371
    %1704 = vmatprep.subr.mxu0 %v1377
    %1705 = vmatpush1.msra.mxu0 %v1375
    %1706 = vmatprep.subr.mxu0 %v1690
    %1707 = vmatpush1.msra.mxu0 %v1687
    %1708 = vmatprep.subr.mxu0 0.0
    %1709 = vmatpush1.msra.mxu0 0.0
    %1710 = vmatprep.subr.mxu0 0.0
    %1711 = vmatpush1.msra.mxu0 0.0
    %1712 = vmatprep.subr.mxu0 0.0
    %1713 = vmatpush1.msra.mxu0 0.0
    %1714 = vmatprep.subr.mxu0 0.0
    %1715 = vmatpush1.msra.mxu0 0.0
    %1716 = vmatprep.subr.mxu0 0.0
    %1717 = vmatpush1.msra.mxu0 0.0
    %1718 = vmatprep.subr.mxu0 0.0
    %1719 = vmatpush1.msra.mxu0 0.0
    %1720 = vmatprep.subr.mxu0 0.0
    %1721 = vmatpush1.msra.mxu0 0.0
    %1722 = vmatprep.subr.mxu0 0.0
    %1723 = vmatpush1.msra.mxu0 0.0
    %1724 = vmatprep.subr.mxu0 0.0
    %1725 = vmatpush1.msra.mxu0 0.0
    %1726 = vmatprep.subr.mxu0 0.0
    %1727 = vmatpush1.msra.mxu0 0.0
    %1728 = vmatprep.subr.mxu0 0.0
    %1729 = vmatpush1.msra.mxu0 0.0
    %1730 = vmatprep.subr.mxu0 0.0
    %1731 = vmatpush1.msra.mxu0 0.0
    %1732 = vmatprep.subr.mxu0 0.0
    %1733 = vmatpush1.msra.mxu0 0.0
    %1734 = vmatprep.subr.mxu0 0.0
    %1735 = vmatpush1.msra.mxu0 0.0
    %1736 = vmatprep.subr.mxu0 0.0
    %1737 = vmatpush1.msra.mxu0 0.0
    %1738 = vmatprep.subr.mxu0 0.0
    %1739 = vmatpush1.msra.mxu0 0.0
    %1740 = vmatprep.subr.mxu0 0.0
    %1741 = vmatpush1.msra.mxu0 0.0
    %1742 = vmatprep.subr.mxu0 0.0
    %1743 = vmatpush1.msra.mxu0 0.0
    %1744 = vmatprep.subr.mxu0 0.0
    %1745 = vmatpush1.msra.mxu0 0.0
    %1746 = vmatprep.subr.mxu0 0.0
    %1747 = vmatpush1.msra.mxu0 0.0
    %1748 = vmatprep.subr.mxu0 0.0
    %1749 = vmatpush1.msra.mxu0 0.0
    %1750 = vmatprep.subr.mxu0 0.0
    %1751 = vmatpush1.msra.mxu0 0.0
    %1752 = vmatprep.subr.mxu0 0.0
    %1753 = vmatpush1.msra.mxu0 0.0
    %1754 = vmatprep.subr.mxu0 0.0
    %1755 = vmatpush1.msra.mxu0 0.0
    %1756 = vmatprep.subr.mxu0 0.0
    %1757 = vmatpush1.msra.mxu0 0.0
    %1758 = vmatprep.subr.mxu0 0.0
    %1759 = vmatpush1.msra.mxu0 0.0
    %1760 = vmatprep.subr.mxu0 0.0
    %1761 = vmatpush1.msra.mxu0 0.0
    %1762 = vmatprep.mubr.f32.mxu0 0.0
    %1763 = vmatmul.mubr.f32.gmra.mrb[0].mxu0 %v1683
    %v1764 = vpop.f32.mrb[0].mxu0
    %v1765 = vadd.f32 0.0, %v1764
    %v1766 = vpop.f32.mrb[0].mxu0
    %v1767 = vadd.f32 0.0, %v1766
    %1768 = vdwg.mxu0
    %1769 = vmatprep.subr.mxu0 %v1672
    %1770 = vmatpush1.msra.mxu0 %v1671
    %1771 = vmatprep.subr.mxu0 %v1674
    %1772 = vmatpush1.msra.mxu0 %v1673
    %1773 = vmatprep.subr.mxu0 %v1676
    %1774 = vmatpush1.msra.mxu0 %v1675
    %1775 = vmatprep.subr.mxu0 %v1678
    %1776 = vmatpush1.msra.mxu0 %v1677
    %1777 = vmatprep.subr.mxu0 %v1696
    %1778 = vmatpush1.msra.mxu0 %v1693
    %1779 = vmatprep.subr.mxu0 0.0
    %1780 = vmatpush1.msra.mxu0 0.0
    %1781 = vmatprep.subr.mxu0 0.0
    %1782 = vmatpush1.msra.mxu0 0.0
    %1783 = vmatprep.subr.mxu0 0.0
    %1784 = vmatpush1.msra.mxu0 0.0
    %1785 = vmatprep.subr.mxu0 0.0
    %1786 = vmatpush1.msra.mxu0 0.0
    %1787 = vmatprep.subr.mxu0 0.0
    %1788 = vmatpush1.msra.mxu0 0.0
    %1789 = vmatprep.subr.mxu0 0.0
    %1790 = vmatpush1.msra.mxu0 0.0
    %1791 = vmatprep.subr.mxu0 0.0
    %1792 = vmatpush1.msra.mxu0 0.0
    %1793 = vmatprep.subr.mxu0 0.0
    %1794 = vmatpush1.msra.mxu0 0.0
    %1795 = vmatprep.subr.mxu0 0.0
    %1796 = vmatpush1.msra.mxu0 0.0
    %1797 = vmatprep.subr.mxu0 0.0
    %1798 = vmatpush1.msra.mxu0 0.0
    %1799 = vmatprep.subr.mxu0 0.0
    %1800 = vmatpush1.msra.mxu0 0.0
    %1801 = vmatprep.subr.mxu0 0.0
    %1802 = vmatpush1.msra.mxu0 0.0
    %1803 = vmatprep.subr.mxu0 0.0
    %1804 = vmatpush1.msra.mxu0 0.0
    %1805 = vmatprep.subr.mxu0 0.0
    %1806 = vmatpush1.msra.mxu0 0.0
    %1807 = vmatprep.subr.mxu0 0.0
    %1808 = vmatpush1.msra.mxu0 0.0
    %1809 = vmatprep.subr.mxu0 0.0
    %1810 = vmatpush1.msra.mxu0 0.0
    %1811 = vmatprep.subr.mxu0 0.0
    %1812 = vmatpush1.msra.mxu0 0.0
    %1813 = vmatprep.subr.mxu0 0.0
    %1814 = vmatpush1.msra.mxu0 0.0
    %1815 = vmatprep.subr.mxu0 0.0
    %1816 = vmatpush1.msra.mxu0 0.0
    %1817 = vmatprep.subr.mxu0 0.0
    %1818 = vmatpush1.msra.mxu0 0.0
    %1819 = vmatprep.subr.mxu0 0.0
    %1820 = vmatpush1.msra.mxu0 0.0
    %1821 = vmatprep.subr.mxu0 0.0
    %1822 = vmatpush1.msra.mxu0 0.0
    %1823 = vmatprep.subr.mxu0 0.0
    %1824 = vmatpush1.msra.mxu0 0.0
    %1825 = vmatprep.subr.mxu0 0.0
    %1826 = vmatpush1.msra.mxu0 0.0
    %1827 = vmatprep.subr.mxu0 0.0
    %1828 = vmatpush1.msra.mxu0 0.0
    %1829 = vmatprep.subr.mxu0 0.0
    %1830 = vmatpush1.msra.mxu0 0.0
    %1831 = vmatprep.subr.mxu0 0.0
    %1832 = vmatpush1.msra.mxu0 0.0
    %1833 = vmatprep.mubr.f32.mxu0 0.0
    %1834 = vmatmul.mubr.f32.gmra.mrb[0].mxu0 %v1683
    %v1835 = vpop.f32.mrb[0].mxu0
    %v1836 = vadd.f32 0.0, %v1835
    %v1837 = vpop.f32.mrb[0].mxu0
    %v1838 = vadd.f32 0.0, %v1837
    %1839 = vdwg.mxu0
    %v1842 = vrot.slane %v1836, 6
    %v1843 = vrot.slane %v1838, 6
    %v1846 = vsel %vm1685, %v1765, %v1842
    %v1847 = vsel %vm1685, %v1767, %v1843
    %1848 = vmatprep.subr.mxu0 0.0
    %1849 = vmatpush1.msra.mxu0 %v1623
    %1850 = vmatprep.subr.mxu0 0.0
    %1851 = vmatpush1.msra.mxu0 %v1624
    %1852 = vmatprep.subr.mxu0 0.0
    %1853 = vmatpush1.msra.mxu0 %v1625
    %1854 = vmatprep.subr.mxu0 0.0
    %1855 = vmatpush1.msra.mxu0 %v1626
    %1856 = vmatprep.subr.mxu0 0.0
    %1857 = vmatpush1.msra.mxu0 %v1627
    %1858 = vmatprep.subr.mxu0 0.0
    %1859 = vmatpush1.msra.mxu0 %v1628
    %1860 = vmatprep.subr.mxu0 0.0
    %1861 = vmatpush1.msra.mxu0 %v1629
    %1862 = vmatprep.subr.mxu0 0.0
    %1863 = vmatpush1.msra.mxu0 %v1630
    %1864 = vmatprep.subr.mxu0 0.0
    %1865 = vmatpush1.msra.mxu0 %v1631
    %1866 = vmatprep.subr.mxu0 0.0
    %1867 = vmatpush1.msra.mxu0 %v1632
    %1868 = vmatprep.subr.mxu0 0.0
    %1869 = vmatpush1.msra.mxu0 %v1633
    %1870 = vmatprep.subr.mxu0 0.0
    %1871 = vmatpush1.msra.mxu0 %v1634
    %1872 = vmatprep.subr.mxu0 0.0
    %1873 = vmatpush1.msra.mxu0 %v1635
    %1874 = vmatprep.subr.mxu0 0.0
    %1875 = vmatpush1.msra.mxu0 %v1636
    %1876 = vmatprep.subr.mxu0 0.0
    %1877 = vmatpush1.msra.mxu0 %v1637
    %1878 = vmatprep.subr.mxu0 0.0
    %1879 = vmatpush1.msra.mxu0 %v1638
    %1880 = vmatprep.subr.mxu0 0.0
    %1881 = vmatpush1.msra.mxu0 %v1639
    %1882 = vmatprep.subr.mxu0 0.0
    %1883 = vmatpush1.msra.mxu0 %v1640
    %1884 = vmatprep.subr.mxu0 0.0
    %1885 = vmatpush1.msra.mxu0 %v1641
    %1886 = vmatprep.subr.mxu0 0.0
    %1887 = vmatpush1.msra.mxu0 %v1642
    %1888 = vmatprep.subr.mxu0 0.0
    %1889 = vmatpush1.msra.mxu0 %v1643
    %1890 = vmatprep.subr.mxu0 0.0
    %1891 = vmatpush1.msra.mxu0 %v1644
    %1892 = vmatprep.subr.mxu0 0.0
    %1893 = vmatpush1.msra.mxu0 %v1645
    %1894 = vmatprep.subr.mxu0 0.0
    %1895 = vmatpush1.msra.mxu0 %v1646
    %1896 = vmatprep.subr.mxu0 0.0
    %1897 = vmatpush1.msra.mxu0 %v1647
    %1898 = vmatprep.subr.mxu0 0.0
    %1899 = vmatpush1.msra.mxu0 %v1648
    %1900 = vmatprep.subr.mxu0 0.0
    %1901 = vmatpush1.msra.mxu0 %v1649
    %1902 = vmatprep.subr.mxu0 0.0
    %1903 = vmatpush1.msra.mxu0 %v1650
    %1904 = vmatprep.subr.mxu0 0.0
    %1905 = vmatpush1.msra.mxu0 %v1651
    %1906 = vmatprep.subr.mxu0 0.0
    %1907 = vmatpush1.msra.mxu0 %v1652
    %1908 = vmatprep.subr.mxu0 0.0
    %1909 = vmatpush1.msra.mxu0 %v1653
    %1910 = vmatprep.subr.mxu0 0.0
    %1911 = vmatpush1.msra.mxu0 %v1654
    %1912 = vmatprep.mubr.f32.mxu0 %v1847
    %1913 = vmatmul.mubr.f32.gmra.mrb[0].mxu0 %v1846
    %v1914 = vpop.f32.mrb[0].mxu0
    %v1915 = vadd.f32 0.0, %v1914
    %v1916 = vpop.f32.mrb[0].mxu0
    %1917 = vdwg.mxu0
    %v1918 = vmul.f32 %v1915, 0.001953125
    %v1919 = vmul.f32 %v1918, %v1918
    %v1921 = vrot.slane %v1919, 6
    %v1923 = vsub.f32 %v1918, %v1921
    %v1924 = vmax.f32 %v1923, 0.0
    %v1925 = vadd.f32 %v1924, 1e-05
    %v1926 = vrsqrt.pop %v1925
    %v1928 = vrot.slane %v1926, 2
    %v1931 = vrot.slane %v1918, 6
    %v1933 = vsel %vm1685, %v1928, %v1931
    %vm1934 = vcmask 64512
    %v1936 = vsel %vm1934, %v1933, 0
    %1938 = vmatprep.subr.mxu0 %v1670
    %1939 = vmatpush1.msra.mxu0 %v1669
    %1940 = vmatprep.subr.mxu0 0.0
    %1941 = vmatpush1.msra.mxu0 0.0
    %1942 = vmatprep.subr.mxu0 0.0
    %1943 = vmatpush1.msra.mxu0 0.0
    %1944 = vmatprep.subr.mxu0 0.0
    %1945 = vmatpush1.msra.mxu0 0.0
    %1946 = vmatprep.subr.mxu0 0.0
    %1947 = vmatpush1.msra.mxu0 0.0
    %1948 = vmatprep.subr.mxu0 0.0
    %1949 = vmatpush1.msra.mxu0 0.0
    %1950 = vmatprep.subr.mxu0 0.0
    %1951 = vmatpush1.msra.mxu0 0.0
    %1952 = vmatprep.subr.mxu0 0.0
    %1953 = vmatpush1.msra.mxu0 0.0
    %1954 = vmatprep.subr.mxu0 0.0
    %1955 = vmatpush1.msra.mxu0 0.0
    %1956 = vmatprep.subr.mxu0 0.0
    %1957 = vmatpush1.msra.mxu0 0.0
    %1958 = vmatprep.subr.mxu0 0.0
    %1959 = vmatpush1.msra.mxu0 0.0
    %1960 = vmatprep.subr.mxu0 0.0
    %1961 = vmatpush1.msra.mxu0 0.0
    %1962 = vmatprep.subr.mxu0 0.0
    %1963 = vmatpush1.msra.mxu0 0.0
    %1964 = vmatprep.subr.mxu0 0.0
    %1965 = vmatpush1.msra.mxu0 0.0
    %1966 = vmatprep.subr.mxu0 0.0
    %1967 = vmatpush1.msra.mxu0 0.0
    %1968 = vmatprep.subr.mxu0 0.0
    %1969 = vmatpush1.msra.mxu0 0.0
    %1970 = vmatprep.subr.mxu0 0.0
    %1971 = vmatpush1.msra.mxu0 0.0
    %1972 = vmatprep.subr.mxu0 0.0
    %1973 = vmatpush1.msra.mxu0 0.0
    %1974 = vmatprep.subr.mxu0 0.0
    %1975 = vmatpush1.msra.mxu0 0.0
    %1976 = vmatprep.subr.mxu0 0.0
    %1977 = vmatpush1.msra.mxu0 0.0
    %1978 = vmatprep.subr.mxu0 0.0
    %1979 = vmatpush1.msra.mxu0 0.0
    %1980 = vmatprep.subr.mxu0 0.0
    %1981 = vmatpush1.msra.mxu0 0.0
    %1982 = vmatprep.subr.mxu0 0.0
    %1983 = vmatpush1.msra.mxu0 0.0
    %1984 = vmatprep.subr.mxu0 0.0
    %1985 = vmatpush1.msra.mxu0 0.0
    %1986 = vmatprep.subr.mxu0 0.0
    %1987 = vmatpush1.msra.mxu0 0.0
    %1988 = vmatprep.subr.mxu0 0.0
    %1989 = vmatpush1.msra.mxu0 0.0
    %1990 = vmatprep.subr.mxu0 0.0
    %1991 = vmatpush1.msra.mxu0 0.0
    %1992 = vmatprep.subr.mxu0 0.0
    %1993 = vmatpush1.msra.mxu0 0.0
    %1994 = vmatprep.subr.mxu0 0.0
    %1995 = vmatpush1.msra.mxu0 0.0
    %1996 = vmatprep.subr.mxu0 0.0
    %1997 = vmatpush1.msra.mxu0 0.0
    %1998 = vmatprep.subr.mxu0 0.0
    %1999 = vmatpush1.msra.mxu0 0.0
    %2000 = vmatprep.subr.mxu0 0.0
    %2001 = vmatpush1.msra.mxu0 0.0
    %2002 = vmatprep.mubr.f32.mxu0 0.0
    %2003 = vmatmul.mubr.f32.gmra.mrb[0].mxu0 %v1936
    %v2004 = vpop.f32.mrb[0].mxu0
    %v2005 = vadd.f32 0.0, %v2004
    %v2006 = vpop.f32.mrb[0].mxu0
    %v2007 = vadd.f32 0.0, %v2006
    %2008 = vdwg.mxu0
    %v2010 = vlaneseq
    %v2011 = vshrl.u32 %v2010, 7
    %v2012 = vsub.s32 0, %v2011
    %v2013 = vrot.slane %v1088, %v2012
    %v2014 = vlaneseq
    %v2015 = vshrl.u32 %v2014, 7
    %v2016 = vsub.s32 1, %v2015
    %v2017 = vrot.slane %v1088, %v2016
    %v2020 = vmul.f32 %v2005, %v2013
    %v2021 = vmul.f32 %v2007, %v2017
    %v2024 = vrot.slane %v2020, 6
    %v2025 = vrot.slane %v2021, 6
    %v2028 = vmul.f32 %v2005, %v2024
    %v2029 = vmul.f32 %v2007, %v2025
    %v2031 = vlaneseq
    %v2032 = vshrl.u32 %v2031, 7
    %v2033 = vsub.s32 0, %v2032
    %v2034 = vrot.slane %v1090, %v2033
    %v2035 = vlaneseq
    %v2036 = vshrl.u32 %v2035, 7
    %v2037 = vsub.s32 1, %v2036
    %v2038 = vrot.slane %v1090, %v2037
    %v2041 = vsub.f32 %v2034, %v2028
    %v2042 = vsub.f32 %v2038, %v2029
    %v2045 = vrot.slane %v2041, 2
    %v2046 = vrot.slane %v2042, 2
    %vm2047 = vcmask 15360
    %v2049 = vsel %vm2047, %v1428, 0
    %v2052 = vsel %vm2047, %v1429, 0
    %v2055 = vsel %vm2047, %v1430, 0
    %v2058 = vsel %vm2047, %v1431, 0
    %v2061 = vsel %vm2047, %v1432, 0
    %v2063 = vsel %vm1685, %v2020, 0
    %v2065 = vsel %vm1685, %v2021, 0
    %v2067 = vsel %vm1685, %v2045, 0
    %v2069 = vsel %vm1685, %v2046, 0
    %2071 = vmatprep.subr.mxu0 %v2065
    %2072 = vmatpush1.msra.mxu0 %v2063
    %2073 = vmatprep.subr.mxu0 0.0
    %2074 = vmatpush1.msra.mxu0 0.0
    %2075 = vmatprep.subr.mxu0 0.0
    %2076 = vmatpush1.msra.mxu0 0.0
    %2077 = vmatprep.subr.mxu0 0.0
    %2078 = vmatpush1.msra.mxu0 0.0
    %2079 = vmatprep.subr.mxu0 0.0
    %2080 = vmatpush1.msra.mxu0 0.0
    %2081 = vmatprep.subr.mxu0 0.0
    %2082 = vmatpush1.msra.mxu0 0.0
    %2083 = vmatprep.subr.mxu0 0.0
    %2084 = vmatpush1.msra.mxu0 0.0
    %2085 = vmatprep.subr.mxu0 0.0
    %2086 = vmatpush1.msra.mxu0 0.0
    %2087 = vmatprep.subr.mxu0 0.0
    %2088 = vmatpush1.msra.mxu0 0.0
    %2089 = vmatprep.subr.mxu0 0.0
    %2090 = vmatpush1.msra.mxu0 0.0
    %2091 = vmatprep.subr.mxu0 0.0
    %2092 = vmatpush1.msra.mxu0 0.0
    %2093 = vmatprep.subr.mxu0 0.0
    %2094 = vmatpush1.msra.mxu0 0.0
    %2095 = vmatprep.subr.mxu0 0.0
    %2096 = vmatpush1.msra.mxu0 0.0
    %2097 = vmatprep.subr.mxu0 0.0
    %2098 = vmatpush1.msra.mxu0 0.0
    %2099 = vmatprep.subr.mxu0 0.0
    %2100 = vmatpush1.msra.mxu0 0.0
    %2101 = vmatprep.subr.mxu0 0.0
    %2102 = vmatpush1.msra.mxu0 0.0
    %2103 = vmatprep.subr.mxu0 0.0
    %2104 = vmatpush1.msra.mxu0 0.0
    %2105 = vmatprep.subr.mxu0 0.0
    %2106 = vmatpush1.msra.mxu0 0.0
    %2107 = vmatprep.subr.mxu0 0.0
    %2108 = vmatpush1.msra.mxu0 0.0
    %2109 = vmatprep.subr.mxu0 0.0
    %2110 = vmatpush1.msra.mxu0 0.0
    %2111 = vmatprep.subr.mxu0 0.0
    %2112 = vmatpush1.msra.mxu0 0.0
    %2113 = vmatprep.subr.mxu0 0.0
    %2114 = vmatpush1.msra.mxu0 0.0
    %2115 = vmatprep.subr.mxu0 0.0
    %2116 = vmatpush1.msra.mxu0 0.0
    %2117 = vmatprep.subr.mxu0 0.0
    %2118 = vmatpush1.msra.mxu0 0.0
    %2119 = vmatprep.subr.mxu0 0.0
    %2120 = vmatpush1.msra.mxu0 0.0
    %2121 = vmatprep.subr.mxu0 0.0
    %2122 = vmatpush1.msra.mxu0 0.0
    %2123 = vmatprep.subr.mxu0 0.0
    %2124 = vmatpush1.msra.mxu0 0.0
    %2125 = vmatprep.subr.mxu0 0.0
    %2126 = vmatpush1.msra.mxu0 0.0
    %2127 = vmatprep.subr.mxu0 0.0
    %2128 = vmatpush1.msra.mxu0 0.0
    %2129 = vmatprep.subr.mxu0 0.0
    %2130 = vmatpush1.msra.mxu0 0.0
    %2131 = vmatprep.subr.mxu0 0.0
    %2132 = vmatpush1.msra.mxu0 0.0
    %2133 = vmatprep.subr.mxu0 0.0
    %2134 = vmatpush1.msra.mxu0 0.0
    %2135 = vmatprep.mubr.f32.mxu0 0.0
    %2136 = vmatmul.mubr.f32.gmra.mrb[0].mxu0 %v2049
    %v2137 = vpop.f32.mrb[0].mxu0
    %v2138 = vadd.f32 0.0, %v2137
    %v2139 = vpop.f32.mrb[0].mxu0
    %v2140 = vadd.f32 0.0, %v2139
    %2141 = vmatprep.mubr.f32.mxu0 0.0
    %2142 = vmatmul.mubr.f32.gmra.mrb[0].mxu0 %v2052
    %v2143 = vpop.f32.mrb[0].mxu0
    %v2144 = vadd.f32 0.0, %v2143
    %v2145 = vpop.f32.mrb[0].mxu0
    %v2146 = vadd.f32 0.0, %v2145
    %2147 = vmatprep.mubr.f32.mxu0 0.0
    %2148 = vmatmul.mubr.f32.gmra.mrb[0].mxu0 %v2055
    %v2149 = vpop.f32.mrb[0].mxu0
    %v2150 = vadd.f32 0.0, %v2149
    %v2151 = vpop.f32.mrb[0].mxu0
    %v2152 = vadd.f32 0.0, %v2151
    %2153 = vmatprep.mubr.f32.mxu0 0.0
    %2154 = vmatmul.mubr.f32.gmra.mrb[0].mxu0 %v2058
    %v2155 = vpop.f32.mrb[0].mxu0
    %v2156 = vadd.f32 0.0, %v2155
    %v2157 = vpop.f32.mrb[0].mxu0
    %v2158 = vadd.f32 0.0, %v2157
    %2159 = vmatprep.mubr.f32.mxu0 0.0
    %2160 = vmatmul.mubr.f32.gmra.mrb[0].mxu0 %v2061
    %v2161 = vpop.f32.mrb[0].mxu0
    %v2162 = vadd.f32 0.0, %v2161
    %v2163 = vpop.f32.mrb[0].mxu0
    %v2164 = vadd.f32 0.0, %v2163
    %2165 = vdwg.mxu0
    %2166 = vmatprep.subr.mxu0 %v2069
    %2167 = vmatpush1.msra.mxu0 %v2067
    %2168 = vmatprep.subr.mxu0 0.0
    %2169 = vmatpush1.msra.mxu0 0.0
    %2170 = vmatprep.subr.mxu0 0.0
    %2171 = vmatpush1.msra.mxu0 0.0
    %2172 = vmatprep.subr.mxu0 0.0
    %2173 = vmatpush1.msra.mxu0 0.0
    %2174 = vmatprep.subr.mxu0 0.0
    %2175 = vmatpush1.msra.mxu0 0.0
    %2176 = vmatprep.subr.mxu0 0.0
    %2177 = vmatpush1.msra.mxu0 0.0
    %2178 = vmatprep.subr.mxu0 0.0
    %2179 = vmatpush1.msra.mxu0 0.0
    %2180 = vmatprep.subr.mxu0 0.0
    %2181 = vmatpush1.msra.mxu0 0.0
    %2182 = vmatprep.subr.mxu0 0.0
    %2183 = vmatpush1.msra.mxu0 0.0
    %2184 = vmatprep.subr.mxu0 0.0
    %2185 = vmatpush1.msra.mxu0 0.0
    %2186 = vmatprep.subr.mxu0 0.0
    %2187 = vmatpush1.msra.mxu0 0.0
    %2188 = vmatprep.subr.mxu0 0.0
    %2189 = vmatpush1.msra.mxu0 0.0
    %2190 = vmatprep.subr.mxu0 0.0
    %2191 = vmatpush1.msra.mxu0 0.0
    %2192 = vmatprep.subr.mxu0 0.0
    %2193 = vmatpush1.msra.mxu0 0.0
    %2194 = vmatprep.subr.mxu0 0.0
    %2195 = vmatpush1.msra.mxu0 0.0
    %2196 = vmatprep.subr.mxu0 0.0
    %2197 = vmatpush1.msra.mxu0 0.0
    %2198 = vmatprep.subr.mxu0 0.0
    %2199 = vmatpush1.msra.mxu0 0.0
    %2200 = vmatprep.subr.mxu0 0.0
    %2201 = vmatpush1.msra.mxu0 0.0
    %2202 = vmatprep.subr.mxu0 0.0
    %2203 = vmatpush1.msra.mxu0 0.0
    %2204 = vmatprep.subr.mxu0 0.0
    %2205 = vmatpush1.msra.mxu0 0.0
    %2206 = vmatprep.subr.mxu0 0.0
    %2207 = vmatpush1.msra.mxu0 0.0
    %2208 = vmatprep.subr.mxu0 0.0
    %2209 = vmatpush1.msra.mxu0 0.0
    %2210 = vmatprep.subr.mxu0 0.0
    %2211 = vmatpush1.msra.mxu0 0.0
    %2212 = vmatprep.subr.mxu0 0.0
    %2213 = vmatpush1.msra.mxu0 0.0
    %2214 = vmatprep.subr.mxu0 0.0
    %2215 = vmatpush1.msra.mxu0 0.0
    %2216 = vmatprep.subr.mxu0 0.0
    %2217 = vmatpush1.msra.mxu0 0.0
    %2218 = vmatprep.subr.mxu0 0.0
    %2219 = vmatpush1.msra.mxu0 0.0
    %2220 = vmatprep.subr.mxu0 0.0
    %2221 = vmatpush1.msra.mxu0 0.0
    %2222 = vmatprep.subr.mxu0 0.0
    %2223 = vmatpush1.msra.mxu0 0.0
    %2224 = vmatprep.subr.mxu0 0.0
    %2225 = vmatpush1.msra.mxu0 0.0
    %2226 = vmatprep.subr.mxu0 0.0
    %2227 = vmatpush1.msra.mxu0 0.0
    %2228 = vmatprep.subr.mxu0 0.0
    %2229 = vmatpush1.msra.mxu0 0.0
    %2230 = vmatprep.mubr.f32.mxu0 0.0
    %2231 = vmatmul.mubr.f32.gmra.mrb[0].mxu0 %v2049
    %v2232 = vpop.f32.mrb[0].mxu0
    %v2233 = vadd.f32 0.0, %v2232
    %v2234 = vpop.f32.mrb[0].mxu0
    %v2235 = vadd.f32 0.0, %v2234
    %2236 = vmatprep.mubr.f32.mxu0 0.0
    %2237 = vmatmul.mubr.f32.gmra.mrb[0].mxu0 %v2052
    %v2238 = vpop.f32.mrb[0].mxu0
    %v2239 = vadd.f32 0.0, %v2238
    %v2240 = vpop.f32.mrb[0].mxu0
    %v2241 = vadd.f32 0.0, %v2240
    %2242 = vmatprep.mubr.f32.mxu0 0.0
    %2243 = vmatmul.mubr.f32.gmra.mrb[0].mxu0 %v2055
    %v2244 = vpop.f32.mrb[0].mxu0
    %v2245 = vadd.f32 0.0, %v2244
    %v2246 = vpop.f32.mrb[0].mxu0
    %v2247 = vadd.f32 0.0, %v2246
    %2248 = vmatprep.mubr.f32.mxu0 0.0
    %2249 = vmatmul.mubr.f32.gmra.mrb[0].mxu0 %v2058
    %v2250 = vpop.f32.mrb[0].mxu0
    %v2251 = vadd.f32 0.0, %v2250
    %v2252 = vpop.f32.mrb[0].mxu0
    %v2253 = vadd.f32 0.0, %v2252
    %2254 = vmatprep.mubr.f32.mxu0 0.0
    %2255 = vmatmul.mubr.f32.gmra.mrb[0].mxu0 %v2061
    %v2256 = vpop.f32.mrb[0].mxu0
    %v2257 = vadd.f32 0.0, %v2256
    %v2258 = vpop.f32.mrb[0].mxu0
    %v2259 = vadd.f32 0.0, %v2258
    %2260 = vdwg.mxu0
    %v2261 = vmul.f32 %v1361, %v2138
    %v2262 = vmul.f32 %v1363, %v2140
    %v2263 = vmul.f32 %v1365, %v2144
    %v2264 = vmul.f32 %v1367, %v2146
    %v2265 = vmul.f32 %v1371, %v2150
    %v2266 = vmul.f32 %v1373, %v2152
    %v2267 = vmul.f32 %v1375, %v2156
    %v2268 = vmul.f32 %v1377, %v2158
    %v2269 = vmul.f32 %v1381, %v2162
    %v2270 = vmul.f32 %v1383, %v2164
    %v2271 = vadd.f32 %v2261, %v2233
    %v2272 = vadd.f32 %v2262, %v2235
    %v2273 = vadd.f32 %v2263, %v2239
    %v2274 = vadd.f32 %v2264, %v2241
    %v2275 = vadd.f32 %v2265, %v2245
    %v2276 = vadd.f32 %v2266, %v2247
    %v2277 = vadd.f32 %v2267, %v2251
    %v2278 = vadd.f32 %v2268, %v2253
    %v2279 = vadd.f32 %v2269, %v2257
    %v2280 = vadd.f32 %v2270, %v2259
    %vm2281 = vcmp.ge.s32.totalorder %v1390, 16
    %vm2282 = vcmp.ge.s32.totalorder %v1398, 16
    %vm2283 = vcmp.ge.s32.totalorder %v1399, 16
    %vm2284 = vcmp.ge.s32.totalorder %v1400, 16
    %v2285 = vsel %vm2281, 1, 0
    %v2286 = vsel %vm2282, 1, 0
    %v2287 = vsel %vm2283, 1, 0
    %v2288 = vsel %vm2284, 1, 0
    %v2289 = vmul.u32 %v2285, 16
    %v2290 = vmul.u32 %v2286, 16
    %v2291 = vmul.u32 %v2287, 16
    %v2292 = vmul.u32 %v2288, 16
    %v2293 = vsub.s32 %v1390, %v2289
    %v2294 = vsub.s32 %v1398, %v2290
    %v2295 = vsub.s32 %v1399, %v2291
    %v2296 = vsub.s32 %v1400, %v2292
    %vm2297 = vcmp.ge.s32.totalorder %v2293, 0
    %vm2298 = vcmp.ge.s32.totalorder %v2294, 0
    %vm2299 = vcmp.ge.s32.totalorder %v2295, 0
    %vm2300 = vcmp.ge.s32.totalorder %v2296, 0
    %vm2301 = vcmp.lt.s32.totalorder %v2293, 8
    %vm2302 = vcmp.lt.s32.totalorder %v2294, 8
    %vm2303 = vcmp.lt.s32.totalorder %v2295, 8
    %vm2304 = vcmp.lt.s32.totalorder %v2296, 8
    %vm2305 = vmand %vm2297, %vm2301
    %vm2306 = vmand %vm2298, %vm2302
    %vm2307 = vmand %vm2299, %vm2303
    %vm2308 = vmand %vm2300, %vm2304
    %v2309 = vmul.u32 %v2293, 2
    %v2310 = vmul.u32 %v2294, 2
    %v2311 = vmul.u32 %v2295, 2
    %v2312 = vmul.u32 %v2296, 2
    %v2313 = vadd.s32 %v2309, %v2285
    %v2314 = vadd.s32 %v2310, %v2286
    %v2315 = vadd.s32 %v2311, %v2287
    %v2316 = vadd.s32 %v2312, %v2288
    %vm2317 = vcmp.eq.s32.totalorder %v1388, %v2313
    %vm2318 = vcmp.eq.s32.totalorder %v1388, %v2314
    %vm2319 = vcmp.eq.s32.totalorder %v1388, %v2315
    %vm2320 = vcmp.eq.s32.totalorder %v1388, %v2316
    %vm2321 = vmand %vm2305, %vm2317
    %vm2322 = vmand %vm2306, %vm2318
    %vm2323 = vmand %vm2307, %vm2319
    %vm2324 = vmand %vm2308, %vm2320
    %v2325 = vsel %vm2321, 1, 0
    %v2326 = vsel %vm2322, 1, 0
    %v2327 = vsel %vm2323, 1, 0
    %v2328 = vsel %vm2324, 1, 0
    %v2329 = vcvt.s32.f32 %v2325
    %v2330 = vcvt.s32.f32 %v2326
    %v2331 = vcvt.s32.f32 %v2327
    %v2332 = vcvt.s32.f32 %v2328
    %vm2333 = vcmp.ge.s32.totalorder %v2293, 8
    %vm2334 = vcmp.ge.s32.totalorder %v2294, 8
    %vm2335 = vcmp.ge.s32.totalorder %v2295, 8
    %vm2336 = vcmp.ge.s32.totalorder %v2296, 8
    %vm2337 = vcmp.lt.s32.totalorder %v2293, 16
    %vm2338 = vcmp.lt.s32.totalorder %v2294, 16
    %vm2339 = vcmp.lt.s32.totalorder %v2295, 16
    %vm2340 = vcmp.lt.s32.totalorder %v2296, 16
    %vm2341 = vmand %vm2333, %vm2337
    %vm2342 = vmand %vm2334, %vm2338
    %vm2343 = vmand %vm2335, %vm2339
    %vm2344 = vmand %vm2336, %vm2340
    %v2345 = vsub.s32 %v2293, 8
    %v2346 = vsub.s32 %v2294, 8
    %v2347 = vsub.s32 %v2295, 8
    %v2348 = vsub.s32 %v2296, 8
    %v2349 = vmul.u32 %v2345, 2
    %v2350 = vmul.u32 %v2346, 2
    %v2351 = vmul.u32 %v2347, 2
    %v2352 = vmul.u32 %v2348, 2
    %v2353 = vadd.s32 %v2349, 18
    %v2354 = vadd.s32 %v2350, 18
    %v2355 = vadd.s32 %v2351, 18
    %v2356 = vadd.s32 %v2352, 18
    %v2357 = vadd.s32 %v2353, %v2285
    %v2358 = vadd.s32 %v2354, %v2286
    %v2359 = vadd.s32 %v2355, %v2287
    %v2360 = vadd.s32 %v2356, %v2288
    %vm2361 = vcmp.eq.s32.totalorder %v1388, %v2357
    %vm2362 = vcmp.eq.s32.totalorder %v1388, %v2358
    %vm2363 = vcmp.eq.s32.totalorder %v1388, %v2359
    %vm2364 = vcmp.eq.s32.totalorder %v1388, %v2360
    %vm2365 = vmand %vm2341, %vm2361
    %vm2366 = vmand %vm2342, %vm2362
    %vm2367 = vmand %vm2343, %vm2363
    %vm2368 = vmand %vm2344, %vm2364
    %v2369 = vsel %vm2365, 1, 0
    %v2370 = vsel %vm2366, 1, 0
    %v2371 = vsel %vm2367, 1, 0
    %v2372 = vsel %vm2368, 1, 0
    %v2373 = vcvt.s32.f32 %v2369
    %v2374 = vcvt.s32.f32 %v2370
    %v2375 = vcvt.s32.f32 %v2371
    %v2376 = vcvt.s32.f32 %v2372
    %v2377 = vadd.f32 %v2329, %v2373
    %v2378 = vadd.f32 %v2330, %v2374
    %v2379 = vadd.f32 %v2331, %v2375
    %v2380 = vadd.f32 %v2332, %v2376
    %v2382 = vsel %vm1681, %v2377, 0
    %v2385 = vsel %vm1681, %v2378, 0
    %v2388 = vsel %vm1681, %v2379, 0
    %v2391 = vsel %vm1681, %v2380, 0
    %v2394 = vsel %vm1685, %v2279, 0
    %v2397 = vsel %vm1685, %v2280, 0
    %2399 = vmatprep.subr.mxu0 %v2272
    %2400 = vmatpush1.msra.mxu0 %v2271
    %2401 = vmatprep.subr.mxu0 %v2274
    %2402 = vmatpush1.msra.mxu0 %v2273
    %2403 = vmatprep.subr.mxu0 %v2276
    %2404 = vmatpush1.msra.mxu0 %v2275
    %2405 = vmatprep.subr.mxu0 %v2278
    %2406 = vmatpush1.msra.mxu0 %v2277
    %2407 = vmatprep.subr.mxu0 %v2397
    %2408 = vmatpush1.msra.mxu0 %v2394
    %2409 = vmatprep.subr.mxu0 0.0
    %2410 = vmatpush1.msra.mxu0 0.0
    %2411 = vmatprep.subr.mxu0 0.0
    %2412 = vmatpush1.msra.mxu0 0.0
    %2413 = vmatprep.subr.mxu0 0.0
    %2414 = vmatpush1.msra.mxu0 0.0
    %2415 = vmatprep.subr.mxu0 0.0
    %2416 = vmatpush1.msra.mxu0 0.0
    %2417 = vmatprep.subr.mxu0 0.0
    %2418 = vmatpush1.msra.mxu0 0.0
    %2419 = vmatprep.subr.mxu0 0.0
    %2420 = vmatpush1.msra.mxu0 0.0
    %2421 = vmatprep.subr.mxu0 0.0
    %2422 = vmatpush1.msra.mxu0 0.0
    %2423 = vmatprep.subr.mxu0 0.0
    %2424 = vmatpush1.msra.mxu0 0.0
    %2425 = vmatprep.subr.mxu0 0.0
    %2426 = vmatpush1.msra.mxu0 0.0
    %2427 = vmatprep.subr.mxu0 0.0
    %2428 = vmatpush1.msra.mxu0 0.0
    %2429 = vmatprep.subr.mxu0 0.0
    %2430 = vmatpush1.msra.mxu0 0.0
    %2431 = vmatprep.subr.mxu0 0.0
    %2432 = vmatpush1.msra.mxu0 0.0
    %2433 = vmatprep.subr.mxu0 0.0
    %2434 = vmatpush1.msra.mxu0 0.0
    %2435 = vmatprep.subr.mxu0 0.0
    %2436 = vmatpush1.msra.mxu0 0.0
    %2437 = vmatprep.subr.mxu0 0.0
    %2438 = vmatpush1.msra.mxu0 0.0
    %2439 = vmatprep.subr.mxu0 0.0
    %2440 = vmatpush1.msra.mxu0 0.0
    %2441 = vmatprep.subr.mxu0 0.0
    %2442 = vmatpush1.msra.mxu0 0.0
    %2443 = vmatprep.subr.mxu0 0.0
    %2444 = vmatpush1.msra.mxu0 0.0
    %2445 = vmatprep.subr.mxu0 0.0
    %2446 = vmatpush1.msra.mxu0 0.0
    %2447 = vmatprep.subr.mxu0 0.0
    %2448 = vmatpush1.msra.mxu0 0.0
    %2449 = vmatprep.subr.mxu0 0.0
    %2450 = vmatpush1.msra.mxu0 0.0
    %2451 = vmatprep.subr.mxu0 0.0
    %2452 = vmatpush1.msra.mxu0 0.0
    %2453 = vmatprep.subr.mxu0 0.0
    %2454 = vmatpush1.msra.mxu0 0.0
    %2455 = vmatprep.subr.mxu0 0.0
    %2456 = vmatpush1.msra.mxu0 0.0
    %2457 = vmatprep.subr.mxu0 0.0
    %2458 = vmatpush1.msra.mxu0 0.0
    %2459 = vmatprep.subr.mxu0 0.0
    %2460 = vmatpush1.msra.mxu0 0.0
    %2461 = vmatprep.subr.mxu0 0.0
    %2462 = vmatpush1.msra.mxu0 0.0
    %2463 = vmatprep.mubr.f32.mxu0 0.0
    %2464 = vmatmul.mubr.f32.gmra.mrb[0].mxu0 %v2382
    %v2465 = vpop.f32.mrb[0].mxu0
    %v2466 = vadd.f32 0.0, %v2465
    %v2467 = vpop.f32.mrb[0].mxu0
    %v2468 = vadd.f32 0.0, %v2467
    %2469 = vmatprep.mubr.f32.mxu0 0.0
    %2470 = vmatmul.mubr.f32.gmra.mrb[0].mxu0 %v2385
    %v2471 = vpop.f32.mrb[0].mxu0
    %v2472 = vadd.f32 0.0, %v2471
    %v2473 = vpop.f32.mrb[0].mxu0
    %v2474 = vadd.f32 0.0, %v2473
    %2475 = vmatprep.mubr.f32.mxu0 0.0
    %2476 = vmatmul.mubr.f32.gmra.mrb[0].mxu0 %v2388
    %v2477 = vpop.f32.mrb[0].mxu0
    %v2478 = vadd.f32 0.0, %v2477
    %v2479 = vpop.f32.mrb[0].mxu0
    %v2480 = vadd.f32 0.0, %v2479
    %2481 = vmatprep.mubr.f32.mxu0 0.0
    %2482 = vmatmul.mubr.f32.gmra.mrb[0].mxu0 %v2391
    %v2483 = vpop.f32.mrb[0].mxu0
    %v2484 = vadd.f32 0.0, %v2483
    %v2485 = vpop.f32.mrb[0].mxu0
    %v2486 = vadd.f32 0.0, %v2485
    %2487 = vdwg.mxu0
    %v2488 = vmax.f32 %v2466, %v2478
    %v2489 = vmax.f32 %v2468, %v2480
    %v2490 = vmax.f32 %v2472, %v2484
    %v2491 = vmax.f32 %v2474, %v2486
    %vm2492 = vcmp.ge.s32.totalorder %v1388, 128
    %vm2493 = vcmp.ge.s32.totalorder %v1655, 128
    %v2494 = vsel %vm2492, 1, 0
    %v2495 = vsel %vm2493, 1, 0
    %v2496 = vmul.u32 %v2494, 128
    %v2497 = vmul.u32 %v2495, 128
    %v2498 = vsub.s32 %v1388, %v2496
    %v2499 = vsub.s32 %v1655, %v2497
    %v2500 = vand.u32 %v2498, 15
    %v2501 = vand.u32 %v2499, 15
    %v2502 = vmul.u32 %v2498, 2
    %v2503 = vmul.u32 %v2499, 2
    %v2504 = vsub.s32 %v2502, %v2500
    %v2505 = vsub.s32 %v2503, %v2501
    %v2506 = vmul.u32 %v2494, 16
    %v2507 = vmul.u32 %v2495, 16
    %v2508 = vadd.s32 %v2504, %v2506
    %v2509 = vadd.s32 %v2505, %v2507
    %vm2510 = vcmp.eq.s32.totalorder %v1390, %v2508
    %vm2511 = vcmp.eq.s32.totalorder %v1390, %v2509
    %vm2512 = vcmp.eq.s32.totalorder %v1398, %v2508
    %vm2513 = vcmp.eq.s32.totalorder %v1398, %v2509
    %vm2514 = vcmp.eq.s32.totalorder %v1399, %v2508
    %vm2515 = vcmp.eq.s32.totalorder %v1399, %v2509
    %vm2516 = vcmp.eq.s32.totalorder %v1400, %v2508
    %vm2517 = vcmp.eq.s32.totalorder %v1400, %v2509
    %vm2518 = vcmp.eq.s32.totalorder %v1401, %v2508
    %vm2519 = vcmp.eq.s32.totalorder %v1401, %v2509
    %vm2520 = vcmp.eq.s32.totalorder %v1433, %v2508
    %vm2521 = vcmp.eq.s32.totalorder %v1433, %v2509
    %vm2522 = vcmp.eq.s32.totalorder %v1434, %v2508
    %vm2523 = vcmp.eq.s32.totalorder %v1434, %v2509
    %vm2524 = vcmp.eq.s32.totalorder %v1435, %v2508
    %vm2525 = vcmp.eq.s32.totalorder %v1435, %v2509
    %vm2526 = vcmp.eq.s32.totalorder %v1436, %v2508
    %vm2527 = vcmp.eq.s32.totalorder %v1436, %v2509
    %vm2528 = vcmp.eq.s32.totalorder %v1437, %v2508
    %vm2529 = vcmp.eq.s32.totalorder %v1437, %v2509
    %vm2530 = vcmp.eq.s32.totalorder %v1438, %v2508
    %vm2531 = vcmp.eq.s32.totalorder %v1438, %v2509
    %vm2532 = vcmp.eq.s32.totalorder %v1439, %v2508
    %vm2533 = vcmp.eq.s32.totalorder %v1439, %v2509
    %vm2534 = vcmp.eq.s32.totalorder %v1440, %v2508
    %vm2535 = vcmp.eq.s32.totalorder %v1440, %v2509
    %vm2536 = vcmp.eq.s32.totalorder %v1441, %v2508
    %vm2537 = vcmp.eq.s32.totalorder %v1441, %v2509
    %vm2538 = vcmp.eq.s32.totalorder %v1442, %v2508
    %vm2539 = vcmp.eq.s32.totalorder %v1442, %v2509
    %vm2540 = vcmp.eq.s32.totalorder %v1443, %v2508
    %vm2541 = vcmp.eq.s32.totalorder %v1443, %v2509
    %vm2542 = vcmp.eq.s32.totalorder %v1444, %v2508
    %vm2543 = vcmp.eq.s32.totalorder %v1444, %v2509
    %vm2544 = vcmp.eq.s32.totalorder %v1445, %v2508
    %vm2545 = vcmp.eq.s32.totalorder %v1445, %v2509
    %vm2546 = vcmp.eq.s32.totalorder %v1446, %v2508
    %vm2547 = vcmp.eq.s32.totalorder %v1446, %v2509
    %vm2548 = vcmp.eq.s32.totalorder %v1447, %v2508
    %vm2549 = vcmp.eq.s32.totalorder %v1447, %v2509
    %vm2550 = vcmp.eq.s32.totalorder %v1448, %v2508
    %vm2551 = vcmp.eq.s32.totalorder %v1448, %v2509
    %vm2552 = vcmp.eq.s32.totalorder %v1449, %v2508
    %vm2553 = vcmp.eq.s32.totalorder %v1449, %v2509
    %vm2554 = vcmp.eq.s32.totalorder %v1450, %v2508
    %vm2555 = vcmp.eq.s32.totalorder %v1450, %v2509
    %vm2556 = vcmp.eq.s32.totalorder %v1451, %v2508
    %vm2557 = vcmp.eq.s32.totalorder %v1451, %v2509
    %vm2558 = vcmp.eq.s32.totalorder %v1452, %v2508
    %vm2559 = vcmp.eq.s32.totalorder %v1452, %v2509
    %vm2560 = vcmp.eq.s32.totalorder %v1453, %v2508
    %vm2561 = vcmp.eq.s32.totalorder %v1453, %v2509
    %vm2562 = vcmp.eq.s32.totalorder %v1454, %v2508
    %vm2563 = vcmp.eq.s32.totalorder %v1454, %v2509
    %vm2564 = vcmp.eq.s32.totalorder %v1455, %v2508
    %vm2565 = vcmp.eq.s32.totalorder %v1455, %v2509
    %vm2566 = vcmp.eq.s32.totalorder %v1456, %v2508
    %vm2567 = vcmp.eq.s32.totalorder %v1456, %v2509
    %vm2568 = vcmp.eq.s32.totalorder %v1457, %v2508
    %vm2569 = vcmp.eq.s32.totalorder %v1457, %v2509
    %vm2570 = vcmp.eq.s32.totalorder %v1458, %v2508
    %vm2571 = vcmp.eq.s32.totalorder %v1458, %v2509
    %vm2572 = vcmp.eq.s32.totalorder %v1459, %v2508
    %vm2573 = vcmp.eq.s32.totalorder %v1459, %v2509
    %v2574 = vsel %vm2510, 1, 0
    %v2575 = vsel %vm2511, 1, 0
    %v2576 = vsel %vm2512, 1, 0
    %v2577 = vsel %vm2513, 1, 0
    %v2578 = vsel %vm2514, 1, 0
    %v2579 = vsel %vm2515, 1, 0
    %v2580 = vsel %vm2516, 1, 0
    %v2581 = vsel %vm2517, 1, 0
    %v2582 = vsel %vm2518, 1, 0
    %v2583 = vsel %vm2519, 1, 0
    %v2584 = vsel %vm2520, 1, 0
    %v2585 = vsel %vm2521, 1, 0
    %v2586 = vsel %vm2522, 1, 0
    %v2587 = vsel %vm2523, 1, 0
    %v2588 = vsel %vm2524, 1, 0
    %v2589 = vsel %vm2525, 1, 0
    %v2590 = vsel %vm2526, 1, 0
    %v2591 = vsel %vm2527, 1, 0
    %v2592 = vsel %vm2528, 1, 0
    %v2593 = vsel %vm2529, 1, 0
    %v2594 = vsel %vm2530, 1, 0
    %v2595 = vsel %vm2531, 1, 0
    %v2596 = vsel %vm2532, 1, 0
    %v2597 = vsel %vm2533, 1, 0
    %v2598 = vsel %vm2534, 1, 0
    %v2599 = vsel %vm2535, 1, 0
    %v2600 = vsel %vm2536, 1, 0
    %v2601 = vsel %vm2537, 1, 0
    %v2602 = vsel %vm2538, 1, 0
    %v2603 = vsel %vm2539, 1, 0
    %v2604 = vsel %vm2540, 1, 0
    %v2605 = vsel %vm2541, 1, 0
    %v2606 = vsel %vm2542, 1, 0
    %v2607 = vsel %vm2543, 1, 0
    %v2608 = vsel %vm2544, 1, 0
    %v2609 = vsel %vm2545, 1, 0
    %v2610 = vsel %vm2546, 1, 0
    %v2611 = vsel %vm2547, 1, 0
    %v2612 = vsel %vm2548, 1, 0
    %v2613 = vsel %vm2549, 1, 0
    %v2614 = vsel %vm2550, 1, 0
    %v2615 = vsel %vm2551, 1, 0
    %v2616 = vsel %vm2552, 1, 0
    %v2617 = vsel %vm2553, 1, 0
    %v2618 = vsel %vm2554, 1, 0
    %v2619 = vsel %vm2555, 1, 0
    %v2620 = vsel %vm2556, 1, 0
    %v2621 = vsel %vm2557, 1, 0
    %v2622 = vsel %vm2558, 1, 0
    %v2623 = vsel %vm2559, 1, 0
    %v2624 = vsel %vm2560, 1, 0
    %v2625 = vsel %vm2561, 1, 0
    %v2626 = vsel %vm2562, 1, 0
    %v2627 = vsel %vm2563, 1, 0
    %v2628 = vsel %vm2564, 1, 0
    %v2629 = vsel %vm2565, 1, 0
    %v2630 = vsel %vm2566, 1, 0
    %v2631 = vsel %vm2567, 1, 0
    %v2632 = vsel %vm2568, 1, 0
    %v2633 = vsel %vm2569, 1, 0
    %v2634 = vsel %vm2570, 1, 0
    %v2635 = vsel %vm2571, 1, 0
    %v2636 = vsel %vm2572, 1, 0
    %v2637 = vsel %vm2573, 1, 0
    %v2638 = vcvt.s32.f32 %v2574
    %v2639 = vcvt.s32.f32 %v2575
    %v2640 = vcvt.s32.f32 %v2576
    %v2641 = vcvt.s32.f32 %v2577
    %v2642 = vcvt.s32.f32 %v2578
    %v2643 = vcvt.s32.f32 %v2579
    %v2644 = vcvt.s32.f32 %v2580
    %v2645 = vcvt.s32.f32 %v2581
    %v2646 = vcvt.s32.f32 %v2582
    %v2647 = vcvt.s32.f32 %v2583
    %v2648 = vcvt.s32.f32 %v2584
    %v2649 = vcvt.s32.f32 %v2585
    %v2650 = vcvt.s32.f32 %v2586
    %v2651 = vcvt.s32.f32 %v2587
    %v2652 = vcvt.s32.f32 %v2588
    %v2653 = vcvt.s32.f32 %v2589
    %v2654 = vcvt.s32.f32 %v2590
    %v2655 = vcvt.s32.f32 %v2591
    %v2656 = vcvt.s32.f32 %v2592
    %v2657 = vcvt.s32.f32 %v2593
    %v2658 = vcvt.s32.f32 %v2594
    %v2659 = vcvt.s32.f32 %v2595
    %v2660 = vcvt.s32.f32 %v2596
    %v2661 = vcvt.s32.f32 %v2597
    %v2662 = vcvt.s32.f32 %v2598
    %v2663 = vcvt.s32.f32 %v2599
    %v2664 = vcvt.s32.f32 %v2600
    %v2665 = vcvt.s32.f32 %v2601
    %v2666 = vcvt.s32.f32 %v2602
    %v2667 = vcvt.s32.f32 %v2603
    %v2668 = vcvt.s32.f32 %v2604
    %v2669 = vcvt.s32.f32 %v2605
    %v2670 = vcvt.s32.f32 %v2606
    %v2671 = vcvt.s32.f32 %v2607
    %v2672 = vcvt.s32.f32 %v2608
    %v2673 = vcvt.s32.f32 %v2609
    %v2674 = vcvt.s32.f32 %v2610
    %v2675 = vcvt.s32.f32 %v2611
    %v2676 = vcvt.s32.f32 %v2612
    %v2677 = vcvt.s32.f32 %v2613
    %v2678 = vcvt.s32.f32 %v2614
    %v2679 = vcvt.s32.f32 %v2615
    %v2680 = vcvt.s32.f32 %v2616
    %v2681 = vcvt.s32.f32 %v2617
    %v2682 = vcvt.s32.f32 %v2618
    %v2683 = vcvt.s32.f32 %v2619
    %v2684 = vcvt.s32.f32 %v2620
    %v2685 = vcvt.s32.f32 %v2621
    %v2686 = vcvt.s32.f32 %v2622
    %v2687 = vcvt.s32.f32 %v2623
    %v2688 = vcvt.s32.f32 %v2624
    %v2689 = vcvt.s32.f32 %v2625
    %v2690 = vcvt.s32.f32 %v2626
    %v2691 = vcvt.s32.f32 %v2627
    %v2692 = vcvt.s32.f32 %v2628
    %v2693 = vcvt.s32.f32 %v2629
    %v2694 = vcvt.s32.f32 %v2630
    %v2695 = vcvt.s32.f32 %v2631
    %v2696 = vcvt.s32.f32 %v2632
    %v2697 = vcvt.s32.f32 %v2633
    %v2698 = vcvt.s32.f32 %v2634
    %v2699 = vcvt.s32.f32 %v2635
    %v2700 = vcvt.s32.f32 %v2636
    %v2701 = vcvt.s32.f32 %v2637
    %2702 = vmatprep.subr.mxu0 %v2639
    %2703 = vmatpush1.msra.mxu0 %v2638
    %2704 = vmatprep.subr.mxu0 %v2641
    %2705 = vmatpush1.msra.mxu0 %v2640
    %2706 = vmatprep.subr.mxu0 %v2643
    %2707 = vmatpush1.msra.mxu0 %v2642
    %2708 = vmatprep.subr.mxu0 %v2645
    %2709 = vmatpush1.msra.mxu0 %v2644
    %2710 = vmatprep.subr.mxu0 %v2647
    %2711 = vmatpush1.msra.mxu0 %v2646
    %2712 = vmatprep.subr.mxu0 %v2649
    %2713 = vmatpush1.msra.mxu0 %v2648
    %2714 = vmatprep.subr.mxu0 %v2651
    %2715 = vmatpush1.msra.mxu0 %v2650
    %2716 = vmatprep.subr.mxu0 %v2653
    %2717 = vmatpush1.msra.mxu0 %v2652
    %2718 = vmatprep.subr.mxu0 %v2655
    %2719 = vmatpush1.msra.mxu0 %v2654
    %2720 = vmatprep.subr.mxu0 %v2657
    %2721 = vmatpush1.msra.mxu0 %v2656
    %2722 = vmatprep.subr.mxu0 %v2659
    %2723 = vmatpush1.msra.mxu0 %v2658
    %2724 = vmatprep.subr.mxu0 %v2661
    %2725 = vmatpush1.msra.mxu0 %v2660
    %2726 = vmatprep.subr.mxu0 %v2663
    %2727 = vmatpush1.msra.mxu0 %v2662
    %2728 = vmatprep.subr.mxu0 %v2665
    %2729 = vmatpush1.msra.mxu0 %v2664
    %2730 = vmatprep.subr.mxu0 %v2667
    %2731 = vmatpush1.msra.mxu0 %v2666
    %2732 = vmatprep.subr.mxu0 %v2669
    %2733 = vmatpush1.msra.mxu0 %v2668
    %2734 = vmatprep.subr.mxu0 %v2671
    %2735 = vmatpush1.msra.mxu0 %v2670
    %2736 = vmatprep.subr.mxu0 %v2673
    %2737 = vmatpush1.msra.mxu0 %v2672
    %2738 = vmatprep.subr.mxu0 %v2675
    %2739 = vmatpush1.msra.mxu0 %v2674
    %2740 = vmatprep.subr.mxu0 %v2677
    %2741 = vmatpush1.msra.mxu0 %v2676
    %2742 = vmatprep.subr.mxu0 %v2679
    %2743 = vmatpush1.msra.mxu0 %v2678
    %2744 = vmatprep.subr.mxu0 %v2681
    %2745 = vmatpush1.msra.mxu0 %v2680
    %2746 = vmatprep.subr.mxu0 %v2683
    %2747 = vmatpush1.msra.mxu0 %v2682
    %2748 = vmatprep.subr.mxu0 %v2685
    %2749 = vmatpush1.msra.mxu0 %v2684
    %2750 = vmatprep.subr.mxu0 %v2687
    %2751 = vmatpush1.msra.mxu0 %v2686
    %2752 = vmatprep.subr.mxu0 %v2689
    %2753 = vmatpush1.msra.mxu0 %v2688
    %2754 = vmatprep.subr.mxu0 %v2691
    %2755 = vmatpush1.msra.mxu0 %v2690
    %2756 = vmatprep.subr.mxu0 %v2693
    %2757 = vmatpush1.msra.mxu0 %v2692
    %2758 = vmatprep.subr.mxu0 %v2695
    %2759 = vmatpush1.msra.mxu0 %v2694
    %2760 = vmatprep.subr.mxu0 %v2697
    %2761 = vmatpush1.msra.mxu0 %v2696
    %2762 = vmatprep.subr.mxu0 %v2699
    %2763 = vmatpush1.msra.mxu0 %v2698
    %2764 = vmatprep.subr.mxu0 %v2701
    %2765 = vmatpush1.msra.mxu0 %v2700
    %2766 = vmatprep.mubr.f32.mxu0 %v2489
    %2767 = vmatmul.mubr.f32.gmra.mrb[0].mxu0 %v2488
    %v2768 = vpop.f32.mrb[0].mxu0
    %v2769 = vadd.f32 0.0, %v2768
    %v2770 = vpop.f32.mrb[0].mxu0
    %v2771 = vadd.f32 0.0, %v2770
    %2772 = vmatprep.mubr.f32.mxu0 %v2491
    %2773 = vmatmul.mubr.f32.gmra.mrb[0].mxu0 %v2490
    %v2774 = vpop.f32.mrb[0].mxu0
    %v2775 = vadd.f32 0.0, %v2774
    %v2776 = vpop.f32.mrb[0].mxu0
    %v2777 = vadd.f32 0.0, %v2776
    %2778 = vdwg.mxu0
    %v2779 = vmax.f32 %v2769, %v2771
    %v2780 = vmax.f32 %v2775, %v2777
    %v2781 = vmax.f32 %v2779, 0.0
    %v2782 = vmax.f32 %v2780, 0.0
    %v2783 = vld [vmem:[%s4] ss:$4 sm:$0x3]
    %s2784 = scalar_lea.vmem %s4, 1
    %v2785 = vld [vmem:[%s2784] ss:$4 sm:$0x3]
    %s2786 = scalar_lea.vmem %s4, 2
    %v2787 = vld [vmem:[%s2786] ss:$4 sm:$0x3]
    %2788 = vst [vmem:[#allocation3] sm:$0x1] 0.0
    %2789 = vst [vmem:[#allocation3 + $0x9] sm:$0x1] 0.0
    %2790 = vst [vmem:[#allocation3 + $0x1] sm:$0xff] %v2781
    %2791 = vst [vmem:[#allocation3 + $0xa] sm:$0x1] 0.0
    %2792 = vst [vmem:[#allocation3 + $0x13] sm:$0x1] 0.0
    %2793 = vst [vmem:[#allocation3 + $0xb] sm:$0xff] %v2782
    %v2794 = vld [vmem:[#allocation3] sm:$0xff]
    %v2795 = vld [vmem:[#allocation3 + $0x8] sm:$0xff]
    %v2796 = vld [vmem:[#allocation3 + $0x10] sm:$0xf]
    %v2800 = vrot.slane %v2794, 1
    %v2801 = vrot.slane %v2795, 1
    %v2802 = vsel %vm1111, %v2800, %v2801
    %v2803 = vrot.slane %v2796, 1
    %v2804 = vsel %vm1111, %v2801, %v2803
    %v2808 = vrot.slane %v2794, 2
    %v2809 = vrot.slane %v2795, 2
    %v2810 = vsel %vm1136, %v2808, %v2809
    %v2811 = vrot.slane %v2796, 2
    %v2812 = vsel %vm1136, %v2809, %v2811
    %v2816 = vpack.c.bf16 %v2795, %v2794
    %v2817 = vpack.c.bf16 %v2804, %v2802
    %v2818 = vpack.c.bf16 %v2812, %v2810
    %v2819 = vpack.c.bf16 %v2796, %v2796
    %v2820 = vpack.c.bf16 %v2803, %v2803
    %v2821 = vpack.c.bf16 %v2811, %v2811
    %v2822 = vld [vmem:[%s3] sm:$0xff]
    %v2823 = vld [vmem:[%s3 + $0x8] sm:$0xff]
    %v2824 = vld [vmem:[%s3 + $0x10] sm:$0xff]
    %v2825 = vld [vmem:[%s3 + $0x18] sm:$0xff]
    %v2826 = vld [vmem:[%s3 + $0x20] sm:$0xff]
    %v2827 = vld [vmem:[%s3 + $0x28] sm:$0xff]
    %v2828 = vld [vmem:[%s3 + $0x30] sm:$0xff]
    %v2829 = vld [vmem:[%s3 + $0x38] sm:$0xff]
    %v2830 = vld [vmem:[%s3 + $0x40] sm:$0xff]
    %v2831 = vld [vmem:[%s3 + $0x48] sm:$0xff]
    %v2832 = vld [vmem:[%s3 + $0x50] sm:$0xff]
    %v2833 = vld [vmem:[%s3 + $0x58] sm:$0xff]
    %v2834 = vld [vmem:[%s3 + $0x60] sm:$0xff]
    %v2835 = vld [vmem:[%s3 + $0x68] sm:$0xff]
    %v2836 = vld [vmem:[%s3 + $0x70] sm:$0xff]
    %v2837 = vld [vmem:[%s3 + $0x78] sm:$0xff]
    %v2838 = vld [vmem:[%s3 + $0x80] sm:$0xff]
    %v2839 = vld [vmem:[%s3 + $0x88] sm:$0xff]
    %v2840 = vld [vmem:[%s3 + $0x90] sm:$0xff]
    %v2841 = vld [vmem:[%s3 + $0x98] sm:$0xff]
    %v2842 = vld [vmem:[%s3 + $0xa0] sm:$0xff]
    %v2843 = vld [vmem:[%s3 + $0xa8] sm:$0xff]
    %v2844 = vld [vmem:[%s3 + $0xb0] sm:$0xff]
    %v2845 = vld [vmem:[%s3 + $0xb8] sm:$0xff]
    %v2846 = vld [vmem:[%s3 + $0xc0] sm:$0xff]
    %v2847 = vld [vmem:[%s3 + $0xc8] sm:$0xff]
    %v2848 = vld [vmem:[%s3 + $0xd0] sm:$0xff]
    %v2849 = vld [vmem:[%s3 + $0xd8] sm:$0xff]
    %v2850 = vld [vmem:[%s3 + $0xe0] sm:$0xff]
    %v2851 = vld [vmem:[%s3 + $0xe8] sm:$0xff]
    %v2852 = vld [vmem:[%s3 + $0xf0] sm:$0xff]
    %v2853 = vld [vmem:[%s3 + $0xf8] sm:$0xff]
    %v2854 = vld [vmem:[%s3 + $0x100] sm:$0xff]
    %v2855 = vld [vmem:[%s3 + $0x108] sm:$0xff]
    %v2856 = vld [vmem:[%s3 + $0x110] sm:$0xff]
    %v2857 = vld [vmem:[%s3 + $0x118] sm:$0xff]
    %v2858 = vld [vmem:[%s3 + $0x120] sm:$0xff]
    %v2859 = vld [vmem:[%s3 + $0x128] sm:$0xff]
    %v2860 = vld [vmem:[%s3 + $0x130] sm:$0xff]
    %v2861 = vld [vmem:[%s3 + $0x138] sm:$0xff]
    %v2862 = vld [vmem:[%s3 + $0x140] sm:$0xff]
    %v2863 = vld [vmem:[%s3 + $0x148] sm:$0xff]
    %v2864 = vld [vmem:[%s3 + $0x150] sm:$0xff]
    %v2865 = vld [vmem:[%s3 + $0x158] sm:$0xff]
    %v2866 = vld [vmem:[%s3 + $0x160] sm:$0xff]
    %v2867 = vld [vmem:[%s3 + $0x168] sm:$0xff]
    %v2868 = vld [vmem:[%s3 + $0x170] sm:$0xff]
    %v2869 = vld [vmem:[%s3 + $0x178] sm:$0xff]
    %v2871 = vlaneseq
    %v2872 = vshrl.u32 %v2871, 7
    %v2873 = vsub.s32 0, %v2872
    %v2874 = vrot.slane %v2783, %v2873
    %v2875 = vlaneseq
    %v2876 = vshrl.u32 %v2875, 7
    %v2877 = vsub.s32 1, %v2876
    %v2878 = vrot.slane %v2783, %v2877
    %v2929 = vunpack.c.l.b16 %v2822
    %v2930 = vunpack.c.h.b16 %v2822
    %v2931 = vunpack.c.l.b16 %v2823
    %v2932 = vunpack.c.h.b16 %v2823
    %v2933 = vunpack.c.l.b16 %v2824
    %v2934 = vunpack.c.h.b16 %v2824
    %v2935 = vunpack.c.l.b16 %v2825
    %v2936 = vunpack.c.h.b16 %v2825
    %v2937 = vunpack.c.l.b16 %v2826
    %v2938 = vunpack.c.h.b16 %v2826
    %v2939 = vunpack.c.l.b16 %v2827
    %v2940 = vunpack.c.h.b16 %v2827
    %v2941 = vunpack.c.l.b16 %v2828
    %v2942 = vunpack.c.h.b16 %v2828
    %v2943 = vunpack.c.l.b16 %v2829
    %v2944 = vunpack.c.h.b16 %v2829
    %v2945 = vunpack.c.l.b16 %v2830
    %v2946 = vunpack.c.h.b16 %v2830
    %v2947 = vunpack.c.l.b16 %v2831
    %v2948 = vunpack.c.h.b16 %v2831
    %v2949 = vunpack.c.l.b16 %v2832
    %v2950 = vunpack.c.h.b16 %v2832
    %v2951 = vunpack.c.l.b16 %v2833
    %v2952 = vunpack.c.h.b16 %v2833
    %v2953 = vunpack.c.l.b16 %v2834
    %v2954 = vunpack.c.h.b16 %v2834
    %v2955 = vunpack.c.l.b16 %v2835
    %v2956 = vunpack.c.h.b16 %v2835
    %v2957 = vunpack.c.l.b16 %v2836
    %v2958 = vunpack.c.h.b16 %v2836
    %v2959 = vunpack.c.l.b16 %v2837
    %v2960 = vunpack.c.h.b16 %v2837
    %v2961 = vunpack.c.l.b16 %v2838
    %v2962 = vunpack.c.h.b16 %v2838
    %v2963 = vunpack.c.l.b16 %v2839
    %v2964 = vunpack.c.h.b16 %v2839
    %v2965 = vunpack.c.l.b16 %v2840
    %v2966 = vunpack.c.h.b16 %v2840
    %v2967 = vunpack.c.l.b16 %v2841
    %v2968 = vunpack.c.h.b16 %v2841
    %v2969 = vunpack.c.l.b16 %v2842
    %v2970 = vunpack.c.h.b16 %v2842
    %v2971 = vunpack.c.l.b16 %v2843
    %v2972 = vunpack.c.h.b16 %v2843
    %v2973 = vunpack.c.l.b16 %v2844
    %v2974 = vunpack.c.h.b16 %v2844
    %v2975 = vunpack.c.l.b16 %v2845
    %v2976 = vunpack.c.h.b16 %v2845
    %v2977 = vunpack.c.l.b16 %v2846
    %v2978 = vunpack.c.h.b16 %v2846
    %v2979 = vunpack.c.l.b16 %v2847
    %v2980 = vunpack.c.h.b16 %v2847
    %v2981 = vunpack.c.l.b16 %v2848
    %v2982 = vunpack.c.h.b16 %v2848
    %v2983 = vunpack.c.l.b16 %v2849
    %v2984 = vunpack.c.h.b16 %v2849
    %v2985 = vunpack.c.l.b16 %v2850
    %v2986 = vunpack.c.h.b16 %v2850
    %v2987 = vunpack.c.l.b16 %v2851
    %v2988 = vunpack.c.h.b16 %v2851
    %v2989 = vunpack.c.l.b16 %v2852
    %v2990 = vunpack.c.h.b16 %v2852
    %v2991 = vunpack.c.l.b16 %v2853
    %v2992 = vunpack.c.h.b16 %v2853
    %v2993 = vunpack.c.l.b16 %v2854
    %v2994 = vunpack.c.h.b16 %v2854
    %v2995 = vunpack.c.l.b16 %v2855
    %v2996 = vunpack.c.h.b16 %v2855
    %v2997 = vunpack.c.l.b16 %v2856
    %v2998 = vunpack.c.h.b16 %v2856
    %v2999 = vunpack.c.l.b16 %v2857
    %v3000 = vunpack.c.h.b16 %v2857
    %v3001 = vunpack.c.l.b16 %v2858
    %v3002 = vunpack.c.h.b16 %v2858
    %v3003 = vunpack.c.l.b16 %v2859
    %v3004 = vunpack.c.h.b16 %v2859
    %v3005 = vunpack.c.l.b16 %v2860
    %v3006 = vunpack.c.h.b16 %v2860
    %v3007 = vunpack.c.l.b16 %v2861
    %v3008 = vunpack.c.h.b16 %v2861
    %v3009 = vunpack.c.l.b16 %v2862
    %v3010 = vunpack.c.h.b16 %v2862
    %v3011 = vunpack.c.l.b16 %v2863
    %v3012 = vunpack.c.h.b16 %v2863
    %v3013 = vunpack.c.l.b16 %v2864
    %v3014 = vunpack.c.h.b16 %v2864
    %v3015 = vunpack.c.l.b16 %v2865
    %v3016 = vunpack.c.h.b16 %v2865
    %v3017 = vunpack.c.l.b16 %v2866
    %v3018 = vunpack.c.h.b16 %v2866
    %v3019 = vunpack.c.l.b16 %v2867
    %v3020 = vunpack.c.h.b16 %v2867
    %v3021 = vunpack.c.l.b16 %v2868
    %v3022 = vunpack.c.h.b16 %v2868
    %v3023 = vunpack.c.l.b16 %v2869
    %v3024 = vunpack.c.h.b16 %v2869
    %v3025 = vpack.c.b16 %v2931, %v2929
    %v3026 = vpack.c.b16 %v2932, %v2930
    %v3027 = vpack.c.b16 %v2935, %v2933
    %v3028 = vpack.c.b16 %v2936, %v2934
    %v3029 = vpack.c.b16 %v2939, %v2937
    %v3030 = vpack.c.b16 %v2940, %v2938
    %v3031 = vpack.c.b16 %v2943, %v2941
    %v3032 = vpack.c.b16 %v2944, %v2942
    %v3033 = vpack.c.b16 %v2947, %v2945
    %v3034 = vpack.c.b16 %v2948, %v2946
    %v3035 = vpack.c.b16 %v2951, %v2949
    %v3036 = vpack.c.b16 %v2952, %v2950
    %v3037 = vpack.c.b16 %v2955, %v2953
    %v3038 = vpack.c.b16 %v2956, %v2954
    %v3039 = vpack.c.b16 %v2959, %v2957
    %v3040 = vpack.c.b16 %v2960, %v2958
    %v3041 = vpack.c.b16 %v2963, %v2961
    %v3042 = vpack.c.b16 %v2964, %v2962
    %v3043 = vpack.c.b16 %v2967, %v2965
    %v3044 = vpack.c.b16 %v2968, %v2966
    %v3045 = vpack.c.b16 %v2971, %v2969
    %v3046 = vpack.c.b16 %v2972, %v2970
    %v3047 = vpack.c.b16 %v2975, %v2973
    %v3048 = vpack.c.b16 %v2976, %v2974
    %v3049 = vpack.c.b16 %v2979, %v2977
    %v3050 = vpack.c.b16 %v2980, %v2978
    %v3051 = vpack.c.b16 %v2983, %v2981
    %v3052 = vpack.c.b16 %v2984, %v2982
    %v3053 = vpack.c.b16 %v2987, %v2985
    %v3054 = vpack.c.b16 %v2988, %v2986
    %v3055 = vpack.c.b16 %v2991, %v2989
    %v3056 = vpack.c.b16 %v2992, %v2990
    %v3057 = vpack.c.b16 %v2995, %v2993
    %v3058 = vpack.c.b16 %v2996, %v2994
    %v3059 = vpack.c.b16 %v2999, %v2997
    %v3060 = vpack.c.b16 %v3000, %v2998
    %v3061 = vpack.c.b16 %v3003, %v3001
    %v3062 = vpack.c.b16 %v3004, %v3002
    %v3063 = vpack.c.b16 %v3007, %v3005
    %v3064 = vpack.c.b16 %v3008, %v3006
    %v3065 = vpack.c.b16 %v3011, %v3009
    %v3066 = vpack.c.b16 %v3012, %v3010
    %v3067 = vpack.c.b16 %v3015, %v3013
    %v3068 = vpack.c.b16 %v3016, %v3014
    %v3069 = vpack.c.b16 %v3019, %v3017
    %v3070 = vpack.c.b16 %v3020, %v3018
    %v3071 = vpack.c.b16 %v3023, %v3021
    %v3072 = vpack.c.b16 %v3024, %v3022
    %3121 = vmatprep.subr.bf16.mxu0 %v3026
    %3122 = vmatpush1.bf16.msra.mxu0 %v3025
    %3123 = vmatprep.subr.bf16.mxu0 %v3028
    %3124 = vmatpush1.bf16.msra.mxu0 %v3027
    %3125 = vmatprep.subr.bf16.mxu0 %v3030
    %3126 = vmatpush1.bf16.msra.mxu0 %v3029
    %3127 = vmatprep.subr.bf16.mxu0 %v3032
    %3128 = vmatpush1.bf16.msra.mxu0 %v3031
    %3129 = vmatprep.subr.bf16.mxu0 %v3034
    %3130 = vmatpush1.bf16.msra.mxu0 %v3033
    %3131 = vmatprep.subr.bf16.mxu0 %v3036
    %3132 = vmatpush1.bf16.msra.mxu0 %v3035
    %3133 = vmatprep.subr.bf16.mxu0 %v3038
    %3134 = vmatpush1.bf16.msra.mxu0 %v3037
    %3135 = vmatprep.subr.bf16.mxu0 %v3040
    %3136 = vmatpush1.bf16.msra.mxu0 %v3039
    %3137 = vmatprep.subr.bf16.mxu0 %v3042
    %3138 = vmatpush1.bf16.msra.mxu0 %v3041
    %3139 = vmatprep.subr.bf16.mxu0 %v3044
    %3140 = vmatpush1.bf16.msra.mxu0 %v3043
    %3141 = vmatprep.subr.bf16.mxu0 %v3046
    %3142 = vmatpush1.bf16.msra.mxu0 %v3045
    %3143 = vmatprep.subr.bf16.mxu0 %v3048
    %3144 = vmatpush1.bf16.msra.mxu0 %v3047
    %3145 = vmatprep.subr.bf16.mxu0 %v3050
    %3146 = vmatpush1.bf16.msra.mxu0 %v3049
    %3147 = vmatprep.subr.bf16.mxu0 %v3052
    %3148 = vmatpush1.bf16.msra.mxu0 %v3051
    %3149 = vmatprep.subr.bf16.mxu0 %v3054
    %3150 = vmatpush1.bf16.msra.mxu0 %v3053
    %3151 = vmatprep.subr.bf16.mxu0 %v3056
    %3152 = vmatpush1.bf16.msra.mxu0 %v3055
    %3153 = vmatprep.mubr.bf16.mxu0 %v2817
    %3154 = vmatmul.mubr.bf16.gmra.mrb[0].mxu0 %v2816
    %v3155 = vpop.f32.mrb[0].mxu0
    %v3156 = vadd.f32 %v2874, %v3155
    %v3157 = vpop.f32.mrb[0].mxu0
    %v3158 = vadd.f32 %v2878, %v3157
    %v3159 = vpop.f32.mrb[0].mxu0
    %v3160 = vadd.f32 %v2874, %v3159
    %v3161 = vpop.f32.mrb[0].mxu0
    %v3162 = vadd.f32 %v2878, %v3161
    %3163 = vmatprep.mubr.bf16.mxu0 %v2820
    %3164 = vmatmul.mubr.bf16.gmra.mrb[0].mxu0 %v2819
    %v3165 = vpop.f32.mrb[0].mxu0
    %v3166 = vadd.f32 %v2874, %v3165
    %v3167 = vpop.f32.mrb[0].mxu0
    %v3168 = vadd.f32 %v2878, %v3167
    %v3169 = vpop.f32.mrb[0].mxu0
    %v3170 = vpop.f32.mrb[0].mxu0
    %3171 = vdwg.mxu0
    %3172 = vmatprep.subr.bf16.mxu0 %v3058
    %3173 = vmatpush1.bf16.msra.mxu0 %v3057
    %3174 = vmatprep.subr.bf16.mxu0 %v3060
    %3175 = vmatpush1.bf16.msra.mxu0 %v3059
    %3176 = vmatprep.subr.bf16.mxu0 %v3062
    %3177 = vmatpush1.bf16.msra.mxu0 %v3061
    %3178 = vmatprep.subr.bf16.mxu0 %v3064
    %3179 = vmatpush1.bf16.msra.mxu0 %v3063
    %3180 = vmatprep.subr.bf16.mxu0 %v3066
    %3181 = vmatpush1.bf16.msra.mxu0 %v3065
    %3182 = vmatprep.subr.bf16.mxu0 %v3068
    %3183 = vmatpush1.bf16.msra.mxu0 %v3067
    %3184 = vmatprep.subr.bf16.mxu0 %v3070
    %3185 = vmatpush1.bf16.msra.mxu0 %v3069
    %3186 = vmatprep.subr.bf16.mxu0 %v3072
    %3187 = vmatpush1.bf16.msra.mxu0 %v3071
    %3188 = vmatprep.subr.bf16.mxu0 0
    %3189 = vmatpush1.bf16.msra.mxu0 0
    %3190 = vmatprep.subr.bf16.mxu0 0
    %3191 = vmatpush1.bf16.msra.mxu0 0
    %3192 = vmatprep.subr.bf16.mxu0 0
    %3193 = vmatpush1.bf16.msra.mxu0 0
    %3194 = vmatprep.subr.bf16.mxu0 0
    %3195 = vmatpush1.bf16.msra.mxu0 0
    %3196 = vmatprep.subr.bf16.mxu0 0
    %3197 = vmatpush1.bf16.msra.mxu0 0
    %3198 = vmatprep.subr.bf16.mxu0 0
    %3199 = vmatpush1.bf16.msra.mxu0 0
    %3200 = vmatprep.subr.bf16.mxu0 0
    %3201 = vmatpush1.bf16.msra.mxu0 0
    %3202 = vmatprep.subr.bf16.mxu0 0
    %3203 = vmatpush1.bf16.msra.mxu0 0
    %3204 = vmatprep.mubr.bf16.mxu0 0
    %3205 = vmatmul.mubr.bf16.gmra.mrb[0].mxu0 %v2818
    %v3206 = vpop.f32.mrb[0].mxu0
    %v3207 = vadd.f32 %v3156, %v3206
    %v3208 = vpop.f32.mrb[0].mxu0
    %v3209 = vadd.f32 %v3158, %v3208
    %v3210 = vpop.f32.mrb[0].mxu0
    %v3211 = vadd.f32 %v3160, %v3210
    %v3212 = vpop.f32.mrb[0].mxu0
    %v3213 = vadd.f32 %v3162, %v3212
    %3214 = vmatprep.mubr.bf16.mxu0 0
    %3215 = vmatmul.mubr.bf16.gmra.mrb[0].mxu0 %v2821
    %v3216 = vpop.f32.mrb[0].mxu0
    %v3217 = vadd.f32 %v3166, %v3216
    %v3218 = vpop.f32.mrb[0].mxu0
    %v3219 = vadd.f32 %v3168, %v3218
    %v3220 = vpop.f32.mrb[0].mxu0
    %v3221 = vpop.f32.mrb[0].mxu0
    %3222 = vdwg.mxu0
    %v3223 = vmul.u32 %v1390, 10
    %v3224 = vsub.s32 %v1388, %v3223
    %vm3225 = vcmp.ge.s32.totalorder %v3224, 0
    %vm3226 = vcmp.lt.s32.totalorder %v3224, 8
    %vm3227 = vmand %vm3225, %vm3226
    %v3228 = vsel %vm3227, 1, 0
    %v3229 = vcvt.s32.f32 %v3228
    %v3230 = vmul.u32 %v1388, 10
    %v3231 = vsub.s32 %v1390, %v3230
    %v3232 = vsub.s32 %v1398, %v3230
    %v3233 = vsub.s32 %v1399, %v3230
    %vm3234 = vcmp.ge.s32.totalorder %v3231, 0
    %vm3235 = vcmp.ge.s32.totalorder %v3232, 0
    %vm3236 = vcmp.ge.s32.totalorder %v3233, 0
    %vm3237 = vcmp.lt.s32.totalorder %v3231, 8
    %vm3238 = vcmp.lt.s32.totalorder %v3232, 8
    %vm3239 = vcmp.lt.s32.totalorder %v3233, 8
    %vm3240 = vmand %vm3234, %vm3237
    %vm3241 = vmand %vm3235, %vm3238
    %vm3242 = vmand %vm3236, %vm3239
    %v3243 = vsel %vm3240, 1, 0
    %v3244 = vsel %vm3241, 1, 0
    %v3245 = vsel %vm3242, 1, 0
    %v3246 = vcvt.s32.f32 %v3243
    %v3247 = vcvt.s32.f32 %v3244
    %v3248 = vcvt.s32.f32 %v3245
    %v3249 = vand.u32 %v1390, 31
    %v3250 = vand.u32 %v1398, 31
    %v3251 = vand.u32 %v1399, 31
    %v3252 = vand.u32 %v1400, 31
    %v3253 = vand.u32 %v1401, 31
    %v3254 = vand.u32 %v1433, 31
    %v3255 = vand.u32 %v1434, 31
    %v3256 = vand.u32 %v1435, 31
    %v3257 = vand.u32 %v1436, 31
    %v3258 = vand.u32 %v1437, 31
    %v3259 = vand.u32 %v1438, 31
    %v3260 = vand.u32 %v1439, 31
    %v3261 = vand.u32 %v1440, 31
    %v3262 = vand.u32 %v1441, 31
    %v3263 = vand.u32 %v1442, 31
    %v3264 = vand.u32 %v1443, 31
    %v3265 = vand.u32 %v1444, 31
    %v3266 = vand.u32 %v1445, 31
    %v3267 = vand.u32 %v1446, 31
    %v3268 = vand.u32 %v1447, 31
    %v3269 = vand.u32 %v1448, 31
    %v3270 = vand.u32 %v1449, 31
    %v3271 = vand.u32 %v1450, 31
    %v3272 = vand.u32 %v1451, 31
    %v3273 = vand.u32 %v1452, 31
    %v3274 = vand.u32 %v1453, 31
    %v3275 = vand.u32 %v1454, 31
    %v3276 = vand.u32 %v1455, 31
    %v3277 = vand.u32 %v1456, 31
    %v3278 = vand.u32 %v1457, 31
    %v3279 = vand.u32 %v1458, 31
    %v3280 = vand.u32 %v1459, 31
    %vm3281 = vcmp.ge.s32.totalorder %v3249, %v1492
    %vm3282 = vcmp.ge.s32.totalorder %v3250, %v1492
    %vm3283 = vcmp.ge.s32.totalorder %v3251, %v1492
    %vm3284 = vcmp.ge.s32.totalorder %v3252, %v1492
    %vm3285 = vcmp.ge.s32.totalorder %v3253, %v1492
    %vm3286 = vcmp.ge.s32.totalorder %v3254, %v1492
    %vm3287 = vcmp.ge.s32.totalorder %v3255, %v1492
    %vm3288 = vcmp.ge.s32.totalorder %v3256, %v1492
    %vm3289 = vcmp.ge.s32.totalorder %v3257, %v1492
    %vm3290 = vcmp.ge.s32.totalorder %v3258, %v1492
    %vm3291 = vcmp.ge.s32.totalorder %v3259, %v1492
    %vm3292 = vcmp.ge.s32.totalorder %v3260, %v1492
    %vm3293 = vcmp.ge.s32.totalorder %v3261, %v1492
    %vm3294 = vcmp.ge.s32.totalorder %v3262, %v1492
    %vm3295 = vcmp.ge.s32.totalorder %v3263, %v1492
    %vm3296 = vcmp.ge.s32.totalorder %v3264, %v1492
    %vm3297 = vcmp.ge.s32.totalorder %v3265, %v1492
    %vm3298 = vcmp.ge.s32.totalorder %v3266, %v1492
    %vm3299 = vcmp.ge.s32.totalorder %v3267, %v1492
    %vm3300 = vcmp.ge.s32.totalorder %v3268, %v1492
    %vm3301 = vcmp.ge.s32.totalorder %v3269, %v1492
    %vm3302 = vcmp.ge.s32.totalorder %v3270, %v1492
    %vm3303 = vcmp.ge.s32.totalorder %v3271, %v1492
    %vm3304 = vcmp.ge.s32.totalorder %v3272, %v1492
    %vm3305 = vcmp.ge.s32.totalorder %v3273, %v1492
    %vm3306 = vcmp.ge.s32.totalorder %v3274, %v1492
    %vm3307 = vcmp.ge.s32.totalorder %v3275, %v1492
    %vm3308 = vcmp.ge.s32.totalorder %v3276, %v1492
    %vm3309 = vcmp.ge.s32.totalorder %v3277, %v1492
    %vm3310 = vcmp.ge.s32.totalorder %v3278, %v1492
    %vm3311 = vcmp.ge.s32.totalorder %v3279, %v1492
    %vm3312 = vcmp.ge.s32.totalorder %v3280, %v1492
    %vm3313 = vcmp.lt.s32.totalorder %v3249, %v1526
    %vm3314 = vcmp.lt.s32.totalorder %v3250, %v1526
    %vm3315 = vcmp.lt.s32.totalorder %v3251, %v1526
    %vm3316 = vcmp.lt.s32.totalorder %v3252, %v1526
    %vm3317 = vcmp.lt.s32.totalorder %v3253, %v1526
    %vm3318 = vcmp.lt.s32.totalorder %v3254, %v1526
    %vm3319 = vcmp.lt.s32.totalorder %v3255, %v1526
    %vm3320 = vcmp.lt.s32.totalorder %v3256, %v1526
    %vm3321 = vcmp.lt.s32.totalorder %v3257, %v1526
    %vm3322 = vcmp.lt.s32.totalorder %v3258, %v1526
    %vm3323 = vcmp.lt.s32.totalorder %v3259, %v1526
    %vm3324 = vcmp.lt.s32.totalorder %v3260, %v1526
    %vm3325 = vcmp.lt.s32.totalorder %v3261, %v1526
    %vm3326 = vcmp.lt.s32.totalorder %v3262, %v1526
    %vm3327 = vcmp.lt.s32.totalorder %v3263, %v1526
    %vm3328 = vcmp.lt.s32.totalorder %v3264, %v1526
    %vm3329 = vcmp.lt.s32.totalorder %v3265, %v1526
    %vm3330 = vcmp.lt.s32.totalorder %v3266, %v1526
    %vm3331 = vcmp.lt.s32.totalorder %v3267, %v1526
    %vm3332 = vcmp.lt.s32.totalorder %v3268, %v1526
    %vm3333 = vcmp.lt.s32.totalorder %v3269, %v1526
    %vm3334 = vcmp.lt.s32.totalorder %v3270, %v1526
    %vm3335 = vcmp.lt.s32.totalorder %v3271, %v1526
    %vm3336 = vcmp.lt.s32.totalorder %v3272, %v1526
    %vm3337 = vcmp.lt.s32.totalorder %v3273, %v1526
    %vm3338 = vcmp.lt.s32.totalorder %v3274, %v1526
    %vm3339 = vcmp.lt.s32.totalorder %v3275, %v1526
    %vm3340 = vcmp.lt.s32.totalorder %v3276, %v1526
    %vm3341 = vcmp.lt.s32.totalorder %v3277, %v1526
    %vm3342 = vcmp.lt.s32.totalorder %v3278, %v1526
    %vm3343 = vcmp.lt.s32.totalorder %v3279, %v1526
    %vm3344 = vcmp.lt.s32.totalorder %v3280, %v1526
    %vm3345 = vmand %vm3281, %vm3313
    %vm3346 = vmand %vm3282, %vm3314
    %vm3347 = vmand %vm3283, %vm3315
    %vm3348 = vmand %vm3284, %vm3316
    %vm3349 = vmand %vm3285, %vm3317
    %vm3350 = vmand %vm3286, %vm3318
    %vm3351 = vmand %vm3287, %vm3319
    %vm3352 = vmand %vm3288, %vm3320
    %vm3353 = vmand %vm3289, %vm3321
    %vm3354 = vmand %vm3290, %vm3322
    %vm3355 = vmand %vm3291, %vm3323
    %vm3356 = vmand %vm3292, %vm3324
    %vm3357 = vmand %vm3293, %vm3325
    %vm3358 = vmand %vm3294, %vm3326
    %vm3359 = vmand %vm3295, %vm3327
    %vm3360 = vmand %vm3296, %vm3328
    %vm3361 = vmand %vm3297, %vm3329
    %vm3362 = vmand %vm3298, %vm3330
    %vm3363 = vmand %vm3299, %vm3331
    %vm3364 = vmand %vm3300, %vm3332
    %vm3365 = vmand %vm3301, %vm3333
    %vm3366 = vmand %vm3302, %vm3334
    %vm3367 = vmand %vm3303, %vm3335
    %vm3368 = vmand %vm3304, %vm3336
    %vm3369 = vmand %vm3305, %vm3337
    %vm3370 = vmand %vm3306, %vm3338
    %vm3371 = vmand %vm3307, %vm3339
    %vm3372 = vmand %vm3308, %vm3340
    %vm3373 = vmand %vm3309, %vm3341
    %vm3374 = vmand %vm3310, %vm3342
    %vm3375 = vmand %vm3311, %vm3343
    %vm3376 = vmand %vm3312, %vm3344
    %v3377 = vsel %vm3345, 1, 0
    %v3378 = vsel %vm3346, 1, 0
    %v3379 = vsel %vm3347, 1, 0
    %v3380 = vsel %vm3348, 1, 0
    %v3381 = vsel %vm3349, 1, 0
    %v3382 = vsel %vm3350, 1, 0
    %v3383 = vsel %vm3351, 1, 0
    %v3384 = vsel %vm3352, 1, 0
    %v3385 = vsel %vm3353, 1, 0
    %v3386 = vsel %vm3354, 1, 0
    %v3387 = vsel %vm3355, 1, 0
    %v3388 = vsel %vm3356, 1, 0
    %v3389 = vsel %vm3357, 1, 0
    %v3390 = vsel %vm3358, 1, 0
    %v3391 = vsel %vm3359, 1, 0
    %v3392 = vsel %vm3360, 1, 0
    %v3393 = vsel %vm3361, 1, 0
    %v3394 = vsel %vm3362, 1, 0
    %v3395 = vsel %vm3363, 1, 0
    %v3396 = vsel %vm3364, 1, 0
    %v3397 = vsel %vm3365, 1, 0
    %v3398 = vsel %vm3366, 1, 0
    %v3399 = vsel %vm3367, 1, 0
    %v3400 = vsel %vm3368, 1, 0
    %v3401 = vsel %vm3369, 1, 0
    %v3402 = vsel %vm3370, 1, 0
    %v3403 = vsel %vm3371, 1, 0
    %v3404 = vsel %vm3372, 1, 0
    %v3405 = vsel %vm3373, 1, 0
    %v3406 = vsel %vm3374, 1, 0
    %v3407 = vsel %vm3375, 1, 0
    %v3408 = vsel %vm3376, 1, 0
    %v3409 = vcvt.s32.f32 %v3377
    %v3410 = vcvt.s32.f32 %v3378
    %v3411 = vcvt.s32.f32 %v3379
    %v3412 = vcvt.s32.f32 %v3380
    %v3413 = vcvt.s32.f32 %v3381
    %v3414 = vcvt.s32.f32 %v3382
    %v3415 = vcvt.s32.f32 %v3383
    %v3416 = vcvt.s32.f32 %v3384
    %v3417 = vcvt.s32.f32 %v3385
    %v3418 = vcvt.s32.f32 %v3386
    %v3419 = vcvt.s32.f32 %v3387
    %v3420 = vcvt.s32.f32 %v3388
    %v3421 = vcvt.s32.f32 %v3389
    %v3422 = vcvt.s32.f32 %v3390
    %v3423 = vcvt.s32.f32 %v3391
    %v3424 = vcvt.s32.f32 %v3392
    %v3425 = vcvt.s32.f32 %v3393
    %v3426 = vcvt.s32.f32 %v3394
    %v3427 = vcvt.s32.f32 %v3395
    %v3428 = vcvt.s32.f32 %v3396
    %v3429 = vcvt.s32.f32 %v3397
    %v3430 = vcvt.s32.f32 %v3398
    %v3431 = vcvt.s32.f32 %v3399
    %v3432 = vcvt.s32.f32 %v3400
    %v3433 = vcvt.s32.f32 %v3401
    %v3434 = vcvt.s32.f32 %v3402
    %v3435 = vcvt.s32.f32 %v3403
    %v3436 = vcvt.s32.f32 %v3404
    %v3437 = vcvt.s32.f32 %v3405
    %v3438 = vcvt.s32.f32 %v3406
    %v3439 = vcvt.s32.f32 %v3407
    %v3440 = vcvt.s32.f32 %v3408
    %v3441 = vand.u32 %v1388, 31
    %v3442 = vand.u32 %v1655, 31
    %v3443 = vmul.u32 %v1398, 2
    %vm3444 = vcmp.ge.s32.totalorder %v3441, %v1658
    %vm3445 = vcmp.ge.s32.totalorder %v3442, %v1658
    %vm3446 = vcmp.ge.s32.totalorder %v3441, %v3443
    %vm3447 = vcmp.ge.s32.totalorder %v3442, %v3443
    %v3448 = vadd.s32 %v1398, 1
    %v3449 = vmul.u32 %v3448, 2
    %vm3450 = vcmp.lt.s32.totalorder %v3441, %v1662
    %vm3451 = vcmp.lt.s32.totalorder %v3442, %v1662
    %vm3452 = vcmp.lt.s32.totalorder %v3441, %v3449
    %vm3453 = vcmp.lt.s32.totalorder %v3442, %v3449
    %vm3454 = vmand %vm3444, %vm3450
    %vm3455 = vmand %vm3445, %vm3451
    %vm3456 = vmand %vm3446, %vm3452
    %vm3457 = vmand %vm3447, %vm3453
    %v3458 = vsel %vm3454, 1, 0
    %v3459 = vsel %vm3455, 1, 0
    %v3460 = vsel %vm3456, 1, 0
    %v3461 = vsel %vm3457, 1, 0
    %v3462 = vcvt.s32.f32 %v3458
    %v3463 = vcvt.s32.f32 %v3459
    %v3464 = vcvt.s32.f32 %v3460
    %v3465 = vcvt.s32.f32 %v3461
    %v3466 = vmul.f32 %v3207, %v3207
    %v3467 = vmul.f32 %v3209, %v3209
    %v3468 = vmul.f32 %v3211, %v3211
    %v3469 = vmul.f32 %v3213, %v3213
    %v3470 = vmul.f32 %v3217, %v3217
    %v3471 = vmul.f32 %v3219, %v3219
    %vm3472 = vcmask 146432
    %v3474 = vsel %vm3472, %v3229, 0
    %v3477 = vsel %vm1685, %v3217, 0
    %v3480 = vsel %vm1685, %v3219, 0
    %v3483 = vsel %vm1685, %v3470, 0
    %v3486 = vsel %vm1685, %v3471, 0
    %3488 = vmatprep.subr.mxu0 %v3209
    %3489 = vmatpush1.msra.mxu0 %v3207
    %3490 = vmatprep.subr.mxu0 %v3213
    %3491 = vmatpush1.msra.mxu0 %v3211
    %3492 = vmatprep.subr.mxu0 %v3480
    %3493 = vmatpush1.msra.mxu0 %v3477
    %3494 = vmatprep.subr.mxu0 0.0
    %3495 = vmatpush1.msra.mxu0 0.0
    %3496 = vmatprep.subr.mxu0 0.0
    %3497 = vmatpush1.msra.mxu0 0.0
    %3498 = vmatprep.subr.mxu0 0.0
    %3499 = vmatpush1.msra.mxu0 0.0
    %3500 = vmatprep.subr.mxu0 0.0
    %3501 = vmatpush1.msra.mxu0 0.0
    %3502 = vmatprep.subr.mxu0 0.0
    %3503 = vmatpush1.msra.mxu0 0.0
    %3504 = vmatprep.subr.mxu0 0.0
    %3505 = vmatpush1.msra.mxu0 0.0
    %3506 = vmatprep.subr.mxu0 0.0
    %3507 = vmatpush1.msra.mxu0 0.0
    %3508 = vmatprep.subr.mxu0 0.0
    %3509 = vmatpush1.msra.mxu0 0.0
    %3510 = vmatprep.subr.mxu0 0.0
    %3511 = vmatpush1.msra.mxu0 0.0
    %3512 = vmatprep.subr.mxu0 0.0
    %3513 = vmatpush1.msra.mxu0 0.0
    %3514 = vmatprep.subr.mxu0 0.0
    %3515 = vmatpush1.msra.mxu0 0.0
    %3516 = vmatprep.subr.mxu0 0.0
    %3517 = vmatpush1.msra.mxu0 0.0
    %3518 = vmatprep.subr.mxu0 0.0
    %3519 = vmatpush1.msra.mxu0 0.0
    %3520 = vmatprep.subr.mxu0 0.0
    %3521 = vmatpush1.msra.mxu0 0.0
    %3522 = vmatprep.subr.mxu0 0.0
    %3523 = vmatpush1.msra.mxu0 0.0
    %3524 = vmatprep.subr.mxu0 0.0
    %3525 = vmatpush1.msra.mxu0 0.0
    %3526 = vmatprep.subr.mxu0 0.0
    %3527 = vmatpush1.msra.mxu0 0.0
    %3528 = vmatprep.subr.mxu0 0.0
    %3529 = vmatpush1.msra.mxu0 0.0
    %3530 = vmatprep.subr.mxu0 0.0
    %3531 = vmatpush1.msra.mxu0 0.0
    %3532 = vmatprep.subr.mxu0 0.0
    %3533 = vmatpush1.msra.mxu0 0.0
    %3534 = vmatprep.subr.mxu0 0.0
    %3535 = vmatpush1.msra.mxu0 0.0
    %3536 = vmatprep.subr.mxu0 0.0
    %3537 = vmatpush1.msra.mxu0 0.0
    %3538 = vmatprep.subr.mxu0 0.0
    %3539 = vmatpush1.msra.mxu0 0.0
    %3540 = vmatprep.subr.mxu0 0.0
    %3541 = vmatpush1.msra.mxu0 0.0
    %3542 = vmatprep.subr.mxu0 0.0
    %3543 = vmatpush1.msra.mxu0 0.0
    %3544 = vmatprep.subr.mxu0 0.0
    %3545 = vmatpush1.msra.mxu0 0.0
    %3546 = vmatprep.subr.mxu0 0.0
    %3547 = vmatpush1.msra.mxu0 0.0
    %3548 = vmatprep.subr.mxu0 0.0
    %3549 = vmatpush1.msra.mxu0 0.0
    %3550 = vmatprep.subr.mxu0 0.0
    %3551 = vmatpush1.msra.mxu0 0.0
    %3552 = vmatprep.mubr.f32.mxu0 0.0
    %3553 = vmatmul.mubr.f32.gmra.mrb[0].mxu0 %v3474
    %v3554 = vpop.f32.mrb[0].mxu0
    %v3555 = vadd.f32 0.0, %v3554
    %v3556 = vpop.f32.mrb[0].mxu0
    %v3557 = vadd.f32 0.0, %v3556
    %3558 = vdwg.mxu0
    %3559 = vmatprep.subr.mxu0 %v3467
    %3560 = vmatpush1.msra.mxu0 %v3466
    %3561 = vmatprep.subr.mxu0 %v3469
    %3562 = vmatpush1.msra.mxu0 %v3468
    %3563 = vmatprep.subr.mxu0 %v3486
    %3564 = vmatpush1.msra.mxu0 %v3483
    %3565 = vmatprep.subr.mxu0 0.0
    %3566 = vmatpush1.msra.mxu0 0.0
    %3567 = vmatprep.subr.mxu0 0.0
    %3568 = vmatpush1.msra.mxu0 0.0
    %3569 = vmatprep.subr.mxu0 0.0
    %3570 = vmatpush1.msra.mxu0 0.0
    %3571 = vmatprep.subr.mxu0 0.0
    %3572 = vmatpush1.msra.mxu0 0.0
    %3573 = vmatprep.subr.mxu0 0.0
    %3574 = vmatpush1.msra.mxu0 0.0
    %3575 = vmatprep.subr.mxu0 0.0
    %3576 = vmatpush1.msra.mxu0 0.0
    %3577 = vmatprep.subr.mxu0 0.0
    %3578 = vmatpush1.msra.mxu0 0.0
    %3579 = vmatprep.subr.mxu0 0.0
    %3580 = vmatpush1.msra.mxu0 0.0
    %3581 = vmatprep.subr.mxu0 0.0
    %3582 = vmatpush1.msra.mxu0 0.0
    %3583 = vmatprep.subr.mxu0 0.0
    %3584 = vmatpush1.msra.mxu0 0.0
    %3585 = vmatprep.subr.mxu0 0.0
    %3586 = vmatpush1.msra.mxu0 0.0
    %3587 = vmatprep.subr.mxu0 0.0
    %3588 = vmatpush1.msra.mxu0 0.0
    %3589 = vmatprep.subr.mxu0 0.0
    %3590 = vmatpush1.msra.mxu0 0.0
    %3591 = vmatprep.subr.mxu0 0.0
    %3592 = vmatpush1.msra.mxu0 0.0
    %3593 = vmatprep.subr.mxu0 0.0
    %3594 = vmatpush1.msra.mxu0 0.0
    %3595 = vmatprep.subr.mxu0 0.0
    %3596 = vmatpush1.msra.mxu0 0.0
    %3597 = vmatprep.subr.mxu0 0.0
    %3598 = vmatpush1.msra.mxu0 0.0
    %3599 = vmatprep.subr.mxu0 0.0
    %3600 = vmatpush1.msra.mxu0 0.0
    %3601 = vmatprep.subr.mxu0 0.0
    %3602 = vmatpush1.msra.mxu0 0.0
    %3603 = vmatprep.subr.mxu0 0.0
    %3604 = vmatpush1.msra.mxu0 0.0
    %3605 = vmatprep.subr.mxu0 0.0
    %3606 = vmatpush1.msra.mxu0 0.0
    %3607 = vmatprep.subr.mxu0 0.0
    %3608 = vmatpush1.msra.mxu0 0.0
    %3609 = vmatprep.subr.mxu0 0.0
    %3610 = vmatpush1.msra.mxu0 0.0
    %3611 = vmatprep.subr.mxu0 0.0
    %3612 = vmatpush1.msra.mxu0 0.0
    %3613 = vmatprep.subr.mxu0 0.0
    %3614 = vmatpush1.msra.mxu0 0.0
    %3615 = vmatprep.subr.mxu0 0.0
    %3616 = vmatpush1.msra.mxu0 0.0
    %3617 = vmatprep.subr.mxu0 0.0
    %3618 = vmatpush1.msra.mxu0 0.0
    %3619 = vmatprep.subr.mxu0 0.0
    %3620 = vmatpush1.msra.mxu0 0.0
    %3621 = vmatprep.subr.mxu0 0.0
    %3622 = vmatpush1.msra.mxu0 0.0
    %3623 = vmatprep.mubr.f32.mxu0 0.0
    %3624 = vmatmul.mubr.f32.gmra.mrb[0].mxu0 %v3474
    %v3625 = vpop.f32.mrb[0].mxu0
    %v3626 = vadd.f32 0.0, %v3625
    %v3627 = vpop.f32.mrb[0].mxu0
    %v3628 = vadd.f32 0.0, %v3627
    %3629 = vdwg.mxu0
    %v3632 = vrot.slane %v3626, 6
    %v3633 = vrot.slane %v3628, 6
    %v3636 = vsel %vm1685, %v3555, %v3632
    %v3637 = vsel %vm1685, %v3557, %v3633
    %3638 = vmatprep.subr.mxu0 0.0
    %3639 = vmatpush1.msra.mxu0 %v3409
    %3640 = vmatprep.subr.mxu0 0.0
    %3641 = vmatpush1.msra.mxu0 %v3410
    %3642 = vmatprep.subr.mxu0 0.0
    %3643 = vmatpush1.msra.mxu0 %v3411
    %3644 = vmatprep.subr.mxu0 0.0
    %3645 = vmatpush1.msra.mxu0 %v3412
    %3646 = vmatprep.subr.mxu0 0.0
    %3647 = vmatpush1.msra.mxu0 %v3413
    %3648 = vmatprep.subr.mxu0 0.0
    %3649 = vmatpush1.msra.mxu0 %v3414
    %3650 = vmatprep.subr.mxu0 0.0
    %3651 = vmatpush1.msra.mxu0 %v3415
    %3652 = vmatprep.subr.mxu0 0.0
    %3653 = vmatpush1.msra.mxu0 %v3416
    %3654 = vmatprep.subr.mxu0 0.0
    %3655 = vmatpush1.msra.mxu0 %v3417
    %3656 = vmatprep.subr.mxu0 0.0
    %3657 = vmatpush1.msra.mxu0 %v3418
    %3658 = vmatprep.subr.mxu0 0.0
    %3659 = vmatpush1.msra.mxu0 %v3419
    %3660 = vmatprep.subr.mxu0 0.0
    %3661 = vmatpush1.msra.mxu0 %v3420
    %3662 = vmatprep.subr.mxu0 0.0
    %3663 = vmatpush1.msra.mxu0 %v3421
    %3664 = vmatprep.subr.mxu0 0.0
    %3665 = vmatpush1.msra.mxu0 %v3422
    %3666 = vmatprep.subr.mxu0 0.0
    %3667 = vmatpush1.msra.mxu0 %v3423
    %3668 = vmatprep.subr.mxu0 0.0
    %3669 = vmatpush1.msra.mxu0 %v3424
    %3670 = vmatprep.subr.mxu0 0.0
    %3671 = vmatpush1.msra.mxu0 %v3425
    %3672 = vmatprep.subr.mxu0 0.0
    %3673 = vmatpush1.msra.mxu0 %v3426
    %3674 = vmatprep.subr.mxu0 0.0
    %3675 = vmatpush1.msra.mxu0 %v3427
    %3676 = vmatprep.subr.mxu0 0.0
    %3677 = vmatpush1.msra.mxu0 %v3428
    %3678 = vmatprep.subr.mxu0 0.0
    %3679 = vmatpush1.msra.mxu0 %v3429
    %3680 = vmatprep.subr.mxu0 0.0
    %3681 = vmatpush1.msra.mxu0 %v3430
    %3682 = vmatprep.subr.mxu0 0.0
    %3683 = vmatpush1.msra.mxu0 %v3431
    %3684 = vmatprep.subr.mxu0 0.0
    %3685 = vmatpush1.msra.mxu0 %v3432
    %3686 = vmatprep.subr.mxu0 0.0
    %3687 = vmatpush1.msra.mxu0 %v3433
    %3688 = vmatprep.subr.mxu0 0.0
    %3689 = vmatpush1.msra.mxu0 %v3434
    %3690 = vmatprep.subr.mxu0 0.0
    %3691 = vmatpush1.msra.mxu0 %v3435
    %3692 = vmatprep.subr.mxu0 0.0
    %3693 = vmatpush1.msra.mxu0 %v3436
    %3694 = vmatprep.subr.mxu0 0.0
    %3695 = vmatpush1.msra.mxu0 %v3437
    %3696 = vmatprep.subr.mxu0 0.0
    %3697 = vmatpush1.msra.mxu0 %v3438
    %3698 = vmatprep.subr.mxu0 0.0
    %3699 = vmatpush1.msra.mxu0 %v3439
    %3700 = vmatprep.subr.mxu0 0.0
    %3701 = vmatpush1.msra.mxu0 %v3440
    %3702 = vmatprep.mubr.f32.mxu0 %v3637
    %3703 = vmatmul.mubr.f32.gmra.mrb[0].mxu0 %v3636
    %v3704 = vpop.f32.mrb[0].mxu0
    %v3705 = vadd.f32 0.0, %v3704
    %v3706 = vpop.f32.mrb[0].mxu0
    %3707 = vdwg.mxu0
    %v3708 = vmul.f32 %v3705, 0.0078125
    %v3709 = vmul.f32 %v3708, %v3708
    %v3711 = vrot.slane %v3709, 6
    %v3713 = vsub.f32 %v3708, %v3711
    %v3714 = vmax.f32 %v3713, 0.0
    %v3715 = vadd.f32 %v3714, 1e-05
    %v3716 = vrsqrt.pop %v3715
    %v3718 = vrot.slane %v3716, 2
    %v3721 = vrot.slane %v3708, 6
    %v3723 = vsel %vm1685, %v3718, %v3721
    %vm3724 = vcmask 130048
    %v3726 = vsel %vm3724, %v3723, 0
    %3728 = vmatprep.subr.mxu0 %v3463
    %3729 = vmatpush1.msra.mxu0 %v3462
    %3730 = vmatprep.subr.mxu0 %v3465
    %3731 = vmatpush1.msra.mxu0 %v3464
    %3732 = vmatprep.subr.mxu0 0.0
    %3733 = vmatpush1.msra.mxu0 0.0
    %3734 = vmatprep.subr.mxu0 0.0
    %3735 = vmatpush1.msra.mxu0 0.0
    %3736 = vmatprep.subr.mxu0 0.0
    %3737 = vmatpush1.msra.mxu0 0.0
    %3738 = vmatprep.subr.mxu0 0.0
    %3739 = vmatpush1.msra.mxu0 0.0
    %3740 = vmatprep.subr.mxu0 0.0
    %3741 = vmatpush1.msra.mxu0 0.0
    %3742 = vmatprep.subr.mxu0 0.0
    %3743 = vmatpush1.msra.mxu0 0.0
    %3744 = vmatprep.subr.mxu0 0.0
    %3745 = vmatpush1.msra.mxu0 0.0
    %3746 = vmatprep.subr.mxu0 0.0
    %3747 = vmatpush1.msra.mxu0 0.0
    %3748 = vmatprep.subr.mxu0 0.0
    %3749 = vmatpush1.msra.mxu0 0.0
    %3750 = vmatprep.subr.mxu0 0.0
    %3751 = vmatpush1.msra.mxu0 0.0
    %3752 = vmatprep.subr.mxu0 0.0
    %3753 = vmatpush1.msra.mxu0 0.0
    %3754 = vmatprep.subr.mxu0 0.0
    %3755 = vmatpush1.msra.mxu0 0.0
    %3756 = vmatprep.subr.mxu0 0.0
    %3757 = vmatpush1.msra.mxu0 0.0
    %3758 = vmatprep.subr.mxu0 0.0
    %3759 = vmatpush1.msra.mxu0 0.0
    %3760 = vmatprep.subr.mxu0 0.0
    %3761 = vmatpush1.msra.mxu0 0.0
    %3762 = vmatprep.subr.mxu0 0.0
    %3763 = vmatpush1.msra.mxu0 0.0
    %3764 = vmatprep.subr.mxu0 0.0
    %3765 = vmatpush1.msra.mxu0 0.0
    %3766 = vmatprep.subr.mxu0 0.0
    %3767 = vmatpush1.msra.mxu0 0.0
    %3768 = vmatprep.subr.mxu0 0.0
    %3769 = vmatpush1.msra.mxu0 0.0
    %3770 = vmatprep.subr.mxu0 0.0
    %3771 = vmatpush1.msra.mxu0 0.0
    %3772 = vmatprep.subr.mxu0 0.0
    %3773 = vmatpush1.msra.mxu0 0.0
    %3774 = vmatprep.subr.mxu0 0.0
    %3775 = vmatpush1.msra.mxu0 0.0
    %3776 = vmatprep.subr.mxu0 0.0
    %3777 = vmatpush1.msra.mxu0 0.0
    %3778 = vmatprep.subr.mxu0 0.0
    %3779 = vmatpush1.msra.mxu0 0.0
    %3780 = vmatprep.subr.mxu0 0.0
    %3781 = vmatpush1.msra.mxu0 0.0
    %3782 = vmatprep.subr.mxu0 0.0
    %3783 = vmatpush1.msra.mxu0 0.0
    %3784 = vmatprep.subr.mxu0 0.0
    %3785 = vmatpush1.msra.mxu0 0.0
    %3786 = vmatprep.subr.mxu0 0.0
    %3787 = vmatpush1.msra.mxu0 0.0
    %3788 = vmatprep.subr.mxu0 0.0
    %3789 = vmatpush1.msra.mxu0 0.0
    %3790 = vmatprep.subr.mxu0 0.0
    %3791 = vmatpush1.msra.mxu0 0.0
    %3792 = vmatprep.mubr.f32.mxu0 0.0
    %3793 = vmatmul.mubr.f32.gmra.mrb[0].mxu0 %v3726
    %v3794 = vpop.f32.mrb[0].mxu0
    %v3795 = vadd.f32 0.0, %v3794
    %v3796 = vpop.f32.mrb[0].mxu0
    %v3797 = vadd.f32 0.0, %v3796
    %3798 = vdwg.mxu0
    %v3800 = vlaneseq
    %v3801 = vshrl.u32 %v3800, 7
    %v3802 = vsub.s32 0, %v3801
    %v3803 = vrot.slane %v2785, %v3802
    %v3804 = vlaneseq
    %v3805 = vshrl.u32 %v3804, 7
    %v3806 = vsub.s32 1, %v3805
    %v3807 = vrot.slane %v2785, %v3806
    %v3810 = vmul.f32 %v3795, %v3803
    %v3811 = vmul.f32 %v3797, %v3807
    %v3814 = vrot.slane %v3810, 6
    %v3815 = vrot.slane %v3811, 6
    %v3818 = vmul.f32 %v3795, %v3814
    %v3819 = vmul.f32 %v3797, %v3815
    %v3821 = vlaneseq
    %v3822 = vshrl.u32 %v3821, 7
    %v3823 = vsub.s32 0, %v3822
    %v3824 = vrot.slane %v2787, %v3823
    %v3825 = vlaneseq
    %v3826 = vshrl.u32 %v3825, 7
    %v3827 = vsub.s32 1, %v3826
    %v3828 = vrot.slane %v2787, %v3827
    %v3831 = vsub.f32 %v3824, %v3818
    %v3832 = vsub.f32 %v3828, %v3819
    %v3835 = vrot.slane %v3831, 2
    %v3836 = vrot.slane %v3832, 2
    %v3838 = vsel %vm2047, %v3246, 0
    %v3841 = vsel %vm2047, %v3247, 0
    %v3844 = vsel %vm2047, %v3248, 0
    %v3846 = vsel %vm1685, %v3810, 0
    %v3848 = vsel %vm1685, %v3811, 0
    %v3850 = vsel %vm1685, %v3835, 0
    %v3852 = vsel %vm1685, %v3836, 0
    %3854 = vmatprep.subr.mxu0 %v3848
    %3855 = vmatpush1.msra.mxu0 %v3846
    %3856 = vmatprep.subr.mxu0 0.0
    %3857 = vmatpush1.msra.mxu0 0.0
    %3858 = vmatprep.subr.mxu0 0.0
    %3859 = vmatpush1.msra.mxu0 0.0
    %3860 = vmatprep.subr.mxu0 0.0
    %3861 = vmatpush1.msra.mxu0 0.0
    %3862 = vmatprep.subr.mxu0 0.0
    %3863 = vmatpush1.msra.mxu0 0.0
    %3864 = vmatprep.subr.mxu0 0.0
    %3865 = vmatpush1.msra.mxu0 0.0
    %3866 = vmatprep.subr.mxu0 0.0
    %3867 = vmatpush1.msra.mxu0 0.0
    %3868 = vmatprep.subr.mxu0 0.0
    %3869 = vmatpush1.msra.mxu0 0.0
    %3870 = vmatprep.subr.mxu0 0.0
    %3871 = vmatpush1.msra.mxu0 0.0
    %3872 = vmatprep.subr.mxu0 0.0
    %3873 = vmatpush1.msra.mxu0 0.0
    %3874 = vmatprep.subr.mxu0 0.0
    %3875 = vmatpush1.msra.mxu0 0.0
    %3876 = vmatprep.subr.mxu0 0.0
    %3877 = vmatpush1.msra.mxu0 0.0
    %3878 = vmatprep.subr.mxu0 0.0
    %3879 = vmatpush1.msra.mxu0 0.0
    %3880 = vmatprep.subr.mxu0 0.0
    %3881 = vmatpush1.msra.mxu0 0.0
    %3882 = vmatprep.subr.mxu0 0.0
    %3883 = vmatpush1.msra.mxu0 0.0
    %3884 = vmatprep.subr.mxu0 0.0
    %3885 = vmatpush1.msra.mxu0 0.0
    %3886 = vmatprep.subr.mxu0 0.0
    %3887 = vmatpush1.msra.mxu0 0.0
    %3888 = vmatprep.subr.mxu0 0.0
    %3889 = vmatpush1.msra.mxu0 0.0
    %3890 = vmatprep.subr.mxu0 0.0
    %3891 = vmatpush1.msra.mxu0 0.0
    %3892 = vmatprep.subr.mxu0 0.0
    %3893 = vmatpush1.msra.mxu0 0.0
    %3894 = vmatprep.subr.mxu0 0.0
    %3895 = vmatpush1.msra.mxu0 0.0
    %3896 = vmatprep.subr.mxu0 0.0
    %3897 = vmatpush1.msra.mxu0 0.0
    %3898 = vmatprep.subr.mxu0 0.0
    %3899 = vmatpush1.msra.mxu0 0.0
    %3900 = vmatprep.subr.mxu0 0.0
    %3901 = vmatpush1.msra.mxu0 0.0
    %3902 = vmatprep.subr.mxu0 0.0
    %3903 = vmatpush1.msra.mxu0 0.0
    %3904 = vmatprep.subr.mxu0 0.0
    %3905 = vmatpush1.msra.mxu0 0.0
    %3906 = vmatprep.subr.mxu0 0.0
    %3907 = vmatpush1.msra.mxu0 0.0
    %3908 = vmatprep.subr.mxu0 0.0
    %3909 = vmatpush1.msra.mxu0 0.0
    %3910 = vmatprep.subr.mxu0 0.0
    %3911 = vmatpush1.msra.mxu0 0.0
    %3912 = vmatprep.subr.mxu0 0.0
    %3913 = vmatpush1.msra.mxu0 0.0
    %3914 = vmatprep.subr.mxu0 0.0
    %3915 = vmatpush1.msra.mxu0 0.0
    %3916 = vmatprep.subr.mxu0 0.0
    %3917 = vmatpush1.msra.mxu0 0.0
    %3918 = vmatprep.mubr.f32.mxu0 0.0
    %3919 = vmatmul.mubr.f32.gmra.mrb[0].mxu0 %v3838
    %v3920 = vpop.f32.mrb[0].mxu0
    %v3921 = vadd.f32 0.0, %v3920
    %v3922 = vpop.f32.mrb[0].mxu0
    %v3923 = vadd.f32 0.0, %v3922
    %3924 = vmatprep.mubr.f32.mxu0 0.0
    %3925 = vmatmul.mubr.f32.gmra.mrb[0].mxu0 %v3841
    %v3926 = vpop.f32.mrb[0].mxu0
    %v3927 = vadd.f32 0.0, %v3926
    %v3928 = vpop.f32.mrb[0].mxu0
    %v3929 = vadd.f32 0.0, %v3928
    %3930 = vmatprep.mubr.f32.mxu0 0.0
    %3931 = vmatmul.mubr.f32.gmra.mrb[0].mxu0 %v3844
    %v3932 = vpop.f32.mrb[0].mxu0
    %v3933 = vadd.f32 0.0, %v3932
    %v3934 = vpop.f32.mrb[0].mxu0
    %v3935 = vadd.f32 0.0, %v3934
    %3936 = vdwg.mxu0
    %3937 = vmatprep.subr.mxu0 %v3852
    %3938 = vmatpush1.msra.mxu0 %v3850
    %3939 = vmatprep.subr.mxu0 0.0
    %3940 = vmatpush1.msra.mxu0 0.0
    %3941 = vmatprep.subr.mxu0 0.0
    %3942 = vmatpush1.msra.mxu0 0.0
    %3943 = vmatprep.subr.mxu0 0.0
    %3944 = vmatpush1.msra.mxu0 0.0
    %3945 = vmatprep.subr.mxu0 0.0
    %3946 = vmatpush1.msra.mxu0 0.0
    %3947 = vmatprep.subr.mxu0 0.0
    %3948 = vmatpush1.msra.mxu0 0.0
    %3949 = vmatprep.subr.mxu0 0.0
    %3950 = vmatpush1.msra.mxu0 0.0
    %3951 = vmatprep.subr.mxu0 0.0
    %3952 = vmatpush1.msra.mxu0 0.0
    %3953 = vmatprep.subr.mxu0 0.0
    %3954 = vmatpush1.msra.mxu0 0.0
    %3955 = vmatprep.subr.mxu0 0.0
    %3956 = vmatpush1.msra.mxu0 0.0
    %3957 = vmatprep.subr.mxu0 0.0
    %3958 = vmatpush1.msra.mxu0 0.0
    %3959 = vmatprep.subr.mxu0 0.0
    %3960 = vmatpush1.msra.mxu0 0.0
    %3961 = vmatprep.subr.mxu0 0.0
    %3962 = vmatpush1.msra.mxu0 0.0
    %3963 = vmatprep.subr.mxu0 0.0
    %3964 = vmatpush1.msra.mxu0 0.0
    %3965 = vmatprep.subr.mxu0 0.0
    %3966 = vmatpush1.msra.mxu0 0.0
    %3967 = vmatprep.subr.mxu0 0.0
    %3968 = vmatpush1.msra.mxu0 0.0
    %3969 = vmatprep.subr.mxu0 0.0
    %3970 = vmatpush1.msra.mxu0 0.0
    %3971 = vmatprep.subr.mxu0 0.0
    %3972 = vmatpush1.msra.mxu0 0.0
    %3973 = vmatprep.subr.mxu0 0.0
    %3974 = vmatpush1.msra.mxu0 0.0
    %3975 = vmatprep.subr.mxu0 0.0
    %3976 = vmatpush1.msra.mxu0 0.0
    %3977 = vmatprep.subr.mxu0 0.0
    %3978 = vmatpush1.msra.mxu0 0.0
    %3979 = vmatprep.subr.mxu0 0.0
    %3980 = vmatpush1.msra.mxu0 0.0
    %3981 = vmatprep.subr.mxu0 0.0
    %3982 = vmatpush1.msra.mxu0 0.0
    %3983 = vmatprep.subr.mxu0 0.0
    %3984 = vmatpush1.msra.mxu0 0.0
    %3985 = vmatprep.subr.mxu0 0.0
    %3986 = vmatpush1.msra.mxu0 0.0
    %3987 = vmatprep.subr.mxu0 0.0
    %3988 = vmatpush1.msra.mxu0 0.0
    %3989 = vmatprep.subr.mxu0 0.0
    %3990 = vmatpush1.msra.mxu0 0.0
    %3991 = vmatprep.subr.mxu0 0.0
    %3992 = vmatpush1.msra.mxu0 0.0
    %3993 = vmatprep.subr.mxu0 0.0
    %3994 = vmatpush1.msra.mxu0 0.0
    %3995 = vmatprep.subr.mxu0 0.0
    %3996 = vmatpush1.msra.mxu0 0.0
    %3997 = vmatprep.subr.mxu0 0.0
    %3998 = vmatpush1.msra.mxu0 0.0
    %3999 = vmatprep.subr.mxu0 0.0
    %4000 = vmatpush1.msra.mxu0 0.0
    %4001 = vmatprep.mubr.f32.mxu0 0.0
    %4002 = vmatmul.mubr.f32.gmra.mrb[0].mxu0 %v3838
    %v4003 = vpop.f32.mrb[0].mxu0
    %v4004 = vadd.f32 0.0, %v4003
    %v4005 = vpop.f32.mrb[0].mxu0
    %v4006 = vadd.f32 0.0, %v4005
    %4007 = vmatprep.mubr.f32.mxu0 0.0
    %4008 = vmatmul.mubr.f32.gmra.mrb[0].mxu0 %v3841
    %v4009 = vpop.f32.mrb[0].mxu0
    %v4010 = vadd.f32 0.0, %v4009
    %v4011 = vpop.f32.mrb[0].mxu0
    %v4012 = vadd.f32 0.0, %v4011
    %4013 = vmatprep.mubr.f32.mxu0 0.0
    %4014 = vmatmul.mubr.f32.gmra.mrb[0].mxu0 %v3844
    %v4015 = vpop.f32.mrb[0].mxu0
    %v4016 = vadd.f32 0.0, %v4015
    %v4017 = vpop.f32.mrb[0].mxu0
    %v4018 = vadd.f32 0.0, %v4017
    %4019 = vdwg.mxu0
    %v4020 = vmul.f32 %v3207, %v3921
    %v4021 = vmul.f32 %v3209, %v3923
    %v4022 = vmul.f32 %v3211, %v3927
    %v4023 = vmul.f32 %v3213, %v3929
    %v4024 = vmul.f32 %v3217, %v3933
    %v4025 = vmul.f32 %v3219, %v3935
    %v4026 = vadd.f32 %v4020, %v4004
    %v4027 = vadd.f32 %v4021, %v4006
    %v4028 = vadd.f32 %v4022, %v4010
    %v4029 = vadd.f32 %v4023, %v4012
    %v4030 = vadd.f32 %v4024, %v4016
    %v4031 = vadd.f32 %v4025, %v4018
    %vm4032 = vcmp.ge.s32.totalorder %v1390, 8
    %vm4033 = vcmp.ge.s32.totalorder %v1398, 8
    %v4034 = vsel %vm4032, 1, 0
    %v4035 = vsel %vm4033, 1, 0
    %v4036 = vmul.u32 %v4034, 8
    %v4037 = vmul.u32 %v4035, 8
    %v4038 = vsub.s32 %v1390, %v4036
    %v4039 = vsub.s32 %v1398, %v4037
    %vm4040 = vcmp.ge.s32.totalorder %v4038, 0
    %vm4041 = vcmp.ge.s32.totalorder %v4039, 0
    %vm4042 = vcmp.lt.s32.totalorder %v4038, 4
    %vm4043 = vcmp.lt.s32.totalorder %v4039, 4
    %vm4044 = vmand %vm4040, %vm4042
    %vm4045 = vmand %vm4041, %vm4043
    %v4046 = vmul.u32 %v4038, 2
    %v4047 = vmul.u32 %v4039, 2
    %v4048 = vadd.s32 %v4046, %v4034
    %v4049 = vadd.s32 %v4047, %v4035
    %vm4050 = vcmp.eq.s32.totalorder %v1388, %v4048
    %vm4051 = vcmp.eq.s32.totalorder %v1388, %v4049
    %vm4052 = vmand %vm4044, %vm4050
    %vm4053 = vmand %vm4045, %vm4051
    %v4054 = vsel %vm4052, 1, 0
    %v4055 = vsel %vm4053, 1, 0
    %v4056 = vcvt.s32.f32 %v4054
    %v4057 = vcvt.s32.f32 %v4055
    %vm4058 = vcmp.ge.s32.totalorder %v4038, 4
    %vm4059 = vcmp.ge.s32.totalorder %v4039, 4
    %vm4060 = vcmp.lt.s32.totalorder %v4038, 8
    %vm4061 = vcmp.lt.s32.totalorder %v4039, 8
    %vm4062 = vmand %vm4058, %vm4060
    %vm4063 = vmand %vm4059, %vm4061
    %v4064 = vsub.s32 %v4038, 4
    %v4065 = vsub.s32 %v4039, 4
    %v4066 = vmul.u32 %v4064, 2
    %v4067 = vmul.u32 %v4065, 2
    %v4068 = vadd.s32 %v4066, 10
    %v4069 = vadd.s32 %v4067, 10
    %v4070 = vadd.s32 %v4068, %v4034
    %v4071 = vadd.s32 %v4069, %v4035
    %vm4072 = vcmp.eq.s32.totalorder %v1388, %v4070
    %vm4073 = vcmp.eq.s32.totalorder %v1388, %v4071
    %vm4074 = vmand %vm4062, %vm4072
    %vm4075 = vmand %vm4063, %vm4073
    %v4076 = vsel %vm4074, 1, 0
    %v4077 = vsel %vm4075, 1, 0
    %v4078 = vcvt.s32.f32 %v4076
    %v4079 = vcvt.s32.f32 %v4077
    %v4080 = vadd.f32 %v4056, %v4078
    %v4081 = vadd.f32 %v4057, %v4079
    %v4083 = vsel %vm3472, %v4080, 0
    %v4086 = vsel %vm3472, %v4081, 0
    %v4089 = vsel %vm1685, %v4030, 0
    %v4092 = vsel %vm1685, %v4031, 0
    %4094 = vmatprep.subr.mxu0 %v4027
    %4095 = vmatpush1.msra.mxu0 %v4026
    %4096 = vmatprep.subr.mxu0 %v4029
    %4097 = vmatpush1.msra.mxu0 %v4028
    %4098 = vmatprep.subr.mxu0 %v4092
    %4099 = vmatpush1.msra.mxu0 %v4089
    %4100 = vmatprep.subr.mxu0 0.0
    %4101 = vmatpush1.msra.mxu0 0.0
    %4102 = vmatprep.subr.mxu0 0.0
    %4103 = vmatpush1.msra.mxu0 0.0
    %4104 = vmatprep.subr.mxu0 0.0
    %4105 = vmatpush1.msra.mxu0 0.0
    %4106 = vmatprep.subr.mxu0 0.0
    %4107 = vmatpush1.msra.mxu0 0.0
    %4108 = vmatprep.subr.mxu0 0.0
    %4109 = vmatpush1.msra.mxu0 0.0
    %4110 = vmatprep.subr.mxu0 0.0
    %4111 = vmatpush1.msra.mxu0 0.0
    %4112 = vmatprep.subr.mxu0 0.0
    %4113 = vmatpush1.msra.mxu0 0.0
    %4114 = vmatprep.subr.mxu0 0.0
    %4115 = vmatpush1.msra.mxu0 0.0
    %4116 = vmatprep.subr.mxu0 0.0
    %4117 = vmatpush1.msra.mxu0 0.0
    %4118 = vmatprep.subr.mxu0 0.0
    %4119 = vmatpush1.msra.mxu0 0.0
    %4120 = vmatprep.subr.mxu0 0.0
    %4121 = vmatpush1.msra.mxu0 0.0
    %4122 = vmatprep.subr.mxu0 0.0
    %4123 = vmatpush1.msra.mxu0 0.0
    %4124 = vmatprep.subr.mxu0 0.0
    %4125 = vmatpush1.msra.mxu0 0.0
    %4126 = vmatprep.subr.mxu0 0.0
    %4127 = vmatpush1.msra.mxu0 0.0
    %4128 = vmatprep.subr.mxu0 0.0
    %4129 = vmatpush1.msra.mxu0 0.0
    %4130 = vmatprep.subr.mxu0 0.0
    %4131 = vmatpush1.msra.mxu0 0.0
    %4132 = vmatprep.subr.mxu0 0.0
    %4133 = vmatpush1.msra.mxu0 0.0
    %4134 = vmatprep.subr.mxu0 0.0
    %4135 = vmatpush1.msra.mxu0 0.0
    %4136 = vmatprep.subr.mxu0 0.0
    %4137 = vmatpush1.msra.mxu0 0.0
    %4138 = vmatprep.subr.mxu0 0.0
    %4139 = vmatpush1.msra.mxu0 0.0
    %4140 = vmatprep.subr.mxu0 0.0
    %4141 = vmatpush1.msra.mxu0 0.0
    %4142 = vmatprep.subr.mxu0 0.0
    %4143 = vmatpush1.msra.mxu0 0.0
    %4144 = vmatprep.subr.mxu0 0.0
    %4145 = vmatpush1.msra.mxu0 0.0
    %4146 = vmatprep.subr.mxu0 0.0
    %4147 = vmatpush1.msra.mxu0 0.0
    %4148 = vmatprep.subr.mxu0 0.0
    %4149 = vmatpush1.msra.mxu0 0.0
    %4150 = vmatprep.subr.mxu0 0.0
    %4151 = vmatpush1.msra.mxu0 0.0
    %4152 = vmatprep.subr.mxu0 0.0
    %4153 = vmatpush1.msra.mxu0 0.0
    %4154 = vmatprep.subr.mxu0 0.0
    %4155 = vmatpush1.msra.mxu0 0.0
    %4156 = vmatprep.subr.mxu0 0.0
    %4157 = vmatpush1.msra.mxu0 0.0
    %4158 = vmatprep.mubr.f32.mxu0 0.0
    %4159 = vmatmul.mubr.f32.gmra.mrb[0].mxu0 %v4083
    %v4160 = vpop.f32.mrb[0].mxu0
    %v4161 = vadd.f32 0.0, %v4160
    %v4162 = vpop.f32.mrb[0].mxu0
    %v4163 = vadd.f32 0.0, %v4162
    %4164 = vmatprep.mubr.f32.mxu0 0.0
    %4165 = vmatmul.mubr.f32.gmra.mrb[0].mxu0 %v4086
    %v4166 = vpop.f32.mrb[0].mxu0
    %v4167 = vadd.f32 0.0, %v4166
    %v4168 = vpop.f32.mrb[0].mxu0
    %v4169 = vadd.f32 0.0, %v4168
    %4170 = vdwg.mxu0
    %v4171 = vmax.f32 %v4161, %v4167
    %v4172 = vmax.f32 %v4163, %v4169
    %v4173 = vand.u32 %v2498, 31
    %v4174 = vand.u32 %v2499, 31
    %v4175 = vsub.s32 %v2502, %v4173
    %v4176 = vsub.s32 %v2503, %v4174
    %v4177 = vmul.u32 %v2494, 32
    %v4178 = vmul.u32 %v2495, 32
    %v4179 = vadd.s32 %v4175, %v4177
    %v4180 = vadd.s32 %v4176, %v4178
    %vm4181 = vcmp.eq.s32.totalorder %v1390, %v4179
    %vm4182 = vcmp.eq.s32.totalorder %v1390, %v4180
    %vm4183 = vcmp.eq.s32.totalorder %v1398, %v4179
    %vm4184 = vcmp.eq.s32.totalorder %v1398, %v4180
    %vm4185 = vcmp.eq.s32.totalorder %v1399, %v4179
    %vm4186 = vcmp.eq.s32.totalorder %v1399, %v4180
    %vm4187 = vcmp.eq.s32.totalorder %v1400, %v4179
    %vm4188 = vcmp.eq.s32.totalorder %v1400, %v4180
    %vm4189 = vcmp.eq.s32.totalorder %v1401, %v4179
    %vm4190 = vcmp.eq.s32.totalorder %v1401, %v4180
    %vm4191 = vcmp.eq.s32.totalorder %v1433, %v4179
    %vm4192 = vcmp.eq.s32.totalorder %v1433, %v4180
    %vm4193 = vcmp.eq.s32.totalorder %v1434, %v4179
    %vm4194 = vcmp.eq.s32.totalorder %v1434, %v4180
    %vm4195 = vcmp.eq.s32.totalorder %v1435, %v4179
    %vm4196 = vcmp.eq.s32.totalorder %v1435, %v4180
    %vm4197 = vcmp.eq.s32.totalorder %v1436, %v4179
    %vm4198 = vcmp.eq.s32.totalorder %v1436, %v4180
    %vm4199 = vcmp.eq.s32.totalorder %v1437, %v4179
    %vm4200 = vcmp.eq.s32.totalorder %v1437, %v4180
    %vm4201 = vcmp.eq.s32.totalorder %v1438, %v4179
    %vm4202 = vcmp.eq.s32.totalorder %v1438, %v4180
    %vm4203 = vcmp.eq.s32.totalorder %v1439, %v4179
    %vm4204 = vcmp.eq.s32.totalorder %v1439, %v4180
    %vm4205 = vcmp.eq.s32.totalorder %v1440, %v4179
    %vm4206 = vcmp.eq.s32.totalorder %v1440, %v4180
    %vm4207 = vcmp.eq.s32.totalorder %v1441, %v4179
    %vm4208 = vcmp.eq.s32.totalorder %v1441, %v4180
    %vm4209 = vcmp.eq.s32.totalorder %v1442, %v4179
    %vm4210 = vcmp.eq.s32.totalorder %v1442, %v4180
    %vm4211 = vcmp.eq.s32.totalorder %v1443, %v4179
    %vm4212 = vcmp.eq.s32.totalorder %v1443, %v4180
    %vm4213 = vcmp.eq.s32.totalorder %v1444, %v4179
    %vm4214 = vcmp.eq.s32.totalorder %v1444, %v4180
    %vm4215 = vcmp.eq.s32.totalorder %v1445, %v4179
    %vm4216 = vcmp.eq.s32.totalorder %v1445, %v4180
    %vm4217 = vcmp.eq.s32.totalorder %v1446, %v4179
    %vm4218 = vcmp.eq.s32.totalorder %v1446, %v4180
    %vm4219 = vcmp.eq.s32.totalorder %v1447, %v4179
    %vm4220 = vcmp.eq.s32.totalorder %v1447, %v4180
    %vm4221 = vcmp.eq.s32.totalorder %v1448, %v4179
    %vm4222 = vcmp.eq.s32.totalorder %v1448, %v4180
    %vm4223 = vcmp.eq.s32.totalorder %v1449, %v4179
    %vm4224 = vcmp.eq.s32.totalorder %v1449, %v4180
    %vm4225 = vcmp.eq.s32.totalorder %v1450, %v4179
    %vm4226 = vcmp.eq.s32.totalorder %v1450, %v4180
    %vm4227 = vcmp.eq.s32.totalorder %v1451, %v4179
    %vm4228 = vcmp.eq.s32.totalorder %v1451, %v4180
    %vm4229 = vcmp.eq.s32.totalorder %v1452, %v4179
    %vm4230 = vcmp.eq.s32.totalorder %v1452, %v4180
    %vm4231 = vcmp.eq.s32.totalorder %v1453, %v4179
    %vm4232 = vcmp.eq.s32.totalorder %v1453, %v4180
    %vm4233 = vcmp.eq.s32.totalorder %v1454, %v4179
    %vm4234 = vcmp.eq.s32.totalorder %v1454, %v4180
    %vm4235 = vcmp.eq.s32.totalorder %v1455, %v4179
    %vm4236 = vcmp.eq.s32.totalorder %v1455, %v4180
    %vm4237 = vcmp.eq.s32.totalorder %v1456, %v4179
    %vm4238 = vcmp.eq.s32.totalorder %v1456, %v4180
    %vm4239 = vcmp.eq.s32.totalorder %v1457, %v4179
    %vm4240 = vcmp.eq.s32.totalorder %v1457, %v4180
    %vm4241 = vcmp.eq.s32.totalorder %v1458, %v4179
    %vm4242 = vcmp.eq.s32.totalorder %v1458, %v4180
    %vm4243 = vcmp.eq.s32.totalorder %v1459, %v4179
    %vm4244 = vcmp.eq.s32.totalorder %v1459, %v4180
    %v4245 = vsel %vm4181, 1, 0
    %v4246 = vsel %vm4182, 1, 0
    %v4247 = vsel %vm4183, 1, 0
    %v4248 = vsel %vm4184, 1, 0
    %v4249 = vsel %vm4185, 1, 0
    %v4250 = vsel %vm4186, 1, 0
    %v4251 = vsel %vm4187, 1, 0
    %v4252 = vsel %vm4188, 1, 0
    %v4253 = vsel %vm4189, 1, 0
    %v4254 = vsel %vm4190, 1, 0
    %v4255 = vsel %vm4191, 1, 0
    %v4256 = vsel %vm4192, 1, 0
    %v4257 = vsel %vm4193, 1, 0
    %v4258 = vsel %vm4194, 1, 0
    %v4259 = vsel %vm4195, 1, 0
    %v4260 = vsel %vm4196, 1, 0
    %v4261 = vsel %vm4197, 1, 0
    %v4262 = vsel %vm4198, 1, 0
    %v4263 = vsel %vm4199, 1, 0
    %v4264 = vsel %vm4200, 1, 0
    %v4265 = vsel %vm4201, 1, 0
    %v4266 = vsel %vm4202, 1, 0
    %v4267 = vsel %vm4203, 1, 0
    %v4268 = vsel %vm4204, 1, 0
    %v4269 = vsel %vm4205, 1, 0
    %v4270 = vsel %vm4206, 1, 0
    %v4271 = vsel %vm4207, 1, 0
    %v4272 = vsel %vm4208, 1, 0
    %v4273 = vsel %vm4209, 1, 0
    %v4274 = vsel %vm4210, 1, 0
    %v4275 = vsel %vm4211, 1, 0
    %v4276 = vsel %vm4212, 1, 0
    %v4277 = vsel %vm4213, 1, 0
    %v4278 = vsel %vm4214, 1, 0
    %v4279 = vsel %vm4215, 1, 0
    %v4280 = vsel %vm4216, 1, 0
    %v4281 = vsel %vm4217, 1, 0
    %v4282 = vsel %vm4218, 1, 0
    %v4283 = vsel %vm4219, 1, 0
    %v4284 = vsel %vm4220, 1, 0
    %v4285 = vsel %vm4221, 1, 0
    %v4286 = vsel %vm4222, 1, 0
    %v4287 = vsel %vm4223, 1, 0
    %v4288 = vsel %vm4224, 1, 0
    %v4289 = vsel %vm4225, 1, 0
    %v4290 = vsel %vm4226, 1, 0
    %v4291 = vsel %vm4227, 1, 0
    %v4292 = vsel %vm4228, 1, 0
    %v4293 = vsel %vm4229, 1, 0
    %v4294 = vsel %vm4230, 1, 0
    %v4295 = vsel %vm4231, 1, 0
    %v4296 = vsel %vm4232, 1, 0
    %v4297 = vsel %vm4233, 1, 0
    %v4298 = vsel %vm4234, 1, 0
    %v4299 = vsel %vm4235, 1, 0
    %v4300 = vsel %vm4236, 1, 0
    %v4301 = vsel %vm4237, 1, 0
    %v4302 = vsel %vm4238, 1, 0
    %v4303 = vsel %vm4239, 1, 0
    %v4304 = vsel %vm4240, 1, 0
    %v4305 = vsel %vm4241, 1, 0
    %v4306 = vsel %vm4242, 1, 0
    %v4307 = vsel %vm4243, 1, 0
    %v4308 = vsel %vm4244, 1, 0
    %v4309 = vcvt.s32.f32 %v4245
    %v4310 = vcvt.s32.f32 %v4246
    %v4311 = vcvt.s32.f32 %v4247
    %v4312 = vcvt.s32.f32 %v4248
    %v4313 = vcvt.s32.f32 %v4249
    %v4314 = vcvt.s32.f32 %v4250
    %v4315 = vcvt.s32.f32 %v4251
    %v4316 = vcvt.s32.f32 %v4252
    %v4317 = vcvt.s32.f32 %v4253
    %v4318 = vcvt.s32.f32 %v4254
    %v4319 = vcvt.s32.f32 %v4255
    %v4320 = vcvt.s32.f32 %v4256
    %v4321 = vcvt.s32.f32 %v4257
    %v4322 = vcvt.s32.f32 %v4258
    %v4323 = vcvt.s32.f32 %v4259
    %v4324 = vcvt.s32.f32 %v4260
    %v4325 = vcvt.s32.f32 %v4261
    %v4326 = vcvt.s32.f32 %v4262
    %v4327 = vcvt.s32.f32 %v4263
    %v4328 = vcvt.s32.f32 %v4264
    %v4329 = vcvt.s32.f32 %v4265
    %v4330 = vcvt.s32.f32 %v4266
    %v4331 = vcvt.s32.f32 %v4267
    %v4332 = vcvt.s32.f32 %v4268
    %v4333 = vcvt.s32.f32 %v4269
    %v4334 = vcvt.s32.f32 %v4270
    %v4335 = vcvt.s32.f32 %v4271
    %v4336 = vcvt.s32.f32 %v4272
    %v4337 = vcvt.s32.f32 %v4273
    %v4338 = vcvt.s32.f32 %v4274
    %v4339 = vcvt.s32.f32 %v4275
    %v4340 = vcvt.s32.f32 %v4276
    %v4341 = vcvt.s32.f32 %v4277
    %v4342 = vcvt.s32.f32 %v4278
    %v4343 = vcvt.s32.f32 %v4279
    %v4344 = vcvt.s32.f32 %v4280
    %v4345 = vcvt.s32.f32 %v4281
    %v4346 = vcvt.s32.f32 %v4282
    %v4347 = vcvt.s32.f32 %v4283
    %v4348 = vcvt.s32.f32 %v4284
    %v4349 = vcvt.s32.f32 %v4285
    %v4350 = vcvt.s32.f32 %v4286
    %v4351 = vcvt.s32.f32 %v4287
    %v4352 = vcvt.s32.f32 %v4288
    %v4353 = vcvt.s32.f32 %v4289
    %v4354 = vcvt.s32.f32 %v4290
    %v4355 = vcvt.s32.f32 %v4291
    %v4356 = vcvt.s32.f32 %v4292
    %v4357 = vcvt.s32.f32 %v4293
    %v4358 = vcvt.s32.f32 %v4294
    %v4359 = vcvt.s32.f32 %v4295
    %v4360 = vcvt.s32.f32 %v4296
    %v4361 = vcvt.s32.f32 %v4297
    %v4362 = vcvt.s32.f32 %v4298
    %v4363 = vcvt.s32.f32 %v4299
    %v4364 = vcvt.s32.f32 %v4300
    %v4365 = vcvt.s32.f32 %v4301
    %v4366 = vcvt.s32.f32 %v4302
    %v4367 = vcvt.s32.f32 %v4303
    %v4368 = vcvt.s32.f32 %v4304
    %v4369 = vcvt.s32.f32 %v4305
    %v4370 = vcvt.s32.f32 %v4306
    %v4371 = vcvt.s32.f32 %v4307
    %v4372 = vcvt.s32.f32 %v4308
    %4373 = vmatprep.subr.mxu0 %v4310
    %4374 = vmatpush1.msra.mxu0 %v4309
    %4375 = vmatprep.subr.mxu0 %v4312
    %4376 = vmatpush1.msra.mxu0 %v4311
    %4377 = vmatprep.subr.mxu0 %v4314
    %4378 = vmatpush1.msra.mxu0 %v4313
    %4379 = vmatprep.subr.mxu0 %v4316
    %4380 = vmatpush1.msra.mxu0 %v4315
    %4381 = vmatprep.subr.mxu0 %v4318
    %4382 = vmatpush1.msra.mxu0 %v4317
    %4383 = vmatprep.subr.mxu0 %v4320
    %4384 = vmatpush1.msra.mxu0 %v4319
    %4385 = vmatprep.subr.mxu0 %v4322
    %4386 = vmatpush1.msra.mxu0 %v4321
    %4387 = vmatprep.subr.mxu0 %v4324
    %4388 = vmatpush1.msra.mxu0 %v4323
    %4389 = vmatprep.subr.mxu0 %v4326
    %4390 = vmatpush1.msra.mxu0 %v4325
    %4391 = vmatprep.subr.mxu0 %v4328
    %4392 = vmatpush1.msra.mxu0 %v4327
    %4393 = vmatprep.subr.mxu0 %v4330
    %4394 = vmatpush1.msra.mxu0 %v4329
    %4395 = vmatprep.subr.mxu0 %v4332
    %4396 = vmatpush1.msra.mxu0 %v4331
    %4397 = vmatprep.subr.mxu0 %v4334
    %4398 = vmatpush1.msra.mxu0 %v4333
    %4399 = vmatprep.subr.mxu0 %v4336
    %4400 = vmatpush1.msra.mxu0 %v4335
    %4401 = vmatprep.subr.mxu0 %v4338
    %4402 = vmatpush1.msra.mxu0 %v4337
    %4403 = vmatprep.subr.mxu0 %v4340
    %4404 = vmatpush1.msra.mxu0 %v4339
    %4405 = vmatprep.subr.mxu0 %v4342
    %4406 = vmatpush1.msra.mxu0 %v4341
    %4407 = vmatprep.subr.mxu0 %v4344
    %4408 = vmatpush1.msra.mxu0 %v4343
    %4409 = vmatprep.subr.mxu0 %v4346
    %4410 = vmatpush1.msra.mxu0 %v4345
    %4411 = vmatprep.subr.mxu0 %v4348
    %4412 = vmatpush1.msra.mxu0 %v4347
    %4413 = vmatprep.subr.mxu0 %v4350
    %4414 = vmatpush1.msra.mxu0 %v4349
    %4415 = vmatprep.subr.mxu0 %v4352
    %4416 = vmatpush1.msra.mxu0 %v4351
    %4417 = vmatprep.subr.mxu0 %v4354
    %4418 = vmatpush1.msra.mxu0 %v4353
    %4419 = vmatprep.subr.mxu0 %v4356
    %4420 = vmatpush1.msra.mxu0 %v4355
    %4421 = vmatprep.subr.mxu0 %v4358
    %4422 = vmatpush1.msra.mxu0 %v4357
    %4423 = vmatprep.subr.mxu0 %v4360
    %4424 = vmatpush1.msra.mxu0 %v4359
    %4425 = vmatprep.subr.mxu0 %v4362
    %4426 = vmatpush1.msra.mxu0 %v4361
    %4427 = vmatprep.subr.mxu0 %v4364
    %4428 = vmatpush1.msra.mxu0 %v4363
    %4429 = vmatprep.subr.mxu0 %v4366
    %4430 = vmatpush1.msra.mxu0 %v4365
    %4431 = vmatprep.subr.mxu0 %v4368
    %4432 = vmatpush1.msra.mxu0 %v4367
    %4433 = vmatprep.subr.mxu0 %v4370
    %4434 = vmatpush1.msra.mxu0 %v4369
    %4435 = vmatprep.subr.mxu0 %v4372
    %4436 = vmatpush1.msra.mxu0 %v4371
    %4437 = vmatprep.mubr.f32.mxu0 %v4172
    %4438 = vmatmul.mubr.f32.gmra.mrb[0].mxu0 %v4171
    %v4439 = vpop.f32.mrb[0].mxu0
    %v4440 = vadd.f32 0.0, %v4439
    %v4441 = vpop.f32.mrb[0].mxu0
    %v4442 = vadd.f32 0.0, %v4441
    %4443 = vdwg.mxu0
    %v4444 = vmax.f32 %v4440, %v4442
    %v4445 = vmax.f32 %v4444, 0.0
    %s4446 = smul.u32 4, 48
    %s4447 = smul.u32 %s4446, 2
    %s4448 = sshll.u32 %s4447, 4
    %4449 = dma.done [#allocation8], %s4448
    %v4450 = vld [vmem:[%s6] ss:$4 sm:$0x3]
    %s4451 = scalar_lea.vmem %s6, 1
    %v4452 = vld [vmem:[%s4451] ss:$4 sm:$0x3]
    %s4453 = scalar_lea.vmem %s6, 2
    %v4454 = vld [vmem:[%s4453] ss:$4 sm:$0x3]
    %4455 = vst [vmem:[#allocation4] sm:$0x1] 0.0
    %4456 = vst [vmem:[#allocation4 + $0x5] sm:$0x1] 0.0
    %4457 = vst [vmem:[#allocation4 + $0x1] sm:$0xf] %v4445
    %4458 = vst [vmem:[#allocation4 + $0x6] sm:$0x1] 0.0
    %4459 = vst [vmem:[#allocation4 + $0xb] sm:$0x1] 0.0
    %4460 = vst [vmem:[#allocation4 + $0x3] sm:$0xf0] %v4445
    %v4461 = vld [vmem:[#allocation4] sm:$0xff]
    %v4462 = vld [vmem:[#allocation4 + $0x8] sm:$0xf]
    %v4465 = vrot.slane %v4461, 1
    %v4466 = vrot.slane %v4462, 1
    %v4467 = vsel %vm1111, %v4465, %v4466
    %v4470 = vrot.slane %v4461, 2
    %v4471 = vrot.slane %v4462, 2
    %v4472 = vsel %vm1136, %v4470, %v4471
    %v4475 = vpack.c.bf16 %v4462, %v4461
    %v4476 = vpack.c.bf16 %v4466, %v4467
    %v4477 = vpack.c.bf16 %v4471, %v4472
    %v4478 = vld [vmem:[#allocation5] sm:$0xff]
    %v4479 = vld [vmem:[#allocation5 + $0x8] sm:$0xff]
    %v4480 = vld [vmem:[#allocation5 + $0x10] sm:$0xff]
    %v4481 = vld [vmem:[#allocation5 + $0x18] sm:$0xff]
    %v4482 = vld [vmem:[#allocation5 + $0x20] sm:$0xff]
    %v4483 = vld [vmem:[#allocation5 + $0x28] sm:$0xff]
    %v4484 = vld [vmem:[#allocation5 + $0x30] sm:$0xff]
    %v4485 = vld [vmem:[#allocation5 + $0x38] sm:$0xff]
    %v4486 = vld [vmem:[#allocation5 + $0x40] sm:$0xff]
    %v4487 = vld [vmem:[#allocation5 + $0x48] sm:$0xff]
    %v4488 = vld [vmem:[#allocation5 + $0x50] sm:$0xff]
    %v4489 = vld [vmem:[#allocation5 + $0x58] sm:$0xff]
    %v4490 = vld [vmem:[#allocation5 + $0x60] sm:$0xff]
    %v4491 = vld [vmem:[#allocation5 + $0x68] sm:$0xff]
    %v4492 = vld [vmem:[#allocation5 + $0x70] sm:$0xff]
    %v4493 = vld [vmem:[#allocation5 + $0x78] sm:$0xff]
    %v4494 = vld [vmem:[#allocation5 + $0x80] sm:$0xff]
    %v4495 = vld [vmem:[#allocation5 + $0x88] sm:$0xff]
    %v4496 = vld [vmem:[#allocation5 + $0x90] sm:$0xff]
    %v4497 = vld [vmem:[#allocation5 + $0x98] sm:$0xff]
    %v4498 = vld [vmem:[#allocation5 + $0xa0] sm:$0xff]
    %v4499 = vld [vmem:[#allocation5 + $0xa8] sm:$0xff]
    %v4500 = vld [vmem:[#allocation5 + $0xb0] sm:$0xff]
    %v4501 = vld [vmem:[#allocation5 + $0xb8] sm:$0xff]
    %v4502 = vld [vmem:[#allocation5 + $0xc0] sm:$0xff]
    %v4503 = vld [vmem:[#allocation5 + $0xc8] sm:$0xff]
    %v4504 = vld [vmem:[#allocation5 + $0xd0] sm:$0xff]
    %v4505 = vld [vmem:[#allocation5 + $0xd8] sm:$0xff]
    %v4506 = vld [vmem:[#allocation5 + $0xe0] sm:$0xff]
    %v4507 = vld [vmem:[#allocation5 + $0xe8] sm:$0xff]
    %v4508 = vld [vmem:[#allocation5 + $0xf0] sm:$0xff]
    %v4509 = vld [vmem:[#allocation5 + $0xf8] sm:$0xff]
    %v4510 = vld [vmem:[#allocation5 + $0x100] sm:$0xff]
    %v4511 = vld [vmem:[#allocation5 + $0x108] sm:$0xff]
    %v4512 = vld [vmem:[#allocation5 + $0x110] sm:$0xff]
    %v4513 = vld [vmem:[#allocation5 + $0x118] sm:$0xff]
    %v4514 = vld [vmem:[#allocation5 + $0x120] sm:$0xff]
    %v4515 = vld [vmem:[#allocation5 + $0x128] sm:$0xff]
    %v4516 = vld [vmem:[#allocation5 + $0x130] sm:$0xff]
    %v4517 = vld [vmem:[#allocation5 + $0x138] sm:$0xff]
    %v4518 = vld [vmem:[#allocation5 + $0x140] sm:$0xff]
    %v4519 = vld [vmem:[#allocation5 + $0x148] sm:$0xff]
    %v4520 = vld [vmem:[#allocation5 + $0x150] sm:$0xff]
    %v4521 = vld [vmem:[#allocation5 + $0x158] sm:$0xff]
    %v4522 = vld [vmem:[#allocation5 + $0x160] sm:$0xff]
    %v4523 = vld [vmem:[#allocation5 + $0x168] sm:$0xff]
    %v4524 = vld [vmem:[#allocation5 + $0x170] sm:$0xff]
    %v4525 = vld [vmem:[#allocation5 + $0x178] sm:$0xff]
    %v4527 = vlaneseq
    %v4528 = vshrl.u32 %v4527, 7
    %v4529 = vsub.s32 0, %v4528
    %v4530 = vrot.slane %v4450, %v4529
    %v4531 = vlaneseq
    %v4532 = vshrl.u32 %v4531, 7
    %v4533 = vsub.s32 1, %v4532
    %v4534 = vrot.slane %v4450, %v4533
    %4537 = vmatprep.subr.bf16.mxu0 %v4479
    %4538 = vmatpush1.bf16.msra.mxu0 %v4478
    %4539 = vmatprep.subr.bf16.mxu0 %v4481
    %4540 = vmatpush1.bf16.msra.mxu0 %v4480
    %4541 = vmatprep.subr.bf16.mxu0 %v4483
    %4542 = vmatpush1.bf16.msra.mxu0 %v4482
    %4543 = vmatprep.subr.bf16.mxu0 %v4485
    %4544 = vmatpush1.bf16.msra.mxu0 %v4484
    %4545 = vmatprep.subr.bf16.mxu0 %v4487
    %4546 = vmatpush1.bf16.msra.mxu0 %v4486
    %4547 = vmatprep.subr.bf16.mxu0 %v4489
    %4548 = vmatpush1.bf16.msra.mxu0 %v4488
    %4549 = vmatprep.subr.bf16.mxu0 %v4491
    %4550 = vmatpush1.bf16.msra.mxu0 %v4490
    %4551 = vmatprep.subr.bf16.mxu0 %v4493
    %4552 = vmatpush1.bf16.msra.mxu0 %v4492
    %4553 = vmatprep.subr.bf16.mxu0 %v4495
    %4554 = vmatpush1.bf16.msra.mxu0 %v4494
    %4555 = vmatprep.subr.bf16.mxu0 %v4497
    %4556 = vmatpush1.bf16.msra.mxu0 %v4496
    %4557 = vmatprep.subr.bf16.mxu0 %v4499
    %4558 = vmatpush1.bf16.msra.mxu0 %v4498
    %4559 = vmatprep.subr.bf16.mxu0 %v4501
    %4560 = vmatpush1.bf16.msra.mxu0 %v4500
    %4561 = vmatprep.subr.bf16.mxu0 %v4503
    %4562 = vmatpush1.bf16.msra.mxu0 %v4502
    %4563 = vmatprep.subr.bf16.mxu0 %v4505
    %4564 = vmatpush1.bf16.msra.mxu0 %v4504
    %4565 = vmatprep.subr.bf16.mxu0 %v4507
    %4566 = vmatpush1.bf16.msra.mxu0 %v4506
    %4567 = vmatprep.subr.bf16.mxu0 %v4509
    %4568 = vmatpush1.bf16.msra.mxu0 %v4508
    %4569 = vmatprep.mubr.bf16.mxu0 %v4476
    %4570 = vmatmul.mubr.bf16.gmra.mrb[0].mxu0 %v4475
    %v4571 = vpop.f32.mrb[0].mxu0
    %v4572 = vadd.f32 %v4530, %v4571
    %v4573 = vpop.f32.mrb[0].mxu0
    %v4574 = vadd.f32 %v4534, %v4573
    %v4575 = vpop.f32.mrb[0].mxu0
    %v4576 = vadd.f32 %v4530, %v4575
    %v4577 = vpop.f32.mrb[0].mxu0
    %v4578 = vadd.f32 %v4534, %v4577
    %4579 = vdwg.mxu0
    %4580 = vmatprep.subr.bf16.mxu0 %v4511
    %4581 = vmatpush1.bf16.msra.mxu0 %v4510
    %4582 = vmatprep.subr.bf16.mxu0 %v4513
    %4583 = vmatpush1.bf16.msra.mxu0 %v4512
    %4584 = vmatprep.subr.bf16.mxu0 %v4515
    %4585 = vmatpush1.bf16.msra.mxu0 %v4514
    %4586 = vmatprep.subr.bf16.mxu0 %v4517
    %4587 = vmatpush1.bf16.msra.mxu0 %v4516
    %4588 = vmatprep.subr.bf16.mxu0 %v4519
    %4589 = vmatpush1.bf16.msra.mxu0 %v4518
    %4590 = vmatprep.subr.bf16.mxu0 %v4521
    %4591 = vmatpush1.bf16.msra.mxu0 %v4520
    %4592 = vmatprep.subr.bf16.mxu0 %v4523
    %4593 = vmatpush1.bf16.msra.mxu0 %v4522
    %4594 = vmatprep.subr.bf16.mxu0 %v4525
    %4595 = vmatpush1.bf16.msra.mxu0 %v4524
    %4596 = vmatprep.subr.bf16.mxu0 0
    %4597 = vmatpush1.bf16.msra.mxu0 0
    %4598 = vmatprep.subr.bf16.mxu0 0
    %4599 = vmatpush1.bf16.msra.mxu0 0
    %4600 = vmatprep.subr.bf16.mxu0 0
    %4601 = vmatpush1.bf16.msra.mxu0 0
    %4602 = vmatprep.subr.bf16.mxu0 0
    %4603 = vmatpush1.bf16.msra.mxu0 0
    %4604 = vmatprep.subr.bf16.mxu0 0
    %4605 = vmatpush1.bf16.msra.mxu0 0
    %4606 = vmatprep.subr.bf16.mxu0 0
    %4607 = vmatpush1.bf16.msra.mxu0 0
    %4608 = vmatprep.subr.bf16.mxu0 0
    %4609 = vmatpush1.bf16.msra.mxu0 0
    %4610 = vmatprep.subr.bf16.mxu0 0
    %4611 = vmatpush1.bf16.msra.mxu0 0
    %4612 = vmatprep.mubr.bf16.mxu0 0
    %4613 = vmatmul.mubr.bf16.gmra.mrb[0].mxu0 %v4477
    %v4614 = vpop.f32.mrb[0].mxu0
    %v4615 = vadd.f32 %v4572, %v4614
    %v4616 = vpop.f32.mrb[0].mxu0
    %v4617 = vadd.f32 %v4574, %v4616
    %v4618 = vpop.f32.mrb[0].mxu0
    %v4619 = vadd.f32 %v4576, %v4618
    %v4620 = vpop.f32.mrb[0].mxu0
    %v4621 = vadd.f32 %v4578, %v4620
    %4622 = vdwg.mxu0
    %v4623 = vmul.u32 %v1390, 6
    %v4624 = vsub.s32 %v1388, %v4623
    %vm4625 = vcmp.ge.s32.totalorder %v4624, 0
    %vm4626 = vcmp.lt.s32.totalorder %v4624, 4
    %vm4627 = vmand %vm4625, %vm4626
    %v4628 = vsel %vm4627, 1, 0
    %v4629 = vcvt.s32.f32 %v4628
    %v4630 = vmul.u32 %v1388, 6
    %v4631 = vsub.s32 %v1390, %v4630
    %v4632 = vsub.s32 %v1398, %v4630
    %vm4633 = vcmp.ge.s32.totalorder %v4631, 0
    %vm4634 = vcmp.ge.s32.totalorder %v4632, 0
    %vm4635 = vcmp.lt.s32.totalorder %v4631, 4
    %vm4636 = vcmp.lt.s32.totalorder %v4632, 4
    %vm4637 = vmand %vm4633, %vm4635
    %vm4638 = vmand %vm4634, %vm4636
    %v4639 = vsel %vm4637, 1, 0
    %v4640 = vsel %vm4638, 1, 0
    %v4641 = vcvt.s32.f32 %v4639
    %v4642 = vcvt.s32.f32 %v4640
    %v4643 = vand.u32 %v1390, 63
    %v4644 = vand.u32 %v1398, 63
    %v4645 = vand.u32 %v1399, 63
    %v4646 = vand.u32 %v1400, 63
    %v4647 = vand.u32 %v1401, 63
    %v4648 = vand.u32 %v1433, 63
    %v4649 = vand.u32 %v1434, 63
    %v4650 = vand.u32 %v1435, 63
    %v4651 = vand.u32 %v1436, 63
    %v4652 = vand.u32 %v1437, 63
    %v4653 = vand.u32 %v1438, 63
    %v4654 = vand.u32 %v1439, 63
    %v4655 = vand.u32 %v1440, 63
    %v4656 = vand.u32 %v1441, 63
    %v4657 = vand.u32 %v1442, 63
    %v4658 = vand.u32 %v1443, 63
    %v4659 = vand.u32 %v1444, 63
    %v4660 = vand.u32 %v1445, 63
    %v4661 = vand.u32 %v1446, 63
    %v4662 = vand.u32 %v1447, 63
    %v4663 = vand.u32 %v1448, 63
    %v4664 = vand.u32 %v1449, 63
    %v4665 = vand.u32 %v1450, 63
    %v4666 = vand.u32 %v1451, 63
    %v4667 = vand.u32 %v1452, 63
    %v4668 = vand.u32 %v1453, 63
    %v4669 = vand.u32 %v1454, 63
    %v4670 = vand.u32 %v1455, 63
    %v4671 = vand.u32 %v1456, 63
    %v4672 = vand.u32 %v1457, 63
    %v4673 = vand.u32 %v1458, 63
    %v4674 = vand.u32 %v1459, 63
    %vm4675 = vcmp.ge.s32.totalorder %v4643, %v1492
    %vm4676 = vcmp.ge.s32.totalorder %v4644, %v1492
    %vm4677 = vcmp.ge.s32.totalorder %v4645, %v1492
    %vm4678 = vcmp.ge.s32.totalorder %v4646, %v1492
    %vm4679 = vcmp.ge.s32.totalorder %v4647, %v1492
    %vm4680 = vcmp.ge.s32.totalorder %v4648, %v1492
    %vm4681 = vcmp.ge.s32.totalorder %v4649, %v1492
    %vm4682 = vcmp.ge.s32.totalorder %v4650, %v1492
    %vm4683 = vcmp.ge.s32.totalorder %v4651, %v1492
    %vm4684 = vcmp.ge.s32.totalorder %v4652, %v1492
    %vm4685 = vcmp.ge.s32.totalorder %v4653, %v1492
    %vm4686 = vcmp.ge.s32.totalorder %v4654, %v1492
    %vm4687 = vcmp.ge.s32.totalorder %v4655, %v1492
    %vm4688 = vcmp.ge.s32.totalorder %v4656, %v1492
    %vm4689 = vcmp.ge.s32.totalorder %v4657, %v1492
    %vm4690 = vcmp.ge.s32.totalorder %v4658, %v1492
    %vm4691 = vcmp.ge.s32.totalorder %v4659, %v1492
    %vm4692 = vcmp.ge.s32.totalorder %v4660, %v1492
    %vm4693 = vcmp.ge.s32.totalorder %v4661, %v1492
    %vm4694 = vcmp.ge.s32.totalorder %v4662, %v1492
    %vm4695 = vcmp.ge.s32.totalorder %v4663, %v1492
    %vm4696 = vcmp.ge.s32.totalorder %v4664, %v1492
    %vm4697 = vcmp.ge.s32.totalorder %v4665, %v1492
    %vm4698 = vcmp.ge.s32.totalorder %v4666, %v1492
    %vm4699 = vcmp.ge.s32.totalorder %v4667, %v1492
    %vm4700 = vcmp.ge.s32.totalorder %v4668, %v1492
    %vm4701 = vcmp.ge.s32.totalorder %v4669, %v1492
    %vm4702 = vcmp.ge.s32.totalorder %v4670, %v1492
    %vm4703 = vcmp.ge.s32.totalorder %v4671, %v1492
    %vm4704 = vcmp.ge.s32.totalorder %v4672, %v1492
    %vm4705 = vcmp.ge.s32.totalorder %v4673, %v1492
    %vm4706 = vcmp.ge.s32.totalorder %v4674, %v1492
    %vm4707 = vcmp.lt.s32.totalorder %v4643, %v1526
    %vm4708 = vcmp.lt.s32.totalorder %v4644, %v1526
    %vm4709 = vcmp.lt.s32.totalorder %v4645, %v1526
    %vm4710 = vcmp.lt.s32.totalorder %v4646, %v1526
    %vm4711 = vcmp.lt.s32.totalorder %v4647, %v1526
    %vm4712 = vcmp.lt.s32.totalorder %v4648, %v1526
    %vm4713 = vcmp.lt.s32.totalorder %v4649, %v1526
    %vm4714 = vcmp.lt.s32.totalorder %v4650, %v1526
    %vm4715 = vcmp.lt.s32.totalorder %v4651, %v1526
    %vm4716 = vcmp.lt.s32.totalorder %v4652, %v1526
    %vm4717 = vcmp.lt.s32.totalorder %v4653, %v1526
    %vm4718 = vcmp.lt.s32.totalorder %v4654, %v1526
    %vm4719 = vcmp.lt.s32.totalorder %v4655, %v1526
    %vm4720 = vcmp.lt.s32.totalorder %v4656, %v1526
    %vm4721 = vcmp.lt.s32.totalorder %v4657, %v1526
    %vm4722 = vcmp.lt.s32.totalorder %v4658, %v1526
    %vm4723 = vcmp.lt.s32.totalorder %v4659, %v1526
    %vm4724 = vcmp.lt.s32.totalorder %v4660, %v1526
    %vm4725 = vcmp.lt.s32.totalorder %v4661, %v1526
    %vm4726 = vcmp.lt.s32.totalorder %v4662, %v1526
    %vm4727 = vcmp.lt.s32.totalorder %v4663, %v1526
    %vm4728 = vcmp.lt.s32.totalorder %v4664, %v1526
    %vm4729 = vcmp.lt.s32.totalorder %v4665, %v1526
    %vm4730 = vcmp.lt.s32.totalorder %v4666, %v1526
    %vm4731 = vcmp.lt.s32.totalorder %v4667, %v1526
    %vm4732 = vcmp.lt.s32.totalorder %v4668, %v1526
    %vm4733 = vcmp.lt.s32.totalorder %v4669, %v1526
    %vm4734 = vcmp.lt.s32.totalorder %v4670, %v1526
    %vm4735 = vcmp.lt.s32.totalorder %v4671, %v1526
    %vm4736 = vcmp.lt.s32.totalorder %v4672, %v1526
    %vm4737 = vcmp.lt.s32.totalorder %v4673, %v1526
    %vm4738 = vcmp.lt.s32.totalorder %v4674, %v1526
    %vm4739 = vmand %vm4675, %vm4707
    %vm4740 = vmand %vm4676, %vm4708
    %vm4741 = vmand %vm4677, %vm4709
    %vm4742 = vmand %vm4678, %vm4710
    %vm4743 = vmand %vm4679, %vm4711
    %vm4744 = vmand %vm4680, %vm4712
    %vm4745 = vmand %vm4681, %vm4713
    %vm4746 = vmand %vm4682, %vm4714
    %vm4747 = vmand %vm4683, %vm4715
    %vm4748 = vmand %vm4684, %vm4716
    %vm4749 = vmand %vm4685, %vm4717
    %vm4750 = vmand %vm4686, %vm4718
    %vm4751 = vmand %vm4687, %vm4719
    %vm4752 = vmand %vm4688, %vm4720
    %vm4753 = vmand %vm4689, %vm4721
    %vm4754 = vmand %vm4690, %vm4722
    %vm4755 = vmand %vm4691, %vm4723
    %vm4756 = vmand %vm4692, %vm4724
    %vm4757 = vmand %vm4693, %vm4725
    %vm4758 = vmand %vm4694, %vm4726
    %vm4759 = vmand %vm4695, %vm4727
    %vm4760 = vmand %vm4696, %vm4728
    %vm4761 = vmand %vm4697, %vm4729
    %vm4762 = vmand %vm4698, %vm4730
    %vm4763 = vmand %vm4699, %vm4731
    %vm4764 = vmand %vm4700, %vm4732
    %vm4765 = vmand %vm4701, %vm4733
    %vm4766 = vmand %vm4702, %vm4734
    %vm4767 = vmand %vm4703, %vm4735
    %vm4768 = vmand %vm4704, %vm4736
    %vm4769 = vmand %vm4705, %vm4737
    %vm4770 = vmand %vm4706, %vm4738
    %v4771 = vsel %vm4739, 1, 0
    %v4772 = vsel %vm4740, 1, 0
    %v4773 = vsel %vm4741, 1, 0
    %v4774 = vsel %vm4742, 1, 0
    %v4775 = vsel %vm4743, 1, 0
    %v4776 = vsel %vm4744, 1, 0
    %v4777 = vsel %vm4745, 1, 0
    %v4778 = vsel %vm4746, 1, 0
    %v4779 = vsel %vm4747, 1, 0
    %v4780 = vsel %vm4748, 1, 0
    %v4781 = vsel %vm4749, 1, 0
    %v4782 = vsel %vm4750, 1, 0
    %v4783 = vsel %vm4751, 1, 0
    %v4784 = vsel %vm4752, 1, 0
    %v4785 = vsel %vm4753, 1, 0
    %v4786 = vsel %vm4754, 1, 0
    %v4787 = vsel %vm4755, 1, 0
    %v4788 = vsel %vm4756, 1, 0
    %v4789 = vsel %vm4757, 1, 0
    %v4790 = vsel %vm4758, 1, 0
    %v4791 = vsel %vm4759, 1, 0
    %v4792 = vsel %vm4760, 1, 0
    %v4793 = vsel %vm4761, 1, 0
    %v4794 = vsel %vm4762, 1, 0
    %v4795 = vsel %vm4763, 1, 0
    %v4796 = vsel %vm4764, 1, 0
    %v4797 = vsel %vm4765, 1, 0
    %v4798 = vsel %vm4766, 1, 0
    %v4799 = vsel %vm4767, 1, 0
    %v4800 = vsel %vm4768, 1, 0
    %v4801 = vsel %vm4769, 1, 0
    %v4802 = vsel %vm4770, 1, 0
    %v4803 = vcvt.s32.f32 %v4771
    %v4804 = vcvt.s32.f32 %v4772
    %v4805 = vcvt.s32.f32 %v4773
    %v4806 = vcvt.s32.f32 %v4774
    %v4807 = vcvt.s32.f32 %v4775
    %v4808 = vcvt.s32.f32 %v4776
    %v4809 = vcvt.s32.f32 %v4777
    %v4810 = vcvt.s32.f32 %v4778
    %v4811 = vcvt.s32.f32 %v4779
    %v4812 = vcvt.s32.f32 %v4780
    %v4813 = vcvt.s32.f32 %v4781
    %v4814 = vcvt.s32.f32 %v4782
    %v4815 = vcvt.s32.f32 %v4783
    %v4816 = vcvt.s32.f32 %v4784
    %v4817 = vcvt.s32.f32 %v4785
    %v4818 = vcvt.s32.f32 %v4786
    %v4819 = vcvt.s32.f32 %v4787
    %v4820 = vcvt.s32.f32 %v4788
    %v4821 = vcvt.s32.f32 %v4789
    %v4822 = vcvt.s32.f32 %v4790
    %v4823 = vcvt.s32.f32 %v4791
    %v4824 = vcvt.s32.f32 %v4792
    %v4825 = vcvt.s32.f32 %v4793
    %v4826 = vcvt.s32.f32 %v4794
    %v4827 = vcvt.s32.f32 %v4795
    %v4828 = vcvt.s32.f32 %v4796
    %v4829 = vcvt.s32.f32 %v4797
    %v4830 = vcvt.s32.f32 %v4798
    %v4831 = vcvt.s32.f32 %v4799
    %v4832 = vcvt.s32.f32 %v4800
    %v4833 = vcvt.s32.f32 %v4801
    %v4834 = vcvt.s32.f32 %v4802
    %v4835 = vand.u32 %v1388, 63
    %v4836 = vand.u32 %v1655, 63
    %v4837 = vmul.u32 %v1399, 2
    %v4838 = vmul.u32 %v1400, 2
    %vm4839 = vcmp.ge.s32.totalorder %v4835, %v1658
    %vm4840 = vcmp.ge.s32.totalorder %v4836, %v1658
    %vm4841 = vcmp.ge.s32.totalorder %v4835, %v3443
    %vm4842 = vcmp.ge.s32.totalorder %v4836, %v3443
    %vm4843 = vcmp.ge.s32.totalorder %v4835, %v4837
    %vm4844 = vcmp.ge.s32.totalorder %v4836, %v4837
    %vm4845 = vcmp.ge.s32.totalorder %v4835, %v4838
    %vm4846 = vcmp.ge.s32.totalorder %v4836, %v4838
    %v4847 = vadd.s32 %v1399, 1
    %v4848 = vadd.s32 %v1400, 1
    %v4849 = vmul.u32 %v4847, 2
    %v4850 = vmul.u32 %v4848, 2
    %vm4851 = vcmp.lt.s32.totalorder %v4835, %v1662
    %vm4852 = vcmp.lt.s32.totalorder %v4836, %v1662
    %vm4853 = vcmp.lt.s32.totalorder %v4835, %v3449
    %vm4854 = vcmp.lt.s32.totalorder %v4836, %v3449
    %vm4855 = vcmp.lt.s32.totalorder %v4835, %v4849
    %vm4856 = vcmp.lt.s32.totalorder %v4836, %v4849
    %vm4857 = vcmp.lt.s32.totalorder %v4835, %v4850
    %vm4858 = vcmp.lt.s32.totalorder %v4836, %v4850
    %vm4859 = vmand %vm4839, %vm4851
    %vm4860 = vmand %vm4840, %vm4852
    %vm4861 = vmand %vm4841, %vm4853
    %vm4862 = vmand %vm4842, %vm4854
    %vm4863 = vmand %vm4843, %vm4855
    %vm4864 = vmand %vm4844, %vm4856
    %vm4865 = vmand %vm4845, %vm4857
    %vm4866 = vmand %vm4846, %vm4858
    %v4867 = vsel %vm4859, 1, 0
    %v4868 = vsel %vm4860, 1, 0
    %v4869 = vsel %vm4861, 1, 0
    %v4870 = vsel %vm4862, 1, 0
    %v4871 = vsel %vm4863, 1, 0
    %v4872 = vsel %vm4864, 1, 0
    %v4873 = vsel %vm4865, 1, 0
    %v4874 = vsel %vm4866, 1, 0
    %v4875 = vcvt.s32.f32 %v4867
    %v4876 = vcvt.s32.f32 %v4868
    %v4877 = vcvt.s32.f32 %v4869
    %v4878 = vcvt.s32.f32 %v4870
    %v4879 = vcvt.s32.f32 %v4871
    %v4880 = vcvt.s32.f32 %v4872
    %v4881 = vcvt.s32.f32 %v4873
    %v4882 = vcvt.s32.f32 %v4874
    %v4883 = vmul.f32 %v4615, %v4615
    %v4884 = vmul.f32 %v4617, %v4617
    %v4885 = vmul.f32 %v4619, %v4619
    %v4886 = vmul.f32 %v4621, %v4621
    %vm4887 = vcmask 80896
    %v4889 = vsel %vm4887, %v4629, 0
    %v4892 = vsel %vm1685, %v4619, 0
    %v4895 = vsel %vm1685, %v4621, 0
    %v4898 = vsel %vm1685, %v4885, 0
    %v4901 = vsel %vm1685, %v4886, 0
    %4903 = vmatprep.subr.mxu0 %v4617
    %4904 = vmatpush1.msra.mxu0 %v4615
    %4905 = vmatprep.subr.mxu0 %v4895
    %4906 = vmatpush1.msra.mxu0 %v4892
    %4907 = vmatprep.subr.mxu0 0.0
    %4908 = vmatpush1.msra.mxu0 0.0
    %4909 = vmatprep.subr.mxu0 0.0
    %4910 = vmatpush1.msra.mxu0 0.0
    %4911 = vmatprep.subr.mxu0 0.0
    %4912 = vmatpush1.msra.mxu0 0.0
    %4913 = vmatprep.subr.mxu0 0.0
    %4914 = vmatpush1.msra.mxu0 0.0
    %4915 = vmatprep.subr.mxu0 0.0
    %4916 = vmatpush1.msra.mxu0 0.0
    %4917 = vmatprep.subr.mxu0 0.0
    %4918 = vmatpush1.msra.mxu0 0.0
    %4919 = vmatprep.subr.mxu0 0.0
    %4920 = vmatpush1.msra.mxu0 0.0
    %4921 = vmatprep.subr.mxu0 0.0
    %4922 = vmatpush1.msra.mxu0 0.0
    %4923 = vmatprep.subr.mxu0 0.0
    %4924 = vmatpush1.msra.mxu0 0.0
    %4925 = vmatprep.subr.mxu0 0.0
    %4926 = vmatpush1.msra.mxu0 0.0
    %4927 = vmatprep.subr.mxu0 0.0
    %4928 = vmatpush1.msra.mxu0 0.0
    %4929 = vmatprep.subr.mxu0 0.0
    %4930 = vmatpush1.msra.mxu0 0.0
    %4931 = vmatprep.subr.mxu0 0.0
    %4932 = vmatpush1.msra.mxu0 0.0
    %4933 = vmatprep.subr.mxu0 0.0
    %4934 = vmatpush1.msra.mxu0 0.0
    %4935 = vmatprep.subr.mxu0 0.0
    %4936 = vmatpush1.msra.mxu0 0.0
    %4937 = vmatprep.subr.mxu0 0.0
    %4938 = vmatpush1.msra.mxu0 0.0
    %4939 = vmatprep.subr.mxu0 0.0
    %4940 = vmatpush1.msra.mxu0 0.0
    %4941 = vmatprep.subr.mxu0 0.0
    %4942 = vmatpush1.msra.mxu0 0.0
    %4943 = vmatprep.subr.mxu0 0.0
    %4944 = vmatpush1.msra.mxu0 0.0
    %4945 = vmatprep.subr.mxu0 0.0
    %4946 = vmatpush1.msra.mxu0 0.0
    %4947 = vmatprep.subr.mxu0 0.0
    %4948 = vmatpush1.msra.mxu0 0.0
    %4949 = vmatprep.subr.mxu0 0.0
    %4950 = vmatpush1.msra.mxu0 0.0
    %4951 = vmatprep.subr.mxu0 0.0
    %4952 = vmatpush1.msra.mxu0 0.0
    %4953 = vmatprep.subr.mxu0 0.0
    %4954 = vmatpush1.msra.mxu0 0.0
    %4955 = vmatprep.subr.mxu0 0.0
    %4956 = vmatpush1.msra.mxu0 0.0
    %4957 = vmatprep.subr.mxu0 0.0
    %4958 = vmatpush1.msra.mxu0 0.0
    %4959 = vmatprep.subr.mxu0 0.0
    %4960 = vmatpush1.msra.mxu0 0.0
    %4961 = vmatprep.subr.mxu0 0.0
    %4962 = vmatpush1.msra.mxu0 0.0
    %4963 = vmatprep.subr.mxu0 0.0
    %4964 = vmatpush1.msra.mxu0 0.0
    %4965 = vmatprep.subr.mxu0 0.0
    %4966 = vmatpush1.msra.mxu0 0.0
    %4967 = vmatprep.mubr.f32.mxu0 0.0
    %4968 = vmatmul.mubr.f32.gmra.mrb[0].mxu0 %v4889
    %v4969 = vpop.f32.mrb[0].mxu0
    %v4970 = vadd.f32 0.0, %v4969
    %v4971 = vpop.f32.mrb[0].mxu0
    %v4972 = vadd.f32 0.0, %v4971
    %4973 = vdwg.mxu0
    %4974 = vmatprep.subr.mxu0 %v4884
    %4975 = vmatpush1.msra.mxu0 %v4883
    %4976 = vmatprep.subr.mxu0 %v4901
    %4977 = vmatpush1.msra.mxu0 %v4898
    %4978 = vmatprep.subr.mxu0 0.0
    %4979 = vmatpush1.msra.mxu0 0.0
    %4980 = vmatprep.subr.mxu0 0.0
    %4981 = vmatpush1.msra.mxu0 0.0
    %4982 = vmatprep.subr.mxu0 0.0
    %4983 = vmatpush1.msra.mxu0 0.0
    %4984 = vmatprep.subr.mxu0 0.0
    %4985 = vmatpush1.msra.mxu0 0.0
    %4986 = vmatprep.subr.mxu0 0.0
    %4987 = vmatpush1.msra.mxu0 0.0
    %4988 = vmatprep.subr.mxu0 0.0
    %4989 = vmatpush1.msra.mxu0 0.0
    %4990 = vmatprep.subr.mxu0 0.0
    %4991 = vmatpush1.msra.mxu0 0.0
    %4992 = vmatprep.subr.mxu0 0.0
    %4993 = vmatpush1.msra.mxu0 0.0
    %4994 = vmatprep.subr.mxu0 0.0
    %4995 = vmatpush1.msra.mxu0 0.0
    %4996 = vmatprep.subr.mxu0 0.0
    %4997 = vmatpush1.msra.mxu0 0.0
    %4998 = vmatprep.subr.mxu0 0.0
    %4999 = vmatpush1.msra.mxu0 0.0
    %5000 = vmatprep.subr.mxu0 0.0
    %5001 = vmatpush1.msra.mxu0 0.0
    %5002 = vmatprep.subr.mxu0 0.0
    %5003 = vmatpush1.msra.mxu0 0.0
    %5004 = vmatprep.subr.mxu0 0.0
    %5005 = vmatpush1.msra.mxu0 0.0
    %5006 = vmatprep.subr.mxu0 0.0
    %5007 = vmatpush1.msra.mxu0 0.0
    %5008 = vmatprep.subr.mxu0 0.0
    %5009 = vmatpush1.msra.mxu0 0.0
    %5010 = vmatprep.subr.mxu0 0.0
    %5011 = vmatpush1.msra.mxu0 0.0
    %5012 = vmatprep.subr.mxu0 0.0
    %5013 = vmatpush1.msra.mxu0 0.0
    %5014 = vmatprep.subr.mxu0 0.0
    %5015 = vmatpush1.msra.mxu0 0.0
    %5016 = vmatprep.subr.mxu0 0.0
    %5017 = vmatpush1.msra.mxu0 0.0
    %5018 = vmatprep.subr.mxu0 0.0
    %5019 = vmatpush1.msra.mxu0 0.0
    %5020 = vmatprep.subr.mxu0 0.0
    %5021 = vmatpush1.msra.mxu0 0.0
    %5022 = vmatprep.subr.mxu0 0.0
    %5023 = vmatpush1.msra.mxu0 0.0
    %5024 = vmatprep.subr.mxu0 0.0
    %5025 = vmatpush1.msra.mxu0 0.0
    %5026 = vmatprep.subr.mxu0 0.0
    %5027 = vmatpush1.msra.mxu0 0.0
    %5028 = vmatprep.subr.mxu0 0.0
    %5029 = vmatpush1.msra.mxu0 0.0
    %5030 = vmatprep.subr.mxu0 0.0
    %5031 = vmatpush1.msra.mxu0 0.0
    %5032 = vmatprep.subr.mxu0 0.0
    %5033 = vmatpush1.msra.mxu0 0.0
    %5034 = vmatprep.subr.mxu0 0.0
    %5035 = vmatpush1.msra.mxu0 0.0
    %5036 = vmatprep.subr.mxu0 0.0
    %5037 = vmatpush1.msra.mxu0 0.0
    %5038 = vmatprep.mubr.f32.mxu0 0.0
    %5039 = vmatmul.mubr.f32.gmra.mrb[0].mxu0 %v4889
    %v5040 = vpop.f32.mrb[0].mxu0
    %v5041 = vadd.f32 0.0, %v5040
    %v5042 = vpop.f32.mrb[0].mxu0
    %v5043 = vadd.f32 0.0, %v5042
    %5044 = vdwg.mxu0
    %v5047 = vrot.slane %v5041, 6
    %v5048 = vrot.slane %v5043, 6
    %v5051 = vsel %vm1685, %v4970, %v5047
    %v5052 = vsel %vm1685, %v4972, %v5048
    %5053 = vmatprep.subr.mxu0 0.0
    %5054 = vmatpush1.msra.mxu0 %v4803
    %5055 = vmatprep.subr.mxu0 0.0
    %5056 = vmatpush1.msra.mxu0 %v4804
    %5057 = vmatprep.subr.mxu0 0.0
    %5058 = vmatpush1.msra.mxu0 %v4805
    %5059 = vmatprep.subr.mxu0 0.0
    %5060 = vmatpush1.msra.mxu0 %v4806
    %5061 = vmatprep.subr.mxu0 0.0
    %5062 = vmatpush1.msra.mxu0 %v4807
    %5063 = vmatprep.subr.mxu0 0.0
    %5064 = vmatpush1.msra.mxu0 %v4808
    %5065 = vmatprep.subr.mxu0 0.0
    %5066 = vmatpush1.msra.mxu0 %v4809
    %5067 = vmatprep.subr.mxu0 0.0
    %5068 = vmatpush1.msra.mxu0 %v4810
    %5069 = vmatprep.subr.mxu0 0.0
    %5070 = vmatpush1.msra.mxu0 %v4811
    %5071 = vmatprep.subr.mxu0 0.0
    %5072 = vmatpush1.msra.mxu0 %v4812
    %5073 = vmatprep.subr.mxu0 0.0
    %5074 = vmatpush1.msra.mxu0 %v4813
    %5075 = vmatprep.subr.mxu0 0.0
    %5076 = vmatpush1.msra.mxu0 %v4814
    %5077 = vmatprep.subr.mxu0 0.0
    %5078 = vmatpush1.msra.mxu0 %v4815
    %5079 = vmatprep.subr.mxu0 0.0
    %5080 = vmatpush1.msra.mxu0 %v4816
    %5081 = vmatprep.subr.mxu0 0.0
    %5082 = vmatpush1.msra.mxu0 %v4817
    %5083 = vmatprep.subr.mxu0 0.0
    %5084 = vmatpush1.msra.mxu0 %v4818
    %5085 = vmatprep.subr.mxu0 0.0
    %5086 = vmatpush1.msra.mxu0 %v4819
    %5087 = vmatprep.subr.mxu0 0.0
    %5088 = vmatpush1.msra.mxu0 %v4820
    %5089 = vmatprep.subr.mxu0 0.0
    %5090 = vmatpush1.msra.mxu0 %v4821
    %5091 = vmatprep.subr.mxu0 0.0
    %5092 = vmatpush1.msra.mxu0 %v4822
    %5093 = vmatprep.subr.mxu0 0.0
    %5094 = vmatpush1.msra.mxu0 %v4823
    %5095 = vmatprep.subr.mxu0 0.0
    %5096 = vmatpush1.msra.mxu0 %v4824
    %5097 = vmatprep.subr.mxu0 0.0
    %5098 = vmatpush1.msra.mxu0 %v4825
    %5099 = vmatprep.subr.mxu0 0.0
    %5100 = vmatpush1.msra.mxu0 %v4826
    %5101 = vmatprep.subr.mxu0 0.0
    %5102 = vmatpush1.msra.mxu0 %v4827
    %5103 = vmatprep.subr.mxu0 0.0
    %5104 = vmatpush1.msra.mxu0 %v4828
    %5105 = vmatprep.subr.mxu0 0.0
    %5106 = vmatpush1.msra.mxu0 %v4829
    %5107 = vmatprep.subr.mxu0 0.0
    %5108 = vmatpush1.msra.mxu0 %v4830
    %5109 = vmatprep.subr.mxu0 0.0
    %5110 = vmatpush1.msra.mxu0 %v4831
    %5111 = vmatprep.subr.mxu0 0.0
    %5112 = vmatpush1.msra.mxu0 %v4832
    %5113 = vmatprep.subr.mxu0 0.0
    %5114 = vmatpush1.msra.mxu0 %v4833
    %5115 = vmatprep.subr.mxu0 0.0
    %5116 = vmatpush1.msra.mxu0 %v4834
    %5117 = vmatprep.mubr.f32.mxu0 %v5052
    %5118 = vmatmul.mubr.f32.gmra.mrb[0].mxu0 %v5051
    %v5119 = vpop.f32.mrb[0].mxu0
    %v5120 = vadd.f32 0.0, %v5119
    %v5121 = vpop.f32.mrb[0].mxu0
    %5122 = vdwg.mxu0
    %v5123 = vmul.f32 %v5120, 0.03125
    %v5124 = vmul.f32 %v5123, %v5123
    %v5126 = vrot.slane %v5124, 6
    %v5128 = vsub.f32 %v5123, %v5126
    %v5129 = vmax.f32 %v5128, 0.0
    %v5130 = vadd.f32 %v5129, 1e-05
    %v5131 = vrsqrt.pop %v5130
    %v5133 = vrot.slane %v5131, 2
    %v5136 = vrot.slane %v5123, 6
    %v5138 = vsel %vm1685, %v5133, %v5136
    %vm5139 = vcmask 261120
    %v5141 = vsel %vm5139, %v5138, 0
    %5143 = vmatprep.subr.mxu0 %v4876
    %5144 = vmatpush1.msra.mxu0 %v4875
    %5145 = vmatprep.subr.mxu0 %v4878
    %5146 = vmatpush1.msra.mxu0 %v4877
    %5147 = vmatprep.subr.mxu0 %v4880
    %5148 = vmatpush1.msra.mxu0 %v4879
    %5149 = vmatprep.subr.mxu0 %v4882
    %5150 = vmatpush1.msra.mxu0 %v4881
    %5151 = vmatprep.subr.mxu0 0.0
    %5152 = vmatpush1.msra.mxu0 0.0
    %5153 = vmatprep.subr.mxu0 0.0
    %5154 = vmatpush1.msra.mxu0 0.0
    %5155 = vmatprep.subr.mxu0 0.0
    %5156 = vmatpush1.msra.mxu0 0.0
    %5157 = vmatprep.subr.mxu0 0.0
    %5158 = vmatpush1.msra.mxu0 0.0
    %5159 = vmatprep.subr.mxu0 0.0
    %5160 = vmatpush1.msra.mxu0 0.0
    %5161 = vmatprep.subr.mxu0 0.0
    %5162 = vmatpush1.msra.mxu0 0.0
    %5163 = vmatprep.subr.mxu0 0.0
    %5164 = vmatpush1.msra.mxu0 0.0
    %5165 = vmatprep.subr.mxu0 0.0
    %5166 = vmatpush1.msra.mxu0 0.0
    %5167 = vmatprep.subr.mxu0 0.0
    %5168 = vmatpush1.msra.mxu0 0.0
    %5169 = vmatprep.subr.mxu0 0.0
    %5170 = vmatpush1.msra.mxu0 0.0
    %5171 = vmatprep.subr.mxu0 0.0
    %5172 = vmatpush1.msra.mxu0 0.0
    %5173 = vmatprep.subr.mxu0 0.0
    %5174 = vmatpush1.msra.mxu0 0.0
    %5175 = vmatprep.subr.mxu0 0.0
    %5176 = vmatpush1.msra.mxu0 0.0
    %5177 = vmatprep.subr.mxu0 0.0
    %5178 = vmatpush1.msra.mxu0 0.0
    %5179 = vmatprep.subr.mxu0 0.0
    %5180 = vmatpush1.msra.mxu0 0.0
    %5181 = vmatprep.subr.mxu0 0.0
    %5182 = vmatpush1.msra.mxu0 0.0
    %5183 = vmatprep.subr.mxu0 0.0
    %5184 = vmatpush1.msra.mxu0 0.0
    %5185 = vmatprep.subr.mxu0 0.0
    %5186 = vmatpush1.msra.mxu0 0.0
    %5187 = vmatprep.subr.mxu0 0.0
    %5188 = vmatpush1.msra.mxu0 0.0
    %5189 = vmatprep.subr.mxu0 0.0
    %5190 = vmatpush1.msra.mxu0 0.0
    %5191 = vmatprep.subr.mxu0 0.0
    %5192 = vmatpush1.msra.mxu0 0.0
    %5193 = vmatprep.subr.mxu0 0.0
    %5194 = vmatpush1.msra.mxu0 0.0
    %5195 = vmatprep.subr.mxu0 0.0
    %5196 = vmatpush1.msra.mxu0 0.0
    %5197 = vmatprep.subr.mxu0 0.0
    %5198 = vmatpush1.msra.mxu0 0.0
    %5199 = vmatprep.subr.mxu0 0.0
    %5200 = vmatpush1.msra.mxu0 0.0
    %5201 = vmatprep.subr.mxu0 0.0
    %5202 = vmatpush1.msra.mxu0 0.0
    %5203 = vmatprep.subr.mxu0 0.0
    %5204 = vmatpush1.msra.mxu0 0.0
    %5205 = vmatprep.subr.mxu0 0.0
    %5206 = vmatpush1.msra.mxu0 0.0
    %5207 = vmatprep.mubr.f32.mxu0 0.0
    %5208 = vmatmul.mubr.f32.gmra.mrb[0].mxu0 %v5141
    %v5209 = vpop.f32.mrb[0].mxu0
    %v5210 = vadd.f32 0.0, %v5209
    %v5211 = vpop.f32.mrb[0].mxu0
    %v5212 = vadd.f32 0.0, %v5211
    %5213 = vdwg.mxu0
    %v5215 = vlaneseq
    %v5216 = vshrl.u32 %v5215, 7
    %v5217 = vsub.s32 0, %v5216
    %v5218 = vrot.slane %v4452, %v5217
    %v5219 = vlaneseq
    %v5220 = vshrl.u32 %v5219, 7
    %v5221 = vsub.s32 1, %v5220
    %v5222 = vrot.slane %v4452, %v5221
    %v5225 = vmul.f32 %v5210, %v5218
    %v5226 = vmul.f32 %v5212, %v5222
    %v5229 = vrot.slane %v5225, 6
    %v5230 = vrot.slane %v5226, 6
    %v5233 = vmul.f32 %v5210, %v5229
    %v5234 = vmul.f32 %v5212, %v5230
    %v5236 = vlaneseq
    %v5237 = vshrl.u32 %v5236, 7
    %v5238 = vsub.s32 0, %v5237
    %v5239 = vrot.slane %v4454, %v5238
    %v5240 = vlaneseq
    %v5241 = vshrl.u32 %v5240, 7
    %v5242 = vsub.s32 1, %v5241
    %v5243 = vrot.slane %v4454, %v5242
    %v5246 = vsub.f32 %v5239, %v5233
    %v5247 = vsub.f32 %v5243, %v5234
    %v5250 = vrot.slane %v5246, 2
    %v5251 = vrot.slane %v5247, 2
    %v5253 = vsel %vm2047, %v4641, 0
    %v5256 = vsel %vm2047, %v4642, 0
    %v5258 = vsel %vm1685, %v5225, 0
    %v5260 = vsel %vm1685, %v5226, 0
    %v5262 = vsel %vm1685, %v5250, 0
    %v5264 = vsel %vm1685, %v5251, 0
    %5266 = vmatprep.subr.mxu0 %v5260
    %5267 = vmatpush1.msra.mxu0 %v5258
    %5268 = vmatprep.subr.mxu0 0.0
    %5269 = vmatpush1.msra.mxu0 0.0
    %5270 = vmatprep.subr.mxu0 0.0
    %5271 = vmatpush1.msra.mxu0 0.0
    %5272 = vmatprep.subr.mxu0 0.0
    %5273 = vmatpush1.msra.mxu0 0.0
    %5274 = vmatprep.subr.mxu0 0.0
    %5275 = vmatpush1.msra.mxu0 0.0
    %5276 = vmatprep.subr.mxu0 0.0
    %5277 = vmatpush1.msra.mxu0 0.0
    %5278 = vmatprep.subr.mxu0 0.0
    %5279 = vmatpush1.msra.mxu0 0.0
    %5280 = vmatprep.subr.mxu0 0.0
    %5281 = vmatpush1.msra.mxu0 0.0
    %5282 = vmatprep.subr.mxu0 0.0
    %5283 = vmatpush1.msra.mxu0 0.0
    %5284 = vmatprep.subr.mxu0 0.0
    %5285 = vmatpush1.msra.mxu0 0.0
    %5286 = vmatprep.subr.mxu0 0.0
    %5287 = vmatpush1.msra.mxu0 0.0
    %5288 = vmatprep.subr.mxu0 0.0
    %5289 = vmatpush1.msra.mxu0 0.0
    %5290 = vmatprep.subr.mxu0 0.0
    %5291 = vmatpush1.msra.mxu0 0.0
    %5292 = vmatprep.subr.mxu0 0.0
    %5293 = vmatpush1.msra.mxu0 0.0
    %5294 = vmatprep.subr.mxu0 0.0
    %5295 = vmatpush1.msra.mxu0 0.0
    %5296 = vmatprep.subr.mxu0 0.0
    %5297 = vmatpush1.msra.mxu0 0.0
    %5298 = vmatprep.subr.mxu0 0.0
    %5299 = vmatpush1.msra.mxu0 0.0
    %5300 = vmatprep.subr.mxu0 0.0
    %5301 = vmatpush1.msra.mxu0 0.0
    %5302 = vmatprep.subr.mxu0 0.0
    %5303 = vmatpush1.msra.mxu0 0.0
    %5304 = vmatprep.subr.mxu0 0.0
    %5305 = vmatpush1.msra.mxu0 0.0
    %5306 = vmatprep.subr.mxu0 0.0
    %5307 = vmatpush1.msra.mxu0 0.0
    %5308 = vmatprep.subr.mxu0 0.0
    %5309 = vmatpush1.msra.mxu0 0.0
    %5310 = vmatprep.subr.mxu0 0.0
    %5311 = vmatpush1.msra.mxu0 0.0
    %5312 = vmatprep.subr.mxu0 0.0
    %5313 = vmatpush1.msra.mxu0 0.0
    %5314 = vmatprep.subr.mxu0 0.0
    %5315 = vmatpush1.msra.mxu0 0.0
    %5316 = vmatprep.subr.mxu0 0.0
    %5317 = vmatpush1.msra.mxu0 0.0
    %5318 = vmatprep.subr.mxu0 0.0
    %5319 = vmatpush1.msra.mxu0 0.0
    %5320 = vmatprep.subr.mxu0 0.0
    %5321 = vmatpush1.msra.mxu0 0.0
    %5322 = vmatprep.subr.mxu0 0.0
    %5323 = vmatpush1.msra.mxu0 0.0
    %5324 = vmatprep.subr.mxu0 0.0
    %5325 = vmatpush1.msra.mxu0 0.0
    %5326 = vmatprep.subr.mxu0 0.0
    %5327 = vmatpush1.msra.mxu0 0.0
    %5328 = vmatprep.subr.mxu0 0.0
    %5329 = vmatpush1.msra.mxu0 0.0
    %5330 = vmatprep.mubr.f32.mxu0 0.0
    %5331 = vmatmul.mubr.f32.gmra.mrb[0].mxu0 %v5253
    %v5332 = vpop.f32.mrb[0].mxu0
    %v5333 = vadd.f32 0.0, %v5332
    %v5334 = vpop.f32.mrb[0].mxu0
    %v5335 = vadd.f32 0.0, %v5334
    %5336 = vmatprep.mubr.f32.mxu0 0.0
    %5337 = vmatmul.mubr.f32.gmra.mrb[0].mxu0 %v5256
    %v5338 = vpop.f32.mrb[0].mxu0
    %v5339 = vadd.f32 0.0, %v5338
    %v5340 = vpop.f32.mrb[0].mxu0
    %v5341 = vadd.f32 0.0, %v5340
    %5342 = vdwg.mxu0
    %5343 = vmatprep.subr.mxu0 %v5264
    %5344 = vmatpush1.msra.mxu0 %v5262
    %5345 = vmatprep.subr.mxu0 0.0
    %5346 = vmatpush1.msra.mxu0 0.0
    %5347 = vmatprep.subr.mxu0 0.0
    %5348 = vmatpush1.msra.mxu0 0.0
    %5349 = vmatprep.subr.mxu0 0.0
    %5350 = vmatpush1.msra.mxu0 0.0
    %5351 = vmatprep.subr.mxu0 0.0
    %5352 = vmatpush1.msra.mxu0 0.0
    %5353 = vmatprep.subr.mxu0 0.0
    %5354 = vmatpush1.msra.mxu0 0.0
    %5355 = vmatprep.subr.mxu0 0.0
    %5356 = vmatpush1.msra.mxu0 0.0
    %5357 = vmatprep.subr.mxu0 0.0
    %5358 = vmatpush1.msra.mxu0 0.0
    %5359 = vmatprep.subr.mxu0 0.0
    %5360 = vmatpush1.msra.mxu0 0.0
    %5361 = vmatprep.subr.mxu0 0.0
    %5362 = vmatpush1.msra.mxu0 0.0
    %5363 = vmatprep.subr.mxu0 0.0
    %5364 = vmatpush1.msra.mxu0 0.0
    %5365 = vmatprep.subr.mxu0 0.0
    %5366 = vmatpush1.msra.mxu0 0.0
    %5367 = vmatprep.subr.mxu0 0.0
    %5368 = vmatpush1.msra.mxu0 0.0
    %5369 = vmatprep.subr.mxu0 0.0
    %5370 = vmatpush1.msra.mxu0 0.0
    %5371 = vmatprep.subr.mxu0 0.0
    %5372 = vmatpush1.msra.mxu0 0.0
    %5373 = vmatprep.subr.mxu0 0.0
    %5374 = vmatpush1.msra.mxu0 0.0
    %5375 = vmatprep.subr.mxu0 0.0
    %5376 = vmatpush1.msra.mxu0 0.0
    %5377 = vmatprep.subr.mxu0 0.0
    %5378 = vmatpush1.msra.mxu0 0.0
    %5379 = vmatprep.subr.mxu0 0.0
    %5380 = vmatpush1.msra.mxu0 0.0
    %5381 = vmatprep.subr.mxu0 0.0
    %5382 = vmatpush1.msra.mxu0 0.0
    %5383 = vmatprep.subr.mxu0 0.0
    %5384 = vmatpush1.msra.mxu0 0.0
    %5385 = vmatprep.subr.mxu0 0.0
    %5386 = vmatpush1.msra.mxu0 0.0
    %5387 = vmatprep.subr.mxu0 0.0
    %5388 = vmatpush1.msra.mxu0 0.0
    %5389 = vmatprep.subr.mxu0 0.0
    %5390 = vmatpush1.msra.mxu0 0.0
    %5391 = vmatprep.subr.mxu0 0.0
    %5392 = vmatpush1.msra.mxu0 0.0
    %5393 = vmatprep.subr.mxu0 0.0
    %5394 = vmatpush1.msra.mxu0 0.0
    %5395 = vmatprep.subr.mxu0 0.0
    %5396 = vmatpush1.msra.mxu0 0.0
    %5397 = vmatprep.subr.mxu0 0.0
    %5398 = vmatpush1.msra.mxu0 0.0
    %5399 = vmatprep.subr.mxu0 0.0
    %5400 = vmatpush1.msra.mxu0 0.0
    %5401 = vmatprep.subr.mxu0 0.0
    %5402 = vmatpush1.msra.mxu0 0.0
    %5403 = vmatprep.subr.mxu0 0.0
    %5404 = vmatpush1.msra.mxu0 0.0
    %5405 = vmatprep.subr.mxu0 0.0
    %5406 = vmatpush1.msra.mxu0 0.0
    %5407 = vmatprep.mubr.f32.mxu0 0.0
    %5408 = vmatmul.mubr.f32.gmra.mrb[0].mxu0 %v5253
    %v5409 = vpop.f32.mrb[0].mxu0
    %v5410 = vadd.f32 0.0, %v5409
    %v5411 = vpop.f32.mrb[0].mxu0
    %v5412 = vadd.f32 0.0, %v5411
    %5413 = vmatprep.mubr.f32.mxu0 0.0
    %5414 = vmatmul.mubr.f32.gmra.mrb[0].mxu0 %v5256
    %v5415 = vpop.f32.mrb[0].mxu0
    %v5416 = vadd.f32 0.0, %v5415
    %v5417 = vpop.f32.mrb[0].mxu0
    %v5418 = vadd.f32 0.0, %v5417
    %5419 = vdwg.mxu0
    %v5420 = vmul.f32 %v4615, %v5333
    %v5421 = vmul.f32 %v4617, %v5335
    %v5422 = vmul.f32 %v4619, %v5339
    %v5423 = vmul.f32 %v4621, %v5341
    %v5424 = vadd.f32 %v5420, %v5410
    %v5425 = vadd.f32 %v5421, %v5412
    %v5426 = vadd.f32 %v5422, %v5416
    %v5427 = vadd.f32 %v5423, %v5418
    %vm5428 = vcmp.ge.s32.totalorder %v1390, 0
    %vm5429 = vcmp.lt.s32.totalorder %v1390, 2
    %vm5430 = vmand %vm5428, %vm5429
    %vm5431 = vcmp.eq.s32.totalorder %v1388, %v1658
    %vm5432 = vmand %vm5430, %vm5431
    %v5433 = vsel %vm5432, 1, 0
    %v5434 = vcvt.s32.f32 %v5433
    %vm5435 = vcmp.ge.s32.totalorder %v1390, 2
    %vm5436 = vcmp.lt.s32.totalorder %v1390, 4
    %vm5437 = vmand %vm5435, %vm5436
    %v5438 = vsub.s32 %v1390, 2
    %v5439 = vmul.u32 %v5438, 2
    %v5440 = vadd.s32 %v5439, 6
    %vm5441 = vcmp.eq.s32.totalorder %v1388, %v5440
    %vm5442 = vmand %vm5437, %vm5441
    %v5443 = vsel %vm5442, 1, 0
    %v5444 = vcvt.s32.f32 %v5443
    %v5445 = vadd.f32 %v5434, %v5444
    %v5447 = vsel %vm4887, %v5445, 0
    %v5450 = vsel %vm1685, %v5426, 0
    %v5453 = vsel %vm1685, %v5427, 0
    %5455 = vmatprep.subr.mxu0 %v5425
    %5456 = vmatpush1.msra.mxu0 %v5424
    %5457 = vmatprep.subr.mxu0 %v5453
    %5458 = vmatpush1.msra.mxu0 %v5450
    %5459 = vmatprep.subr.mxu0 0.0
    %5460 = vmatpush1.msra.mxu0 0.0
    %5461 = vmatprep.subr.mxu0 0.0
    %5462 = vmatpush1.msra.mxu0 0.0
    %5463 = vmatprep.subr.mxu0 0.0
    %5464 = vmatpush1.msra.mxu0 0.0
    %5465 = vmatprep.subr.mxu0 0.0
    %5466 = vmatpush1.msra.mxu0 0.0
    %5467 = vmatprep.subr.mxu0 0.0
    %5468 = vmatpush1.msra.mxu0 0.0
    %5469 = vmatprep.subr.mxu0 0.0
    %5470 = vmatpush1.msra.mxu0 0.0
    %5471 = vmatprep.subr.mxu0 0.0
    %5472 = vmatpush1.msra.mxu0 0.0
    %5473 = vmatprep.subr.mxu0 0.0
    %5474 = vmatpush1.msra.mxu0 0.0
    %5475 = vmatprep.subr.mxu0 0.0
    %5476 = vmatpush1.msra.mxu0 0.0
    %5477 = vmatprep.subr.mxu0 0.0
    %5478 = vmatpush1.msra.mxu0 0.0
    %5479 = vmatprep.subr.mxu0 0.0
    %5480 = vmatpush1.msra.mxu0 0.0
    %5481 = vmatprep.subr.mxu0 0.0
    %5482 = vmatpush1.msra.mxu0 0.0
    %5483 = vmatprep.subr.mxu0 0.0
    %5484 = vmatpush1.msra.mxu0 0.0
    %5485 = vmatprep.subr.mxu0 0.0
    %5486 = vmatpush1.msra.mxu0 0.0
    %5487 = vmatprep.subr.mxu0 0.0
    %5488 = vmatpush1.msra.mxu0 0.0
    %5489 = vmatprep.subr.mxu0 0.0
    %5490 = vmatpush1.msra.mxu0 0.0
    %5491 = vmatprep.subr.mxu0 0.0
    %5492 = vmatpush1.msra.mxu0 0.0
    %5493 = vmatprep.subr.mxu0 0.0
    %5494 = vmatpush1.msra.mxu0 0.0
    %5495 = vmatprep.subr.mxu0 0.0
    %5496 = vmatpush1.msra.mxu0 0.0
    %5497 = vmatprep.subr.mxu0 0.0
    %5498 = vmatpush1.msra.mxu0 0.0
    %5499 = vmatprep.subr.mxu0 0.0
    %5500 = vmatpush1.msra.mxu0 0.0
    %5501 = vmatprep.subr.mxu0 0.0
    %5502 = vmatpush1.msra.mxu0 0.0
    %5503 = vmatprep.subr.mxu0 0.0
    %5504 = vmatpush1.msra.mxu0 0.0
    %5505 = vmatprep.subr.mxu0 0.0
    %5506 = vmatpush1.msra.mxu0 0.0
    %5507 = vmatprep.subr.mxu0 0.0
    %5508 = vmatpush1.msra.mxu0 0.0
    %5509 = vmatprep.subr.mxu0 0.0
    %5510 = vmatpush1.msra.mxu0 0.0
    %5511 = vmatprep.subr.mxu0 0.0
    %5512 = vmatpush1.msra.mxu0 0.0
    %5513 = vmatprep.subr.mxu0 0.0
    %5514 = vmatpush1.msra.mxu0 0.0
    %5515 = vmatprep.subr.mxu0 0.0
    %5516 = vmatpush1.msra.mxu0 0.0
    %5517 = vmatprep.subr.mxu0 0.0
    %5518 = vmatpush1.msra.mxu0 0.0
    %5519 = vmatprep.mubr.f32.mxu0 0.0
    %5520 = vmatmul.mubr.f32.gmra.mrb[0].mxu0 %v5447
    %v5521 = vpop.f32.mrb[0].mxu0
    %v5522 = vadd.f32 0.0, %v5521
    %v5523 = vpop.f32.mrb[0].mxu0
    %v5524 = vadd.f32 0.0, %v5523
    %5525 = vdwg.mxu0
    %v5526 = vadd.s32 %v1658, 1
    %vm5527 = vcmp.eq.s32.totalorder %v1388, %v5526
    %vm5528 = vmand %vm5430, %vm5527
    %v5529 = vsel %vm5528, 1, 0
    %v5530 = vcvt.s32.f32 %v5529
    %v5531 = vadd.s32 %v5440, 1
    %vm5532 = vcmp.eq.s32.totalorder %v1388, %v5531
    %vm5533 = vmand %vm5437, %vm5532
    %v5534 = vsel %vm5533, 1, 0
    %v5535 = vcvt.s32.f32 %v5534
    %v5536 = vadd.f32 %v5530, %v5535
    %v5538 = vsel %vm4887, %v5536, 0
    %5540 = vmatprep.subr.mxu0 %v5425
    %5541 = vmatpush1.msra.mxu0 %v5424
    %5542 = vmatprep.subr.mxu0 %v5453
    %5543 = vmatpush1.msra.mxu0 %v5450
    %5544 = vmatprep.subr.mxu0 0.0
    %5545 = vmatpush1.msra.mxu0 0.0
    %5546 = vmatprep.subr.mxu0 0.0
    %5547 = vmatpush1.msra.mxu0 0.0
    %5548 = vmatprep.subr.mxu0 0.0
    %5549 = vmatpush1.msra.mxu0 0.0
    %5550 = vmatprep.subr.mxu0 0.0
    %5551 = vmatpush1.msra.mxu0 0.0
    %5552 = vmatprep.subr.mxu0 0.0
    %5553 = vmatpush1.msra.mxu0 0.0
    %5554 = vmatprep.subr.mxu0 0.0
    %5555 = vmatpush1.msra.mxu0 0.0
    %5556 = vmatprep.subr.mxu0 0.0
    %5557 = vmatpush1.msra.mxu0 0.0
    %5558 = vmatprep.subr.mxu0 0.0
    %5559 = vmatpush1.msra.mxu0 0.0
    %5560 = vmatprep.subr.mxu0 0.0
    %5561 = vmatpush1.msra.mxu0 0.0
    %5562 = vmatprep.subr.mxu0 0.0
    %5563 = vmatpush1.msra.mxu0 0.0
    %5564 = vmatprep.subr.mxu0 0.0
    %5565 = vmatpush1.msra.mxu0 0.0
    %5566 = vmatprep.subr.mxu0 0.0
    %5567 = vmatpush1.msra.mxu0 0.0
    %5568 = vmatprep.subr.mxu0 0.0
    %5569 = vmatpush1.msra.mxu0 0.0
    %5570 = vmatprep.subr.mxu0 0.0
    %5571 = vmatpush1.msra.mxu0 0.0
    %5572 = vmatprep.subr.mxu0 0.0
    %5573 = vmatpush1.msra.mxu0 0.0
    %5574 = vmatprep.subr.mxu0 0.0
    %5575 = vmatpush1.msra.mxu0 0.0
    %5576 = vmatprep.subr.mxu0 0.0
    %5577 = vmatpush1.msra.mxu0 0.0
    %5578 = vmatprep.subr.mxu0 0.0
    %5579 = vmatpush1.msra.mxu0 0.0
    %5580 = vmatprep.subr.mxu0 0.0
    %5581 = vmatpush1.msra.mxu0 0.0
    %5582 = vmatprep.subr.mxu0 0.0
    %5583 = vmatpush1.msra.mxu0 0.0
    %5584 = vmatprep.subr.mxu0 0.0
    %5585 = vmatpush1.msra.mxu0 0.0
    %5586 = vmatprep.subr.mxu0 0.0
    %5587 = vmatpush1.msra.mxu0 0.0
    %5588 = vmatprep.subr.mxu0 0.0
    %5589 = vmatpush1.msra.mxu0 0.0
    %5590 = vmatprep.subr.mxu0 0.0
    %5591 = vmatpush1.msra.mxu0 0.0
    %5592 = vmatprep.subr.mxu0 0.0
    %5593 = vmatpush1.msra.mxu0 0.0
    %5594 = vmatprep.subr.mxu0 0.0
    %5595 = vmatpush1.msra.mxu0 0.0
    %5596 = vmatprep.subr.mxu0 0.0
    %5597 = vmatpush1.msra.mxu0 0.0
    %5598 = vmatprep.subr.mxu0 0.0
    %5599 = vmatpush1.msra.mxu0 0.0
    %5600 = vmatprep.subr.mxu0 0.0
    %5601 = vmatpush1.msra.mxu0 0.0
    %5602 = vmatprep.subr.mxu0 0.0
    %5603 = vmatpush1.msra.mxu0 0.0
    %5604 = vmatprep.mubr.f32.mxu0 0.0
    %5605 = vmatmul.mubr.f32.gmra.mrb[0].mxu0 %v5538
    %v5606 = vpop.f32.mrb[0].mxu0
    %v5607 = vadd.f32 0.0, %v5606
    %v5608 = vpop.f32.mrb[0].mxu0
    %v5609 = vadd.f32 0.0, %v5608
    %5610 = vdwg.mxu0
    %v5611 = vmax.f32 %v5522, %v5607
    %v5612 = vmax.f32 %v5524, %v5609
    %v5613 = vand.u32 %v2498, 63
    %v5614 = vand.u32 %v2499, 63
    %v5615 = vsub.s32 %v2502, %v5613
    %v5616 = vsub.s32 %v2503, %v5614
    %v5617 = vmul.u32 %v2494, 64
    %v5618 = vmul.u32 %v2495, 64
    %v5619 = vadd.s32 %v5615, %v5617
    %v5620 = vadd.s32 %v5616, %v5618
    %vm5621 = vcmp.eq.s32.totalorder %v1390, %v5619
    %vm5622 = vcmp.eq.s32.totalorder %v1390, %v5620
    %vm5623 = vcmp.eq.s32.totalorder %v1398, %v5619
    %vm5624 = vcmp.eq.s32.totalorder %v1398, %v5620
    %vm5625 = vcmp.eq.s32.totalorder %v1399, %v5619
    %vm5626 = vcmp.eq.s32.totalorder %v1399, %v5620
    %vm5627 = vcmp.eq.s32.totalorder %v1400, %v5619
    %vm5628 = vcmp.eq.s32.totalorder %v1400, %v5620
    %vm5629 = vcmp.eq.s32.totalorder %v1401, %v5619
    %vm5630 = vcmp.eq.s32.totalorder %v1401, %v5620
    %vm5631 = vcmp.eq.s32.totalorder %v1433, %v5619
    %vm5632 = vcmp.eq.s32.totalorder %v1433, %v5620
    %vm5633 = vcmp.eq.s32.totalorder %v1434, %v5619
    %vm5634 = vcmp.eq.s32.totalorder %v1434, %v5620
    %vm5635 = vcmp.eq.s32.totalorder %v1435, %v5619
    %vm5636 = vcmp.eq.s32.totalorder %v1435, %v5620
    %vm5637 = vcmp.eq.s32.totalorder %v1436, %v5619
    %vm5638 = vcmp.eq.s32.totalorder %v1436, %v5620
    %vm5639 = vcmp.eq.s32.totalorder %v1437, %v5619
    %vm5640 = vcmp.eq.s32.totalorder %v1437, %v5620
    %vm5641 = vcmp.eq.s32.totalorder %v1438, %v5619
    %vm5642 = vcmp.eq.s32.totalorder %v1438, %v5620
    %vm5643 = vcmp.eq.s32.totalorder %v1439, %v5619
    %vm5644 = vcmp.eq.s32.totalorder %v1439, %v5620
    %vm5645 = vcmp.eq.s32.totalorder %v1440, %v5619
    %vm5646 = vcmp.eq.s32.totalorder %v1440, %v5620
    %vm5647 = vcmp.eq.s32.totalorder %v1441, %v5619
    %vm5648 = vcmp.eq.s32.totalorder %v1441, %v5620
    %vm5649 = vcmp.eq.s32.totalorder %v1442, %v5619
    %vm5650 = vcmp.eq.s32.totalorder %v1442, %v5620
    %vm5651 = vcmp.eq.s32.totalorder %v1443, %v5619
    %vm5652 = vcmp.eq.s32.totalorder %v1443, %v5620
    %vm5653 = vcmp.eq.s32.totalorder %v1444, %v5619
    %vm5654 = vcmp.eq.s32.totalorder %v1444, %v5620
    %vm5655 = vcmp.eq.s32.totalorder %v1445, %v5619
    %vm5656 = vcmp.eq.s32.totalorder %v1445, %v5620
    %vm5657 = vcmp.eq.s32.totalorder %v1446, %v5619
    %vm5658 = vcmp.eq.s32.totalorder %v1446, %v5620
    %vm5659 = vcmp.eq.s32.totalorder %v1447, %v5619
    %vm5660 = vcmp.eq.s32.totalorder %v1447, %v5620
    %vm5661 = vcmp.eq.s32.totalorder %v1448, %v5619
    %vm5662 = vcmp.eq.s32.totalorder %v1448, %v5620
    %vm5663 = vcmp.eq.s32.totalorder %v1449, %v5619
    %vm5664 = vcmp.eq.s32.totalorder %v1449, %v5620
    %vm5665 = vcmp.eq.s32.totalorder %v1450, %v5619
    %vm5666 = vcmp.eq.s32.totalorder %v1450, %v5620
    %vm5667 = vcmp.eq.s32.totalorder %v1451, %v5619
    %vm5668 = vcmp.eq.s32.totalorder %v1451, %v5620
    %vm5669 = vcmp.eq.s32.totalorder %v1452, %v5619
    %vm5670 = vcmp.eq.s32.totalorder %v1452, %v5620
    %vm5671 = vcmp.eq.s32.totalorder %v1453, %v5619
    %vm5672 = vcmp.eq.s32.totalorder %v1453, %v5620
    %vm5673 = vcmp.eq.s32.totalorder %v1454, %v5619
    %vm5674 = vcmp.eq.s32.totalorder %v1454, %v5620
    %vm5675 = vcmp.eq.s32.totalorder %v1455, %v5619
    %vm5676 = vcmp.eq.s32.totalorder %v1455, %v5620
    %vm5677 = vcmp.eq.s32.totalorder %v1456, %v5619
    %vm5678 = vcmp.eq.s32.totalorder %v1456, %v5620
    %vm5679 = vcmp.eq.s32.totalorder %v1457, %v5619
    %vm5680 = vcmp.eq.s32.totalorder %v1457, %v5620
    %vm5681 = vcmp.eq.s32.totalorder %v1458, %v5619
    %vm5682 = vcmp.eq.s32.totalorder %v1458, %v5620
    %vm5683 = vcmp.eq.s32.totalorder %v1459, %v5619
    %vm5684 = vcmp.eq.s32.totalorder %v1459, %v5620
    %v5685 = vsel %vm5621, 1, 0
    %v5686 = vsel %vm5622, 1, 0
    %v5687 = vsel %vm5623, 1, 0
    %v5688 = vsel %vm5624, 1, 0
    %v5689 = vsel %vm5625, 1, 0
    %v5690 = vsel %vm5626, 1, 0
    %v5691 = vsel %vm5627, 1, 0
    %v5692 = vsel %vm5628, 1, 0
    %v5693 = vsel %vm5629, 1, 0
    %v5694 = vsel %vm5630, 1, 0
    %v5695 = vsel %vm5631, 1, 0
    %v5696 = vsel %vm5632, 1, 0
    %v5697 = vsel %vm5633, 1, 0
    %v5698 = vsel %vm5634, 1, 0
    %v5699 = vsel %vm5635, 1, 0
    %v5700 = vsel %vm5636, 1, 0
    %v5701 = vsel %vm5637, 1, 0
    %v5702 = vsel %vm5638, 1, 0
    %v5703 = vsel %vm5639, 1, 0
    %v5704 = vsel %vm5640, 1, 0
    %v5705 = vsel %vm5641, 1, 0
    %v5706 = vsel %vm5642, 1, 0
    %v5707 = vsel %vm5643, 1, 0
    %v5708 = vsel %vm5644, 1, 0
    %v5709 = vsel %vm5645, 1, 0
    %v5710 = vsel %vm5646, 1, 0
    %v5711 = vsel %vm5647, 1, 0
    %v5712 = vsel %vm5648, 1, 0
    %v5713 = vsel %vm5649, 1, 0
    %v5714 = vsel %vm5650, 1, 0
    %v5715 = vsel %vm5651, 1, 0
    %v5716 = vsel %vm5652, 1, 0
    %v5717 = vsel %vm5653, 1, 0
    %v5718 = vsel %vm5654, 1, 0
    %v5719 = vsel %vm5655, 1, 0
    %v5720 = vsel %vm5656, 1, 0
    %v5721 = vsel %vm5657, 1, 0
    %v5722 = vsel %vm5658, 1, 0
    %v5723 = vsel %vm5659, 1, 0
    %v5724 = vsel %vm5660, 1, 0
    %v5725 = vsel %vm5661, 1, 0
    %v5726 = vsel %vm5662, 1, 0
    %v5727 = vsel %vm5663, 1, 0
    %v5728 = vsel %vm5664, 1, 0
    %v5729 = vsel %vm5665, 1, 0
    %v5730 = vsel %vm5666, 1, 0
    %v5731 = vsel %vm5667, 1, 0
    %v5732 = vsel %vm5668, 1, 0
    %v5733 = vsel %vm5669, 1, 0
    %v5734 = vsel %vm5670, 1, 0
    %v5735 = vsel %vm5671, 1, 0
    %v5736 = vsel %vm5672, 1, 0
    %v5737 = vsel %vm5673, 1, 0
    %v5738 = vsel %vm5674, 1, 0
    %v5739 = vsel %vm5675, 1, 0
    %v5740 = vsel %vm5676, 1, 0
    %v5741 = vsel %vm5677, 1, 0
    %v5742 = vsel %vm5678, 1, 0
    %v5743 = vsel %vm5679, 1, 0
    %v5744 = vsel %vm5680, 1, 0
    %v5745 = vsel %vm5681, 1, 0
    %v5746 = vsel %vm5682, 1, 0
    %v5747 = vsel %vm5683, 1, 0
    %v5748 = vsel %vm5684, 1, 0
    %v5749 = vcvt.s32.f32 %v5685
    %v5750 = vcvt.s32.f32 %v5686
    %v5751 = vcvt.s32.f32 %v5687
    %v5752 = vcvt.s32.f32 %v5688
    %v5753 = vcvt.s32.f32 %v5689
    %v5754 = vcvt.s32.f32 %v5690
    %v5755 = vcvt.s32.f32 %v5691
    %v5756 = vcvt.s32.f32 %v5692
    %v5757 = vcvt.s32.f32 %v5693
    %v5758 = vcvt.s32.f32 %v5694
    %v5759 = vcvt.s32.f32 %v5695
    %v5760 = vcvt.s32.f32 %v5696
    %v5761 = vcvt.s32.f32 %v5697
    %v5762 = vcvt.s32.f32 %v5698
    %v5763 = vcvt.s32.f32 %v5699
    %v5764 = vcvt.s32.f32 %v5700
    %v5765 = vcvt.s32.f32 %v5701
    %v5766 = vcvt.s32.f32 %v5702
    %v5767 = vcvt.s32.f32 %v5703
    %v5768 = vcvt.s32.f32 %v5704
    %v5769 = vcvt.s32.f32 %v5705
    %v5770 = vcvt.s32.f32 %v5706
    %v5771 = vcvt.s32.f32 %v5707
    %v5772 = vcvt.s32.f32 %v5708
    %v5773 = vcvt.s32.f32 %v5709
    %v5774 = vcvt.s32.f32 %v5710
    %v5775 = vcvt.s32.f32 %v5711
    %v5776 = vcvt.s32.f32 %v5712
    %v5777 = vcvt.s32.f32 %v5713
    %v5778 = vcvt.s32.f32 %v5714
    %v5779 = vcvt.s32.f32 %v5715
    %v5780 = vcvt.s32.f32 %v5716
    %v5781 = vcvt.s32.f32 %v5717
    %v5782 = vcvt.s32.f32 %v5718
    %v5783 = vcvt.s32.f32 %v5719
    %v5784 = vcvt.s32.f32 %v5720
    %v5785 = vcvt.s32.f32 %v5721
    %v5786 = vcvt.s32.f32 %v5722
    %v5787 = vcvt.s32.f32 %v5723
    %v5788 = vcvt.s32.f32 %v5724
    %v5789 = vcvt.s32.f32 %v5725
    %v5790 = vcvt.s32.f32 %v5726
    %v5791 = vcvt.s32.f32 %v5727
    %v5792 = vcvt.s32.f32 %v5728
    %v5793 = vcvt.s32.f32 %v5729
    %v5794 = vcvt.s32.f32 %v5730
    %v5795 = vcvt.s32.f32 %v5731
    %v5796 = vcvt.s32.f32 %v5732
    %v5797 = vcvt.s32.f32 %v5733
    %v5798 = vcvt.s32.f32 %v5734
    %v5799 = vcvt.s32.f32 %v5735
    %v5800 = vcvt.s32.f32 %v5736
    %v5801 = vcvt.s32.f32 %v5737
    %v5802 = vcvt.s32.f32 %v5738
    %v5803 = vcvt.s32.f32 %v5739
    %v5804 = vcvt.s32.f32 %v5740
    %v5805 = vcvt.s32.f32 %v5741
    %v5806 = vcvt.s32.f32 %v5742
    %v5807 = vcvt.s32.f32 %v5743
    %v5808 = vcvt.s32.f32 %v5744
    %v5809 = vcvt.s32.f32 %v5745
    %v5810 = vcvt.s32.f32 %v5746
    %v5811 = vcvt.s32.f32 %v5747
    %v5812 = vcvt.s32.f32 %v5748
    %5813 = vmatprep.subr.mxu0 %v5750
    %5814 = vmatpush1.msra.mxu0 %v5749
    %5815 = vmatprep.subr.mxu0 %v5752
    %5816 = vmatpush1.msra.mxu0 %v5751
    %5817 = vmatprep.subr.mxu0 %v5754
    %5818 = vmatpush1.msra.mxu0 %v5753
    %5819 = vmatprep.subr.mxu0 %v5756
    %5820 = vmatpush1.msra.mxu0 %v5755
    %5821 = vmatprep.subr.mxu0 %v5758
    %5822 = vmatpush1.msra.mxu0 %v5757
    %5823 = vmatprep.subr.mxu0 %v5760
    %5824 = vmatpush1.msra.mxu0 %v5759
    %5825 = vmatprep.subr.mxu0 %v5762
    %5826 = vmatpush1.msra.mxu0 %v5761
    %5827 = vmatprep.subr.mxu0 %v5764
    %5828 = vmatpush1.msra.mxu0 %v5763
    %5829 = vmatprep.subr.mxu0 %v5766
    %5830 = vmatpush1.msra.mxu0 %v5765
    %5831 = vmatprep.subr.mxu0 %v5768
    %5832 = vmatpush1.msra.mxu0 %v5767
    %5833 = vmatprep.subr.mxu0 %v5770
    %5834 = vmatpush1.msra.mxu0 %v5769
    %5835 = vmatprep.subr.mxu0 %v5772
    %5836 = vmatpush1.msra.mxu0 %v5771
    %5837 = vmatprep.subr.mxu0 %v5774
    %5838 = vmatpush1.msra.mxu0 %v5773
    %5839 = vmatprep.subr.mxu0 %v5776
    %5840 = vmatpush1.msra.mxu0 %v5775
    %5841 = vmatprep.subr.mxu0 %v5778
    %5842 = vmatpush1.msra.mxu0 %v5777
    %5843 = vmatprep.subr.mxu0 %v5780
    %5844 = vmatpush1.msra.mxu0 %v5779
    %5845 = vmatprep.subr.mxu0 %v5782
    %5846 = vmatpush1.msra.mxu0 %v5781
    %5847 = vmatprep.subr.mxu0 %v5784
    %5848 = vmatpush1.msra.mxu0 %v5783
    %5849 = vmatprep.subr.mxu0 %v5786
    %5850 = vmatpush1.msra.mxu0 %v5785
    %5851 = vmatprep.subr.mxu0 %v5788
    %5852 = vmatpush1.msra.mxu0 %v5787
    %5853 = vmatprep.subr.mxu0 %v5790
    %5854 = vmatpush1.msra.mxu0 %v5789
    %5855 = vmatprep.subr.mxu0 %v5792
    %5856 = vmatpush1.msra.mxu0 %v5791
    %5857 = vmatprep.subr.mxu0 %v5794
    %5858 = vmatpush1.msra.mxu0 %v5793
    %5859 = vmatprep.subr.mxu0 %v5796
    %5860 = vmatpush1.msra.mxu0 %v5795
    %5861 = vmatprep.subr.mxu0 %v5798
    %5862 = vmatpush1.msra.mxu0 %v5797
    %5863 = vmatprep.subr.mxu0 %v5800
    %5864 = vmatpush1.msra.mxu0 %v5799
    %5865 = vmatprep.subr.mxu0 %v5802
    %5866 = vmatpush1.msra.mxu0 %v5801
    %5867 = vmatprep.subr.mxu0 %v5804
    %5868 = vmatpush1.msra.mxu0 %v5803
    %5869 = vmatprep.subr.mxu0 %v5806
    %5870 = vmatpush1.msra.mxu0 %v5805
    %5871 = vmatprep.subr.mxu0 %v5808
    %5872 = vmatpush1.msra.mxu0 %v5807
    %5873 = vmatprep.subr.mxu0 %v5810
    %5874 = vmatpush1.msra.mxu0 %v5809
    %5875 = vmatprep.subr.mxu0 %v5812
    %5876 = vmatpush1.msra.mxu0 %v5811
    %5877 = vmatprep.mubr.f32.mxu0 %v5612
    %5878 = vmatmul.mubr.f32.gmra.mrb[0].mxu0 %v5611
    %v5879 = vpop.f32.mrb[0].mxu0
    %v5880 = vadd.f32 0.0, %v5879
    %v5881 = vpop.f32.mrb[0].mxu0
    %v5882 = vadd.f32 0.0, %v5881
    %5883 = vdwg.mxu0
    %v5884 = vmax.f32 %v5880, %v5882
    %v5885 = vmax.f32 %v5884, 0.0
    %s5886 = smul.u32 4, 32
    %s5887 = smul.u32 %s5886, 2
    %s5888 = sshll.u32 %s5887, 4
    %5889 = dma.done %s472, %s5888
    %s5890 = sshll.u32 %s5887, 4
    %5891 = dma.done %s777, %s5890
    %v5892 = vsel %vm5431, 1, 0
    %v5893 = vcvt.s32.f32 %v5892
    %vm5894 = vcmask 31744
    %v5896 = vsel %vm5894, %v5893, 0
    %vm5898 = vcmask 1043456
    %v5900 = vsel %vm5898, %v5885, 0
    %5902 = vmatprep.subr.mxu0 0.0
    %5903 = vmatpush1.msra.mxu0 %v5900
    %5904 = vmatprep.subr.mxu0 0.0
    %5905 = vmatpush1.msra.mxu0 0.0
    %5906 = vmatprep.subr.mxu0 0.0
    %5907 = vmatpush1.msra.mxu0 0.0
    %5908 = vmatprep.subr.mxu0 0.0
    %5909 = vmatpush1.msra.mxu0 0.0
    %5910 = vmatprep.subr.mxu0 0.0
    %5911 = vmatpush1.msra.mxu0 0.0
    %5912 = vmatprep.subr.mxu0 0.0
    %5913 = vmatpush1.msra.mxu0 0.0
    %5914 = vmatprep.subr.mxu0 0.0
    %5915 = vmatpush1.msra.mxu0 0.0
    %5916 = vmatprep.subr.mxu0 0.0
    %5917 = vmatpush1.msra.mxu0 0.0
    %5918 = vmatprep.subr.mxu0 0.0
    %5919 = vmatpush1.msra.mxu0 0.0
    %5920 = vmatprep.subr.mxu0 0.0
    %5921 = vmatpush1.msra.mxu0 0.0
    %5922 = vmatprep.subr.mxu0 0.0
    %5923 = vmatpush1.msra.mxu0 0.0
    %5924 = vmatprep.subr.mxu0 0.0
    %5925 = vmatpush1.msra.mxu0 0.0
    %5926 = vmatprep.subr.mxu0 0.0
    %5927 = vmatpush1.msra.mxu0 0.0
    %5928 = vmatprep.subr.mxu0 0.0
    %5929 = vmatpush1.msra.mxu0 0.0
    %5930 = vmatprep.subr.mxu0 0.0
    %5931 = vmatpush1.msra.mxu0 0.0
    %5932 = vmatprep.subr.mxu0 0.0
    %5933 = vmatpush1.msra.mxu0 0.0
    %5934 = vmatprep.subr.mxu0 0.0
    %5935 = vmatpush1.msra.mxu0 0.0
    %5936 = vmatprep.subr.mxu0 0.0
    %5937 = vmatpush1.msra.mxu0 0.0
    %5938 = vmatprep.subr.mxu0 0.0
    %5939 = vmatpush1.msra.mxu0 0.0
    %5940 = vmatprep.subr.mxu0 0.0
    %5941 = vmatpush1.msra.mxu0 0.0
    %5942 = vmatprep.subr.mxu0 0.0
    %5943 = vmatpush1.msra.mxu0 0.0
    %5944 = vmatprep.subr.mxu0 0.0
    %5945 = vmatpush1.msra.mxu0 0.0
    %5946 = vmatprep.subr.mxu0 0.0
    %5947 = vmatpush1.msra.mxu0 0.0
    %5948 = vmatprep.subr.mxu0 0.0
    %5949 = vmatpush1.msra.mxu0 0.0
    %5950 = vmatprep.subr.mxu0 0.0
    %5951 = vmatpush1.msra.mxu0 0.0
    %5952 = vmatprep.subr.mxu0 0.0
    %5953 = vmatpush1.msra.mxu0 0.0
    %5954 = vmatprep.subr.mxu0 0.0
    %5955 = vmatpush1.msra.mxu0 0.0
    %5956 = vmatprep.subr.mxu0 0.0
    %5957 = vmatpush1.msra.mxu0 0.0
    %5958 = vmatprep.subr.mxu0 0.0
    %5959 = vmatpush1.msra.mxu0 0.0
    %5960 = vmatprep.subr.mxu0 0.0
    %5961 = vmatpush1.msra.mxu0 0.0
    %5962 = vmatprep.subr.mxu0 0.0
    %5963 = vmatpush1.msra.mxu0 0.0
    %5964 = vmatprep.subr.mxu0 0.0
    %5965 = vmatpush1.msra.mxu0 0.0
    %5966 = vmatprep.mubr.f32.mxu0 0.0
    %5967 = vmatmul.mubr.f32.gmra.mrb[0].mxu0 %v5896
    %v5968 = vpop.f32.mrb[0].mxu0
    %v5969 = vadd.f32 0.0, %v5968
    %v5970 = vpop.f32.mrb[0].mxu0
    %5971 = vdwg.mxu0
    %v5972 = vsel %vm5527, 1, 0
    %v5973 = vcvt.s32.f32 %v5972
    %v5975 = vsel %vm5894, %v5973, 0
    %5977 = vmatprep.subr.mxu0 0.0
    %5978 = vmatpush1.msra.mxu0 %v5900
    %5979 = vmatprep.subr.mxu0 0.0
    %5980 = vmatpush1.msra.mxu0 0.0
    %5981 = vmatprep.subr.mxu0 0.0
    %5982 = vmatpush1.msra.mxu0 0.0
    %5983 = vmatprep.subr.mxu0 0.0
    %5984 = vmatpush1.msra.mxu0 0.0
    %5985 = vmatprep.subr.mxu0 0.0
    %5986 = vmatpush1.msra.mxu0 0.0
    %5987 = vmatprep.subr.mxu0 0.0
    %5988 = vmatpush1.msra.mxu0 0.0
    %5989 = vmatprep.subr.mxu0 0.0
    %5990 = vmatpush1.msra.mxu0 0.0
    %5991 = vmatprep.subr.mxu0 0.0
    %5992 = vmatpush1.msra.mxu0 0.0
    %5993 = vmatprep.subr.mxu0 0.0
    %5994 = vmatpush1.msra.mxu0 0.0
    %5995 = vmatprep.subr.mxu0 0.0
    %5996 = vmatpush1.msra.mxu0 0.0
    %5997 = vmatprep.subr.mxu0 0.0
    %5998 = vmatpush1.msra.mxu0 0.0
    %5999 = vmatprep.subr.mxu0 0.0
    %6000 = vmatpush1.msra.mxu0 0.0
    %6001 = vmatprep.subr.mxu0 0.0
    %6002 = vmatpush1.msra.mxu0 0.0
    %6003 = vmatprep.subr.mxu0 0.0
    %6004 = vmatpush1.msra.mxu0 0.0
    %6005 = vmatprep.subr.mxu0 0.0
    %6006 = vmatpush1.msra.mxu0 0.0
    %6007 = vmatprep.subr.mxu0 0.0
    %6008 = vmatpush1.msra.mxu0 0.0
    %6009 = vmatprep.subr.mxu0 0.0
    %6010 = vmatpush1.msra.mxu0 0.0
    %6011 = vmatprep.subr.mxu0 0.0
    %6012 = vmatpush1.msra.mxu0 0.0
    %6013 = vmatprep.subr.mxu0 0.0
    %6014 = vmatpush1.msra.mxu0 0.0
    %6015 = vmatprep.subr.mxu0 0.0
    %6016 = vmatpush1.msra.mxu0 0.0
    %6017 = vmatprep.subr.mxu0 0.0
    %6018 = vmatpush1.msra.mxu0 0.0
    %6019 = vmatprep.subr.mxu0 0.0
    %6020 = vmatpush1.msra.mxu0 0.0
    %6021 = vmatprep.subr.mxu0 0.0
    %6022 = vmatpush1.msra.mxu0 0.0
    %6023 = vmatprep.subr.mxu0 0.0
    %6024 = vmatpush1.msra.mxu0 0.0
    %6025 = vmatprep.subr.mxu0 0.0
    %6026 = vmatpush1.msra.mxu0 0.0
    %6027 = vmatprep.subr.mxu0 0.0
    %6028 = vmatpush1.msra.mxu0 0.0
    %6029 = vmatprep.subr.mxu0 0.0
    %6030 = vmatpush1.msra.mxu0 0.0
    %6031 = vmatprep.subr.mxu0 0.0
    %6032 = vmatpush1.msra.mxu0 0.0
    %6033 = vmatprep.subr.mxu0 0.0
    %6034 = vmatpush1.msra.mxu0 0.0
    %6035 = vmatprep.subr.mxu0 0.0
    %6036 = vmatpush1.msra.mxu0 0.0
    %6037 = vmatprep.subr.mxu0 0.0
    %6038 = vmatpush1.msra.mxu0 0.0
    %6039 = vmatprep.subr.mxu0 0.0
    %6040 = vmatpush1.msra.mxu0 0.0
    %6041 = vmatprep.mubr.f32.mxu0 0.0
    %6042 = vmatmul.mubr.f32.gmra.mrb[0].mxu0 %v5975
    %v6043 = vpop.f32.mrb[0].mxu0
    %v6044 = vadd.f32 0.0, %v6043
    %v6045 = vpop.f32.mrb[0].mxu0
    %6046 = vdwg.mxu0
    %v6047 = vpack.c.bf16 %v5969, %v5969
    %v6048 = vpack.c.bf16 %v6044, %v6044
    %v6049 = vld [vmem:[#allocation6] sm:$0xff]
    %v6050 = vld [vmem:[#allocation6 + $0x8] sm:$0xff]
    %v6051 = vld [vmem:[#allocation6 + $0x10] sm:$0xff]
    %v6052 = vld [vmem:[#allocation6 + $0x18] sm:$0xff]
    %v6053 = vld [vmem:[#allocation6 + $0x20] sm:$0xff]
    %v6054 = vld [vmem:[#allocation6 + $0x28] sm:$0xff]
    %v6055 = vld [vmem:[#allocation6 + $0x30] sm:$0xff]
    %v6056 = vld [vmem:[#allocation6 + $0x38] sm:$0xff]
    %v6057 = vld [vmem:[#allocation6 + $0x40] sm:$0xff]
    %v6058 = vld [vmem:[#allocation6 + $0x48] sm:$0xff]
    %v6059 = vld [vmem:[#allocation6 + $0x50] sm:$0xff]
    %v6060 = vld [vmem:[#allocation6 + $0x58] sm:$0xff]
    %v6061 = vld [vmem:[#allocation6 + $0x60] sm:$0xff]
    %v6062 = vld [vmem:[#allocation6 + $0x68] sm:$0xff]
    %v6063 = vld [vmem:[#allocation6 + $0x70] sm:$0xff]
    %v6064 = vld [vmem:[#allocation6 + $0x78] sm:$0xff]
    %v6065 = vld [vmem:[#allocation6 + $0x80] sm:$0xff]
    %v6066 = vld [vmem:[#allocation6 + $0x88] sm:$0xff]
    %v6067 = vld [vmem:[#allocation6 + $0x90] sm:$0xff]
    %v6068 = vld [vmem:[#allocation6 + $0x98] sm:$0xff]
    %v6069 = vld [vmem:[#allocation6 + $0xa0] sm:$0xff]
    %v6070 = vld [vmem:[#allocation6 + $0xa8] sm:$0xff]
    %v6071 = vld [vmem:[#allocation6 + $0xb0] sm:$0xff]
    %v6072 = vld [vmem:[#allocation6 + $0xb8] sm:$0xff]
    %v6073 = vld [vmem:[#allocation6 + $0xc0] sm:$0xff]
    %v6074 = vld [vmem:[#allocation6 + $0xc8] sm:$0xff]
    %v6075 = vld [vmem:[#allocation6 + $0xd0] sm:$0xff]
    %v6076 = vld [vmem:[#allocation6 + $0xd8] sm:$0xff]
    %v6077 = vld [vmem:[#allocation6 + $0xe0] sm:$0xff]
    %v6078 = vld [vmem:[#allocation6 + $0xe8] sm:$0xff]
    %v6079 = vld [vmem:[#allocation6 + $0xf0] sm:$0xff]
    %v6080 = vld [vmem:[#allocation6 + $0xf8] sm:$0xff]
    %v6081 = vld [vmem:[%s8] sm:$0x3]
    %v6083 = vlaneseq
    %v6084 = vshrl.u32 %v6083, 7
    %v6085 = vsub.s32 0, %v6084
    %v6086 = vrot.slane %v6081, %v6085
    %v6087 = vlaneseq
    %v6088 = vshrl.u32 %v6087, 7
    %v6089 = vsub.s32 1, %v6088
    %v6090 = vrot.slane %v6081, %v6089
    %6093 = vmatprep.subr.bf16.mxu0 %v6050
    %6094 = vmatpush1.bf16.msra.mxu0 %v6049
    %6095 = vmatprep.subr.bf16.mxu0 %v6052
    %6096 = vmatpush1.bf16.msra.mxu0 %v6051
    %6097 = vmatprep.subr.bf16.mxu0 %v6054
    %6098 = vmatpush1.bf16.msra.mxu0 %v6053
    %6099 = vmatprep.subr.bf16.mxu0 %v6056
    %6100 = vmatpush1.bf16.msra.mxu0 %v6055
    %6101 = vmatprep.subr.bf16.mxu0 %v6058
    %6102 = vmatpush1.bf16.msra.mxu0 %v6057
    %6103 = vmatprep.subr.bf16.mxu0 %v6060
    %6104 = vmatpush1.bf16.msra.mxu0 %v6059
    %6105 = vmatprep.subr.bf16.mxu0 %v6062
    %6106 = vmatpush1.bf16.msra.mxu0 %v6061
    %6107 = vmatprep.subr.bf16.mxu0 %v6064
    %6108 = vmatpush1.bf16.msra.mxu0 %v6063
    %6109 = vmatprep.subr.bf16.mxu0 %v6066
    %6110 = vmatpush1.bf16.msra.mxu0 %v6065
    %6111 = vmatprep.subr.bf16.mxu0 %v6068
    %6112 = vmatpush1.bf16.msra.mxu0 %v6067
    %6113 = vmatprep.subr.bf16.mxu0 %v6070
    %6114 = vmatpush1.bf16.msra.mxu0 %v6069
    %6115 = vmatprep.subr.bf16.mxu0 %v6072
    %6116 = vmatpush1.bf16.msra.mxu0 %v6071
    %6117 = vmatprep.subr.bf16.mxu0 %v6074
    %6118 = vmatpush1.bf16.msra.mxu0 %v6073
    %6119 = vmatprep.subr.bf16.mxu0 %v6076
    %6120 = vmatpush1.bf16.msra.mxu0 %v6075
    %6121 = vmatprep.subr.bf16.mxu0 %v6078
    %6122 = vmatpush1.bf16.msra.mxu0 %v6077
    %6123 = vmatprep.subr.bf16.mxu0 %v6080
    %6124 = vmatpush1.bf16.msra.mxu0 %v6079
    %6125 = vmatprep.mubr.bf16.mxu0 %v6048
    %6126 = vmatmul.mubr.bf16.gmra.mrb[0].mxu0 %v6047
    %v6127 = vpop.f32.mrb[0].mxu0
    %v6128 = vadd.f32 %v6086, %v6127
    %v6129 = vpop.f32.mrb[0].mxu0
    %v6130 = vadd.f32 %v6090, %v6129
    %v6131 = vpop.f32.mrb[0].mxu0
    %v6132 = vpop.f32.mrb[0].mxu0
    %6133 = vdwg.mxu0
    %v6134 = vmax.f32 %v6128, 0.0
    %v6135 = vmax.f32 %v6130, 0.0
    %v6136 = vpack.c.bf16 %v6134, %v6134
    %v6137 = vpack.c.bf16 %v6135, %v6135
    %v6138 = vld [vmem:[#allocation7] sm:$0xff]
    %v6139 = vld [vmem:[#allocation7 + $0x8] sm:$0xff]
    %v6140 = vld [vmem:[#allocation7 + $0x10] sm:$0xff]
    %v6141 = vld [vmem:[#allocation7 + $0x18] sm:$0xff]
    %v6142 = vld [vmem:[#allocation7 + $0x20] sm:$0xff]
    %v6143 = vld [vmem:[#allocation7 + $0x28] sm:$0xff]
    %v6144 = vld [vmem:[#allocation7 + $0x30] sm:$0xff]
    %v6145 = vld [vmem:[#allocation7 + $0x38] sm:$0xff]
    %v6146 = vld [vmem:[#allocation7 + $0x40] sm:$0xff]
    %v6147 = vld [vmem:[#allocation7 + $0x48] sm:$0xff]
    %v6148 = vld [vmem:[#allocation7 + $0x50] sm:$0xff]
    %v6149 = vld [vmem:[#allocation7 + $0x58] sm:$0xff]
    %v6150 = vld [vmem:[#allocation7 + $0x60] sm:$0xff]
    %v6151 = vld [vmem:[#allocation7 + $0x68] sm:$0xff]
    %v6152 = vld [vmem:[#allocation7 + $0x70] sm:$0xff]
    %v6153 = vld [vmem:[#allocation7 + $0x78] sm:$0xff]
    %v6154 = vld [vmem:[#allocation7 + $0x80] sm:$0xff]
    %v6155 = vld [vmem:[#allocation7 + $0x88] sm:$0xff]
    %v6156 = vld [vmem:[#allocation7 + $0x90] sm:$0xff]
    %v6157 = vld [vmem:[#allocation7 + $0x98] sm:$0xff]
    %v6158 = vld [vmem:[#allocation7 + $0xa0] sm:$0xff]
    %v6159 = vld [vmem:[#allocation7 + $0xa8] sm:$0xff]
    %v6160 = vld [vmem:[#allocation7 + $0xb0] sm:$0xff]
    %v6161 = vld [vmem:[#allocation7 + $0xb8] sm:$0xff]
    %v6162 = vld [vmem:[#allocation7 + $0xc0] sm:$0xff]
    %v6163 = vld [vmem:[#allocation7 + $0xc8] sm:$0xff]
    %v6164 = vld [vmem:[#allocation7 + $0xd0] sm:$0xff]
    %v6165 = vld [vmem:[#allocation7 + $0xd8] sm:$0xff]
    %v6166 = vld [vmem:[#allocation7 + $0xe0] sm:$0xff]
    %v6167 = vld [vmem:[#allocation7 + $0xe8] sm:$0xff]
    %v6168 = vld [vmem:[#allocation7 + $0xf0] sm:$0xff]
    %v6169 = vld [vmem:[#allocation7 + $0xf8] sm:$0xff]
    %v6170 = vld [vmem:[%s10] sm:$0x3]
    %v6172 = vlaneseq
    %v6173 = vshrl.u32 %v6172, 7
    %v6174 = vsub.s32 0, %v6173
    %v6175 = vrot.slane %v6170, %v6174
    %v6176 = vlaneseq
    %v6177 = vshrl.u32 %v6176, 7
    %v6178 = vsub.s32 1, %v6177
    %v6179 = vrot.slane %v6170, %v6178
    %6182 = vmatprep.subr.bf16.mxu0 %v6139
    %6183 = vmatpush1.bf16.msra.mxu0 %v6138
    %6184 = vmatprep.subr.bf16.mxu0 %v6141
    %6185 = vmatpush1.bf16.msra.mxu0 %v6140
    %6186 = vmatprep.subr.bf16.mxu0 %v6143
    %6187 = vmatpush1.bf16.msra.mxu0 %v6142
    %6188 = vmatprep.subr.bf16.mxu0 %v6145
    %6189 = vmatpush1.bf16.msra.mxu0 %v6144
    %6190 = vmatprep.subr.bf16.mxu0 %v6147
    %6191 = vmatpush1.bf16.msra.mxu0 %v6146
    %6192 = vmatprep.subr.bf16.mxu0 %v6149
    %6193 = vmatpush1.bf16.msra.mxu0 %v6148
    %6194 = vmatprep.subr.bf16.mxu0 %v6151
    %6195 = vmatpush1.bf16.msra.mxu0 %v6150
    %6196 = vmatprep.subr.bf16.mxu0 %v6153
    %6197 = vmatpush1.bf16.msra.mxu0 %v6152
    %6198 = vmatprep.subr.bf16.mxu0 %v6155
    %6199 = vmatpush1.bf16.msra.mxu0 %v6154
    %6200 = vmatprep.subr.bf16.mxu0 %v6157
    %6201 = vmatpush1.bf16.msra.mxu0 %v6156
    %6202 = vmatprep.subr.bf16.mxu0 %v6159
    %6203 = vmatpush1.bf16.msra.mxu0 %v6158
    %6204 = vmatprep.subr.bf16.mxu0 %v6161
    %6205 = vmatpush1.bf16.msra.mxu0 %v6160
    %6206 = vmatprep.subr.bf16.mxu0 %v6163
    %6207 = vmatpush1.bf16.msra.mxu0 %v6162
    %6208 = vmatprep.subr.bf16.mxu0 %v6165
    %6209 = vmatpush1.bf16.msra.mxu0 %v6164
    %6210 = vmatprep.subr.bf16.mxu0 %v6167
    %6211 = vmatpush1.bf16.msra.mxu0 %v6166
    %6212 = vmatprep.subr.bf16.mxu0 %v6169
    %6213 = vmatpush1.bf16.msra.mxu0 %v6168
    %6214 = vmatprep.mubr.bf16.mxu0 %v6137
    %6215 = vmatmul.mubr.bf16.gmra.mrb[0].mxu0 %v6136
    %v6216 = vpop.f32.mrb[0].mxu0
    %v6217 = vadd.f32 %v6175, %v6216
    %v6218 = vpop.f32.mrb[0].mxu0
    %v6219 = vadd.f32 %v6179, %v6218
    %v6220 = vpop.f32.mrb[0].mxu0
    %v6221 = vpop.f32.mrb[0].mxu0
    %6222 = vdwg.mxu0
    %v6223 = vmax.f32 %v6217, 0.0
    %v6224 = vmax.f32 %v6219, 0.0
    %v6225 = vld [vmem:[%s11] sm:$0xff]
    %v6226 = vld [vmem:[%s11 + $0x8] sm:$0xff]
    %v6227 = vld [vmem:[%s11 + $0x10] sm:$0xff]
    %v6228 = vld [vmem:[%s11 + $0x18] sm:$0xff]
    %v6229 = vld [vmem:[%s11 + $0x20] sm:$0xff]
    %v6230 = vld [vmem:[%s11 + $0x28] sm:$0xff]
    %v6231 = vld [vmem:[%s11 + $0x30] sm:$0xff]
    %v6232 = vld [vmem:[%s11 + $0x38] sm:$0xff]
    %v6233 = vld [vmem:[%s11 + $0x40] sm:$0xff]
    %v6234 = vld [vmem:[%s11 + $0x48] sm:$0xff]
    %v6235 = vld [vmem:[%s11 + $0x50] sm:$0xff]
    %v6236 = vld [vmem:[%s11 + $0x58] sm:$0xff]
    %v6237 = vld [vmem:[%s11 + $0x60] sm:$0xff]
    %v6238 = vld [vmem:[%s11 + $0x68] sm:$0xff]
    %v6239 = vld [vmem:[%s11 + $0x70] sm:$0xff]
    %v6240 = vld [vmem:[%s11 + $0x78] sm:$0xff]
    %v6241 = vld [vmem:[%s11 + $0x80] sm:$0xff]
    %v6242 = vld [vmem:[%s11 + $0x88] sm:$0xff]
    %v6243 = vld [vmem:[%s11 + $0x90] sm:$0xff]
    %v6244 = vld [vmem:[%s11 + $0x98] sm:$0xff]
    %v6245 = vld [vmem:[%s11 + $0xa0] sm:$0xff]
    %v6246 = vld [vmem:[%s11 + $0xa8] sm:$0xff]
    %v6247 = vld [vmem:[%s11 + $0xb0] sm:$0xff]
    %v6248 = vld [vmem:[%s11 + $0xb8] sm:$0xff]
    %v6249 = vld [vmem:[%s11 + $0xc0] sm:$0xff]
    %v6250 = vld [vmem:[%s11 + $0xc8] sm:$0xff]
    %v6251 = vld [vmem:[%s11 + $0xd0] sm:$0xff]
    %v6252 = vld [vmem:[%s11 + $0xd8] sm:$0xff]
    %v6253 = vld [vmem:[%s11 + $0xe0] sm:$0xff]
    %v6254 = vld [vmem:[%s11 + $0xe8] sm:$0xff]
    %v6255 = vld [vmem:[%s11 + $0xf0] sm:$0xff]
    %v6256 = vld [vmem:[%s11 + $0xf8] sm:$0xff]
    %v6257 = vld [vmem:[%s12] sm:$0x1]
    %v6259 = vlaneseq
    %v6260 = vshrl.u32 %v6259, 7
    %v6261 = vsub.s32 0, %v6260
    %v6262 = vrot.slane %v6257, %v6261
    %6264 = vmatprep.subr.mxu0 0.0
    %6265 = vmatpush1.msra.mxu0 %v6225
    %6266 = vmatprep.subr.mxu0 0.0
    %6267 = vmatpush1.msra.mxu0 %v6226
    %6268 = vmatprep.subr.mxu0 0.0
    %6269 = vmatpush1.msra.mxu0 %v6227
    %6270 = vmatprep.subr.mxu0 0.0
    %6271 = vmatpush1.msra.mxu0 %v6228
    %6272 = vmatprep.subr.mxu0 0.0
    %6273 = vmatpush1.msra.mxu0 %v6229
    %6274 = vmatprep.subr.mxu0 0.0
    %6275 = vmatpush1.msra.mxu0 %v6230
    %6276 = vmatprep.subr.mxu0 0.0
    %6277 = vmatpush1.msra.mxu0 %v6231
    %6278 = vmatprep.subr.mxu0 0.0
    %6279 = vmatpush1.msra.mxu0 %v6232
    %6280 = vmatprep.subr.mxu0 0.0
    %6281 = vmatpush1.msra.mxu0 %v6233
    %6282 = vmatprep.subr.mxu0 0.0
    %6283 = vmatpush1.msra.mxu0 %v6234
    %6284 = vmatprep.subr.mxu0 0.0
    %6285 = vmatpush1.msra.mxu0 %v6235
    %6286 = vmatprep.subr.mxu0 0.0
    %6287 = vmatpush1.msra.mxu0 %v6236
    %6288 = vmatprep.subr.mxu0 0.0
    %6289 = vmatpush1.msra.mxu0 %v6237
    %6290 = vmatprep.subr.mxu0 0.0
    %6291 = vmatpush1.msra.mxu0 %v6238
    %6292 = vmatprep.subr.mxu0 0.0
    %6293 = vmatpush1.msra.mxu0 %v6239
    %6294 = vmatprep.subr.mxu0 0.0
    %6295 = vmatpush1.msra.mxu0 %v6240
    %6296 = vmatprep.subr.mxu0 0.0
    %6297 = vmatpush1.msra.mxu0 %v6241
    %6298 = vmatprep.subr.mxu0 0.0
    %6299 = vmatpush1.msra.mxu0 %v6242
    %6300 = vmatprep.subr.mxu0 0.0
    %6301 = vmatpush1.msra.mxu0 %v6243
    %6302 = vmatprep.subr.mxu0 0.0
    %6303 = vmatpush1.msra.mxu0 %v6244
    %6304 = vmatprep.subr.mxu0 0.0
    %6305 = vmatpush1.msra.mxu0 %v6245
    %6306 = vmatprep.subr.mxu0 0.0
    %6307 = vmatpush1.msra.mxu0 %v6246
    %6308 = vmatprep.subr.mxu0 0.0
    %6309 = vmatpush1.msra.mxu0 %v6247
    %6310 = vmatprep.subr.mxu0 0.0
    %6311 = vmatpush1.msra.mxu0 %v6248
    %6312 = vmatprep.subr.mxu0 0.0
    %6313 = vmatpush1.msra.mxu0 %v6249
    %6314 = vmatprep.subr.mxu0 0.0
    %6315 = vmatpush1.msra.mxu0 %v6250
    %6316 = vmatprep.subr.mxu0 0.0
    %6317 = vmatpush1.msra.mxu0 %v6251
    %6318 = vmatprep.subr.mxu0 0.0
    %6319 = vmatpush1.msra.mxu0 %v6252
    %6320 = vmatprep.subr.mxu0 0.0
    %6321 = vmatpush1.msra.mxu0 %v6253
    %6322 = vmatprep.subr.mxu0 0.0
    %6323 = vmatpush1.msra.mxu0 %v6254
    %6324 = vmatprep.subr.mxu0 0.0
    %6325 = vmatpush1.msra.mxu0 %v6255
    %6326 = vmatprep.subr.mxu0 0.0
    %6327 = vmatpush1.msra.mxu0 %v6256
    %6328 = vmatprep.mubr.f32.mxu0 %v6224
    %6329 = vmatmul.mubr.f32.gmra.mrb[0].mxu0 %v6223
    %v6330 = vpop.f32.mrb[0].mxu0
    %v6331 = vadd.f32 %v6262, %v6330
    %v6332 = vpop.f32.mrb[0].mxu0
    %6333 = vdwg.mxu0
    %vm6334 = vcmask 74752
    %6335 = vst.msk [vmem:[#allocation9] sm:$0x3] %vm6334, %v6331
    // Predicated region
    $region153: #{group_cnn_forward.1} parent=1 // pred_check
      _
    $region154: #{group_cnn_forward.1} parent=1 // pred_check_branch
      %6337 = sbr.rel (0) target = $region156
    $region155: #{group_cnn_forward.1} parent=1 // pred_region
      %s6339 = ssub.s32 32, 32
      %6340 = vsyncadd [#allocation10], %s6339
      %s6342 = sshll.u32 [#allocation9], 4
      %s6343 = int_to_ptr.vmem [resolvable:$true] %s6342
      %6345 = dma.vmem_to_hbm [thread:$0]  %s6343, 32, %s13, [#allocation10]
    $region156: #{group_cnn_forward.1} parent=1 // pred_fallthru
      _
    // Predicated region
    $region157: #{group_cnn_forward.1} parent=1 // pred_check
      _
    $region158: #{group_cnn_forward.1} parent=1 // pred_check_branch
      %6347 = sbr.rel (0) target = $region160
    $region159: #{group_cnn_forward.1} parent=1 // pred_region
      %6348 = dma.done [#allocation10], 32
    $region160: #{group_cnn_forward.1} parent=1 // pred_fallthru
      _
    %6349 = vsyncpa [#allocation10], 1
  %6350 = vsyncmov [#allocation8]
  %s6351 = vpop.sfrf %6350
  %p6352 = scmp.eq.s32.totalorder %s6351, 0
  %p6353 = pneg %p6352
  %6355 = shalt.err (%p6353)
  %s6356 = scalar_lea.sflag [#allocation8], 1
  %6357 = vsyncmov %s6356
  %s6358 = vpop.sfrf %6357
  %p6359 = scmp.eq.s32.totalorder %s6358, 0
  %p6360 = pneg %p6359
  %6362 = shalt.err (%p6360)
  %s6363 = scalar_lea.sflag [#allocation8], 2
  %6364 = vsyncmov %s6363
  %s6365 = vpop.sfrf %6364
  %p6366 = scmp.eq.s32.totalorder %s6365, 0
  %p6367 = pneg %p6366
  %6369 = shalt.err (%p6367)

</llo_original>
